<compile_context>
chip_gen: v6e
topology: v6e:2x2x1
jax: 0.10.0
libtpu: 0.0.40
codegen_flags: <defaults>
</compile_context>

<pallas_src>
import functools
import math

import jax
import jax.numpy as jnp
from jax.experimental import pallas as pl
from jax.experimental.pallas import tpu as pltpu


# ---------------- label-encoder kernel (batch independent, runs once) ----------------

def _label_encoder_kernel(le_ref, adj_ref, gcn3_ref, ll_w_ref, ll_b_ref,
                          gcn5_ref, lin_wa_ref, lin_wb_ref, lin_b_ref, o_ref):
    f32 = jnp.float32
    bf16 = jnp.bfloat16
    D = gcn3_ref.shape[0]

    le = le_ref[...]                                     # (L, D) f32
    adj = adj_ref[...]                                   # (L, L) f32

    # GCN3: support = LE @ W3 ; out = adj @ support ; LeakyReLU(0.2)
    support3 = jnp.dot(le.astype(bf16), gcn3_ref[...], preferred_element_type=f32)
    h = jnp.dot(adj, support3, preferred_element_type=f32)
    le1 = jnp.where(h >= 0, h, 0.2 * h)                  # f32

    # linear_label1 / linear_label2 fused into one (D, 2D) matmul, split in-kernel
    pq = (jnp.dot(le1.astype(bf16), ll_w_ref[...], preferred_element_type=f32)
          + ll_b_ref[...])
    p = pq[:, :D]
    q = pq[:, D:]

    # A = sigmoid(p @ q^T)
    A = jax.nn.sigmoid(
        jax.lax.dot_general(p, q, (((1,), (1,)), ((), ())),
                            preferred_element_type=f32))          # (L, L)

    # normalize_adj: torch's row_sum = adj.sum(dim=1) on (B, L, L) => per-matrix
    # column sums d[k] = rsqrt(sum_i A[i, k]); out[x, y] = A[y, x] * d[x] * d[y].
    rs = jnp.sum(A, axis=0, keepdims=True)               # (1, L)
    d = jnp.where(rs > 0, jax.lax.rsqrt(rs), 0.0)        # inf -> 0 guard
    A_n = (A.T * d) * d.T

    # GCN5 with learned adjacency + LeakyReLU(0.2)
    support5 = jnp.dot(le1.astype(bf16), gcn5_ref[...], preferred_element_type=f32)
    h2 = jnp.dot(A_n, support5, preferred_element_type=f32)
    dle = jnp.where(h2 >= 0, h2, 0.2 * h2)

    # concat([le1, dle], -1) @ lin_w + lin_b  (lin_w split into two D x D halves)
    le2 = (jnp.dot(le1.astype(bf16), lin_wa_ref[...], preferred_element_type=f32)
           + jnp.dot(dle.astype(bf16), lin_wb_ref[...], preferred_element_type=f32)
           + lin_b_ref[...])

    # F.normalize(p=1, dim=-2): normalize over the label axis (f32)
    denom = jnp.maximum(jnp.sum(jnp.abs(le2), axis=0, keepdims=True), 1e-12)
    o_ref[...] = (le2 / denom).astype(o_ref.dtype)


def label_encoder_pallas(label_embed, label_adj, gcn3_w, ll_w, ll_b,
                         gcn5_w, lin_wa, lin_wb, lin_b):
    L, D = label_embed.shape
    bf16 = jnp.bfloat16
    # bf16 weights: halves the (DMA-bound) HBM->VMEM traffic and VMEM footprint.
    args = (label_embed.astype(jnp.float32), label_adj.astype(jnp.float32),
            gcn3_w.astype(bf16), ll_w.astype(bf16), ll_b.astype(jnp.float32),
            gcn5_w.astype(bf16), lin_wa.astype(bf16), lin_wb.astype(bf16),
            lin_b.astype(jnp.float32))
    const2d = lambda i: (0, 0)
    return pl.pallas_call(
        _label_encoder_kernel,
        out_shape=jax.ShapeDtypeStruct((L, D), jnp.bfloat16),
        grid=(1,),
        in_specs=[pl.BlockSpec(a.shape, const2d) for a in args],
        out_specs=pl.BlockSpec((L, D), const2d),
        compiler_params=pltpu.CompilerParams(
            dimension_semantics=("arbitrary",),
            # ~6.75 MiB of bf16 weights (x2 if double-buffered) — comfortably
            # under every generation's physical VMEM.
            vmem_limit_bytes=32 * 1024 * 1024),
    )(*args)


# ---------------- fused doc-side kernel (TB batch elements per grid step) ----------------

def _doc_branch_kernel(doc_ref, le_ref, wt_ref, brep_ref, w1_ref, b1_ref,
                       o_ref, pad_ref, taps_ref, *, ks):
    f32 = jnp.float32
    bf16 = jnp.bfloat16
    TB, S, D = doc_ref.shape
    L = le_ref.shape[0]
    LC = wt_ref.shape[1]
    pad = ks // 2

    doc = doc_ref[...].astype(f32)                                  # (TB, S, D)
    # F.normalize(p=1, dim=-2): over the sequence axis (f32 math)
    denom = jnp.maximum(jnp.sum(jnp.abs(doc), axis=1, keepdims=True), 1e-12)
    doc_n = doc / denom                                             # (TB, S, D) f32
    doc_nb = doc_n.astype(bf16)

    # word-label attention: ONE (TB*S, D) @ (D, L) bf16 MXU matmul, f32 acc
    wla = jax.lax.dot_general(doc_nb.reshape(TB * S, D), le_ref[...],
                              (((1,), (1,)), ((), ())),
                              preferred_element_type=f32).reshape(TB, S, L)

    # sequence-axis zero padding via a VMEM scratch (no O(S^2) shift matmul):
    # pad rows stay zero, middle rows hold wla.
    pad_ref[:, 0:pad, :] = jnp.zeros((TB, pad, L), f32)
    pad_ref[:, pad + S:, :] = jnp.zeros((TB, pad, L), f32)
    pad_ref[:, pad:pad + S, :] = wla

    # lane-concatenate the ks shifted (TB, S, L) slices into (TB, S, ks*L)
    for i in range(ks):
        taps_ref[:, :, i * L:(i + 1) * L] = pad_ref[:, i:i + S, :]

    # Conv2d(1 -> C, ks x ks, padding=pad): all ks Toeplitz taps fused into ONE
    # matmul — K = ks*L, N = L*C, all output channels on lanes: acc[s, l*C + c].
    acc = jnp.dot(taps_ref[...].reshape(TB * S, ks * L).astype(bf16), wt_ref[...],
                  preferred_element_type=f32)                       # (TB*S, L*C)
    acc = acc.reshape(TB, S, LC) + brep_ref[...]                    # conv bias

    # max over channels, max over label positions (keepdim), tanh  (f32)
    att = jnp.tanh(jnp.max(acc, axis=-1, keepdims=True))            # (TB, S, 1)

    # H_enc = sum_s att * doc_n ; label_output = sigmoid(H_enc @ W1 + b1)
    # TODO(synk): for very large S this multiply-reduce could move to the MXU
    # as a batched (1,S)@(S,D) dot; kept on the VPU for lowering robustness.
    h = jnp.sum(att * doc_n, axis=1)                                # (TB, D) f32
    logits = jnp.dot(h, w1_ref[...], preferred_element_type=f32) + b1_ref[...]
    o_ref[0] = jax.nn.sigmoid(logits).astype(o_ref.dtype)


def _pick_tb(batch, seq, hidden, num_labels, ks=9, max_tb=8,
             vmem_budget=16 * 1024 * 1024):
    # Rough VMEM bytes per batch row: double-buffered bf16 doc tile + f32
    # padding / Toeplitz scratches.
    per_row = (seq * hidden * 2 * 2
               + seq * ks * num_labels * 4
               + (seq + ks) * num_labels * 4)
    cap = max(1, min(max_tb, vmem_budget // max(1, per_row)))
    for tb in range(min(cap, batch), 0, -1):
        # keep >= 2 grid steps so "parallel" can split the batch across v7x's 2 TCs
        if batch % tb == 0 and batch // tb >= 2:
            return tb
    return 1


def doc_branch_pallas(doc_bf16, le_n, wt2, brep, lin1_w, lin1_b, ks=9):
    B, S, D = doc_bf16.shape
    L = le_n.shape[0]
    C = lin1_b.shape[-1]
    pad = ks // 2
    tb = _pick_tb(B, S, D, L, ks=ks)
    G = B // tb
    # TODO(synk): for very large S add a sequence grid axis (two-pass L1
    # normalization) so the per-step tile stays under v7x's 64 MiB VMEM.
    out = pl.pallas_call(
        functools.partial(_doc_branch_kernel, ks=ks),
        out_shape=jax.ShapeDtypeStruct((G, tb, C), jnp.float32),
        grid=(G,),
        in_specs=[pl.BlockSpec((tb, S, D), lambda b: (b, 0, 0)),
                  pl.BlockSpec((L, D), lambda b: (0, 0)),
                  pl.BlockSpec(wt2.shape, lambda b: (0, 0)),
                  pl.BlockSpec(brep.shape, lambda b: (0, 0)),
                  pl.BlockSpec(lin1_w.shape, lambda b: (0, 0)),
                  pl.BlockSpec(lin1_b.shape, lambda b: (0, 0))],
        out_specs=pl.BlockSpec((1, tb, C), lambda b: (b, 0, 0)),
        scratch_shapes=[pltpu.VMEM((tb, S + 2 * pad, L), jnp.float32),
                        pltpu.VMEM((tb, S, ks * L), jnp.float32)],
        compiler_params=pltpu.CompilerParams(
            dimension_semantics=("parallel",),
            vmem_limit_bytes=48 * 1024 * 1024),
    )(doc_bf16, le_n, wt2, brep, lin1_w, lin1_b)
    return out.reshape(B, C)


# ---------------- host-side weight re-packing (plain JAX, done once per call) ----------------

def build_conv_toeplitz(conv_w, L):
    # conv_w: (C, KS, KS)  (torch Conv2d(1, C, 9, 9) weight with the Cin=1 dim dropped)
    # Returns Wt (KS, L, L*C) with Wt[i, m, l*C + c] = conv_w[c, i, m - l + KS//2],
    # zero where the tap falls outside the kernel (this encodes the label-side
    # zero padding of the (S, L) attention map).
    C, KS, _ = conv_w.shape
    pad = KS // 2
    m = jnp.arange(L)[:, None]
    l = jnp.arange(L)[None, :]
    j = m - l + pad
    valid = (j >= 0) & (j < KS)
    jc = jnp.clip(j, 0, KS - 1)
    g = conv_w[:, :, jc]                                 # (C, KS, L, L)
    g = jnp.where(valid[None, None], g, 0.0)
    g = jnp.transpose(g, (1, 2, 3, 0))                   # (KS, L, L, C)
    return g.reshape(KS, L, L * C)


# ---------------- ClassifyModel.classifier forward (inference, iftrain=0) ----------------

def compute_label_encoding(params, label_adj):
    # The whole label branch is batch-independent; cache this result across
    # forwards when label_embed / label_adj are static.
    D = params["gcn3_w"].shape[0]
    ll_w = jnp.concatenate([params["ll1_w"], params["ll2_w"]], axis=1)        # (D, 2D)
    ll_b = jnp.concatenate([params["ll1_b"], params["ll2_b"]]).reshape(1, 2 * D)
    lin_wa = params["lin_w"][:D]
    lin_wb = params["lin_w"][D:]
    return label_encoder_pallas(params["label_embed"], label_adj,
                                params["gcn3_w"], ll_w, ll_b, params["gcn5_w"],
                                lin_wa, lin_wb, params["lin_b"].reshape(1, D))


def classify_forward(params, doc_embedding, label_adj, labels, le_n=None):
    B, S, D = doc_embedding.shape
    L = params["label_embed"].shape[0]
    C = params["lin1_b"].shape[0]

    # TODO(synk): RoBERTa tokenizer + encoder not implemented; doc_embedding
    # (BERT last_hidden_state) is taken as a kernel input. Dropout(0.5) is
    # identity in eval mode (iftrain=0).

    # --- label branch: batch-independent, computed once, fully fused ---
    if le_n is None:
        le_n = compute_label_encoding(params, label_adj)                      # (L, D) bf16

    # --- doc branch: one fused kernel, TB docs per grid step ---
    wt2 = build_conv_toeplitz(params["conv_w"], L).reshape(9 * L, L * C)
    wt2 = wt2.astype(jnp.bfloat16)                                            # (9L, L*C)
    brep = jnp.tile(params["conv_b"], L).reshape(1, L * C).astype(jnp.float32)
    label_output = doc_branch_pallas(doc_embedding.astype(jnp.bfloat16), le_n,
                                     wt2, brep, params["lin1_w"],
                                     params["lin1_b"].reshape(1, C))          # (B, C)

    # TODO(synk): loss_function is an external ctor arg in the module; mean BCE here.
    eps = 1e-7
    lo = jnp.clip(label_output, eps, 1.0 - eps)
    loss = -jnp.mean(labels * jnp.log(lo) + (1.0 - labels) * jnp.log(1.0 - lo))
    return label_output, loss


if __name__ == "__main__":
    B, S, D, NUM_LABELS = 2, 8, 768, 16
    key = jax.random.PRNGKey(0)
    ks = jax.random.split(key, 16)

    def uni(k, shape, bound):
        return jax.random.uniform(k, shape, jnp.float32, -bound, bound)

    stdv = 1.0 / math.sqrt(D)
    params = {
        "gcn3_w": uni(ks[0], (D, D), stdv),
        "gcn5_w": uni(ks[1], (D, D), stdv),
        "ll1_w": uni(ks[2], (D, D), stdv),
        "ll1_b": uni(ks[3], (D,), stdv),
        "ll2_w": uni(ks[4], (D, D), stdv),
        "ll2_b": uni(ks[5], (D,), stdv),
        "lin_w": uni(ks[6], (2 * D, D), 1.0 / math.sqrt(2 * D)),
        "lin_b": uni(ks[7], (D,), 1.0 / math.sqrt(2 * D)),
        "lin1_w": uni(ks[8], (D, NUM_LABELS), stdv),
        "lin1_b": uni(ks[9], (NUM_LABELS,), stdv),
        # torch Conv2d(1, num_labels, 9, 9) weight with the Cin=1 dim dropped: (C, 9, 9)
        "conv_w": uni(ks[10], (NUM_LABELS, 9, 9), 1.0 / 9.0),
        "conv_b": uni(ks[11], (NUM_LABELS,), 1.0 / 9.0),
        "label_embed": jax.random.normal(ks[12], (NUM_LABELS, D), jnp.float32),
    }

    doc_embedding = jax.random.normal(ks[13], (B, S, D), jnp.float32)
    label_adj = jax.random.uniform(ks[14], (NUM_LABELS, NUM_LABELS), jnp.float32)
    labels = (jax.random.uniform(ks[15], (B, NUM_LABELS)) > 0.5).astype(jnp.float32)

    fwd = jax.jit(classify_forward)
    label_output, loss = fwd(params, doc_embedding, label_adj, labels)
    jax.block_until_ready((label_output, loss))
    assert label_output.shape == (B, NUM_LABELS)
    assert bool(jnp.all(jnp.isfinite(label_output))) and bool(jnp.isfinite(loss))
    print("KERNEL_OK")
</pallas_src>

<mosaic_0001>
module attributes {stable_mosaic.version = 11 : i64} {
  func.func @_label_encoder_kernel(%arg0: i32, %arg1: memref<16x768xf32, #tpu.memory_space<vmem>>, %arg2: memref<16x16xf32, #tpu.memory_space<vmem>>, %arg3: memref<768x768xbf16, #tpu.memory_space<vmem>>, %arg4: memref<768x1536xbf16, #tpu.memory_space<vmem>>, %arg5: memref<1x1536xf32, #tpu.memory_space<vmem>>, %arg6: memref<768x768xbf16, #tpu.memory_space<vmem>>, %arg7: memref<768x768xbf16, #tpu.memory_space<vmem>>, %arg8: memref<768x768xbf16, #tpu.memory_space<vmem>>, %arg9: memref<1x768xf32, #tpu.memory_space<vmem>>, %arg10: memref<16x768xbf16, #tpu.memory_space<vmem>>) attributes {dimension_semantics = [#tpu.dimension_semantics<arbitrary>], iteration_bounds = array<i64: 1>, scalar_prefetch = 0 : i64, scratch_operands = 0 : i64, tpu.core_type = #tpu.core_type<tc>, window_params = [{pipeline_mode = #tpu.pipeline_mode<synchronous>, transform_indices = @transform_0, window_bounds = array<i64: 16, 768>}, {pipeline_mode = #tpu.pipeline_mode<synchronous>, transform_indices = @transform_1, window_bounds = array<i64: 16, 16>}, {pipeline_mode = #tpu.pipeline_mode<synchronous>, transform_indices = @transform_2, window_bounds = array<i64: 768, 768>}, {pipeline_mode = #tpu.pipeline_mode<synchronous>, transform_indices = @transform_3, window_bounds = array<i64: 768, 1536>}, {pipeline_mode = #tpu.pipeline_mode<synchronous>, transform_indices = @transform_4, window_bounds = array<i64: 1, 1536>}, {pipeline_mode = #tpu.pipeline_mode<synchronous>, transform_indices = @transform_5, window_bounds = array<i64: 768, 768>}, {pipeline_mode = #tpu.pipeline_mode<synchronous>, transform_indices = @transform_6, window_bounds = array<i64: 768, 768>}, {pipeline_mode = #tpu.pipeline_mode<synchronous>, transform_indices = @transform_7, window_bounds = array<i64: 768, 768>}, {pipeline_mode = #tpu.pipeline_mode<synchronous>, transform_indices = @transform_8, window_bounds = array<i64: 1, 768>}, {pipeline_mode = #tpu.pipeline_mode<synchronous>, transform_indices = @transform_9, window_bounds = array<i64: 16, 768>}]} {
    %c0 = arith.constant 0 : index
    %c0_0 = arith.constant 0 : index
    %0 = vector.load %arg1[%c0, %c0_0] : memref<16x768xf32, #tpu.memory_space<vmem>>, vector<16x768xf32>
    %c0_1 = arith.constant 0 : index
    %c0_2 = arith.constant 0 : index
    %1 = vector.load %arg2[%c0_1, %c0_2] : memref<16x16xf32, #tpu.memory_space<vmem>>, vector<16x16xf32>
    %2 = arith.truncf %0 : vector<16x768xf32> to vector<16x768xbf16>
    %c0_3 = arith.constant 0 : index
    %c0_4 = arith.constant 0 : index
    %3 = vector.load %arg3[%c0_3, %c0_4] : memref<768x768xbf16, #tpu.memory_space<vmem>>, vector<768x768xbf16>
    %cst = arith.constant dense<0.000000e+00> : vector<16x768xf32>
    %4 = tpu.matmul %2, %3, %cst {dimension_numbers = #tpu.dot_dimension_numbers<[1], [0], [0], [1], [0, 0, 1, 1], [], []>} : vector<16x768xbf16>, vector<768x768xbf16>, vector<16x768xf32> -> vector<16x768xf32>
    %cst_5 = arith.constant dense<0.000000e+00> : vector<16x768xf32>
    %5 = tpu.matmul %1, %4, %cst_5 {dimension_numbers = #tpu.dot_dimension_numbers<[1], [0], [0], [1], [0, 0, 1, 1], [], []>} : vector<16x16xf32>, vector<16x768xf32>, vector<16x768xf32> -> vector<16x768xf32>
    %cst_6 = arith.constant 0.000000e+00 : f32
    %6 = vector.broadcast %cst_6 : f32 to vector<16x768xf32>
    %7 = arith.cmpf oge, %5, %6 : vector<16x768xf32>
    %cst_7 = arith.constant 2.000000e-01 : f32
    %8 = vector.broadcast %cst_7 : f32 to vector<16x768xf32>
    %9 = arith.mulf %8, %5 : vector<16x768xf32>
    %10 = arith.select %7, %5, %9 : vector<16x768xi1>, vector<16x768xf32>
    %11 = arith.truncf %10 : vector<16x768xf32> to vector<16x768xbf16>
    %c0_8 = arith.constant 0 : index
    %c0_9 = arith.constant 0 : index
    %12 = vector.load %arg4[%c0_8, %c0_9] : memref<768x1536xbf16, #tpu.memory_space<vmem>>, vector<768x1536xbf16>
    %cst_10 = arith.constant dense<0.000000e+00> : vector<16x1536xf32>
    %13 = tpu.matmul %11, %12, %cst_10 {dimension_numbers = #tpu.dot_dimension_numbers<[1], [0], [0], [1], [0, 0, 1, 1], [], []>} : vector<16x768xbf16>, vector<768x1536xbf16>, vector<16x1536xf32> -> vector<16x1536xf32>
    %c0_11 = arith.constant 0 : index
    %c0_12 = arith.constant 0 : index
    %14 = vector.load %arg5[%c0_11, %c0_12] : memref<1x1536xf32, #tpu.memory_space<vmem>>, vector<1x1536xf32>
    %15 = vector.broadcast %14 : vector<1x1536xf32> to vector<16x1536xf32>
    %16 = arith.addf %13, %15 : vector<16x1536xf32>
    %17 = vector.extract_strided_slice %16 {offsets = [0, 0], sizes = [16, 768], strides = [1, 1]} : vector<16x1536xf32> to vector<16x768xf32>
    %18 = vector.extract_strided_slice %16 {offsets = [0, 768], sizes = [16, 768], strides = [1, 1]} : vector<16x1536xf32> to vector<16x768xf32>
    %cst_13 = arith.constant dense<0.000000e+00> : vector<16x16xf32>
    %19 = tpu.matmul %17, %18, %cst_13 {dimension_numbers = #tpu.dot_dimension_numbers<[1], [1], [0], [0], [0, 0, 1, 0], [], []>} : vector<16x768xf32>, vector<16x768xf32>, vector<16x16xf32> -> vector<16x16xf32>
    %20 = arith.negf %19 : vector<16x16xf32>
    %21 = math.exp %20 : vector<16x16xf32>
    %cst_14 = arith.constant 1.000000e+00 : f32
    %22 = vector.broadcast %cst_14 : f32 to vector<16x16xf32>
    %23 = arith.addf %22, %21 : vector<16x16xf32>
    %24 = arith.divf %22, %23 : vector<16x16xf32>
    %cst_15 = arith.constant dense<0.000000e+00> : vector<16xf32>
    %25 = vector.multi_reduction <add>, %24, %cst_15 [0] : vector<16x16xf32> to vector<16xf32>
    %26 = vector.shape_cast %25 : vector<16xf32> to vector<1x16xf32>
    %cst_16 = arith.constant 0.000000e+00 : f32
    %27 = vector.broadcast %cst_16 : f32 to vector<1x16xf32>
    %28 = arith.cmpf ogt, %26, %27 : vector<1x16xf32>
    %29 = math.rsqrt %26 : vector<1x16xf32>
    %cst_17 = arith.constant 0.000000e+00 : f32
    %30 = vector.broadcast %cst_17 : f32 to vector<1x16xf32>
    %31 = arith.select %28, %29, %30 : vector<1x16xi1>, vector<1x16xf32>
    %32 = tpu.transpose %24, [1, 0] : vector<16x16xf32> -> vector<16x16xf32>
    %33 = vector.broadcast %31 : vector<1x16xf32> to vector<16x16xf32>
    %34 = arith.mulf %32, %33 : vector<16x16xf32>
    %35 = tpu.transpose %31, [1, 0] : vector<1x16xf32> -> vector<16x1xf32>
    %36 = vector.broadcast %35 : vector<16x1xf32> to vector<16x16xf32>
    %37 = arith.mulf %34, %36 : vector<16x16xf32>
    %38 = arith.truncf %10 : vector<16x768xf32> to vector<16x768xbf16>
    %c0_18 = arith.constant 0 : index
    %c0_19 = arith.constant 0 : index
    %39 = vector.load %arg6[%c0_18, %c0_19] : memref<768x768xbf16, #tpu.memory_space<vmem>>, vector<768x768xbf16>
    %cst_20 = arith.constant dense<0.000000e+00> : vector<16x768xf32>
    %40 = tpu.matmul %38, %39, %cst_20 {dimension_numbers = #tpu.dot_dimension_numbers<[1], [0], [0], [1], [0, 0, 1, 1], [], []>} : vector<16x768xbf16>, vector<768x768xbf16>, vector<16x768xf32> -> vector<16x768xf32>
    %cst_21 = arith.constant dense<0.000000e+00> : vector<16x768xf32>
    %41 = tpu.matmul %37, %40, %cst_21 {dimension_numbers = #tpu.dot_dimension_numbers<[1], [0], [0], [1], [0, 0, 1, 1], [], []>} : vector<16x16xf32>, vector<16x768xf32>, vector<16x768xf32> -> vector<16x768xf32>
    %cst_22 = arith.constant 0.000000e+00 : f32
    %42 = vector.broadcast %cst_22 : f32 to vector<16x768xf32>
    %43 = arith.cmpf oge, %41, %42 : vector<16x768xf32>
    %cst_23 = arith.constant 2.000000e-01 : f32
    %44 = vector.broadcast %cst_23 : f32 to vector<16x768xf32>
    %45 = arith.mulf %44, %41 : vector<16x768xf32>
    %46 = arith.select %43, %41, %45 : vector<16x768xi1>, vector<16x768xf32>
    %47 = arith.truncf %10 : vector<16x768xf32> to vector<16x768xbf16>
    %c0_24 = arith.constant 0 : index
    %c0_25 = arith.constant 0 : index
    %48 = vector.load %arg7[%c0_24, %c0_25] : memref<768x768xbf16, #tpu.memory_space<vmem>>, vector<768x768xbf16>
    %cst_26 = arith.constant dense<0.000000e+00> : vector<16x768xf32>
    %49 = tpu.matmul %47, %48, %cst_26 {dimension_numbers = #tpu.dot_dimension_numbers<[1], [0], [0], [1], [0, 0, 1, 1], [], []>} : vector<16x768xbf16>, vector<768x768xbf16>, vector<16x768xf32> -> vector<16x768xf32>
    %50 = arith.truncf %46 : vector<16x768xf32> to vector<16x768xbf16>
    %c0_27 = arith.constant 0 : index
    %c0_28 = arith.constant 0 : index
    %51 = vector.load %arg8[%c0_27, %c0_28] : memref<768x768xbf16, #tpu.memory_space<vmem>>, vector<768x768xbf16>
    %cst_29 = arith.constant dense<0.000000e+00> : vector<16x768xf32>
    %52 = tpu.matmul %50, %51, %cst_29 {dimension_numbers = #tpu.dot_dimension_numbers<[1], [0], [0], [1], [0, 0, 1, 1], [], []>} : vector<16x768xbf16>, vector<768x768xbf16>, vector<16x768xf32> -> vector<16x768xf32>
    %53 = arith.addf %49, %52 : vector<16x768xf32>
    %c0_30 = arith.constant 0 : index
    %c0_31 = arith.constant 0 : index
    %54 = vector.load %arg9[%c0_30, %c0_31] : memref<1x768xf32, #tpu.memory_space<vmem>>, vector<1x768xf32>
    %55 = vector.broadcast %54 : vector<1x768xf32> to vector<16x768xf32>
    %56 = arith.addf %53, %55 : vector<16x768xf32>
    %57 = math.absf %56 : vector<16x768xf32>
    %cst_32 = arith.constant dense<0.000000e+00> : vector<768xf32>
    %58 = vector.multi_reduction <add>, %57, %cst_32 [0] : vector<16x768xf32> to vector<768xf32>
    %59 = vector.shape_cast %58 : vector<768xf32> to vector<1x768xf32>
    %cst_33 = arith.constant 9.99999996E-13 : f32
    %60 = vector.broadcast %cst_33 : f32 to vector<1x768xf32>
    %61 = arith.maximumf %59, %60 : vector<1x768xf32>
    %62 = vector.broadcast %61 : vector<1x768xf32> to vector<16x768xf32>
    %63 = arith.divf %56, %62 : vector<16x768xf32>
    %64 = arith.truncf %63 : vector<16x768xf32> to vector<16x768xbf16>
    %c0_34 = arith.constant 0 : index
    %c0_35 = arith.constant 0 : index
    %65 = vector.load %arg10[%c0_34, %c0_35] : memref<16x768xbf16, #tpu.memory_space<vmem>>, vector<16x768xbf16>
    tpu.vector_store %arg10[%c0_34, %c0_35], %64 {strides = array<i32>} : memref<16x768xbf16, #tpu.memory_space<vmem>>, vector<16x768xbf16>,
    return
  }
  func.func @transform_0(%arg0: i32) -> (i32, i32) {
    %c0_i32 = arith.constant 0 : i32
    %c0_i32_0 = arith.constant 0 : i32
    %c0_i32_1 = arith.constant 0 : i32
    return %c0_i32, %c0_i32_0 : i32, i32
  }
  func.func @transform_1(%arg0: i32) -> (i32, i32) {
    %c0_i32 = arith.constant 0 : i32
    %c0_i32_0 = arith.constant 0 : i32
    %c0_i32_1 = arith.constant 0 : i32
    return %c0_i32, %c0_i32_0 : i32, i32
  }
  func.func @transform_2(%arg0: i32) -> (i32, i32) {
    %c0_i32 = arith.constant 0 : i32
    %c0_i32_0 = arith.constant 0 : i32
    %c0_i32_1 = arith.constant 0 : i32
    return %c0_i32, %c0_i32_0 : i32, i32
  }
  func.func @transform_3(%arg0: i32) -> (i32, i32) {
    %c0_i32 = arith.constant 0 : i32
    %c0_i32_0 = arith.constant 0 : i32
    %c0_i32_1 = arith.constant 0 : i32
    return %c0_i32, %c0_i32_0 : i32, i32
  }
  func.func @transform_4(%arg0: i32) -> (i32, i32) {
    %c0_i32 = arith.constant 0 : i32
    %c0_i32_0 = arith.constant 0 : i32
    %c0_i32_1 = arith.constant 0 : i32
    return %c0_i32, %c0_i32_0 : i32, i32
  }
  func.func @transform_5(%arg0: i32) -> (i32, i32) {
    %c0_i32 = arith.constant 0 : i32
    %c0_i32_0 = arith.constant 0 : i32
    %c0_i32_1 = arith.constant 0 : i32
    return %c0_i32, %c0_i32_0 : i32, i32
  }
  func.func @transform_6(%arg0: i32) -> (i32, i32) {
    %c0_i32 = arith.constant 0 : i32
    %c0_i32_0 = arith.constant 0 : i32
    %c0_i32_1 = arith.constant 0 : i32
    return %c0_i32, %c0_i32_0 : i32, i32
  }
  func.func @transform_7(%arg0: i32) -> (i32, i32) {
    %c0_i32 = arith.constant 0 : i32
    %c0_i32_0 = arith.constant 0 : i32
    %c0_i32_1 = arith.constant 0 : i32
    return %c0_i32, %c0_i32_0 : i32, i32
  }
  func.func @transform_8(%arg0: i32) -> (i32, i32) {
    %c0_i32 = arith.constant 0 : i32
    %c0_i32_0 = arith.constant 0 : i32
    %c0_i32_1 = arith.constant 0 : i32
    return %c0_i32, %c0_i32_0 : i32, i32
  }
  func.func @transform_9(%arg0: i32) -> (i32, i32) {
    %c0_i32 = arith.constant 0 : i32
    %c0_i32_0 = arith.constant 0 : i32
    %c0_i32_1 = arith.constant 0 : i32
    return %c0_i32, %c0_i32_0 : i32, i32
  }
}

module attributes {stable_mosaic.version = 11 : i64} {
  func.func @_doc_branch_kernel(%arg0: i32, %arg1: memref<1x8x768xbf16, #tpu.memory_space<vmem>>, %arg2: memref<16x768xbf16, #tpu.memory_space<vmem>>, %arg3: memref<144x256xbf16, #tpu.memory_space<vmem>>, %arg4: memref<1x256xf32, #tpu.memory_space<vmem>>, %arg5: memref<768x16xf32, #tpu.memory_space<vmem>>, %arg6: memref<1x16xf32, #tpu.memory_space<vmem>>, %arg7: memref<1x1x16xf32, #tpu.memory_space<vmem>>, %arg8: memref<1x16x16xf32, #tpu.memory_space<vmem>>, %arg9: memref<1x8x144xf32, #tpu.memory_space<vmem>>) attributes {dimension_semantics = [#tpu.dimension_semantics<parallel>], iteration_bounds = array<i64: 2>, scalar_prefetch = 0 : i64, scratch_operands = 2 : i64, tpu.core_type = #tpu.core_type<tc>, window_params = [{transform_indices = @transform_0, window_bounds = array<i64: 1, 8, 768>}, {pipeline_mode = #tpu.pipeline_mode<synchronous>, transform_indices = @transform_1, window_bounds = array<i64: 16, 768>}, {pipeline_mode = #tpu.pipeline_mode<synchronous>, transform_indices = @transform_2, window_bounds = array<i64: 144, 256>}, {pipeline_mode = #tpu.pipeline_mode<synchronous>, transform_indices = @transform_3, window_bounds = array<i64: 1, 256>}, {pipeline_mode = #tpu.pipeline_mode<synchronous>, transform_indices = @transform_4, window_bounds = array<i64: 768, 16>}, {pipeline_mode = #tpu.pipeline_mode<synchronous>, transform_indices = @transform_5, window_bounds = array<i64: 1, 16>}, {transform_indices = @transform_6, window_bounds = array<i64: 1, 1, 16>}]} {
    %c0 = arith.constant 0 : index
    %c0_0 = arith.constant 0 : index
    %c0_1 = arith.constant 0 : index
    %0 = vector.load %arg1[%c0, %c0_0, %c0_1] : memref<1x8x768xbf16, #tpu.memory_space<vmem>>, vector<1x8x768xbf16>
    %1 = arith.extf %0 : vector<1x8x768xbf16> to vector<1x8x768xf32>
    %2 = math.absf %1 : vector<1x8x768xf32>
    %cst = arith.constant dense<0.000000e+00> : vector<1x768xf32>
    %3 = vector.multi_reduction <add>, %2, %cst [1] : vector<1x8x768xf32> to vector<1x768xf32>
    %4 = vector.shape_cast %3 : vector<1x768xf32> to vector<1x1x768xf32>
    %cst_2 = arith.constant 9.99999996E-13 : f32
    %5 = vector.broadcast %cst_2 : f32 to vector<1x1x768xf32>
    %6 = arith.maximumf %4, %5 : vector<1x1x768xf32>
    %7 = vector.broadcast %6 : vector<1x1x768xf32> to vector<1x8x768xf32>
    %8 = arith.divf %1, %7 : vector<1x8x768xf32>
    %9 = arith.truncf %8 : vector<1x8x768xf32> to vector<1x8x768xbf16>
    %10 = vector.shape_cast %9 : vector<1x8x768xbf16> to vector<8x768xbf16>
    %c0_3 = arith.constant 0 : index
    %c0_4 = arith.constant 0 : index
    %11 = vector.load %arg2[%c0_3, %c0_4] : memref<16x768xbf16, #tpu.memory_space<vmem>>, vector<16x768xbf16>
    %cst_5 = arith.constant dense<0.000000e+00> : vector<8x16xf32>
    %12 = tpu.matmul %10, %11, %cst_5 {dimension_numbers = #tpu.dot_dimension_numbers<[1], [1], [0], [0], [0, 0, 1, 0], [], []>} : vector<8x768xbf16>, vector<16x768xbf16>, vector<8x16xf32> -> vector<8x16xf32>
    %13 = vector.shape_cast %12 : vector<8x16xf32> to vector<1x8x16xf32>
    %cst_6 = arith.constant 0.000000e+00 : f32
    %14 = vector.broadcast %cst_6 : f32 to vector<1x4x16xf32>
    %c0_7 = arith.constant 0 : index
    %c0_8 = arith.constant 0 : index
    %c0_9 = arith.constant 0 : index
    %15 = vector.load %arg8[%c0_7, %c0_8, %c0_9] : memref<1x16x16xf32, #tpu.memory_space<vmem>>, vector<1x4x16xf32>
    tpu.vector_store %arg8[%c0_7, %c0_8, %c0_9], %14 {strides = array<i32>} : memref<1x16x16xf32, #tpu.memory_space<vmem>>, vector<1x4x16xf32>,
    %cst_10 = arith.constant 0.000000e+00 : f32
    %16 = vector.broadcast %cst_10 : f32 to vector<1x4x16xf32>
    %c0_11 = arith.constant 0 : index
    %c12 = arith.constant 12 : index
    %c0_12 = arith.constant 0 : index
    %17 = vector.load %arg8[%c0_11, %c12, %c0_12] : memref<1x16x16xf32, #tpu.memory_space<vmem>>, vector<1x4x16xf32>
    tpu.vector_store %arg8[%c0_11, %c12, %c0_12], %16 {strides = array<i32>} : memref<1x16x16xf32, #tpu.memory_space<vmem>>, vector<1x4x16xf32>,
    %c0_13 = arith.constant 0 : index
    %c4 = arith.constant 4 : index
    %c0_14 = arith.constant 0 : index
    %18 = vector.load %arg8[%c0_13, %c4, %c0_14] : memref<1x16x16xf32, #tpu.memory_space<vmem>>, vector<1x8x16xf32>
    tpu.vector_store %arg8[%c0_13, %c4, %c0_14], %13 {strides = array<i32>} : memref<1x16x16xf32, #tpu.memory_space<vmem>>, vector<1x8x16xf32>,
    %c0_15 = arith.constant 0 : index
    %c0_16 = arith.constant 0 : index
    %c0_17 = arith.constant 0 : index
    %19 = vector.load %arg8[%c0_15, %c0_16, %c0_17] : memref<1x16x16xf32, #tpu.memory_space<vmem>>, vector<1x8x16xf32>
    %c0_18 = arith.constant 0 : index
    %c0_19 = arith.constant 0 : index
    %c0_20 = arith.constant 0 : index
    %20 = vector.load %arg9[%c0_18, %c0_19, %c0_20] : memref<1x8x144xf32, #tpu.memory_space<vmem>>, vector<1x8x16xf32>
    tpu.vector_store %arg9[%c0_18, %c0_19, %c0_20], %19 {strides = array<i32>} : memref<1x8x144xf32, #tpu.memory_space<vmem>>, vector<1x8x16xf32>,
    %c0_21 = arith.constant 0 : index
    %c1 = arith.constant 1 : index
    %c0_22 = arith.constant 0 : index
    %21 = vector.load %arg8[%c0_21, %c1, %c0_22] : memref<1x16x16xf32, #tpu.memory_space<vmem>>, vector<1x8x16xf32>
    %c0_23 = arith.constant 0 : index
    %c0_24 = arith.constant 0 : index
    %c16 = arith.constant 16 : index
    %22 = vector.load %arg9[%c0_23, %c0_24, %c16] : memref<1x8x144xf32, #tpu.memory_space<vmem>>, vector<1x8x16xf32>
    tpu.vector_store %arg9[%c0_23, %c0_24, %c16], %21 {strides = array<i32>} : memref<1x8x144xf32, #tpu.memory_space<vmem>>, vector<1x8x16xf32>,
    %c0_25 = arith.constant 0 : index
    %c2 = arith.constant 2 : index
    %c0_26 = arith.constant 0 : index
    %23 = vector.load %arg8[%c0_25, %c2, %c0_26] : memref<1x16x16xf32, #tpu.memory_space<vmem>>, vector<1x8x16xf32>
    %c0_27 = arith.constant 0 : index
    %c0_28 = arith.constant 0 : index
    %c32 = arith.constant 32 : index
    %24 = vector.load %arg9[%c0_27, %c0_28, %c32] : memref<1x8x144xf32, #tpu.memory_space<vmem>>, vector<1x8x16xf32>
    tpu.vector_store %arg9[%c0_27, %c0_28, %c32], %23 {strides = array<i32>} : memref<1x8x144xf32, #tpu.memory_space<vmem>>, vector<1x8x16xf32>,
    %c0_29 = arith.constant 0 : index
    %c3 = arith.constant 3 : index
    %c0_30 = arith.constant 0 : index
    %25 = vector.load %arg8[%c0_29, %c3, %c0_30] : memref<1x16x16xf32, #tpu.memory_space<vmem>>, vector<1x8x16xf32>
    %c0_31 = arith.constant 0 : index
    %c0_32 = arith.constant 0 : index
    %c48 = arith.constant 48 : index
    %26 = vector.load %arg9[%c0_31, %c0_32, %c48] : memref<1x8x144xf32, #tpu.memory_space<vmem>>, vector<1x8x16xf32>
    tpu.vector_store %arg9[%c0_31, %c0_32, %c48], %25 {strides = array<i32>} : memref<1x8x144xf32, #tpu.memory_space<vmem>>, vector<1x8x16xf32>,
    %c0_33 = arith.constant 0 : index
    %c4_34 = arith.constant 4 : index
    %c0_35 = arith.constant 0 : index
    %27 = vector.load %arg8[%c0_33, %c4_34, %c0_35] : memref<1x16x16xf32, #tpu.memory_space<vmem>>, vector<1x8x16xf32>
    %c0_36 = arith.constant 0 : index
    %c0_37 = arith.constant 0 : index
    %c64 = arith.constant 64 : index
    %28 = vector.load %arg9[%c0_36, %c0_37, %c64] : memref<1x8x144xf32, #tpu.memory_space<vmem>>, vector<1x8x16xf32>
    tpu.vector_store %arg9[%c0_36, %c0_37, %c64], %27 {strides = array<i32>} : memref<1x8x144xf32, #tpu.memory_space<vmem>>, vector<1x8x16xf32>,
    %c0_38 = arith.constant 0 : index
    %c5 = arith.constant 5 : index
    %c0_39 = arith.constant 0 : index
    %29 = vector.load %arg8[%c0_38, %c5, %c0_39] : memref<1x16x16xf32, #tpu.memory_space<vmem>>, vector<1x8x16xf32>
    %c0_40 = arith.constant 0 : index
    %c0_41 = arith.constant 0 : index
    %c80 = arith.constant 80 : index
    %30 = vector.load %arg9[%c0_40, %c0_41, %c80] : memref<1x8x144xf32, #tpu.memory_space<vmem>>, vector<1x8x16xf32>
    tpu.vector_store %arg9[%c0_40, %c0_41, %c80], %29 {strides = array<i32>} : memref<1x8x144xf32, #tpu.memory_space<vmem>>, vector<1x8x16xf32>,
    %c0_42 = arith.constant 0 : index
    %c6 = arith.constant 6 : index
    %c0_43 = arith.constant 0 : index
    %31 = vector.load %arg8[%c0_42, %c6, %c0_43] : memref<1x16x16xf32, #tpu.memory_space<vmem>>, vector<1x8x16xf32>
    %c0_44 = arith.constant 0 : index
    %c0_45 = arith.constant 0 : index
    %c96 = arith.constant 96 : index
    %32 = vector.load %arg9[%c0_44, %c0_45, %c96] : memref<1x8x144xf32, #tpu.memory_space<vmem>>, vector<1x8x16xf32>
    tpu.vector_store %arg9[%c0_44, %c0_45, %c96], %31 {strides = array<i32>} : memref<1x8x144xf32, #tpu.memory_space<vmem>>, vector<1x8x16xf32>,
    %c0_46 = arith.constant 0 : index
    %c7 = arith.constant 7 : index
    %c0_47 = arith.constant 0 : index
    %33 = vector.load %arg8[%c0_46, %c7, %c0_47] : memref<1x16x16xf32, #tpu.memory_space<vmem>>, vector<1x8x16xf32>
    %c0_48 = arith.constant 0 : index
    %c0_49 = arith.constant 0 : index
    %c112 = arith.constant 112 : index
    %34 = vector.load %arg9[%c0_48, %c0_49, %c112] : memref<1x8x144xf32, #tpu.memory_space<vmem>>, vector<1x8x16xf32>
    tpu.vector_store %arg9[%c0_48, %c0_49, %c112], %33 {strides = array<i32>} : memref<1x8x144xf32, #tpu.memory_space<vmem>>, vector<1x8x16xf32>,
    %c0_50 = arith.constant 0 : index
    %c8 = arith.constant 8 : index
    %c0_51 = arith.constant 0 : index
    %35 = vector.load %arg8[%c0_50, %c8, %c0_51] : memref<1x16x16xf32, #tpu.memory_space<vmem>>, vector<1x8x16xf32>
    %c0_52 = arith.constant 0 : index
    %c0_53 = arith.constant 0 : index
    %c128 = arith.constant 128 : index
    %36 = vector.load %arg9[%c0_52, %c0_53, %c128] : memref<1x8x144xf32, #tpu.memory_space<vmem>>, vector<1x8x16xf32>
    tpu.vector_store %arg9[%c0_52, %c0_53, %c128], %35 {strides = array<i32>} : memref<1x8x144xf32, #tpu.memory_space<vmem>>, vector<1x8x16xf32>,
    %c0_54 = arith.constant 0 : index
    %c0_55 = arith.constant 0 : index
    %c0_56 = arith.constant 0 : index
    %37 = vector.load %arg9[%c0_54, %c0_55, %c0_56] : memref<1x8x144xf32, #tpu.memory_space<vmem>>, vector<1x8x144xf32>
    %38 = vector.shape_cast %37 : vector<1x8x144xf32> to vector<8x144xf32>
    %39 = arith.truncf %38 : vector<8x144xf32> to vector<8x144xbf16>
    %c0_57 = arith.constant 0 : index
    %c0_58 = arith.constant 0 : index
    %40 = vector.load %arg3[%c0_57, %c0_58] : memref<144x256xbf16, #tpu.memory_space<vmem>>, vector<144x256xbf16>
    %cst_59 = arith.constant dense<0.000000e+00> : vector<8x256xf32>
    %41 = tpu.matmul %39, %40, %cst_59 {dimension_numbers = #tpu.dot_dimension_numbers<[1], [0], [0], [1], [0, 0, 1, 1], [], []>} : vector<8x144xbf16>, vector<144x256xbf16>, vector<8x256xf32> -> vector<8x256xf32>
    %42 = vector.shape_cast %41 : vector<8x256xf32> to vector<1x8x256xf32>
    %c0_60 = arith.constant 0 : index
    %c0_61 = arith.constant 0 : index
    %43 = vector.load %arg4[%c0_60, %c0_61] : memref<1x256xf32, #tpu.memory_space<vmem>>, vector<1x256xf32>
    %44 = vector.shape_cast %43 : vector<1x256xf32> to vector<1x1x256xf32>
    %45 = vector.broadcast %44 : vector<1x1x256xf32> to vector<1x8x256xf32>
    %46 = arith.addf %42, %45 : vector<1x8x256xf32>
    %cst_62 = arith.constant dense<0xFF800000> : vector<1x8xf32>
    %47 = vector.multi_reduction <maximumf>, %46, %cst_62 [2] : vector<1x8x256xf32> to vector<1x8xf32>
    %48 = vector.shape_cast %47 : vector<1x8xf32> to vector<1x8x1xf32>
    %49 = math.tanh %48 : vector<1x8x1xf32>
    %50 = vector.broadcast %49 : vector<1x8x1xf32> to vector<1x8x768xf32>
    %51 = arith.mulf %50, %8 : vector<1x8x768xf32>
    %cst_63 = arith.constant dense<0.000000e+00> : vector<1x768xf32>
    %52 = vector.multi_reduction <add>, %51, %cst_63 [1] : vector<1x8x768xf32> to vector<1x768xf32>
    %c0_64 = arith.constant 0 : index
    %c0_65 = arith.constant 0 : index
    %53 = vector.load %arg5[%c0_64, %c0_65] : memref<768x16xf32, #tpu.memory_space<vmem>>, vector<768x16xf32>
    %cst_66 = arith.constant dense<0.000000e+00> : vector<1x16xf32>
    %54 = tpu.matmul %52, %53, %cst_66 {dimension_numbers = #tpu.dot_dimension_numbers<[1], [0], [0], [1], [0, 0, 1, 1], [], []>} : vector<1x768xf32>, vector<768x16xf32>, vector<1x16xf32> -> vector<1x16xf32>
    %c0_67 = arith.constant 0 : index
    %c0_68 = arith.constant 0 : index
    %55 = vector.load %arg6[%c0_67, %c0_68] : memref<1x16xf32, #tpu.memory_space<vmem>>, vector<1x16xf32>
    %56 = arith.addf %54, %55 : vector<1x16xf32>
    %57 = arith.negf %56 : vector<1x16xf32>
    %58 = math.exp %57 : vector<1x16xf32>
    %cst_69 = arith.constant 1.000000e+00 : f32
    %59 = vector.broadcast %cst_69 : f32 to vector<1x16xf32>
    %60 = arith.addf %59, %58 : vector<1x16xf32>
    %61 = arith.divf %59, %60 : vector<1x16xf32>
    %c0_70 = arith.constant 0 : index
    %c0_71 = arith.constant 0 : index
    %c0_72 = arith.constant 0 : index
    %62 = vector.load %arg7[%c0_70, %c0_71, %c0_72] : memref<1x1x16xf32, #tpu.memory_space<vmem>>, vector<1x1x16xf32>
    %63 = vector.shape_cast %62 : vector<1x1x16xf32> to vector<1x16xf32>
    %64 = vector.shape_cast %61 : vector<1x16xf32> to vector<1x1x16xf32>
    tpu.vector_store %arg7[%c0_70, %c0_71, %c0_72], %64 {strides = array<i32>} : memref<1x1x16xf32, #tpu.memory_space<vmem>>, vector<1x1x16xf32>,
    return
  }
  func.func @transform_0(%arg0: i32) -> (i32, i32, i32) {
    %c0_i32 = arith.constant 0 : i32
    %c0_i32_0 = arith.constant 0 : i32
    %c0_i32_1 = arith.constant 0 : i32
    return %arg0, %c0_i32, %c0_i32_0 : i32, i32, i32
  }
  func.func @transform_1(%arg0: i32) -> (i32, i32) {
    %c0_i32 = arith.constant 0 : i32
    %c0_i32_0 = arith.constant 0 : i32
    %c0_i32_1 = arith.constant 0 : i32
    return %c0_i32, %c0_i32_0 : i32, i32
  }
  func.func @transform_2(%arg0: i32) -> (i32, i32) {
    %c0_i32 = arith.constant 0 : i32
    %c0_i32_0 = arith.constant 0 : i32
    %c0_i32_1 = arith.constant 0 : i32
    return %c0_i32, %c0_i32_0 : i32, i32
  }
  func.func @transform_3(%arg0: i32) -> (i32, i32) {
    %c0_i32 = arith.constant 0 : i32
    %c0_i32_0 = arith.constant 0 : i32
    %c0_i32_1 = arith.constant 0 : i32
    return %c0_i32, %c0_i32_0 : i32, i32
  }
  func.func @transform_4(%arg0: i32) -> (i32, i32) {
    %c0_i32 = arith.constant 0 : i32
    %c0_i32_0 = arith.constant 0 : i32
    %c0_i32_1 = arith.constant 0 : i32
    return %c0_i32, %c0_i32_0 : i32, i32
  }
  func.func @transform_5(%arg0: i32) -> (i32, i32) {
    %c0_i32 = arith.constant 0 : i32
    %c0_i32_0 = arith.constant 0 : i32
    %c0_i32_1 = arith.constant 0 : i32
    return %c0_i32, %c0_i32_0 : i32, i32
  }
  func.func @transform_6(%arg0: i32) -> (i32, i32, i32) {
    %c0_i32 = arith.constant 0 : i32
    %c0_i32_0 = arith.constant 0 : i32
    %c0_i32_1 = arith.constant 0 : i32
    return %arg0, %c0_i32, %c0_i32_0 : i32, i32, i32
  }
}

</mosaic_0001>

<llo_original>
// kernel: tile.8
$region0: #{tile.8}
  #allocation0 [shape = 's32[1]{0}', space=sflag, size = 0x4, scoped, tag = 'scoped memory for tile.8']
  %s0 = inlined_call_operand.vmem [shape: f32[16], index: 0, kind: input, shape index: {}]
  %s1 = inlined_call_operand.vmem [shape: f32[16,16], index: 1, kind: output, shape index: {}]
  // Predicated region
  $region2: #{tile.8} parent=0 // pred_check
    _
  $region3: #{tile.8} parent=0 // pred_check_branch
    %3 = sbr.rel (0) target = $region5
  $region4: #{tile.8} parent=0 // pred_region
    _
  $region5: #{tile.8} parent=0 // pred_fallthru
    _
  %v4 = vld [vmem:[%s0] ss:$0 sm:$0xff]
  %5 = vst [vmem:[%s1] sm:$0xff] %v4
  %s6 = scalar_lea.vmem %s1, 8
  %7 = vst [vmem:[%s6] sm:$0xff] %v4

// kernel: tile.9
$region0: #{tile.9}
  %s0 = inlined_call_operand.vmem [shape: f32[16,16], index: 0, kind: input, shape index: {}]
  %s1 = inlined_call_operand.vmem [shape: f32[1,256], index: 1, kind: output, shape index: {}]
  $region1: #{tile.9} parent=0
    #allocation0 [shape = 'u8[8192]{0}', space=vmem, size = 0x2000, scoped, tag = 'scoped mem for output reshape']
    %s2 = smov 3
    %v3 = vld [vmem:[%s0] ss:$8 sm:%s2]
    %vm4 = vcmask 130048
    %5 = vst.msk [vmem:[#allocation0] ss:$8 sm:$0x3] %vm4, %v3
    %s6 = scalar_lea.vmem %s0, 7
    %s7 = smov 3
    %v8 = vld [vmem:[%s6] ss:$8 sm:%s7]
    %9 = vrot.lane.b32.xlu0 %v8, 112
    %v10 = vpop.permute.xlu0 %9
    %vm11 = vcmask 1048448
    %12 = vst.msk [vmem:[#allocation0] ss:$8 sm:$0x3] %vm11, %v10
    %s13 = scalar_lea.vmem %s0, 6
    %s14 = smov 3
    %v15 = vld [vmem:[%s13] ss:$8 sm:%s14]
    %16 = vrot.lane.b32.xlu0 %v15, 96
    %v17 = vpop.permute.xlu0 %16
    %vm18 = vcmask 917248
    %19 = vst.msk [vmem:[#allocation0] ss:$8 sm:$0x3] %vm18, %v17
    %s20 = scalar_lea.vmem %s0, 5
    %s21 = smov 3
    %v22 = vld [vmem:[%s20] ss:$8 sm:%s21]
    %23 = vrot.lane.b32.xlu0 %v22, 80
    %v24 = vpop.permute.xlu0 %23
    %vm25 = vcmask 786048
    %26 = vst.msk [vmem:[#allocation0] ss:$8 sm:$0x3] %vm25, %v24
    %s27 = scalar_lea.vmem %s0, 4
    %s28 = smov 3
    %v29 = vld [vmem:[%s27] ss:$8 sm:%s28]
    %30 = vrot.lane.b32.xlu0 %v29, 64
    %v31 = vpop.permute.xlu0 %30
    %vm32 = vcmask 654848
    %33 = vst.msk [vmem:[#allocation0] ss:$8 sm:$0x3] %vm32, %v31
    %s34 = scalar_lea.vmem %s0, 3
    %s35 = smov 3
    %v36 = vld [vmem:[%s34] ss:$8 sm:%s35]
    %37 = vrot.lane.b32.xlu0 %v36, 48
    %v38 = vpop.permute.xlu0 %37
    %vm39 = vcmask 523648
    %40 = vst.msk [vmem:[#allocation0] ss:$8 sm:$0x3] %vm39, %v38
    %s41 = scalar_lea.vmem %s0, 2
    %s42 = smov 3
    %v43 = vld [vmem:[%s41] ss:$8 sm:%s42]
    %44 = vrot.lane.b32.xlu0 %v43, 32
    %v45 = vpop.permute.xlu0 %44
    %vm46 = vcmask 392448
    %47 = vst.msk [vmem:[#allocation0] ss:$8 sm:$0x3] %vm46, %v45
    %s48 = scalar_lea.vmem %s0, 1
    %s49 = smov 3
    %v50 = vld [vmem:[%s48] ss:$8 sm:%s49]
    %51 = vrot.lane.b32.xlu0 %v50, 16
    %v52 = vpop.permute.xlu0 %51
    %vm53 = vcmask 261248
    %54 = vst.msk [vmem:[#allocation0] ss:$8 sm:$0x3] %vm53, %v52
    %s56 = sshll.u32 1, 1
    %s57 = ssub.s32 %s56, 1
    %v59 = vld [vmem:[#allocation0] sm:%s57]
    %s60 = sshll.u32 1, 1
    %s61 = ssub.s32 %s60, 1
    %62 = vst [vmem:[%s1] sm:%s61] %v59
    %s63 = scalar_lea.vmem [#allocation0], 8
    %v64 = vld [vmem:[%s63] sm:%s57]
    %s65 = sshll.u32 1, 1
    %s66 = ssub.s32 %s65, 1
    %s67 = scalar_lea.vmem %s1, 1
    %68 = vst [vmem:[%s67] sm:%s66] %v64

// kernel: classify_forward.3
$region0: #{classify_forward.3}
  #allocation0 [shape = 'u32[]', space=smem, size = 0x4, offset = 0x4, fixed_abs, tag = 'smem constant byte address 0x4 - core index']
  #allocation1 [shape = 'u32[144,128]{1,0:T(1,128)}', space=vmem, size = 0x12000, scoped, tag = 'internal scratch']
  #allocation2 [shape = 'f32[1,16,16]{2,1,0:T(8,128)}', space=vmem, size = 0x2000, scoped, tag = 'scratch operand']
  #allocation3 [shape = 'f32[1,8,144]{2,1,0:T(8,128)}', space=vmem, size = 0x2000, scoped, tag = 'scratch operand']
  %s0 = inlined_call_operand.vmem [shape: bf16[2,8,768], index: 0, kind: input, shape index: {}]
  %s1 = inlined_call_operand.vmem [shape: bf16[16,768], index: 1, kind: input, shape index: {}]
  %s2 = inlined_call_operand.vmem [shape: bf16[144,256], index: 2, kind: input, shape index: {}]
  %s3 = inlined_call_operand.vmem [shape: f32[1,256], index: 3, kind: input, shape index: {}]
  %s4 = inlined_call_operand.vmem [shape: f32[768,16], index: 4, kind: input, shape index: {}]
  %s5 = inlined_call_operand.vmem [shape: f32[1,16], index: 5, kind: input, shape index: {}]
  %s6 = inlined_call_operand.vmem [shape: f32[2,1,16], index: 6, kind: output, shape index: {}]
  %s7 = sld [smem:[#allocation0]]
  $region57: #{classify_forward.3} parent=0
    _
  %s9 = ssub.s32 1, %s7
  %s10 = scalar_select 0, %s9, %s7
  loop: start=0, step=1, limit=4
  $region2: #{classify_forward.3} parent=0 // loop_pre_header
    _
  $region3: #{classify_forward.3} parent=0 // loop_header
    %s12 = sphi 0, %s16
    %p13 = scmp.ge.s32.totalorder %s12, 4
    %s22 = sphi 0, %s24
    %s25 = sphi 0, %s22
    %s26 = sphi 0, %s25
    %s42 = sphi 0, %s26
    %s46 = sphi 0, %s46
    %s48 = sphi 0, %s46
    %s49 = sphi 0, %s48
    %s63 = sphi 0, %s49
    %s67 = sphi 0, %s67
    %s69 = sphi 0, %s67
    %s70 = sphi 0, %s69
    %s84 = sphi 0, %s70
    %s88 = sphi 0, %s88
    %s90 = sphi 0, %s88
    %s91 = sphi 0, %s90
    %s105 = sphi 0, %s91
    %s109 = sphi 0, %s109
    %s111 = sphi 0, %s109
    %s112 = sphi 0, %s111
    %s126 = sphi 0, %s112
    %s130 = sphi 0, %s130
    %s132 = sphi 0, %s130
    %s133 = sphi 0, %s132
    %s147 = sphi 0, %s133
    %s153 = sphi 0, %s155
    %s156 = sphi 0, %s153
    %s157 = sphi 0, %s156
    %s173 = sphi 0, %s157
  $region4: #{classify_forward.3} parent=0 // loop_header_branch
    %15 = sbr.rel (%p13) target = $region8
  $region5: #{classify_forward.3} parent=0 // loop_body
    %s17 = ssub.s32 %s12, 1
    %s18 = ssub.s32 %s12, 2
    %s19 = sadd.s32 %s12, 1
    %s20 = ssub.s32 %s12, %s19
    %p21 = scmp.eq.s32.totalorder %s20, 0
    %s23 = sadd.s32 %s22, 1
    %s24 = scalar_select %p21, %s22, %s23
    %p27 = pneg %p21
    %p28 = scmp.eq.s32.totalorder %s12, 1
    %p29 = por %p27, %p28
    %p30 = scmp.ne.s32.totalorder %s22, %s25
    %p31 = scmp.eq.s32.totalorder %s12, 0
    %p32 = por %p30, %p31
    %p33 = scmp.ne.s32.totalorder %s22, %s25
    %p34 = scmp.eq.s32.totalorder %s17, 1
    %p35 = por %p33, %p34
    %p36 = scmp.ne.s32.totalorder %s25, %s26
    %p37 = scmp.eq.s32.totalorder %s17, 0
    %p38 = por %p36, %p37
    %p39 = scmp.ne.s32.totalorder %s25, %s26
    %p40 = scmp.eq.s32.totalorder %s18, 1
    %p41 = por %p39, %p40
    %p43 = scmp.ne.s32.totalorder %s26, %s42
    %p44 = scmp.eq.s32.totalorder %s18, 0
    %p45 = por %p43, %p44
    %s47 = sadd.s32 %s46, 1
    %p50 = scmp.eq.s32.totalorder %s12, 1
    %p51 = scmp.ne.s32.totalorder %s46, %s48
    %p52 = scmp.eq.s32.totalorder %s12, 0
    %p53 = por %p51, %p52
    %p54 = scmp.ne.s32.totalorder %s46, %s48
    %p55 = scmp.eq.s32.totalorder %s17, 1
    %p56 = por %p54, %p55
    %p57 = scmp.ne.s32.totalorder %s48, %s49
    %p58 = scmp.eq.s32.totalorder %s17, 0
    %p59 = por %p57, %p58
    %p60 = scmp.ne.s32.totalorder %s48, %s49
    %p61 = scmp.eq.s32.totalorder %s18, 1
    %p62 = por %p60, %p61
    %p64 = scmp.ne.s32.totalorder %s49, %s63
    %p65 = scmp.eq.s32.totalorder %s18, 0
    %p66 = por %p64, %p65
    %s68 = sadd.s32 %s67, 1
    %p71 = scmp.eq.s32.totalorder %s12, 1
    %p72 = scmp.ne.s32.totalorder %s67, %s69
    %p73 = scmp.eq.s32.totalorder %s12, 0
    %p74 = por %p72, %p73
    %p75 = scmp.ne.s32.totalorder %s67, %s69
    %p76 = scmp.eq.s32.totalorder %s17, 1
    %p77 = por %p75, %p76
    %p78 = scmp.ne.s32.totalorder %s69, %s70
    %p79 = scmp.eq.s32.totalorder %s17, 0
    %p80 = por %p78, %p79
    %p81 = scmp.ne.s32.totalorder %s69, %s70
    %p82 = scmp.eq.s32.totalorder %s18, 1
    %p83 = por %p81, %p82
    %p85 = scmp.ne.s32.totalorder %s70, %s84
    %p86 = scmp.eq.s32.totalorder %s18, 0
    %p87 = por %p85, %p86
    %s89 = sadd.s32 %s88, 1
    %p92 = scmp.eq.s32.totalorder %s12, 1
    %p93 = scmp.ne.s32.totalorder %s88, %s90
    %p94 = scmp.eq.s32.totalorder %s12, 0
    %p95 = por %p93, %p94
    %p96 = scmp.ne.s32.totalorder %s88, %s90
    %p97 = scmp.eq.s32.totalorder %s17, 1
    %p98 = por %p96, %p97
    %p99 = scmp.ne.s32.totalorder %s90, %s91
    %p100 = scmp.eq.s32.totalorder %s17, 0
    %p101 = por %p99, %p100
    %p102 = scmp.ne.s32.totalorder %s90, %s91
    %p103 = scmp.eq.s32.totalorder %s18, 1
    %p104 = por %p102, %p103
    %p106 = scmp.ne.s32.totalorder %s91, %s105
    %p107 = scmp.eq.s32.totalorder %s18, 0
    %p108 = por %p106, %p107
    %s110 = sadd.s32 %s109, 1
    %p113 = scmp.eq.s32.totalorder %s12, 1
    %p114 = scmp.ne.s32.totalorder %s109, %s111
    %p115 = scmp.eq.s32.totalorder %s12, 0
    %p116 = por %p114, %p115
    %p117 = scmp.ne.s32.totalorder %s109, %s111
    %p118 = scmp.eq.s32.totalorder %s17, 1
    %p119 = por %p117, %p118
    %p120 = scmp.ne.s32.totalorder %s111, %s112
    %p121 = scmp.eq.s32.totalorder %s17, 0
    %p122 = por %p120, %p121
    %p123 = scmp.ne.s32.totalorder %s111, %s112
    %p124 = scmp.eq.s32.totalorder %s18, 1
    %p125 = por %p123, %p124
    %p127 = scmp.ne.s32.totalorder %s112, %s126
    %p128 = scmp.eq.s32.totalorder %s18, 0
    %p129 = por %p127, %p128
    %s131 = sadd.s32 %s130, 1
    %p134 = scmp.eq.s32.totalorder %s12, 1
    %p135 = scmp.ne.s32.totalorder %s130, %s132
    %p136 = scmp.eq.s32.totalorder %s12, 0
    %p137 = por %p135, %p136
    %p138 = scmp.ne.s32.totalorder %s130, %s132
    %p139 = scmp.eq.s32.totalorder %s17, 1
    %p140 = por %p138, %p139
    %p141 = scmp.ne.s32.totalorder %s132, %s133
    %p142 = scmp.eq.s32.totalorder %s17, 0
    %p143 = por %p141, %p142
    %p144 = scmp.ne.s32.totalorder %s132, %s133
    %p145 = scmp.eq.s32.totalorder %s18, 1
    %p146 = por %p144, %p145
    %p148 = scmp.ne.s32.totalorder %s133, %s147
    %p149 = scmp.eq.s32.totalorder %s18, 0
    %p150 = por %p148, %p149
    %s151 = ssub.s32 %s12, %s19
    %p152 = scmp.eq.s32.totalorder %s151, 0
    %s154 = sadd.s32 %s153, 1
    %s155 = scalar_select %p152, %s153, %s154
    %p158 = pneg %p152
    %p159 = scmp.eq.s32.totalorder %s12, 1
    %p160 = por %p158, %p159
    %p161 = scmp.ne.s32.totalorder %s153, %s156
    %p162 = scmp.eq.s32.totalorder %s12, 0
    %p163 = por %p161, %p162
    %p164 = scmp.ne.s32.totalorder %s153, %s156
    %p165 = scmp.eq.s32.totalorder %s17, 1
    %p166 = por %p164, %p165
    %p167 = scmp.ne.s32.totalorder %s156, %s157
    %p168 = scmp.eq.s32.totalorder %s17, 0
    %p169 = por %p167, %p168
    %p170 = scmp.ne.s32.totalorder %s156, %s157
    %p171 = scmp.eq.s32.totalorder %s18, 1
    %p172 = por %p170, %p171
    %p174 = scmp.ne.s32.totalorder %s157, %s173
    %p175 = scmp.eq.s32.totalorder %s18, 0
    %p176 = por %p174, %p175
    %p177 = scmp.le.s32.totalorder 1, %s12
    %p178 = scmp.lt.s32.totalorder %s12, 3
    %p179 = pnand %p177, %p178
    %p180 = pneg %p179
    // Predicated region
    $region9: #{classify_forward.3} parent=5 // pred_check
      _
    $region10: #{classify_forward.3} parent=5 // pred_check_branch
      %182 = sbr.rel (%p179) target = $region12
    $region11: #{classify_forward.3} parent=5 // pred_region
      %s183 = ssub.s32 %s12, 1
      // Predicated region
      $region13: #{classify_forward.3} parent=11 // pred_check
        %p184 = pneg %p59
      $region14: #{classify_forward.3} parent=11 // pred_check_branch
        %186 = sbr.rel (%p184) target = $region16
      $region15: #{classify_forward.3} parent=11 // pred_region
        _
      $region16: #{classify_forward.3} parent=11 // pred_fallthru
        _
      // Predicated region
      $region17: #{classify_forward.3} parent=11 // pred_check
        %p187 = pneg %p80
      $region18: #{classify_forward.3} parent=11 // pred_check_branch
        %189 = sbr.rel (%p187) target = $region20
      $region19: #{classify_forward.3} parent=11 // pred_region
        _
      $region20: #{classify_forward.3} parent=11 // pred_fallthru
        _
      // Predicated region
      $region21: #{classify_forward.3} parent=11 // pred_check
        %p190 = pneg %p101
      $region22: #{classify_forward.3} parent=11 // pred_check_branch
        %192 = sbr.rel (%p190) target = $region24
      $region23: #{classify_forward.3} parent=11 // pred_region
        _
      $region24: #{classify_forward.3} parent=11 // pred_fallthru
        _
      // Predicated region
      $region25: #{classify_forward.3} parent=11 // pred_check
        %p193 = pneg %p122
      $region26: #{classify_forward.3} parent=11 // pred_check_branch
        %195 = sbr.rel (%p193) target = $region28
      $region27: #{classify_forward.3} parent=11 // pred_region
        _
      $region28: #{classify_forward.3} parent=11 // pred_fallthru
        _
      // Predicated region
      $region29: #{classify_forward.3} parent=11 // pred_check
        %p196 = pneg %p143
      $region30: #{classify_forward.3} parent=11 // pred_check_branch
        %198 = sbr.rel (%p196) target = $region32
      $region31: #{classify_forward.3} parent=11 // pred_region
        _
      $region32: #{classify_forward.3} parent=11 // pred_fallthru
        _
    $region12: #{classify_forward.3} parent=5 // pred_fallthru
      _
    %p199 = scmp.lt.s32.totalorder %s12, 2
    // Predicated region
    $region33: #{classify_forward.3} parent=5 // pred_check
      %p200 = pneg %p199
    $region34: #{classify_forward.3} parent=5 // pred_check_branch
      %202 = sbr.rel (%p200) target = $region36
    $region35: #{classify_forward.3} parent=5 // pred_region
      // Predicated region
      $region37: #{classify_forward.3} parent=35 // pred_check
        %p203 = pneg %p32
      $region38: #{classify_forward.3} parent=35 // pred_check_branch
        %205 = sbr.rel (%p203) target = $region40
      $region39: #{classify_forward.3} parent=35 // pred_region
        %p206 = scmp.lt.s32.totalorder %s12, 1
        %s207 = scalar_select %p206, %s12, 1
        %s208 = smul.addr %s207, 6
        %s209 = smul.addr %s208, 4
        %s210 = scalar_lea.vmem %s0, %s209
      $region40: #{classify_forward.3} parent=35 // pred_fallthru
        _
    $region36: #{classify_forward.3} parent=5 // pred_fallthru
      _
    %p211 = scmp.le.s32.totalorder 1, %s12
    %p212 = scmp.lt.s32.totalorder %s12, 3
    %p213 = pnand %p211, %p212
    %p214 = pneg %p213
    // Predicated region
    $region41: #{classify_forward.3} parent=5 // pred_check
      _
    $region42: #{classify_forward.3} parent=5 // pred_check_branch
      %216 = sbr.rel (%p213) target = $region44
    $region43: #{classify_forward.3} parent=5 // pred_region
      %s217 = ssub.s32 %s12, 1
      %p218 = scmp.lt.s32.totalorder %s17, 1
      %s219 = scalar_select %p218, %s17, 1
      %s220 = smul.addr %s219, 6
      %s221 = smul.addr %s220, 4
      %s222 = scalar_lea.vmem %s0, %s221
      %p223 = pneg %p38
      %p224 = pneg %p35
      %p225 = pneg %p59
      %p226 = pneg %p56
      %p227 = pneg %p80
      %p228 = pneg %p77
      %p229 = pneg %p101
      %p230 = pneg %p98
      %p231 = pneg %p122
      %p232 = pneg %p119
      %p233 = pneg %p143
      %p234 = pneg %p140
      %p235 = pneg %p169
      %p236 = pneg %p166
      %p237 = scmp.lt.s32.totalorder %s17, 1
      %s238 = scalar_select %p237, %s17, 1
      %s239 = scalar_lea.vmem %s6, %s238
      %p240 = scmp.lt.s32.totalorder %s17, 1
      %s241 = scalar_select %p240, %s17, 1
      %s242 = smul.addr %s241, 6
      %s243 = smul.addr %s242, 4
      %s244 = scalar_lea.vmem %s0, %s243
      %p245 = scmp.lt.s32.totalorder %s17, 1
      %s246 = scalar_select %p245, %s17, 1
      %s247 = scalar_lea.vmem %s6, %s246
      %v249 = vld [vmem:[%s244] sm:$0xff]
      %v250 = vld [vmem:[%s244 + $0x8] sm:$0xff]
      %v251 = vld [vmem:[%s244 + $0x10] sm:$0xff]
      %v252 = vunpack.c.l.bf16 %v249
      %v253 = vunpack.c.h.bf16 %v249
      %v254 = vunpack.c.l.bf16 %v250
      %v255 = vunpack.c.h.bf16 %v250
      %v256 = vunpack.c.l.bf16 %v251
      %v257 = vunpack.c.h.bf16 %v251
      %v258 = vand.u32 2147483647, %v252
      %v259 = vand.u32 2147483647, %v253
      %v260 = vand.u32 2147483647, %v254
      %v261 = vand.u32 2147483647, %v255
      %v262 = vand.u32 2147483647, %v256
      %v263 = vand.u32 2147483647, %v257
      %v264 = vrot.slane %v258, 4
      %v265 = vadd.f32 %v258, %v264
      %v266 = vrot.slane %v265, 2
      %v267 = vadd.f32 %v265, %v266
      %v268 = vrot.slane %v267, 1
      %v269 = vadd.f32 %v267, %v268
      %v270 = vrot.slane %v259, 4
      %v271 = vadd.f32 %v259, %v270
      %v272 = vrot.slane %v271, 2
      %v273 = vadd.f32 %v271, %v272
      %v274 = vrot.slane %v273, 1
      %v275 = vadd.f32 %v273, %v274
      %v276 = vrot.slane %v260, 4
      %v277 = vadd.f32 %v260, %v276
      %v278 = vrot.slane %v277, 2
      %v279 = vadd.f32 %v277, %v278
      %v280 = vrot.slane %v279, 1
      %v281 = vadd.f32 %v279, %v280
      %v282 = vrot.slane %v261, 4
      %v283 = vadd.f32 %v261, %v282
      %v284 = vrot.slane %v283, 2
      %v285 = vadd.f32 %v283, %v284
      %v286 = vrot.slane %v285, 1
      %v287 = vadd.f32 %v285, %v286
      %v288 = vrot.slane %v262, 4
      %v289 = vadd.f32 %v262, %v288
      %v290 = vrot.slane %v289, 2
      %v291 = vadd.f32 %v289, %v290
      %v292 = vrot.slane %v291, 1
      %v293 = vadd.f32 %v291, %v292
      %v294 = vrot.slane %v263, 4
      %v295 = vadd.f32 %v263, %v294
      %v296 = vrot.slane %v295, 2
      %v297 = vadd.f32 %v295, %v296
      %v298 = vrot.slane %v297, 1
      %v299 = vadd.f32 %v297, %v298
      %v300 = vmax.f32 %v269, 1e-12
      %v301 = vmax.f32 %v275, 1e-12
      %v302 = vmax.f32 %v281, 1e-12
      %v303 = vmax.f32 %v287, 1e-12
      %v304 = vmax.f32 %v293, 1e-12
      %v305 = vmax.f32 %v299, 1e-12
      %v306 = vrcp.pop %v300
      %v307 = vmul.f32 %v252, %v306
      %v308 = vrcp.pop %v301
      %v309 = vmul.f32 %v253, %v308
      %v310 = vrcp.pop %v302
      %v311 = vmul.f32 %v254, %v310
      %v312 = vrcp.pop %v303
      %v313 = vmul.f32 %v255, %v312
      %v314 = vrcp.pop %v304
      %v315 = vmul.f32 %v256, %v314
      %v316 = vrcp.pop %v305
      %v317 = vmul.f32 %v257, %v316
      %v318 = vpack.c.bf16 %v307, %v307
      %v319 = vpack.c.bf16 %v309, %v309
      %v320 = vpack.c.bf16 %v311, %v311
      %v321 = vpack.c.bf16 %v313, %v313
      %v322 = vpack.c.bf16 %v315, %v315
      %v323 = vpack.c.bf16 %v317, %v317
      %v324 = vld [vmem:[%s1] sm:$0xff]
      %v325 = vld [vmem:[%s1 + $0x8] sm:$0xff]
      %v326 = vld [vmem:[%s1 + $0x10] sm:$0xff]
      %v327 = vld [vmem:[%s1 + $0x18] sm:$0xff]
      %v328 = vld [vmem:[%s1 + $0x20] sm:$0xff]
      %v329 = vld [vmem:[%s1 + $0x28] sm:$0xff]
      %v336 = vunpack.c.l.b16 %v324
      %v337 = vunpack.c.h.b16 %v324
      %v338 = vunpack.c.l.b16 %v325
      %v339 = vunpack.c.h.b16 %v325
      %v340 = vunpack.c.l.b16 %v326
      %v341 = vunpack.c.h.b16 %v326
      %v342 = vunpack.c.l.b16 %v327
      %v343 = vunpack.c.h.b16 %v327
      %v344 = vunpack.c.l.b16 %v328
      %v345 = vunpack.c.h.b16 %v328
      %v346 = vunpack.c.l.b16 %v329
      %v347 = vunpack.c.h.b16 %v329
      %v348 = vpack.c.b16 %v342, %v336
      %v349 = vpack.c.b16 %v343, %v337
      %v350 = vpack.c.b16 %v344, %v338
      %v351 = vpack.c.b16 %v345, %v339
      %v352 = vpack.c.b16 %v346, %v340
      %v353 = vpack.c.b16 %v347, %v341
      %360 = vmatprep.subr.bf16.mxu0 0
      %361 = vmatpush1.bf16.xpose.msra.mxu0 0
      %362 = vmatprep.subr.bf16.mxu0 0
      %363 = vmatpush1.bf16.xpose.msra.mxu0 0
      %364 = vmatprep.subr.bf16.mxu0 0
      %365 = vmatpush1.bf16.xpose.msra.mxu0 0
      %366 = vmatprep.subr.bf16.mxu0 0
      %367 = vmatpush1.bf16.xpose.msra.mxu0 0
      %368 = vmatprep.subr.bf16.mxu0 0
      %369 = vmatpush1.bf16.xpose.msra.mxu0 0
      %370 = vmatprep.subr.bf16.mxu0 0
      %371 = vmatpush1.bf16.xpose.msra.mxu0 0
      %372 = vmatprep.subr.bf16.mxu0 0
      %373 = vmatpush1.bf16.xpose.msra.mxu0 0
      %374 = vmatprep.subr.bf16.mxu0 %v349
      %375 = vmatpush1.bf16.xpose.msra.mxu0 %v348
      %376 = vmatprep.subr.bf16.mxu0 0
      %377 = vmatpush2.bf16.xpose.msra.mxu0 0
      %378 = vmatprep.subr.bf16.mxu0 0
      %379 = vmatpush2.bf16.xpose.msra.mxu0 0
      %380 = vmatprep.subr.bf16.mxu0 0
      %381 = vmatpush2.bf16.xpose.msra.mxu0 0
      %382 = vmatprep.subr.bf16.mxu0 0
      %383 = vmatpush2.bf16.xpose.msra.mxu0 0
      %384 = vmatprep.subr.bf16.mxu0 0
      %385 = vmatpush2.bf16.xpose.msra.mxu0 0
      %386 = vmatprep.subr.bf16.mxu0 0
      %387 = vmatpush2.bf16.xpose.msra.mxu0 0
      %388 = vmatprep.subr.bf16.mxu0 0
      %389 = vmatpush2.bf16.xpose.msra.mxu0 0
      %390 = vmatprep.subr.bf16.mxu0 0
      %391 = vmatpush2.bf16.xpose.msra.mxu0 0
      %392 = vmatprep.mubr.bf16.mxu0 %v319
      %393 = vmatmul.mubr.bf16.gmra.mxu0 %v318
      %v394 = vpop.f32.mrf.mxu0
      %v395 = vadd.f32 0.0, %v394
      %v396 = vpop.f32.mrf.mxu0
      %v397 = vpop.f32.mrf.mxu0
      %v398 = vpop.f32.mrf.mxu0
      %399 = vdwg.mxu0
      %400 = vmatprep.subr.bf16.mxu0 0
      %401 = vmatpush1.bf16.xpose.msra.mxu0 0
      %402 = vmatprep.subr.bf16.mxu0 0
      %403 = vmatpush1.bf16.xpose.msra.mxu0 0
      %404 = vmatprep.subr.bf16.mxu0 0
      %405 = vmatpush1.bf16.xpose.msra.mxu0 0
      %406 = vmatprep.subr.bf16.mxu0 0
      %407 = vmatpush1.bf16.xpose.msra.mxu0 0
      %408 = vmatprep.subr.bf16.mxu0 0
      %409 = vmatpush1.bf16.xpose.msra.mxu0 0
      %410 = vmatprep.subr.bf16.mxu0 0
      %411 = vmatpush1.bf16.xpose.msra.mxu0 0
      %412 = vmatprep.subr.bf16.mxu0 0
      %413 = vmatpush1.bf16.xpose.msra.mxu0 0
      %414 = vmatprep.subr.bf16.mxu0 %v351
      %415 = vmatpush1.bf16.xpose.msra.mxu0 %v350
      %416 = vmatprep.subr.bf16.mxu0 0
      %417 = vmatpush2.bf16.xpose.msra.mxu0 0
      %418 = vmatprep.subr.bf16.mxu0 0
      %419 = vmatpush2.bf16.xpose.msra.mxu0 0
      %420 = vmatprep.subr.bf16.mxu0 0
      %421 = vmatpush2.bf16.xpose.msra.mxu0 0
      %422 = vmatprep.subr.bf16.mxu0 0
      %423 = vmatpush2.bf16.xpose.msra.mxu0 0
      %424 = vmatprep.subr.bf16.mxu0 0
      %425 = vmatpush2.bf16.xpose.msra.mxu0 0
      %426 = vmatprep.subr.bf16.mxu0 0
      %427 = vmatpush2.bf16.xpose.msra.mxu0 0
      %428 = vmatprep.subr.bf16.mxu0 0
      %429 = vmatpush2.bf16.xpose.msra.mxu0 0
      %430 = vmatprep.subr.bf16.mxu0 0
      %431 = vmatpush2.bf16.xpose.msra.mxu0 0
      %432 = vmatprep.mubr.bf16.mxu0 %v321
      %433 = vmatmul.mubr.bf16.gmra.mxu0 %v320
      %v434 = vpop.f32.mrf.mxu0
      %v435 = vadd.f32 %v395, %v434
      %v436 = vpop.f32.mrf.mxu0
      %v437 = vpop.f32.mrf.mxu0
      %v438 = vpop.f32.mrf.mxu0
      %439 = vdwg.mxu0
      %440 = vmatprep.subr.bf16.mxu0 0
      %441 = vmatpush1.bf16.xpose.msra.mxu0 0
      %442 = vmatprep.subr.bf16.mxu0 0
      %443 = vmatpush1.bf16.xpose.msra.mxu0 0
      %444 = vmatprep.subr.bf16.mxu0 0
      %445 = vmatpush1.bf16.xpose.msra.mxu0 0
      %446 = vmatprep.subr.bf16.mxu0 0
      %447 = vmatpush1.bf16.xpose.msra.mxu0 0
      %448 = vmatprep.subr.bf16.mxu0 0
      %449 = vmatpush1.bf16.xpose.msra.mxu0 0
      %450 = vmatprep.subr.bf16.mxu0 0
      %451 = vmatpush1.bf16.xpose.msra.mxu0 0
      %452 = vmatprep.subr.bf16.mxu0 0
      %453 = vmatpush1.bf16.xpose.msra.mxu0 0
      %454 = vmatprep.subr.bf16.mxu0 %v353
      %455 = vmatpush1.bf16.xpose.msra.mxu0 %v352
      %456 = vmatprep.subr.bf16.mxu0 0
      %457 = vmatpush2.bf16.xpose.msra.mxu0 0
      %458 = vmatprep.subr.bf16.mxu0 0
      %459 = vmatpush2.bf16.xpose.msra.mxu0 0
      %460 = vmatprep.subr.bf16.mxu0 0
      %461 = vmatpush2.bf16.xpose.msra.mxu0 0
      %462 = vmatprep.subr.bf16.mxu0 0
      %463 = vmatpush2.bf16.xpose.msra.mxu0 0
      %464 = vmatprep.subr.bf16.mxu0 0
      %465 = vmatpush2.bf16.xpose.msra.mxu0 0
      %466 = vmatprep.subr.bf16.mxu0 0
      %467 = vmatpush2.bf16.xpose.msra.mxu0 0
      %468 = vmatprep.subr.bf16.mxu0 0
      %469 = vmatpush2.bf16.xpose.msra.mxu0 0
      %470 = vmatprep.subr.bf16.mxu0 0
      %471 = vmatpush2.bf16.xpose.msra.mxu0 0
      %472 = vmatprep.mubr.bf16.mxu0 %v323
      %473 = vmatmul.mubr.bf16.gmra.mxu0 %v322
      %v474 = vpop.f32.mrf.mxu0
      %v475 = vadd.f32 %v435, %v474
      %v476 = vpop.f32.mrf.mxu0
      %v477 = vpop.f32.mrf.mxu0
      %v478 = vpop.f32.mrf.mxu0
      %479 = vdwg.mxu0
      %vm480 = vcmask 125952
      %481 = vst.msk [vmem:[#allocation2] sm:$0xf] %vm480, 0.0
      %482 = vst.msk [vmem:[#allocation2 + $0xc] sm:$0xf] %vm480, 0.0
      %vm483 = vcmask 130048
      %484 = vst.msk [vmem:[#allocation2 + $0x4] sm:$0xff] %vm483, %v475
      %v485 = vld [vmem:[#allocation2] sm:$0xff]
      %486 = vst.msk [vmem:[#allocation3] sm:$0xff] %vm483, %v485
      %v487 = vld [vmem:[#allocation2 + $0x1] sm:$0xff]
      %489 = vrot.lane.b32.xlu0 %v487, 16
      %v490 = vpop.permute.xlu0 %489
      %vm492 = vcmask 261248
      %493 = vst.msk [vmem:[#allocation3] sm:$0xff] %vm492, %v490
      %v494 = vld [vmem:[#allocation2 + $0x2] sm:$0xff]
      %496 = vrot.lane.b32.xlu0 %v494, 32
      %v497 = vpop.permute.xlu0 %496
      %vm499 = vcmask 392448
      %500 = vst.msk [vmem:[#allocation3] sm:$0xff] %vm499, %v497
      %v501 = vld [vmem:[#allocation2 + $0x3] sm:$0xff]
      %503 = vrot.lane.b32.xlu0 %v501, 48
      %v504 = vpop.permute.xlu0 %503
      %vm506 = vcmask 523648
      %507 = vst.msk [vmem:[#allocation3] sm:$0xff] %vm506, %v504
      %v508 = vld [vmem:[#allocation2 + $0x4] sm:$0xff]
      %510 = vrot.lane.b32.xlu0 %v508, 64
      %v511 = vpop.permute.xlu0 %510
      %vm513 = vcmask 654848
      %514 = vst.msk [vmem:[#allocation3] sm:$0xff] %vm513, %v511
      %v515 = vld [vmem:[#allocation2 + $0x5] sm:$0xff]
      %517 = vrot.lane.b32.xlu0 %v515, 80
      %v518 = vpop.permute.xlu0 %517
      %vm520 = vcmask 786048
      %521 = vst.msk [vmem:[#allocation3] sm:$0xff] %vm520, %v518
      %v522 = vld [vmem:[#allocation2 + $0x6] sm:$0xff]
      %524 = vrot.lane.b32.xlu0 %v522, 96
      %v525 = vpop.permute.xlu0 %524
      %vm527 = vcmask 917248
      %528 = vst.msk [vmem:[#allocation3] sm:$0xff] %vm527, %v525
      %v529 = vld [vmem:[#allocation2 + $0x7] sm:$0xff]
      %531 = vrot.lane.b32.xlu0 %v529, 112
      %v532 = vpop.permute.xlu0 %531
      %vm534 = vcmask 1048448
      %535 = vst.msk [vmem:[#allocation3] sm:$0xff] %vm534, %v532
      %v536 = vld [vmem:[#allocation2 + $0x8] sm:$0xff]
      %537 = vst.msk [vmem:[#allocation3 + $0x8] sm:$0xff] %vm483, %v536
      %v538 = vld [vmem:[#allocation3] sm:$0xff]
      %v539 = vld [vmem:[#allocation3 + $0x8] sm:$0xff]
      %v540 = vpack.c.bf16 %v538, %v538
      %v541 = vpack.c.bf16 %v539, %v539
      %v542 = vld [vmem:[%s2] sm:$0xff]
      %v543 = vld [vmem:[%s2 + $0x8] sm:$0xff]
      %v544 = vld [vmem:[%s2 + $0x10] sm:$0xff]
      %v545 = vld [vmem:[%s2 + $0x18] sm:$0xff]
      %v546 = vld [vmem:[%s2 + $0x20] sm:$0xff]
      %v547 = vld [vmem:[%s2 + $0x28] sm:$0xff]
      %v548 = vld [vmem:[%s2 + $0x30] sm:$0xff]
      %v549 = vld [vmem:[%s2 + $0x38] sm:$0xff]
      %v550 = vld [vmem:[%s2 + $0x40] sm:$0xff]
      %v551 = vld [vmem:[%s2 + $0x48] sm:$0xff]
      %v552 = vld [vmem:[%s2 + $0x50] sm:$0xff]
      %v553 = vld [vmem:[%s2 + $0x58] sm:$0xff]
      %v554 = vld [vmem:[%s2 + $0x60] sm:$0xff]
      %v555 = vld [vmem:[%s2 + $0x68] sm:$0xff]
      %v556 = vld [vmem:[%s2 + $0x70] sm:$0xff]
      %v557 = vld [vmem:[%s2 + $0x78] sm:$0xff]
      %v558 = vld [vmem:[%s2 + $0x80] sm:$0xff]
      %v559 = vld [vmem:[%s2 + $0x88] sm:$0xff]
      %v578 = vunpack.c.l.b16 %v542
      %v579 = vunpack.c.h.b16 %v542
      %v580 = vunpack.c.l.b16 %v543
      %v581 = vunpack.c.h.b16 %v543
      %v582 = vunpack.c.l.b16 %v544
      %v583 = vunpack.c.h.b16 %v544
      %v584 = vunpack.c.l.b16 %v545
      %v585 = vunpack.c.h.b16 %v545
      %v586 = vunpack.c.l.b16 %v546
      %v587 = vunpack.c.h.b16 %v546
      %v588 = vunpack.c.l.b16 %v547
      %v589 = vunpack.c.h.b16 %v547
      %v590 = vunpack.c.l.b16 %v548
      %v591 = vunpack.c.h.b16 %v548
      %v592 = vunpack.c.l.b16 %v549
      %v593 = vunpack.c.h.b16 %v549
      %v594 = vunpack.c.l.b16 %v550
      %v595 = vunpack.c.h.b16 %v550
      %v596 = vunpack.c.l.b16 %v551
      %v597 = vunpack.c.h.b16 %v551
      %v598 = vunpack.c.l.b16 %v552
      %v599 = vunpack.c.h.b16 %v552
      %v600 = vunpack.c.l.b16 %v553
      %v601 = vunpack.c.h.b16 %v553
      %v602 = vunpack.c.l.b16 %v554
      %v603 = vunpack.c.h.b16 %v554
      %v604 = vunpack.c.l.b16 %v555
      %v605 = vunpack.c.h.b16 %v555
      %v606 = vunpack.c.l.b16 %v556
      %v607 = vunpack.c.h.b16 %v556
      %v608 = vunpack.c.l.b16 %v557
      %v609 = vunpack.c.h.b16 %v557
      %v610 = vunpack.c.l.b16 %v558
      %v611 = vunpack.c.h.b16 %v558
      %v612 = vunpack.c.l.b16 %v559
      %v613 = vunpack.c.h.b16 %v559
      %v614 = vpack.c.b16 %v580, %v578
      %v615 = vpack.c.b16 %v581, %v579
      %v616 = vpack.c.b16 %v584, %v582
      %v617 = vpack.c.b16 %v585, %v583
      %v618 = vpack.c.b16 %v588, %v586
      %v619 = vpack.c.b16 %v589, %v587
      %v620 = vpack.c.b16 %v592, %v590
      %v621 = vpack.c.b16 %v593, %v591
      %v622 = vpack.c.b16 %v596, %v594
      %v623 = vpack.c.b16 %v597, %v595
      %v624 = vpack.c.b16 %v600, %v598
      %v625 = vpack.c.b16 %v601, %v599
      %v626 = vpack.c.b16 %v604, %v602
      %v627 = vpack.c.b16 %v605, %v603
      %v628 = vpack.c.b16 %v608, %v606
      %v629 = vpack.c.b16 %v609, %v607
      %v630 = vpack.c.b16 %v612, %v610
      %v631 = vpack.c.b16 %v613, %v611
      %v651 = vsel %vm483, %v541, 0
      %653 = vmatprep.subr.bf16.mxu0 %v629
      %654 = vmatpush1.bf16.msra.mxu0 %v628
      %655 = vmatprep.subr.bf16.mxu0 %v627
      %656 = vmatpush1.bf16.msra.mxu0 %v626
      %657 = vmatprep.subr.bf16.mxu0 %v625
      %658 = vmatpush1.bf16.msra.mxu0 %v624
      %659 = vmatprep.subr.bf16.mxu0 %v623
      %660 = vmatpush1.bf16.msra.mxu0 %v622
      %661 = vmatprep.subr.bf16.mxu0 %v621
      %662 = vmatpush1.bf16.msra.mxu0 %v620
      %663 = vmatprep.subr.bf16.mxu0 %v619
      %664 = vmatpush1.bf16.msra.mxu0 %v618
      %665 = vmatprep.subr.bf16.mxu0 %v617
      %666 = vmatpush1.bf16.msra.mxu0 %v616
      %667 = vmatprep.subr.bf16.mxu0 %v615
      %668 = vmatpush1.bf16.msra.mxu0 %v614
      %669 = vmatprep.subr.bf16.mxu0 0
      %670 = vmatpush2.bf16.msra.mxu0 0
      %671 = vmatprep.subr.bf16.mxu0 0
      %672 = vmatpush2.bf16.msra.mxu0 0
      %673 = vmatprep.subr.bf16.mxu0 0
      %674 = vmatpush2.bf16.msra.mxu0 0
      %675 = vmatprep.subr.bf16.mxu0 0
      %676 = vmatpush2.bf16.msra.mxu0 0
      %677 = vmatprep.subr.bf16.mxu0 0
      %678 = vmatpush2.bf16.msra.mxu0 0
      %679 = vmatprep.subr.bf16.mxu0 0
      %680 = vmatpush2.bf16.msra.mxu0 0
      %681 = vmatprep.subr.bf16.mxu0 0
      %682 = vmatpush2.bf16.msra.mxu0 0
      %683 = vmatprep.subr.bf16.mxu0 %v631
      %684 = vmatpush2.bf16.msra.mxu0 %v630
      %685 = vmatprep.mubr.bf16.mxu0 %v651
      %686 = vmatmul.mubr.bf16.gmra.mxu0 %v540
      %v687 = vpop.f32.mrf.mxu0
      %v688 = vadd.f32 0.0, %v687
      %v689 = vpop.f32.mrf.mxu0
      %v690 = vadd.f32 0.0, %v689
      %v691 = vpop.f32.mrf.mxu0
      %v692 = vpop.f32.mrf.mxu0
      %693 = vdwg.mxu0
      %v694 = vld [vmem:[%s3] sm:$0x3]
      %v696 = vlaneseq
      %v697 = vshrl.u32 %v696, 7
      %v698 = vsub.s32 0, %v697
      %v699 = vrot.slane %v694, %v698
      %v700 = vlaneseq
      %v701 = vshrl.u32 %v700, 7
      %v702 = vsub.s32 1, %v701
      %v703 = vrot.slane %v694, %v702
      %v706 = vadd.f32 %v688, %v699
      %v707 = vadd.f32 %v690, %v703
      %v708 = vmax.f32 %v706, %v707
      %709 = vmax.xlane.f32.xlu0 %v708
      %v710 = vpop.xlane.xlu0 %709
      %v711 = vtanh.pop %v710
      %v712 = vmul.f32 %v711, %v307
      %v713 = vmul.f32 %v711, %v309
      %v714 = vmul.f32 %v711, %v311
      %v715 = vmul.f32 %v711, %v313
      %v716 = vmul.f32 %v711, %v315
      %v717 = vmul.f32 %v711, %v317
      %v718 = vrot.slane %v712, 4
      %v719 = vadd.f32 %v712, %v718
      %v720 = vrot.slane %v719, 2
      %v721 = vadd.f32 %v719, %v720
      %v722 = vrot.slane %v721, 1
      %v723 = vadd.f32 %v721, %v722
      %v724 = vrot.slane %v713, 4
      %v725 = vadd.f32 %v713, %v724
      %v726 = vrot.slane %v725, 2
      %v727 = vadd.f32 %v725, %v726
      %v728 = vrot.slane %v727, 1
      %v729 = vadd.f32 %v727, %v728
      %v730 = vrot.slane %v714, 4
      %v731 = vadd.f32 %v714, %v730
      %v732 = vrot.slane %v731, 2
      %v733 = vadd.f32 %v731, %v732
      %v734 = vrot.slane %v733, 1
      %v735 = vadd.f32 %v733, %v734
      %v736 = vrot.slane %v715, 4
      %v737 = vadd.f32 %v715, %v736
      %v738 = vrot.slane %v737, 2
      %v739 = vadd.f32 %v737, %v738
      %v740 = vrot.slane %v739, 1
      %v741 = vadd.f32 %v739, %v740
      %v742 = vrot.slane %v716, 4
      %v743 = vadd.f32 %v716, %v742
      %v744 = vrot.slane %v743, 2
      %v745 = vadd.f32 %v743, %v744
      %v746 = vrot.slane %v745, 1
      %v747 = vadd.f32 %v745, %v746
      %v748 = vrot.slane %v717, 4
      %v749 = vadd.f32 %v717, %v748
      %v750 = vrot.slane %v749, 2
      %v751 = vadd.f32 %v749, %v750
      %v752 = vrot.slane %v751, 1
      %v753 = vadd.f32 %v751, %v752
      %v754 = vld [vmem:[%s4] sm:$0xff]
      %v755 = vld [vmem:[%s4 + $0x8] sm:$0xff]
      %v756 = vld [vmem:[%s4 + $0x10] sm:$0xff]
      %v757 = vld [vmem:[%s4 + $0x18] sm:$0xff]
      %v758 = vld [vmem:[%s4 + $0x20] sm:$0xff]
      %v759 = vld [vmem:[%s4 + $0x28] sm:$0xff]
      %v760 = vld [vmem:[%s4 + $0x30] sm:$0xff]
      %v761 = vld [vmem:[%s4 + $0x38] sm:$0xff]
      %v762 = vld [vmem:[%s4 + $0x40] sm:$0xff]
      %v763 = vld [vmem:[%s4 + $0x48] sm:$0xff]
      %v764 = vld [vmem:[%s4 + $0x50] sm:$0xff]
      %v765 = vld [vmem:[%s4 + $0x58] sm:$0xff]
      %v766 = vld [vmem:[%s4 + $0x60] sm:$0xff]
      %v767 = vld [vmem:[%s4 + $0x68] sm:$0xff]
      %v768 = vld [vmem:[%s4 + $0x70] sm:$0xff]
      %v769 = vld [vmem:[%s4 + $0x78] sm:$0xff]
      %v770 = vld [vmem:[%s4 + $0x80] sm:$0xff]
      %v771 = vld [vmem:[%s4 + $0x88] sm:$0xff]
      %v772 = vld [vmem:[%s4 + $0x90] sm:$0xff]
      %v773 = vld [vmem:[%s4 + $0x98] sm:$0xff]
      %v774 = vld [vmem:[%s4 + $0xa0] sm:$0xff]
      %v775 = vld [vmem:[%s4 + $0xa8] sm:$0xff]
      %v776 = vld [vmem:[%s4 + $0xb0] sm:$0xff]
      %v777 = vld [vmem:[%s4 + $0xb8] sm:$0xff]
      %v778 = vld [vmem:[%s4 + $0xc0] sm:$0xff]
      %v779 = vld [vmem:[%s4 + $0xc8] sm:$0xff]
      %v780 = vld [vmem:[%s4 + $0xd0] sm:$0xff]
      %v781 = vld [vmem:[%s4 + $0xd8] sm:$0xff]
      %v782 = vld [vmem:[%s4 + $0xe0] sm:$0xff]
      %v783 = vld [vmem:[%s4 + $0xe8] sm:$0xff]
      %v784 = vld [vmem:[%s4 + $0xf0] sm:$0xff]
      %v785 = vld [vmem:[%s4 + $0xf8] sm:$0xff]
      %v786 = vld [vmem:[%s4 + $0x100] sm:$0xff]
      %v787 = vld [vmem:[%s4 + $0x108] sm:$0xff]
      %v788 = vld [vmem:[%s4 + $0x110] sm:$0xff]
      %v789 = vld [vmem:[%s4 + $0x118] sm:$0xff]
      %v790 = vld [vmem:[%s4 + $0x120] sm:$0xff]
      %v791 = vld [vmem:[%s4 + $0x128] sm:$0xff]
      %v792 = vld [vmem:[%s4 + $0x130] sm:$0xff]
      %v793 = vld [vmem:[%s4 + $0x138] sm:$0xff]
      %v794 = vld [vmem:[%s4 + $0x140] sm:$0xff]
      %v795 = vld [vmem:[%s4 + $0x148] sm:$0xff]
      %v796 = vld [vmem:[%s4 + $0x150] sm:$0xff]
      %v797 = vld [vmem:[%s4 + $0x158] sm:$0xff]
      %v798 = vld [vmem:[%s4 + $0x160] sm:$0xff]
      %v799 = vld [vmem:[%s4 + $0x168] sm:$0xff]
      %v800 = vld [vmem:[%s4 + $0x170] sm:$0xff]
      %v801 = vld [vmem:[%s4 + $0x178] sm:$0xff]
      %v802 = vld [vmem:[%s4 + $0x180] sm:$0xff]
      %v803 = vld [vmem:[%s4 + $0x188] sm:$0xff]
      %v804 = vld [vmem:[%s4 + $0x190] sm:$0xff]
      %v805 = vld [vmem:[%s4 + $0x198] sm:$0xff]
      %v806 = vld [vmem:[%s4 + $0x1a0] sm:$0xff]
      %v807 = vld [vmem:[%s4 + $0x1a8] sm:$0xff]
      %v808 = vld [vmem:[%s4 + $0x1b0] sm:$0xff]
      %v809 = vld [vmem:[%s4 + $0x1b8] sm:$0xff]
      %v810 = vld [vmem:[%s4 + $0x1c0] sm:$0xff]
      %v811 = vld [vmem:[%s4 + $0x1c8] sm:$0xff]
      %v812 = vld [vmem:[%s4 + $0x1d0] sm:$0xff]
      %v813 = vld [vmem:[%s4 + $0x1d8] sm:$0xff]
      %v814 = vld [vmem:[%s4 + $0x1e0] sm:$0xff]
      %v815 = vld [vmem:[%s4 + $0x1e8] sm:$0xff]
      %v816 = vld [vmem:[%s4 + $0x1f0] sm:$0xff]
      %v817 = vld [vmem:[%s4 + $0x1f8] sm:$0xff]
      %v818 = vld [vmem:[%s4 + $0x200] sm:$0xff]
      %v819 = vld [vmem:[%s4 + $0x208] sm:$0xff]
      %v820 = vld [vmem:[%s4 + $0x210] sm:$0xff]
      %v821 = vld [vmem:[%s4 + $0x218] sm:$0xff]
      %v822 = vld [vmem:[%s4 + $0x220] sm:$0xff]
      %v823 = vld [vmem:[%s4 + $0x228] sm:$0xff]
      %v824 = vld [vmem:[%s4 + $0x230] sm:$0xff]
      %v825 = vld [vmem:[%s4 + $0x238] sm:$0xff]
      %v826 = vld [vmem:[%s4 + $0x240] sm:$0xff]
      %v827 = vld [vmem:[%s4 + $0x248] sm:$0xff]
      %v828 = vld [vmem:[%s4 + $0x250] sm:$0xff]
      %v829 = vld [vmem:[%s4 + $0x258] sm:$0xff]
      %v830 = vld [vmem:[%s4 + $0x260] sm:$0xff]
      %v831 = vld [vmem:[%s4 + $0x268] sm:$0xff]
      %v832 = vld [vmem:[%s4 + $0x270] sm:$0xff]
      %v833 = vld [vmem:[%s4 + $0x278] sm:$0xff]
      %v834 = vld [vmem:[%s4 + $0x280] sm:$0xff]
      %v835 = vld [vmem:[%s4 + $0x288] sm:$0xff]
      %v836 = vld [vmem:[%s4 + $0x290] sm:$0xff]
      %v837 = vld [vmem:[%s4 + $0x298] sm:$0xff]
      %v838 = vld [vmem:[%s4 + $0x2a0] sm:$0xff]
      %v839 = vld [vmem:[%s4 + $0x2a8] sm:$0xff]
      %v840 = vld [vmem:[%s4 + $0x2b0] sm:$0xff]
      %v841 = vld [vmem:[%s4 + $0x2b8] sm:$0xff]
      %v842 = vld [vmem:[%s4 + $0x2c0] sm:$0xff]
      %v843 = vld [vmem:[%s4 + $0x2c8] sm:$0xff]
      %v844 = vld [vmem:[%s4 + $0x2d0] sm:$0xff]
      %v845 = vld [vmem:[%s4 + $0x2d8] sm:$0xff]
      %v846 = vld [vmem:[%s4 + $0x2e0] sm:$0xff]
      %v847 = vld [vmem:[%s4 + $0x2e8] sm:$0xff]
      %v848 = vld [vmem:[%s4 + $0x2f0] sm:$0xff]
      %v849 = vld [vmem:[%s4 + $0x2f8] sm:$0xff]
      %v850 = vld [vmem:[%s5] sm:$0x1]
      %851 = vmatprep.subr.mxu0 0.0
      %852 = vmatpush1.msra.mxu0 %v769
      %853 = vmatprep.subr.mxu0 0.0
      %854 = vmatpush1.msra.mxu0 %v768
      %855 = vmatprep.subr.mxu0 0.0
      %856 = vmatpush1.msra.mxu0 %v767
      %857 = vmatprep.subr.mxu0 0.0
      %858 = vmatpush1.msra.mxu0 %v766
      %859 = vmatprep.subr.mxu0 0.0
      %860 = vmatpush1.msra.mxu0 %v765
      %861 = vmatprep.subr.mxu0 0.0
      %862 = vmatpush1.msra.mxu0 %v764
      %863 = vmatprep.subr.mxu0 0.0
      %864 = vmatpush1.msra.mxu0 %v763
      %865 = vmatprep.subr.mxu0 0.0
      %866 = vmatpush1.msra.mxu0 %v762
      %867 = vmatprep.subr.mxu0 0.0
      %868 = vmatpush1.msra.mxu0 %v761
      %869 = vmatprep.subr.mxu0 0.0
      %870 = vmatpush1.msra.mxu0 %v760
      %871 = vmatprep.subr.mxu0 0.0
      %872 = vmatpush1.msra.mxu0 %v759
      %873 = vmatprep.subr.mxu0 0.0
      %874 = vmatpush1.msra.mxu0 %v758
      %875 = vmatprep.subr.mxu0 0.0
      %876 = vmatpush1.msra.mxu0 %v757
      %877 = vmatprep.subr.mxu0 0.0
      %878 = vmatpush1.msra.mxu0 %v756
      %879 = vmatprep.subr.mxu0 0.0
      %880 = vmatpush1.msra.mxu0 %v755
      %881 = vmatprep.subr.mxu0 0.0
      %882 = vmatpush1.msra.mxu0 %v754
      %883 = vmatprep.subr.mxu0 0.0
      %884 = vmatpush2.msra.mxu0 %v785
      %885 = vmatprep.subr.mxu0 0.0
      %886 = vmatpush2.msra.mxu0 %v784
      %887 = vmatprep.subr.mxu0 0.0
      %888 = vmatpush2.msra.mxu0 %v783
      %889 = vmatprep.subr.mxu0 0.0
      %890 = vmatpush2.msra.mxu0 %v782
      %891 = vmatprep.subr.mxu0 0.0
      %892 = vmatpush2.msra.mxu0 %v781
      %893 = vmatprep.subr.mxu0 0.0
      %894 = vmatpush2.msra.mxu0 %v780
      %895 = vmatprep.subr.mxu0 0.0
      %896 = vmatpush2.msra.mxu0 %v779
      %897 = vmatprep.subr.mxu0 0.0
      %898 = vmatpush2.msra.mxu0 %v778
      %899 = vmatprep.subr.mxu0 0.0
      %900 = vmatpush2.msra.mxu0 %v777
      %901 = vmatprep.subr.mxu0 0.0
      %902 = vmatpush2.msra.mxu0 %v776
      %903 = vmatprep.subr.mxu0 0.0
      %904 = vmatpush2.msra.mxu0 %v775
      %905 = vmatprep.subr.mxu0 0.0
      %906 = vmatpush2.msra.mxu0 %v774
      %907 = vmatprep.subr.mxu0 0.0
      %908 = vmatpush2.msra.mxu0 %v773
      %909 = vmatprep.subr.mxu0 0.0
      %910 = vmatpush2.msra.mxu0 %v772
      %911 = vmatprep.subr.mxu0 0.0
      %912 = vmatpush2.msra.mxu0 %v771
      %913 = vmatprep.subr.mxu0 0.0
      %914 = vmatpush2.msra.mxu0 %v770
      %915 = vmatprep.mubr.f32.mxu0 %v729
      %916 = vmatmul.mubr.f32.gmra.mxu0 %v723
      %v917 = vpop.f32.mrf.mxu0
      %v918 = vadd.f32 %v850, %v917
      %v919 = vpop.f32.mrf.mxu0
      %920 = vdwg.mxu0
      %921 = vmatprep.subr.mxu0 0.0
      %922 = vmatpush1.msra.mxu0 %v801
      %923 = vmatprep.subr.mxu0 0.0
      %924 = vmatpush1.msra.mxu0 %v800
      %925 = vmatprep.subr.mxu0 0.0
      %926 = vmatpush1.msra.mxu0 %v799
      %927 = vmatprep.subr.mxu0 0.0
      %928 = vmatpush1.msra.mxu0 %v798
      %929 = vmatprep.subr.mxu0 0.0
      %930 = vmatpush1.msra.mxu0 %v797
      %931 = vmatprep.subr.mxu0 0.0
      %932 = vmatpush1.msra.mxu0 %v796
      %933 = vmatprep.subr.mxu0 0.0
      %934 = vmatpush1.msra.mxu0 %v795
      %935 = vmatprep.subr.mxu0 0.0
      %936 = vmatpush1.msra.mxu0 %v794
      %937 = vmatprep.subr.mxu0 0.0
      %938 = vmatpush1.msra.mxu0 %v793
      %939 = vmatprep.subr.mxu0 0.0
      %940 = vmatpush1.msra.mxu0 %v792
      %941 = vmatprep.subr.mxu0 0.0
      %942 = vmatpush1.msra.mxu0 %v791
      %943 = vmatprep.subr.mxu0 0.0
      %944 = vmatpush1.msra.mxu0 %v790
      %945 = vmatprep.subr.mxu0 0.0
      %946 = vmatpush1.msra.mxu0 %v789
      %947 = vmatprep.subr.mxu0 0.0
      %948 = vmatpush1.msra.mxu0 %v788
      %949 = vmatprep.subr.mxu0 0.0
      %950 = vmatpush1.msra.mxu0 %v787
      %951 = vmatprep.subr.mxu0 0.0
      %952 = vmatpush1.msra.mxu0 %v786
      %953 = vmatprep.subr.mxu0 0.0
      %954 = vmatpush2.msra.mxu0 %v817
      %955 = vmatprep.subr.mxu0 0.0
      %956 = vmatpush2.msra.mxu0 %v816
      %957 = vmatprep.subr.mxu0 0.0
      %958 = vmatpush2.msra.mxu0 %v815
      %959 = vmatprep.subr.mxu0 0.0
      %960 = vmatpush2.msra.mxu0 %v814
      %961 = vmatprep.subr.mxu0 0.0
      %962 = vmatpush2.msra.mxu0 %v813
      %963 = vmatprep.subr.mxu0 0.0
      %964 = vmatpush2.msra.mxu0 %v812
      %965 = vmatprep.subr.mxu0 0.0
      %966 = vmatpush2.msra.mxu0 %v811
      %967 = vmatprep.subr.mxu0 0.0
      %968 = vmatpush2.msra.mxu0 %v810
      %969 = vmatprep.subr.mxu0 0.0
      %970 = vmatpush2.msra.mxu0 %v809
      %971 = vmatprep.subr.mxu0 0.0
      %972 = vmatpush2.msra.mxu0 %v808
      %973 = vmatprep.subr.mxu0 0.0
      %974 = vmatpush2.msra.mxu0 %v807
      %975 = vmatprep.subr.mxu0 0.0
      %976 = vmatpush2.msra.mxu0 %v806
      %977 = vmatprep.subr.mxu0 0.0
      %978 = vmatpush2.msra.mxu0 %v805
      %979 = vmatprep.subr.mxu0 0.0
      %980 = vmatpush2.msra.mxu0 %v804
      %981 = vmatprep.subr.mxu0 0.0
      %982 = vmatpush2.msra.mxu0 %v803
      %983 = vmatprep.subr.mxu0 0.0
      %984 = vmatpush2.msra.mxu0 %v802
      %985 = vmatprep.mubr.f32.mxu0 %v741
      %986 = vmatmul.mubr.f32.gmra.mxu0 %v735
      %v987 = vpop.f32.mrf.mxu0
      %v988 = vadd.f32 %v918, %v987
      %v989 = vpop.f32.mrf.mxu0
      %990 = vdwg.mxu0
      %991 = vmatprep.subr.mxu0 0.0
      %992 = vmatpush1.msra.mxu0 %v833
      %993 = vmatprep.subr.mxu0 0.0
      %994 = vmatpush1.msra.mxu0 %v832
      %995 = vmatprep.subr.mxu0 0.0
      %996 = vmatpush1.msra.mxu0 %v831
      %997 = vmatprep.subr.mxu0 0.0
      %998 = vmatpush1.msra.mxu0 %v830
      %999 = vmatprep.subr.mxu0 0.0
      %1000 = vmatpush1.msra.mxu0 %v829
      %1001 = vmatprep.subr.mxu0 0.0
      %1002 = vmatpush1.msra.mxu0 %v828
      %1003 = vmatprep.subr.mxu0 0.0
      %1004 = vmatpush1.msra.mxu0 %v827
      %1005 = vmatprep.subr.mxu0 0.0
      %1006 = vmatpush1.msra.mxu0 %v826
      %1007 = vmatprep.subr.mxu0 0.0
      %1008 = vmatpush1.msra.mxu0 %v825
      %1009 = vmatprep.subr.mxu0 0.0
      %1010 = vmatpush1.msra.mxu0 %v824
      %1011 = vmatprep.subr.mxu0 0.0
      %1012 = vmatpush1.msra.mxu0 %v823
      %1013 = vmatprep.subr.mxu0 0.0
      %1014 = vmatpush1.msra.mxu0 %v822
      %1015 = vmatprep.subr.mxu0 0.0
      %1016 = vmatpush1.msra.mxu0 %v821
      %1017 = vmatprep.subr.mxu0 0.0
      %1018 = vmatpush1.msra.mxu0 %v820
      %1019 = vmatprep.subr.mxu0 0.0
      %1020 = vmatpush1.msra.mxu0 %v819
      %1021 = vmatprep.subr.mxu0 0.0
      %1022 = vmatpush1.msra.mxu0 %v818
      %1023 = vmatprep.subr.mxu0 0.0
      %1024 = vmatpush2.msra.mxu0 %v849
      %1025 = vmatprep.subr.mxu0 0.0
      %1026 = vmatpush2.msra.mxu0 %v848
      %1027 = vmatprep.subr.mxu0 0.0
      %1028 = vmatpush2.msra.mxu0 %v847
      %1029 = vmatprep.subr.mxu0 0.0
      %1030 = vmatpush2.msra.mxu0 %v846
      %1031 = vmatprep.subr.mxu0 0.0
      %1032 = vmatpush2.msra.mxu0 %v845
      %1033 = vmatprep.subr.mxu0 0.0
      %1034 = vmatpush2.msra.mxu0 %v844
      %1035 = vmatprep.subr.mxu0 0.0
      %1036 = vmatpush2.msra.mxu0 %v843
      %1037 = vmatprep.subr.mxu0 0.0
      %1038 = vmatpush2.msra.mxu0 %v842
      %1039 = vmatprep.subr.mxu0 0.0
      %1040 = vmatpush2.msra.mxu0 %v841
      %1041 = vmatprep.subr.mxu0 0.0
      %1042 = vmatpush2.msra.mxu0 %v840
      %1043 = vmatprep.subr.mxu0 0.0
      %1044 = vmatpush2.msra.mxu0 %v839
      %1045 = vmatprep.subr.mxu0 0.0
      %1046 = vmatpush2.msra.mxu0 %v838
      %1047 = vmatprep.subr.mxu0 0.0
      %1048 = vmatpush2.msra.mxu0 %v837
      %1049 = vmatprep.subr.mxu0 0.0
      %1050 = vmatpush2.msra.mxu0 %v836
      %1051 = vmatprep.subr.mxu0 0.0
      %1052 = vmatpush2.msra.mxu0 %v835
      %1053 = vmatprep.subr.mxu0 0.0
      %1054 = vmatpush2.msra.mxu0 %v834
      %1055 = vmatprep.mubr.f32.mxu0 %v753
      %1056 = vmatmul.mubr.f32.gmra.mxu0 %v747
      %v1057 = vpop.f32.mrf.mxu0
      %v1058 = vadd.f32 %v988, %v1057
      %v1059 = vpop.f32.mrf.mxu0
      %1060 = vdwg.mxu0
      %v1061 = vxor.u32 %v1058, 2147483648
      %v1062 = vmul.f32 %v1061, 1.442695
      %v1063 = vpow.pop %v1062
      %v1064 = vadd.f32 %v1063, 1.0
      %v1065 = vrcp.pop %v1064
      %v1066 = vmul.f32 1.0, %v1065
      %vm1067 = vcmask 122880
      %1068 = vst.msk [vmem:[%s247] sm:$0x1] %vm1067, %v1066
      %p1069 = scmp.lt.s32.totalorder %s17, 1
      %s1070 = scalar_select %p1069, %s17, 1
      %s1071 = scalar_lea.vmem %s6, %s1070
      // Predicated region
      $region45: #{classify_forward.3} parent=43 // pred_check
        %p1072 = pneg %p166
      $region46: #{classify_forward.3} parent=43 // pred_check_branch
        %1074 = sbr.rel (%p1072) target = $region48
      $region47: #{classify_forward.3} parent=43 // pred_region
        _
      $region48: #{classify_forward.3} parent=43 // pred_fallthru
        _
    $region44: #{classify_forward.3} parent=5 // pred_fallthru
      _
    %p1075 = scmp.le.s32.totalorder 2, %s12
    // Predicated region
    $region49: #{classify_forward.3} parent=5 // pred_check
      %p1076 = pneg %p1075
    $region50: #{classify_forward.3} parent=5 // pred_check_branch
      %1078 = sbr.rel (%p1076) target = $region52
    $region51: #{classify_forward.3} parent=5 // pred_region
      %s1079 = ssub.s32 %s12, 2
      // Predicated region
      $region53: #{classify_forward.3} parent=51 // pred_check
        %p1080 = pneg %p172
      $region54: #{classify_forward.3} parent=51 // pred_check_branch
        %1082 = sbr.rel (%p1080) target = $region56
      $region55: #{classify_forward.3} parent=51 // pred_region
        %p1083 = scmp.lt.s32.totalorder %s18, 1
        %s1084 = scalar_select %p1083, %s18, 1
        %s1085 = scalar_lea.vmem %s6, %s1084
      $region56: #{classify_forward.3} parent=51 // pred_fallthru
        _
    $region52: #{classify_forward.3} parent=5 // pred_fallthru
      _
  $region6: #{classify_forward.3} parent=0 // loop_footer
    %s16 = sadd.s32 1, %s12
  $region7: #{classify_forward.3} parent=0 // loop_footer_branch
    %11 = sbr.rel target = $region3
  $region8: #{classify_forward.3} parent=0 // loop_exit
    _

// kernel: classify_forward.2
$region0: #{classify_forward.2}
  #allocation0 [shape = 'u32[]', space=smem, size = 0x4, offset = 0x4, fixed_abs, tag = 'smem constant byte address 0x4 - core index']
  #allocation1 [shape = 'u32[144,128]{1,0:T(1,128)}', space=vmem, size = 0x12000, scoped, tag = 'internal scratch']
  %s0 = inlined_call_operand.vmem [shape: f32[16,768], index: 0, kind: input, shape index: {}]
  %s1 = inlined_call_operand.vmem [shape: f32[16,16], index: 1, kind: input, shape index: {}]
  %s2 = inlined_call_operand.vmem [shape: bf16[768,768], index: 2, kind: input, shape index: {}]
  %s3 = inlined_call_operand.vmem [shape: bf16[768,1536], index: 3, kind: input, shape index: {}]
  %s4 = inlined_call_operand.vmem [shape: f32[1,1536], index: 4, kind: input, shape index: {}]
  %s5 = inlined_call_operand.vmem [shape: bf16[768,768], index: 5, kind: input, shape index: {}]
  %s6 = inlined_call_operand.vmem [shape: bf16[768,768], index: 6, kind: input, shape index: {}]
  %s7 = inlined_call_operand.vmem [shape: bf16[768,768], index: 7, kind: input, shape index: {}]
  %s8 = inlined_call_operand.vmem [shape: f32[1,768], index: 8, kind: input, shape index: {}]
  %s9 = inlined_call_operand.vmem [shape: bf16[16,768], index: 9, kind: output, shape index: {}]
  %s10 = sld [smem:[#allocation0]]
  $region46: #{classify_forward.2} parent=0
    _
  %s12 = ssub.s32 1, %s10
  %s13 = scalar_select 0, %s12, %s10
  // Predicated region
  $region2: #{classify_forward.2} parent=0 // pred_check
    _
  $region3: #{classify_forward.2} parent=0 // pred_check_branch
    %15 = sbr.rel (0) target = $region5
  $region4: #{classify_forward.2} parent=0 // pred_region
    _
  $region5: #{classify_forward.2} parent=0 // pred_fallthru
    _
  // Predicated region
  $region6: #{classify_forward.2} parent=0 // pred_check
    _
  $region7: #{classify_forward.2} parent=0 // pred_check_branch
    %17 = sbr.rel (0) target = $region9
  $region8: #{classify_forward.2} parent=0 // pred_region
    _
  $region9: #{classify_forward.2} parent=0 // pred_fallthru
    _
  // Predicated region
  $region10: #{classify_forward.2} parent=0 // pred_check
    _
  $region11: #{classify_forward.2} parent=0 // pred_check_branch
    %19 = sbr.rel (0) target = $region13
  $region12: #{classify_forward.2} parent=0 // pred_region
    _
  $region13: #{classify_forward.2} parent=0 // pred_fallthru
    _
  // Predicated region
  $region14: #{classify_forward.2} parent=0 // pred_check
    _
  $region15: #{classify_forward.2} parent=0 // pred_check_branch
    %21 = sbr.rel (0) target = $region17
  $region16: #{classify_forward.2} parent=0 // pred_region
    _
  $region17: #{classify_forward.2} parent=0 // pred_fallthru
    _
  // Predicated region
  $region18: #{classify_forward.2} parent=0 // pred_check
    _
  $region19: #{classify_forward.2} parent=0 // pred_check_branch
    %23 = sbr.rel (0) target = $region21
  $region20: #{classify_forward.2} parent=0 // pred_region
    _
  $region21: #{classify_forward.2} parent=0 // pred_fallthru
    _
  // Predicated region
  $region22: #{classify_forward.2} parent=0 // pred_check
    _
  $region23: #{classify_forward.2} parent=0 // pred_check_branch
    %25 = sbr.rel (0) target = $region25
  $region24: #{classify_forward.2} parent=0 // pred_region
    _
  $region25: #{classify_forward.2} parent=0 // pred_fallthru
    _
  // Predicated region
  $region26: #{classify_forward.2} parent=0 // pred_check
    _
  $region27: #{classify_forward.2} parent=0 // pred_check_branch
    %27 = sbr.rel (0) target = $region29
  $region28: #{classify_forward.2} parent=0 // pred_region
    _
  $region29: #{classify_forward.2} parent=0 // pred_fallthru
    _
  // Predicated region
  $region30: #{classify_forward.2} parent=0 // pred_check
    _
  $region31: #{classify_forward.2} parent=0 // pred_check_branch
    %29 = sbr.rel (0) target = $region33
  $region32: #{classify_forward.2} parent=0 // pred_region
    _
  $region33: #{classify_forward.2} parent=0 // pred_fallthru
    _
  // Predicated region
  $region34: #{classify_forward.2} parent=0 // pred_check
    _
  $region35: #{classify_forward.2} parent=0 // pred_check_branch
    %31 = sbr.rel (0) target = $region37
  $region36: #{classify_forward.2} parent=0 // pred_region
    _
  $region37: #{classify_forward.2} parent=0 // pred_fallthru
    _
  %v32 = vld [vmem:[%s0] sm:$0xff]
  %v33 = vld [vmem:[%s0 + $0x8] sm:$0xff]
  %v34 = vld [vmem:[%s0 + $0x10] sm:$0xff]
  %v35 = vld [vmem:[%s0 + $0x18] sm:$0xff]
  %v36 = vld [vmem:[%s0 + $0x20] sm:$0xff]
  %v37 = vld [vmem:[%s0 + $0x28] sm:$0xff]
  %v38 = vld [vmem:[%s0 + $0x30] sm:$0xff]
  %v39 = vld [vmem:[%s0 + $0x38] sm:$0xff]
  %v40 = vld [vmem:[%s0 + $0x40] sm:$0xff]
  %v41 = vld [vmem:[%s0 + $0x48] sm:$0xff]
  %v42 = vld [vmem:[%s0 + $0x50] sm:$0xff]
  %v43 = vld [vmem:[%s0 + $0x58] sm:$0xff]
  %v44 = vld [vmem:[%s1] sm:$0xff]
  %v45 = vld [vmem:[%s1 + $0x8] sm:$0xff]
  %v46 = vpack.c.bf16 %v38, %v32
  %v47 = vpack.c.bf16 %v39, %v33
  %v48 = vpack.c.bf16 %v40, %v34
  %v49 = vpack.c.bf16 %v41, %v35
  %v50 = vpack.c.bf16 %v42, %v36
  %v51 = vpack.c.bf16 %v43, %v37
  %v52 = vld [vmem:[%s2] sm:$0xff]
  %v53 = vld [vmem:[%s2 + $0x8] sm:$0xff]
  %v54 = vld [vmem:[%s2 + $0x10] sm:$0xff]
  %v55 = vld [vmem:[%s2 + $0x18] sm:$0xff]
  %v56 = vld [vmem:[%s2 + $0x20] sm:$0xff]
  %v57 = vld [vmem:[%s2 + $0x28] sm:$0xff]
  %v58 = vld [vmem:[%s2 + $0x30] sm:$0xff]
  %v59 = vld [vmem:[%s2 + $0x38] sm:$0xff]
  %v60 = vld [vmem:[%s2 + $0x40] sm:$0xff]
  %v61 = vld [vmem:[%s2 + $0x48] sm:$0xff]
  %v62 = vld [vmem:[%s2 + $0x50] sm:$0xff]
  %v63 = vld [vmem:[%s2 + $0x58] sm:$0xff]
  %v64 = vld [vmem:[%s2 + $0x60] sm:$0xff]
  %v65 = vld [vmem:[%s2 + $0x68] sm:$0xff]
  %v66 = vld [vmem:[%s2 + $0x70] sm:$0xff]
  %v67 = vld [vmem:[%s2 + $0x78] sm:$0xff]
  %v68 = vld [vmem:[%s2 + $0x80] sm:$0xff]
  %v69 = vld [vmem:[%s2 + $0x88] sm:$0xff]
  %v70 = vld [vmem:[%s2 + $0x90] sm:$0xff]
  %v71 = vld [vmem:[%s2 + $0x98] sm:$0xff]
  %v72 = vld [vmem:[%s2 + $0xa0] sm:$0xff]
  %v73 = vld [vmem:[%s2 + $0xa8] sm:$0xff]
  %v74 = vld [vmem:[%s2 + $0xb0] sm:$0xff]
  %v75 = vld [vmem:[%s2 + $0xb8] sm:$0xff]
  %v76 = vld [vmem:[%s2 + $0xc0] sm:$0xff]
  %v77 = vld [vmem:[%s2 + $0xc8] sm:$0xff]
  %v78 = vld [vmem:[%s2 + $0xd0] sm:$0xff]
  %v79 = vld [vmem:[%s2 + $0xd8] sm:$0xff]
  %v80 = vld [vmem:[%s2 + $0xe0] sm:$0xff]
  %v81 = vld [vmem:[%s2 + $0xe8] sm:$0xff]
  %v82 = vld [vmem:[%s2 + $0xf0] sm:$0xff]
  %v83 = vld [vmem:[%s2 + $0xf8] sm:$0xff]
  %v84 = vld [vmem:[%s2 + $0x100] sm:$0xff]
  %v85 = vld [vmem:[%s2 + $0x108] sm:$0xff]
  %v86 = vld [vmem:[%s2 + $0x110] sm:$0xff]
  %v87 = vld [vmem:[%s2 + $0x118] sm:$0xff]
  %v88 = vld [vmem:[%s2 + $0x120] sm:$0xff]
  %v89 = vld [vmem:[%s2 + $0x128] sm:$0xff]
  %v90 = vld [vmem:[%s2 + $0x130] sm:$0xff]
  %v91 = vld [vmem:[%s2 + $0x138] sm:$0xff]
  %v92 = vld [vmem:[%s2 + $0x140] sm:$0xff]
  %v93 = vld [vmem:[%s2 + $0x148] sm:$0xff]
  %v94 = vld [vmem:[%s2 + $0x150] sm:$0xff]
  %v95 = vld [vmem:[%s2 + $0x158] sm:$0xff]
  %v96 = vld [vmem:[%s2 + $0x160] sm:$0xff]
  %v97 = vld [vmem:[%s2 + $0x168] sm:$0xff]
  %v98 = vld [vmem:[%s2 + $0x170] sm:$0xff]
  %v99 = vld [vmem:[%s2 + $0x178] sm:$0xff]
  %v100 = vld [vmem:[%s2 + $0x180] sm:$0xff]
  %v101 = vld [vmem:[%s2 + $0x188] sm:$0xff]
  %v102 = vld [vmem:[%s2 + $0x190] sm:$0xff]
  %v103 = vld [vmem:[%s2 + $0x198] sm:$0xff]
  %v104 = vld [vmem:[%s2 + $0x1a0] sm:$0xff]
  %v105 = vld [vmem:[%s2 + $0x1a8] sm:$0xff]
  %v106 = vld [vmem:[%s2 + $0x1b0] sm:$0xff]
  %v107 = vld [vmem:[%s2 + $0x1b8] sm:$0xff]
  %v108 = vld [vmem:[%s2 + $0x1c0] sm:$0xff]
  %v109 = vld [vmem:[%s2 + $0x1c8] sm:$0xff]
  %v110 = vld [vmem:[%s2 + $0x1d0] sm:$0xff]
  %v111 = vld [vmem:[%s2 + $0x1d8] sm:$0xff]
  %v112 = vld [vmem:[%s2 + $0x1e0] sm:$0xff]
  %v113 = vld [vmem:[%s2 + $0x1e8] sm:$0xff]
  %v114 = vld [vmem:[%s2 + $0x1f0] sm:$0xff]
  %v115 = vld [vmem:[%s2 + $0x1f8] sm:$0xff]
  %v116 = vld [vmem:[%s2 + $0x200] sm:$0xff]
  %v117 = vld [vmem:[%s2 + $0x208] sm:$0xff]
  %v118 = vld [vmem:[%s2 + $0x210] sm:$0xff]
  %v119 = vld [vmem:[%s2 + $0x218] sm:$0xff]
  %v120 = vld [vmem:[%s2 + $0x220] sm:$0xff]
  %v121 = vld [vmem:[%s2 + $0x228] sm:$0xff]
  %v122 = vld [vmem:[%s2 + $0x230] sm:$0xff]
  %v123 = vld [vmem:[%s2 + $0x238] sm:$0xff]
  %v124 = vld [vmem:[%s2 + $0x240] sm:$0xff]
  %v125 = vld [vmem:[%s2 + $0x248] sm:$0xff]
  %v126 = vld [vmem:[%s2 + $0x250] sm:$0xff]
  %v127 = vld [vmem:[%s2 + $0x258] sm:$0xff]
  %v128 = vld [vmem:[%s2 + $0x260] sm:$0xff]
  %v129 = vld [vmem:[%s2 + $0x268] sm:$0xff]
  %v130 = vld [vmem:[%s2 + $0x270] sm:$0xff]
  %v131 = vld [vmem:[%s2 + $0x278] sm:$0xff]
  %v132 = vld [vmem:[%s2 + $0x280] sm:$0xff]
  %v133 = vld [vmem:[%s2 + $0x288] sm:$0xff]
  %v134 = vld [vmem:[%s2 + $0x290] sm:$0xff]
  %v135 = vld [vmem:[%s2 + $0x298] sm:$0xff]
  %v136 = vld [vmem:[%s2 + $0x2a0] sm:$0xff]
  %v137 = vld [vmem:[%s2 + $0x2a8] sm:$0xff]
  %v138 = vld [vmem:[%s2 + $0x2b0] sm:$0xff]
  %v139 = vld [vmem:[%s2 + $0x2b8] sm:$0xff]
  %v140 = vld [vmem:[%s2 + $0x2c0] sm:$0xff]
  %v141 = vld [vmem:[%s2 + $0x2c8] sm:$0xff]
  %v142 = vld [vmem:[%s2 + $0x2d0] sm:$0xff]
  %v143 = vld [vmem:[%s2 + $0x2d8] sm:$0xff]
  %v144 = vld [vmem:[%s2 + $0x2e0] sm:$0xff]
  %v145 = vld [vmem:[%s2 + $0x2e8] sm:$0xff]
  %v146 = vld [vmem:[%s2 + $0x2f0] sm:$0xff]
  %v147 = vld [vmem:[%s2 + $0x2f8] sm:$0xff]
  %v148 = vld [vmem:[%s2 + $0x300] sm:$0xff]
  %v149 = vld [vmem:[%s2 + $0x308] sm:$0xff]
  %v150 = vld [vmem:[%s2 + $0x310] sm:$0xff]
  %v151 = vld [vmem:[%s2 + $0x318] sm:$0xff]
  %v152 = vld [vmem:[%s2 + $0x320] sm:$0xff]
  %v153 = vld [vmem:[%s2 + $0x328] sm:$0xff]
  %v154 = vld [vmem:[%s2 + $0x330] sm:$0xff]
  %v155 = vld [vmem:[%s2 + $0x338] sm:$0xff]
  %v156 = vld [vmem:[%s2 + $0x340] sm:$0xff]
  %v157 = vld [vmem:[%s2 + $0x348] sm:$0xff]
  %v158 = vld [vmem:[%s2 + $0x350] sm:$0xff]
  %v159 = vld [vmem:[%s2 + $0x358] sm:$0xff]
  %v160 = vld [vmem:[%s2 + $0x360] sm:$0xff]
  %v161 = vld [vmem:[%s2 + $0x368] sm:$0xff]
  %v162 = vld [vmem:[%s2 + $0x370] sm:$0xff]
  %v163 = vld [vmem:[%s2 + $0x378] sm:$0xff]
  %v164 = vld [vmem:[%s2 + $0x380] sm:$0xff]
  %v165 = vld [vmem:[%s2 + $0x388] sm:$0xff]
  %v166 = vld [vmem:[%s2 + $0x390] sm:$0xff]
  %v167 = vld [vmem:[%s2 + $0x398] sm:$0xff]
  %v168 = vld [vmem:[%s2 + $0x3a0] sm:$0xff]
  %v169 = vld [vmem:[%s2 + $0x3a8] sm:$0xff]
  %v170 = vld [vmem:[%s2 + $0x3b0] sm:$0xff]
  %v171 = vld [vmem:[%s2 + $0x3b8] sm:$0xff]
  %v172 = vld [vmem:[%s2 + $0x3c0] sm:$0xff]
  %v173 = vld [vmem:[%s2 + $0x3c8] sm:$0xff]
  %v174 = vld [vmem:[%s2 + $0x3d0] sm:$0xff]
  %v175 = vld [vmem:[%s2 + $0x3d8] sm:$0xff]
  %v176 = vld [vmem:[%s2 + $0x3e0] sm:$0xff]
  %v177 = vld [vmem:[%s2 + $0x3e8] sm:$0xff]
  %v178 = vld [vmem:[%s2 + $0x3f0] sm:$0xff]
  %v179 = vld [vmem:[%s2 + $0x3f8] sm:$0xff]
  %v180 = vld [vmem:[%s2 + $0x400] sm:$0xff]
  %v181 = vld [vmem:[%s2 + $0x408] sm:$0xff]
  %v182 = vld [vmem:[%s2 + $0x410] sm:$0xff]
  %v183 = vld [vmem:[%s2 + $0x418] sm:$0xff]
  %v184 = vld [vmem:[%s2 + $0x420] sm:$0xff]
  %v185 = vld [vmem:[%s2 + $0x428] sm:$0xff]
  %v186 = vld [vmem:[%s2 + $0x430] sm:$0xff]
  %v187 = vld [vmem:[%s2 + $0x438] sm:$0xff]
  %v188 = vld [vmem:[%s2 + $0x440] sm:$0xff]
  %v189 = vld [vmem:[%s2 + $0x448] sm:$0xff]
  %v190 = vld [vmem:[%s2 + $0x450] sm:$0xff]
  %v191 = vld [vmem:[%s2 + $0x458] sm:$0xff]
  %v192 = vld [vmem:[%s2 + $0x460] sm:$0xff]
  %v193 = vld [vmem:[%s2 + $0x468] sm:$0xff]
  %v194 = vld [vmem:[%s2 + $0x470] sm:$0xff]
  %v195 = vld [vmem:[%s2 + $0x478] sm:$0xff]
  %v196 = vld [vmem:[%s2 + $0x480] sm:$0xff]
  %v197 = vld [vmem:[%s2 + $0x488] sm:$0xff]
  %v198 = vld [vmem:[%s2 + $0x490] sm:$0xff]
  %v199 = vld [vmem:[%s2 + $0x498] sm:$0xff]
  %v200 = vld [vmem:[%s2 + $0x4a0] sm:$0xff]
  %v201 = vld [vmem:[%s2 + $0x4a8] sm:$0xff]
  %v202 = vld [vmem:[%s2 + $0x4b0] sm:$0xff]
  %v203 = vld [vmem:[%s2 + $0x4b8] sm:$0xff]
  %v204 = vld [vmem:[%s2 + $0x4c0] sm:$0xff]
  %v205 = vld [vmem:[%s2 + $0x4c8] sm:$0xff]
  %v206 = vld [vmem:[%s2 + $0x4d0] sm:$0xff]
  %v207 = vld [vmem:[%s2 + $0x4d8] sm:$0xff]
  %v208 = vld [vmem:[%s2 + $0x4e0] sm:$0xff]
  %v209 = vld [vmem:[%s2 + $0x4e8] sm:$0xff]
  %v210 = vld [vmem:[%s2 + $0x4f0] sm:$0xff]
  %v211 = vld [vmem:[%s2 + $0x4f8] sm:$0xff]
  %v212 = vld [vmem:[%s2 + $0x500] sm:$0xff]
  %v213 = vld [vmem:[%s2 + $0x508] sm:$0xff]
  %v214 = vld [vmem:[%s2 + $0x510] sm:$0xff]
  %v215 = vld [vmem:[%s2 + $0x518] sm:$0xff]
  %v216 = vld [vmem:[%s2 + $0x520] sm:$0xff]
  %v217 = vld [vmem:[%s2 + $0x528] sm:$0xff]
  %v218 = vld [vmem:[%s2 + $0x530] sm:$0xff]
  %v219 = vld [vmem:[%s2 + $0x538] sm:$0xff]
  %v220 = vld [vmem:[%s2 + $0x540] sm:$0xff]
  %v221 = vld [vmem:[%s2 + $0x548] sm:$0xff]
  %v222 = vld [vmem:[%s2 + $0x550] sm:$0xff]
  %v223 = vld [vmem:[%s2 + $0x558] sm:$0xff]
  %v224 = vld [vmem:[%s2 + $0x560] sm:$0xff]
  %v225 = vld [vmem:[%s2 + $0x568] sm:$0xff]
  %v226 = vld [vmem:[%s2 + $0x570] sm:$0xff]
  %v227 = vld [vmem:[%s2 + $0x578] sm:$0xff]
  %v228 = vld [vmem:[%s2 + $0x580] sm:$0xff]
  %v229 = vld [vmem:[%s2 + $0x588] sm:$0xff]
  %v230 = vld [vmem:[%s2 + $0x590] sm:$0xff]
  %v231 = vld [vmem:[%s2 + $0x598] sm:$0xff]
  %v232 = vld [vmem:[%s2 + $0x5a0] sm:$0xff]
  %v233 = vld [vmem:[%s2 + $0x5a8] sm:$0xff]
  %v234 = vld [vmem:[%s2 + $0x5b0] sm:$0xff]
  %v235 = vld [vmem:[%s2 + $0x5b8] sm:$0xff]
  %v236 = vld [vmem:[%s2 + $0x5c0] sm:$0xff]
  %v237 = vld [vmem:[%s2 + $0x5c8] sm:$0xff]
  %v238 = vld [vmem:[%s2 + $0x5d0] sm:$0xff]
  %v239 = vld [vmem:[%s2 + $0x5d8] sm:$0xff]
  %v240 = vld [vmem:[%s2 + $0x5e0] sm:$0xff]
  %v241 = vld [vmem:[%s2 + $0x5e8] sm:$0xff]
  %v242 = vld [vmem:[%s2 + $0x5f0] sm:$0xff]
  %v243 = vld [vmem:[%s2 + $0x5f8] sm:$0xff]
  %v244 = vld [vmem:[%s2 + $0x600] sm:$0xff]
  %v245 = vld [vmem:[%s2 + $0x608] sm:$0xff]
  %v246 = vld [vmem:[%s2 + $0x610] sm:$0xff]
  %v247 = vld [vmem:[%s2 + $0x618] sm:$0xff]
  %v248 = vld [vmem:[%s2 + $0x620] sm:$0xff]
  %v249 = vld [vmem:[%s2 + $0x628] sm:$0xff]
  %v250 = vld [vmem:[%s2 + $0x630] sm:$0xff]
  %v251 = vld [vmem:[%s2 + $0x638] sm:$0xff]
  %v252 = vld [vmem:[%s2 + $0x640] sm:$0xff]
  %v253 = vld [vmem:[%s2 + $0x648] sm:$0xff]
  %v254 = vld [vmem:[%s2 + $0x650] sm:$0xff]
  %v255 = vld [vmem:[%s2 + $0x658] sm:$0xff]
  %v256 = vld [vmem:[%s2 + $0x660] sm:$0xff]
  %v257 = vld [vmem:[%s2 + $0x668] sm:$0xff]
  %v258 = vld [vmem:[%s2 + $0x670] sm:$0xff]
  %v259 = vld [vmem:[%s2 + $0x678] sm:$0xff]
  %v260 = vld [vmem:[%s2 + $0x680] sm:$0xff]
  %v261 = vld [vmem:[%s2 + $0x688] sm:$0xff]
  %v262 = vld [vmem:[%s2 + $0x690] sm:$0xff]
  %v263 = vld [vmem:[%s2 + $0x698] sm:$0xff]
  %v264 = vld [vmem:[%s2 + $0x6a0] sm:$0xff]
  %v265 = vld [vmem:[%s2 + $0x6a8] sm:$0xff]
  %v266 = vld [vmem:[%s2 + $0x6b0] sm:$0xff]
  %v267 = vld [vmem:[%s2 + $0x6b8] sm:$0xff]
  %v268 = vld [vmem:[%s2 + $0x6c0] sm:$0xff]
  %v269 = vld [vmem:[%s2 + $0x6c8] sm:$0xff]
  %v270 = vld [vmem:[%s2 + $0x6d0] sm:$0xff]
  %v271 = vld [vmem:[%s2 + $0x6d8] sm:$0xff]
  %v272 = vld [vmem:[%s2 + $0x6e0] sm:$0xff]
  %v273 = vld [vmem:[%s2 + $0x6e8] sm:$0xff]
  %v274 = vld [vmem:[%s2 + $0x6f0] sm:$0xff]
  %v275 = vld [vmem:[%s2 + $0x6f8] sm:$0xff]
  %v276 = vld [vmem:[%s2 + $0x700] sm:$0xff]
  %v277 = vld [vmem:[%s2 + $0x708] sm:$0xff]
  %v278 = vld [vmem:[%s2 + $0x710] sm:$0xff]
  %v279 = vld [vmem:[%s2 + $0x718] sm:$0xff]
  %v280 = vld [vmem:[%s2 + $0x720] sm:$0xff]
  %v281 = vld [vmem:[%s2 + $0x728] sm:$0xff]
  %v282 = vld [vmem:[%s2 + $0x730] sm:$0xff]
  %v283 = vld [vmem:[%s2 + $0x738] sm:$0xff]
  %v284 = vld [vmem:[%s2 + $0x740] sm:$0xff]
  %v285 = vld [vmem:[%s2 + $0x748] sm:$0xff]
  %v286 = vld [vmem:[%s2 + $0x750] sm:$0xff]
  %v287 = vld [vmem:[%s2 + $0x758] sm:$0xff]
  %v288 = vld [vmem:[%s2 + $0x760] sm:$0xff]
  %v289 = vld [vmem:[%s2 + $0x768] sm:$0xff]
  %v290 = vld [vmem:[%s2 + $0x770] sm:$0xff]
  %v291 = vld [vmem:[%s2 + $0x778] sm:$0xff]
  %v292 = vld [vmem:[%s2 + $0x780] sm:$0xff]
  %v293 = vld [vmem:[%s2 + $0x788] sm:$0xff]
  %v294 = vld [vmem:[%s2 + $0x790] sm:$0xff]
  %v295 = vld [vmem:[%s2 + $0x798] sm:$0xff]
  %v296 = vld [vmem:[%s2 + $0x7a0] sm:$0xff]
  %v297 = vld [vmem:[%s2 + $0x7a8] sm:$0xff]
  %v298 = vld [vmem:[%s2 + $0x7b0] sm:$0xff]
  %v299 = vld [vmem:[%s2 + $0x7b8] sm:$0xff]
  %v300 = vld [vmem:[%s2 + $0x7c0] sm:$0xff]
  %v301 = vld [vmem:[%s2 + $0x7c8] sm:$0xff]
  %v302 = vld [vmem:[%s2 + $0x7d0] sm:$0xff]
  %v303 = vld [vmem:[%s2 + $0x7d8] sm:$0xff]
  %v304 = vld [vmem:[%s2 + $0x7e0] sm:$0xff]
  %v305 = vld [vmem:[%s2 + $0x7e8] sm:$0xff]
  %v306 = vld [vmem:[%s2 + $0x7f0] sm:$0xff]
  %v307 = vld [vmem:[%s2 + $0x7f8] sm:$0xff]
  %v308 = vld [vmem:[%s2 + $0x800] sm:$0xff]
  %v309 = vld [vmem:[%s2 + $0x808] sm:$0xff]
  %v310 = vld [vmem:[%s2 + $0x810] sm:$0xff]
  %v311 = vld [vmem:[%s2 + $0x818] sm:$0xff]
  %v312 = vld [vmem:[%s2 + $0x820] sm:$0xff]
  %v313 = vld [vmem:[%s2 + $0x828] sm:$0xff]
  %v314 = vld [vmem:[%s2 + $0x830] sm:$0xff]
  %v315 = vld [vmem:[%s2 + $0x838] sm:$0xff]
  %v316 = vld [vmem:[%s2 + $0x840] sm:$0xff]
  %v317 = vld [vmem:[%s2 + $0x848] sm:$0xff]
  %v318 = vld [vmem:[%s2 + $0x850] sm:$0xff]
  %v319 = vld [vmem:[%s2 + $0x858] sm:$0xff]
  %v320 = vld [vmem:[%s2 + $0x860] sm:$0xff]
  %v321 = vld [vmem:[%s2 + $0x868] sm:$0xff]
  %v322 = vld [vmem:[%s2 + $0x870] sm:$0xff]
  %v323 = vld [vmem:[%s2 + $0x878] sm:$0xff]
  %v324 = vld [vmem:[%s2 + $0x880] sm:$0xff]
  %v325 = vld [vmem:[%s2 + $0x888] sm:$0xff]
  %v326 = vld [vmem:[%s2 + $0x890] sm:$0xff]
  %v327 = vld [vmem:[%s2 + $0x898] sm:$0xff]
  %v328 = vld [vmem:[%s2 + $0x8a0] sm:$0xff]
  %v329 = vld [vmem:[%s2 + $0x8a8] sm:$0xff]
  %v330 = vld [vmem:[%s2 + $0x8b0] sm:$0xff]
  %v331 = vld [vmem:[%s2 + $0x8b8] sm:$0xff]
  %v332 = vld [vmem:[%s2 + $0x8c0] sm:$0xff]
  %v333 = vld [vmem:[%s2 + $0x8c8] sm:$0xff]
  %v334 = vld [vmem:[%s2 + $0x8d0] sm:$0xff]
  %v335 = vld [vmem:[%s2 + $0x8d8] sm:$0xff]
  %v336 = vld [vmem:[%s2 + $0x8e0] sm:$0xff]
  %v337 = vld [vmem:[%s2 + $0x8e8] sm:$0xff]
  %v338 = vld [vmem:[%s2 + $0x8f0] sm:$0xff]
  %v339 = vld [vmem:[%s2 + $0x8f8] sm:$0xff]
  %v628 = vunpack.c.l.b16 %v52
  %v629 = vunpack.c.h.b16 %v52
  %v630 = vunpack.c.l.b16 %v53
  %v631 = vunpack.c.h.b16 %v53
  %v632 = vunpack.c.l.b16 %v54
  %v633 = vunpack.c.h.b16 %v54
  %v634 = vunpack.c.l.b16 %v55
  %v635 = vunpack.c.h.b16 %v55
  %v636 = vunpack.c.l.b16 %v56
  %v637 = vunpack.c.h.b16 %v56
  %v638 = vunpack.c.l.b16 %v57
  %v639 = vunpack.c.h.b16 %v57
  %v640 = vunpack.c.l.b16 %v58
  %v641 = vunpack.c.h.b16 %v58
  %v642 = vunpack.c.l.b16 %v59
  %v643 = vunpack.c.h.b16 %v59
  %v644 = vunpack.c.l.b16 %v60
  %v645 = vunpack.c.h.b16 %v60
  %v646 = vunpack.c.l.b16 %v61
  %v647 = vunpack.c.h.b16 %v61
  %v648 = vunpack.c.l.b16 %v62
  %v649 = vunpack.c.h.b16 %v62
  %v650 = vunpack.c.l.b16 %v63
  %v651 = vunpack.c.h.b16 %v63
  %v652 = vunpack.c.l.b16 %v64
  %v653 = vunpack.c.h.b16 %v64
  %v654 = vunpack.c.l.b16 %v65
  %v655 = vunpack.c.h.b16 %v65
  %v656 = vunpack.c.l.b16 %v66
  %v657 = vunpack.c.h.b16 %v66
  %v658 = vunpack.c.l.b16 %v67
  %v659 = vunpack.c.h.b16 %v67
  %v660 = vunpack.c.l.b16 %v68
  %v661 = vunpack.c.h.b16 %v68
  %v662 = vunpack.c.l.b16 %v69
  %v663 = vunpack.c.h.b16 %v69
  %v664 = vunpack.c.l.b16 %v70
  %v665 = vunpack.c.h.b16 %v70
  %v666 = vunpack.c.l.b16 %v71
  %v667 = vunpack.c.h.b16 %v71
  %v668 = vunpack.c.l.b16 %v72
  %v669 = vunpack.c.h.b16 %v72
  %v670 = vunpack.c.l.b16 %v73
  %v671 = vunpack.c.h.b16 %v73
  %v672 = vunpack.c.l.b16 %v74
  %v673 = vunpack.c.h.b16 %v74
  %v674 = vunpack.c.l.b16 %v75
  %v675 = vunpack.c.h.b16 %v75
  %v676 = vunpack.c.l.b16 %v76
  %v677 = vunpack.c.h.b16 %v76
  %v678 = vunpack.c.l.b16 %v77
  %v679 = vunpack.c.h.b16 %v77
  %v680 = vunpack.c.l.b16 %v78
  %v681 = vunpack.c.h.b16 %v78
  %v682 = vunpack.c.l.b16 %v79
  %v683 = vunpack.c.h.b16 %v79
  %v684 = vunpack.c.l.b16 %v80
  %v685 = vunpack.c.h.b16 %v80
  %v686 = vunpack.c.l.b16 %v81
  %v687 = vunpack.c.h.b16 %v81
  %v688 = vunpack.c.l.b16 %v82
  %v689 = vunpack.c.h.b16 %v82
  %v690 = vunpack.c.l.b16 %v83
  %v691 = vunpack.c.h.b16 %v83
  %v692 = vunpack.c.l.b16 %v84
  %v693 = vunpack.c.h.b16 %v84
  %v694 = vunpack.c.l.b16 %v85
  %v695 = vunpack.c.h.b16 %v85
  %v696 = vunpack.c.l.b16 %v86
  %v697 = vunpack.c.h.b16 %v86
  %v698 = vunpack.c.l.b16 %v87
  %v699 = vunpack.c.h.b16 %v87
  %v700 = vunpack.c.l.b16 %v88
  %v701 = vunpack.c.h.b16 %v88
  %v702 = vunpack.c.l.b16 %v89
  %v703 = vunpack.c.h.b16 %v89
  %v704 = vunpack.c.l.b16 %v90
  %v705 = vunpack.c.h.b16 %v90
  %v706 = vunpack.c.l.b16 %v91
  %v707 = vunpack.c.h.b16 %v91
  %v708 = vunpack.c.l.b16 %v92
  %v709 = vunpack.c.h.b16 %v92
  %v710 = vunpack.c.l.b16 %v93
  %v711 = vunpack.c.h.b16 %v93
  %v712 = vunpack.c.l.b16 %v94
  %v713 = vunpack.c.h.b16 %v94
  %v714 = vunpack.c.l.b16 %v95
  %v715 = vunpack.c.h.b16 %v95
  %v716 = vunpack.c.l.b16 %v96
  %v717 = vunpack.c.h.b16 %v96
  %v718 = vunpack.c.l.b16 %v97
  %v719 = vunpack.c.h.b16 %v97
  %v720 = vunpack.c.l.b16 %v98
  %v721 = vunpack.c.h.b16 %v98
  %v722 = vunpack.c.l.b16 %v99
  %v723 = vunpack.c.h.b16 %v99
  %v724 = vunpack.c.l.b16 %v100
  %v725 = vunpack.c.h.b16 %v100
  %v726 = vunpack.c.l.b16 %v101
  %v727 = vunpack.c.h.b16 %v101
  %v728 = vunpack.c.l.b16 %v102
  %v729 = vunpack.c.h.b16 %v102
  %v730 = vunpack.c.l.b16 %v103
  %v731 = vunpack.c.h.b16 %v103
  %v732 = vunpack.c.l.b16 %v104
  %v733 = vunpack.c.h.b16 %v104
  %v734 = vunpack.c.l.b16 %v105
  %v735 = vunpack.c.h.b16 %v105
  %v736 = vunpack.c.l.b16 %v106
  %v737 = vunpack.c.h.b16 %v106
  %v738 = vunpack.c.l.b16 %v107
  %v739 = vunpack.c.h.b16 %v107
  %v740 = vunpack.c.l.b16 %v108
  %v741 = vunpack.c.h.b16 %v108
  %v742 = vunpack.c.l.b16 %v109
  %v743 = vunpack.c.h.b16 %v109
  %v744 = vunpack.c.l.b16 %v110
  %v745 = vunpack.c.h.b16 %v110
  %v746 = vunpack.c.l.b16 %v111
  %v747 = vunpack.c.h.b16 %v111
  %v748 = vunpack.c.l.b16 %v112
  %v749 = vunpack.c.h.b16 %v112
  %v750 = vunpack.c.l.b16 %v113
  %v751 = vunpack.c.h.b16 %v113
  %v752 = vunpack.c.l.b16 %v114
  %v753 = vunpack.c.h.b16 %v114
  %v754 = vunpack.c.l.b16 %v115
  %v755 = vunpack.c.h.b16 %v115
  %v756 = vunpack.c.l.b16 %v116
  %v757 = vunpack.c.h.b16 %v116
  %v758 = vunpack.c.l.b16 %v117
  %v759 = vunpack.c.h.b16 %v117
  %v760 = vunpack.c.l.b16 %v118
  %v761 = vunpack.c.h.b16 %v118
  %v762 = vunpack.c.l.b16 %v119
  %v763 = vunpack.c.h.b16 %v119
  %v764 = vunpack.c.l.b16 %v120
  %v765 = vunpack.c.h.b16 %v120
  %v766 = vunpack.c.l.b16 %v121
  %v767 = vunpack.c.h.b16 %v121
  %v768 = vunpack.c.l.b16 %v122
  %v769 = vunpack.c.h.b16 %v122
  %v770 = vunpack.c.l.b16 %v123
  %v771 = vunpack.c.h.b16 %v123
  %v772 = vunpack.c.l.b16 %v124
  %v773 = vunpack.c.h.b16 %v124
  %v774 = vunpack.c.l.b16 %v125
  %v775 = vunpack.c.h.b16 %v125
  %v776 = vunpack.c.l.b16 %v126
  %v777 = vunpack.c.h.b16 %v126
  %v778 = vunpack.c.l.b16 %v127
  %v779 = vunpack.c.h.b16 %v127
  %v780 = vunpack.c.l.b16 %v128
  %v781 = vunpack.c.h.b16 %v128
  %v782 = vunpack.c.l.b16 %v129
  %v783 = vunpack.c.h.b16 %v129
  %v784 = vunpack.c.l.b16 %v130
  %v785 = vunpack.c.h.b16 %v130
  %v786 = vunpack.c.l.b16 %v131
  %v787 = vunpack.c.h.b16 %v131
  %v788 = vunpack.c.l.b16 %v132
  %v789 = vunpack.c.h.b16 %v132
  %v790 = vunpack.c.l.b16 %v133
  %v791 = vunpack.c.h.b16 %v133
  %v792 = vunpack.c.l.b16 %v134
  %v793 = vunpack.c.h.b16 %v134
  %v794 = vunpack.c.l.b16 %v135
  %v795 = vunpack.c.h.b16 %v135
  %v796 = vunpack.c.l.b16 %v136
  %v797 = vunpack.c.h.b16 %v136
  %v798 = vunpack.c.l.b16 %v137
  %v799 = vunpack.c.h.b16 %v137
  %v800 = vunpack.c.l.b16 %v138
  %v801 = vunpack.c.h.b16 %v138
  %v802 = vunpack.c.l.b16 %v139
  %v803 = vunpack.c.h.b16 %v139
  %v804 = vunpack.c.l.b16 %v140
  %v805 = vunpack.c.h.b16 %v140
  %v806 = vunpack.c.l.b16 %v141
  %v807 = vunpack.c.h.b16 %v141
  %v808 = vunpack.c.l.b16 %v142
  %v809 = vunpack.c.h.b16 %v142
  %v810 = vunpack.c.l.b16 %v143
  %v811 = vunpack.c.h.b16 %v143
  %v812 = vunpack.c.l.b16 %v144
  %v813 = vunpack.c.h.b16 %v144
  %v814 = vunpack.c.l.b16 %v145
  %v815 = vunpack.c.h.b16 %v145
  %v816 = vunpack.c.l.b16 %v146
  %v817 = vunpack.c.h.b16 %v146
  %v818 = vunpack.c.l.b16 %v147
  %v819 = vunpack.c.h.b16 %v147
  %v820 = vunpack.c.l.b16 %v148
  %v821 = vunpack.c.h.b16 %v148
  %v822 = vunpack.c.l.b16 %v149
  %v823 = vunpack.c.h.b16 %v149
  %v824 = vunpack.c.l.b16 %v150
  %v825 = vunpack.c.h.b16 %v150
  %v826 = vunpack.c.l.b16 %v151
  %v827 = vunpack.c.h.b16 %v151
  %v828 = vunpack.c.l.b16 %v152
  %v829 = vunpack.c.h.b16 %v152
  %v830 = vunpack.c.l.b16 %v153
  %v831 = vunpack.c.h.b16 %v153
  %v832 = vunpack.c.l.b16 %v154
  %v833 = vunpack.c.h.b16 %v154
  %v834 = vunpack.c.l.b16 %v155
  %v835 = vunpack.c.h.b16 %v155
  %v836 = vunpack.c.l.b16 %v156
  %v837 = vunpack.c.h.b16 %v156
  %v838 = vunpack.c.l.b16 %v157
  %v839 = vunpack.c.h.b16 %v157
  %v840 = vunpack.c.l.b16 %v158
  %v841 = vunpack.c.h.b16 %v158
  %v842 = vunpack.c.l.b16 %v159
  %v843 = vunpack.c.h.b16 %v159
  %v844 = vunpack.c.l.b16 %v160
  %v845 = vunpack.c.h.b16 %v160
  %v846 = vunpack.c.l.b16 %v161
  %v847 = vunpack.c.h.b16 %v161
  %v848 = vunpack.c.l.b16 %v162
  %v849 = vunpack.c.h.b16 %v162
  %v850 = vunpack.c.l.b16 %v163
  %v851 = vunpack.c.h.b16 %v163
  %v852 = vunpack.c.l.b16 %v164
  %v853 = vunpack.c.h.b16 %v164
  %v854 = vunpack.c.l.b16 %v165
  %v855 = vunpack.c.h.b16 %v165
  %v856 = vunpack.c.l.b16 %v166
  %v857 = vunpack.c.h.b16 %v166
  %v858 = vunpack.c.l.b16 %v167
  %v859 = vunpack.c.h.b16 %v167
  %v860 = vunpack.c.l.b16 %v168
  %v861 = vunpack.c.h.b16 %v168
  %v862 = vunpack.c.l.b16 %v169
  %v863 = vunpack.c.h.b16 %v169
  %v864 = vunpack.c.l.b16 %v170
  %v865 = vunpack.c.h.b16 %v170
  %v866 = vunpack.c.l.b16 %v171
  %v867 = vunpack.c.h.b16 %v171
  %v868 = vunpack.c.l.b16 %v172
  %v869 = vunpack.c.h.b16 %v172
  %v870 = vunpack.c.l.b16 %v173
  %v871 = vunpack.c.h.b16 %v173
  %v872 = vunpack.c.l.b16 %v174
  %v873 = vunpack.c.h.b16 %v174
  %v874 = vunpack.c.l.b16 %v175
  %v875 = vunpack.c.h.b16 %v175
  %v876 = vunpack.c.l.b16 %v176
  %v877 = vunpack.c.h.b16 %v176
  %v878 = vunpack.c.l.b16 %v177
  %v879 = vunpack.c.h.b16 %v177
  %v880 = vunpack.c.l.b16 %v178
  %v881 = vunpack.c.h.b16 %v178
  %v882 = vunpack.c.l.b16 %v179
  %v883 = vunpack.c.h.b16 %v179
  %v884 = vunpack.c.l.b16 %v180
  %v885 = vunpack.c.h.b16 %v180
  %v886 = vunpack.c.l.b16 %v181
  %v887 = vunpack.c.h.b16 %v181
  %v888 = vunpack.c.l.b16 %v182
  %v889 = vunpack.c.h.b16 %v182
  %v890 = vunpack.c.l.b16 %v183
  %v891 = vunpack.c.h.b16 %v183
  %v892 = vunpack.c.l.b16 %v184
  %v893 = vunpack.c.h.b16 %v184
  %v894 = vunpack.c.l.b16 %v185
  %v895 = vunpack.c.h.b16 %v185
  %v896 = vunpack.c.l.b16 %v186
  %v897 = vunpack.c.h.b16 %v186
  %v898 = vunpack.c.l.b16 %v187
  %v899 = vunpack.c.h.b16 %v187
  %v900 = vunpack.c.l.b16 %v188
  %v901 = vunpack.c.h.b16 %v188
  %v902 = vunpack.c.l.b16 %v189
  %v903 = vunpack.c.h.b16 %v189
  %v904 = vunpack.c.l.b16 %v190
  %v905 = vunpack.c.h.b16 %v190
  %v906 = vunpack.c.l.b16 %v191
  %v907 = vunpack.c.h.b16 %v191
  %v908 = vunpack.c.l.b16 %v192
  %v909 = vunpack.c.h.b16 %v192
  %v910 = vunpack.c.l.b16 %v193
  %v911 = vunpack.c.h.b16 %v193
  %v912 = vunpack.c.l.b16 %v194
  %v913 = vunpack.c.h.b16 %v194
  %v914 = vunpack.c.l.b16 %v195
  %v915 = vunpack.c.h.b16 %v195
  %v916 = vunpack.c.l.b16 %v196
  %v917 = vunpack.c.h.b16 %v196
  %v918 = vunpack.c.l.b16 %v197
  %v919 = vunpack.c.h.b16 %v197
  %v920 = vunpack.c.l.b16 %v198
  %v921 = vunpack.c.h.b16 %v198
  %v922 = vunpack.c.l.b16 %v199
  %v923 = vunpack.c.h.b16 %v199
  %v924 = vunpack.c.l.b16 %v200
  %v925 = vunpack.c.h.b16 %v200
  %v926 = vunpack.c.l.b16 %v201
  %v927 = vunpack.c.h.b16 %v201
  %v928 = vunpack.c.l.b16 %v202
  %v929 = vunpack.c.h.b16 %v202
  %v930 = vunpack.c.l.b16 %v203
  %v931 = vunpack.c.h.b16 %v203
  %v932 = vunpack.c.l.b16 %v204
  %v933 = vunpack.c.h.b16 %v204
  %v934 = vunpack.c.l.b16 %v205
  %v935 = vunpack.c.h.b16 %v205
  %v936 = vunpack.c.l.b16 %v206
  %v937 = vunpack.c.h.b16 %v206
  %v938 = vunpack.c.l.b16 %v207
  %v939 = vunpack.c.h.b16 %v207
  %v940 = vunpack.c.l.b16 %v208
  %v941 = vunpack.c.h.b16 %v208
  %v942 = vunpack.c.l.b16 %v209
  %v943 = vunpack.c.h.b16 %v209
  %v944 = vunpack.c.l.b16 %v210
  %v945 = vunpack.c.h.b16 %v210
  %v946 = vunpack.c.l.b16 %v211
  %v947 = vunpack.c.h.b16 %v211
  %v948 = vunpack.c.l.b16 %v212
  %v949 = vunpack.c.h.b16 %v212
  %v950 = vunpack.c.l.b16 %v213
  %v951 = vunpack.c.h.b16 %v213
  %v952 = vunpack.c.l.b16 %v214
  %v953 = vunpack.c.h.b16 %v214
  %v954 = vunpack.c.l.b16 %v215
  %v955 = vunpack.c.h.b16 %v215
  %v956 = vunpack.c.l.b16 %v216
  %v957 = vunpack.c.h.b16 %v216
  %v958 = vunpack.c.l.b16 %v217
  %v959 = vunpack.c.h.b16 %v217
  %v960 = vunpack.c.l.b16 %v218
  %v961 = vunpack.c.h.b16 %v218
  %v962 = vunpack.c.l.b16 %v219
  %v963 = vunpack.c.h.b16 %v219
  %v964 = vunpack.c.l.b16 %v220
  %v965 = vunpack.c.h.b16 %v220
  %v966 = vunpack.c.l.b16 %v221
  %v967 = vunpack.c.h.b16 %v221
  %v968 = vunpack.c.l.b16 %v222
  %v969 = vunpack.c.h.b16 %v222
  %v970 = vunpack.c.l.b16 %v223
  %v971 = vunpack.c.h.b16 %v223
  %v972 = vunpack.c.l.b16 %v224
  %v973 = vunpack.c.h.b16 %v224
  %v974 = vunpack.c.l.b16 %v225
  %v975 = vunpack.c.h.b16 %v225
  %v976 = vunpack.c.l.b16 %v226
  %v977 = vunpack.c.h.b16 %v226
  %v978 = vunpack.c.l.b16 %v227
  %v979 = vunpack.c.h.b16 %v227
  %v980 = vunpack.c.l.b16 %v228
  %v981 = vunpack.c.h.b16 %v228
  %v982 = vunpack.c.l.b16 %v229
  %v983 = vunpack.c.h.b16 %v229
  %v984 = vunpack.c.l.b16 %v230
  %v985 = vunpack.c.h.b16 %v230
  %v986 = vunpack.c.l.b16 %v231
  %v987 = vunpack.c.h.b16 %v231
  %v988 = vunpack.c.l.b16 %v232
  %v989 = vunpack.c.h.b16 %v232
  %v990 = vunpack.c.l.b16 %v233
  %v991 = vunpack.c.h.b16 %v233
  %v992 = vunpack.c.l.b16 %v234
  %v993 = vunpack.c.h.b16 %v234
  %v994 = vunpack.c.l.b16 %v235
  %v995 = vunpack.c.h.b16 %v235
  %v996 = vunpack.c.l.b16 %v236
  %v997 = vunpack.c.h.b16 %v236
  %v998 = vunpack.c.l.b16 %v237
  %v999 = vunpack.c.h.b16 %v237
  %v1000 = vunpack.c.l.b16 %v238
  %v1001 = vunpack.c.h.b16 %v238
  %v1002 = vunpack.c.l.b16 %v239
  %v1003 = vunpack.c.h.b16 %v239
  %v1004 = vunpack.c.l.b16 %v240
  %v1005 = vunpack.c.h.b16 %v240
  %v1006 = vunpack.c.l.b16 %v241
  %v1007 = vunpack.c.h.b16 %v241
  %v1008 = vunpack.c.l.b16 %v242
  %v1009 = vunpack.c.h.b16 %v242
  %v1010 = vunpack.c.l.b16 %v243
  %v1011 = vunpack.c.h.b16 %v243
  %v1012 = vunpack.c.l.b16 %v244
  %v1013 = vunpack.c.h.b16 %v244
  %v1014 = vunpack.c.l.b16 %v245
  %v1015 = vunpack.c.h.b16 %v245
  %v1016 = vunpack.c.l.b16 %v246
  %v1017 = vunpack.c.h.b16 %v246
  %v1018 = vunpack.c.l.b16 %v247
  %v1019 = vunpack.c.h.b16 %v247
  %v1020 = vunpack.c.l.b16 %v248
  %v1021 = vunpack.c.h.b16 %v248
  %v1022 = vunpack.c.l.b16 %v249
  %v1023 = vunpack.c.h.b16 %v249
  %v1024 = vunpack.c.l.b16 %v250
  %v1025 = vunpack.c.h.b16 %v250
  %v1026 = vunpack.c.l.b16 %v251
  %v1027 = vunpack.c.h.b16 %v251
  %v1028 = vunpack.c.l.b16 %v252
  %v1029 = vunpack.c.h.b16 %v252
  %v1030 = vunpack.c.l.b16 %v253
  %v1031 = vunpack.c.h.b16 %v253
  %v1032 = vunpack.c.l.b16 %v254
  %v1033 = vunpack.c.h.b16 %v254
  %v1034 = vunpack.c.l.b16 %v255
  %v1035 = vunpack.c.h.b16 %v255
  %v1036 = vunpack.c.l.b16 %v256
  %v1037 = vunpack.c.h.b16 %v256
  %v1038 = vunpack.c.l.b16 %v257
  %v1039 = vunpack.c.h.b16 %v257
  %v1040 = vunpack.c.l.b16 %v258
  %v1041 = vunpack.c.h.b16 %v258
  %v1042 = vunpack.c.l.b16 %v259
  %v1043 = vunpack.c.h.b16 %v259
  %v1044 = vunpack.c.l.b16 %v260
  %v1045 = vunpack.c.h.b16 %v260
  %v1046 = vunpack.c.l.b16 %v261
  %v1047 = vunpack.c.h.b16 %v261
  %v1048 = vunpack.c.l.b16 %v262
  %v1049 = vunpack.c.h.b16 %v262
  %v1050 = vunpack.c.l.b16 %v263
  %v1051 = vunpack.c.h.b16 %v263
  %v1052 = vunpack.c.l.b16 %v264
  %v1053 = vunpack.c.h.b16 %v264
  %v1054 = vunpack.c.l.b16 %v265
  %v1055 = vunpack.c.h.b16 %v265
  %v1056 = vunpack.c.l.b16 %v266
  %v1057 = vunpack.c.h.b16 %v266
  %v1058 = vunpack.c.l.b16 %v267
  %v1059 = vunpack.c.h.b16 %v267
  %v1060 = vunpack.c.l.b16 %v268
  %v1061 = vunpack.c.h.b16 %v268
  %v1062 = vunpack.c.l.b16 %v269
  %v1063 = vunpack.c.h.b16 %v269
  %v1064 = vunpack.c.l.b16 %v270
  %v1065 = vunpack.c.h.b16 %v270
  %v1066 = vunpack.c.l.b16 %v271
  %v1067 = vunpack.c.h.b16 %v271
  %v1068 = vunpack.c.l.b16 %v272
  %v1069 = vunpack.c.h.b16 %v272
  %v1070 = vunpack.c.l.b16 %v273
  %v1071 = vunpack.c.h.b16 %v273
  %v1072 = vunpack.c.l.b16 %v274
  %v1073 = vunpack.c.h.b16 %v274
  %v1074 = vunpack.c.l.b16 %v275
  %v1075 = vunpack.c.h.b16 %v275
  %v1076 = vunpack.c.l.b16 %v276
  %v1077 = vunpack.c.h.b16 %v276
  %v1078 = vunpack.c.l.b16 %v277
  %v1079 = vunpack.c.h.b16 %v277
  %v1080 = vunpack.c.l.b16 %v278
  %v1081 = vunpack.c.h.b16 %v278
  %v1082 = vunpack.c.l.b16 %v279
  %v1083 = vunpack.c.h.b16 %v279
  %v1084 = vunpack.c.l.b16 %v280
  %v1085 = vunpack.c.h.b16 %v280
  %v1086 = vunpack.c.l.b16 %v281
  %v1087 = vunpack.c.h.b16 %v281
  %v1088 = vunpack.c.l.b16 %v282
  %v1089 = vunpack.c.h.b16 %v282
  %v1090 = vunpack.c.l.b16 %v283
  %v1091 = vunpack.c.h.b16 %v283
  %v1092 = vunpack.c.l.b16 %v284
  %v1093 = vunpack.c.h.b16 %v284
  %v1094 = vunpack.c.l.b16 %v285
  %v1095 = vunpack.c.h.b16 %v285
  %v1096 = vunpack.c.l.b16 %v286
  %v1097 = vunpack.c.h.b16 %v286
  %v1098 = vunpack.c.l.b16 %v287
  %v1099 = vunpack.c.h.b16 %v287
  %v1100 = vunpack.c.l.b16 %v288
  %v1101 = vunpack.c.h.b16 %v288
  %v1102 = vunpack.c.l.b16 %v289
  %v1103 = vunpack.c.h.b16 %v289
  %v1104 = vunpack.c.l.b16 %v290
  %v1105 = vunpack.c.h.b16 %v290
  %v1106 = vunpack.c.l.b16 %v291
  %v1107 = vunpack.c.h.b16 %v291
  %v1108 = vunpack.c.l.b16 %v292
  %v1109 = vunpack.c.h.b16 %v292
  %v1110 = vunpack.c.l.b16 %v293
  %v1111 = vunpack.c.h.b16 %v293
  %v1112 = vunpack.c.l.b16 %v294
  %v1113 = vunpack.c.h.b16 %v294
  %v1114 = vunpack.c.l.b16 %v295
  %v1115 = vunpack.c.h.b16 %v295
  %v1116 = vunpack.c.l.b16 %v296
  %v1117 = vunpack.c.h.b16 %v296
  %v1118 = vunpack.c.l.b16 %v297
  %v1119 = vunpack.c.h.b16 %v297
  %v1120 = vunpack.c.l.b16 %v298
  %v1121 = vunpack.c.h.b16 %v298
  %v1122 = vunpack.c.l.b16 %v299
  %v1123 = vunpack.c.h.b16 %v299
  %v1124 = vunpack.c.l.b16 %v300
  %v1125 = vunpack.c.h.b16 %v300
  %v1126 = vunpack.c.l.b16 %v301
  %v1127 = vunpack.c.h.b16 %v301
  %v1128 = vunpack.c.l.b16 %v302
  %v1129 = vunpack.c.h.b16 %v302
  %v1130 = vunpack.c.l.b16 %v303
  %v1131 = vunpack.c.h.b16 %v303
  %v1132 = vunpack.c.l.b16 %v304
  %v1133 = vunpack.c.h.b16 %v304
  %v1134 = vunpack.c.l.b16 %v305
  %v1135 = vunpack.c.h.b16 %v305
  %v1136 = vunpack.c.l.b16 %v306
  %v1137 = vunpack.c.h.b16 %v306
  %v1138 = vunpack.c.l.b16 %v307
  %v1139 = vunpack.c.h.b16 %v307
  %v1140 = vunpack.c.l.b16 %v308
  %v1141 = vunpack.c.h.b16 %v308
  %v1142 = vunpack.c.l.b16 %v309
  %v1143 = vunpack.c.h.b16 %v309
  %v1144 = vunpack.c.l.b16 %v310
  %v1145 = vunpack.c.h.b16 %v310
  %v1146 = vunpack.c.l.b16 %v311
  %v1147 = vunpack.c.h.b16 %v311
  %v1148 = vunpack.c.l.b16 %v312
  %v1149 = vunpack.c.h.b16 %v312
  %v1150 = vunpack.c.l.b16 %v313
  %v1151 = vunpack.c.h.b16 %v313
  %v1152 = vunpack.c.l.b16 %v314
  %v1153 = vunpack.c.h.b16 %v314
  %v1154 = vunpack.c.l.b16 %v315
  %v1155 = vunpack.c.h.b16 %v315
  %v1156 = vunpack.c.l.b16 %v316
  %v1157 = vunpack.c.h.b16 %v316
  %v1158 = vunpack.c.l.b16 %v317
  %v1159 = vunpack.c.h.b16 %v317
  %v1160 = vunpack.c.l.b16 %v318
  %v1161 = vunpack.c.h.b16 %v318
  %v1162 = vunpack.c.l.b16 %v319
  %v1163 = vunpack.c.h.b16 %v319
  %v1164 = vunpack.c.l.b16 %v320
  %v1165 = vunpack.c.h.b16 %v320
  %v1166 = vunpack.c.l.b16 %v321
  %v1167 = vunpack.c.h.b16 %v321
  %v1168 = vunpack.c.l.b16 %v322
  %v1169 = vunpack.c.h.b16 %v322
  %v1170 = vunpack.c.l.b16 %v323
  %v1171 = vunpack.c.h.b16 %v323
  %v1172 = vunpack.c.l.b16 %v324
  %v1173 = vunpack.c.h.b16 %v324
  %v1174 = vunpack.c.l.b16 %v325
  %v1175 = vunpack.c.h.b16 %v325
  %v1176 = vunpack.c.l.b16 %v326
  %v1177 = vunpack.c.h.b16 %v326
  %v1178 = vunpack.c.l.b16 %v327
  %v1179 = vunpack.c.h.b16 %v327
  %v1180 = vunpack.c.l.b16 %v328
  %v1181 = vunpack.c.h.b16 %v328
  %v1182 = vunpack.c.l.b16 %v329
  %v1183 = vunpack.c.h.b16 %v329
  %v1184 = vunpack.c.l.b16 %v330
  %v1185 = vunpack.c.h.b16 %v330
  %v1186 = vunpack.c.l.b16 %v331
  %v1187 = vunpack.c.h.b16 %v331
  %v1188 = vunpack.c.l.b16 %v332
  %v1189 = vunpack.c.h.b16 %v332
  %v1190 = vunpack.c.l.b16 %v333
  %v1191 = vunpack.c.h.b16 %v333
  %v1192 = vunpack.c.l.b16 %v334
  %v1193 = vunpack.c.h.b16 %v334
  %v1194 = vunpack.c.l.b16 %v335
  %v1195 = vunpack.c.h.b16 %v335
  %v1196 = vunpack.c.l.b16 %v336
  %v1197 = vunpack.c.h.b16 %v336
  %v1198 = vunpack.c.l.b16 %v337
  %v1199 = vunpack.c.h.b16 %v337
  %v1200 = vunpack.c.l.b16 %v338
  %v1201 = vunpack.c.h.b16 %v338
  %v1202 = vunpack.c.l.b16 %v339
  %v1203 = vunpack.c.h.b16 %v339
  %v1204 = vpack.c.b16 %v634, %v628
  %v1205 = vpack.c.b16 %v635, %v629
  %v1206 = vpack.c.b16 %v636, %v630
  %v1207 = vpack.c.b16 %v637, %v631
  %v1208 = vpack.c.b16 %v638, %v632
  %v1209 = vpack.c.b16 %v639, %v633
  %v1210 = vpack.c.b16 %v646, %v640
  %v1211 = vpack.c.b16 %v647, %v641
  %v1212 = vpack.c.b16 %v648, %v642
  %v1213 = vpack.c.b16 %v649, %v643
  %v1214 = vpack.c.b16 %v650, %v644
  %v1215 = vpack.c.b16 %v651, %v645
  %v1216 = vpack.c.b16 %v658, %v652
  %v1217 = vpack.c.b16 %v659, %v653
  %v1218 = vpack.c.b16 %v660, %v654
  %v1219 = vpack.c.b16 %v661, %v655
  %v1220 = vpack.c.b16 %v662, %v656
  %v1221 = vpack.c.b16 %v663, %v657
  %v1222 = vpack.c.b16 %v670, %v664
  %v1223 = vpack.c.b16 %v671, %v665
  %v1224 = vpack.c.b16 %v672, %v666
  %v1225 = vpack.c.b16 %v673, %v667
  %v1226 = vpack.c.b16 %v674, %v668
  %v1227 = vpack.c.b16 %v675, %v669
  %v1228 = vpack.c.b16 %v682, %v676
  %v1229 = vpack.c.b16 %v683, %v677
  %v1230 = vpack.c.b16 %v684, %v678
  %v1231 = vpack.c.b16 %v685, %v679
  %v1232 = vpack.c.b16 %v686, %v680
  %v1233 = vpack.c.b16 %v687, %v681
  %v1234 = vpack.c.b16 %v694, %v688
  %v1235 = vpack.c.b16 %v695, %v689
  %v1236 = vpack.c.b16 %v696, %v690
  %v1237 = vpack.c.b16 %v697, %v691
  %v1238 = vpack.c.b16 %v698, %v692
  %v1239 = vpack.c.b16 %v699, %v693
  %v1240 = vpack.c.b16 %v706, %v700
  %v1241 = vpack.c.b16 %v707, %v701
  %v1242 = vpack.c.b16 %v708, %v702
  %v1243 = vpack.c.b16 %v709, %v703
  %v1244 = vpack.c.b16 %v710, %v704
  %v1245 = vpack.c.b16 %v711, %v705
  %v1246 = vpack.c.b16 %v718, %v712
  %v1247 = vpack.c.b16 %v719, %v713
  %v1248 = vpack.c.b16 %v720, %v714
  %v1249 = vpack.c.b16 %v721, %v715
  %v1250 = vpack.c.b16 %v722, %v716
  %v1251 = vpack.c.b16 %v723, %v717
  %v1252 = vpack.c.b16 %v730, %v724
  %v1253 = vpack.c.b16 %v731, %v725
  %v1254 = vpack.c.b16 %v732, %v726
  %v1255 = vpack.c.b16 %v733, %v727
  %v1256 = vpack.c.b16 %v734, %v728
  %v1257 = vpack.c.b16 %v735, %v729
  %v1258 = vpack.c.b16 %v742, %v736
  %v1259 = vpack.c.b16 %v743, %v737
  %v1260 = vpack.c.b16 %v744, %v738
  %v1261 = vpack.c.b16 %v745, %v739
  %v1262 = vpack.c.b16 %v746, %v740
  %v1263 = vpack.c.b16 %v747, %v741
  %v1264 = vpack.c.b16 %v754, %v748
  %v1265 = vpack.c.b16 %v755, %v749
  %v1266 = vpack.c.b16 %v756, %v750
  %v1267 = vpack.c.b16 %v757, %v751
  %v1268 = vpack.c.b16 %v758, %v752
  %v1269 = vpack.c.b16 %v759, %v753
  %v1270 = vpack.c.b16 %v766, %v760
  %v1271 = vpack.c.b16 %v767, %v761
  %v1272 = vpack.c.b16 %v768, %v762
  %v1273 = vpack.c.b16 %v769, %v763
  %v1274 = vpack.c.b16 %v770, %v764
  %v1275 = vpack.c.b16 %v771, %v765
  %v1276 = vpack.c.b16 %v778, %v772
  %v1277 = vpack.c.b16 %v779, %v773
  %v1278 = vpack.c.b16 %v780, %v774
  %v1279 = vpack.c.b16 %v781, %v775
  %v1280 = vpack.c.b16 %v782, %v776
  %v1281 = vpack.c.b16 %v783, %v777
  %v1282 = vpack.c.b16 %v790, %v784
  %v1283 = vpack.c.b16 %v791, %v785
  %v1284 = vpack.c.b16 %v792, %v786
  %v1285 = vpack.c.b16 %v793, %v787
  %v1286 = vpack.c.b16 %v794, %v788
  %v1287 = vpack.c.b16 %v795, %v789
  %v1288 = vpack.c.b16 %v802, %v796
  %v1289 = vpack.c.b16 %v803, %v797
  %v1290 = vpack.c.b16 %v804, %v798
  %v1291 = vpack.c.b16 %v805, %v799
  %v1292 = vpack.c.b16 %v806, %v800
  %v1293 = vpack.c.b16 %v807, %v801
  %v1294 = vpack.c.b16 %v814, %v808
  %v1295 = vpack.c.b16 %v815, %v809
  %v1296 = vpack.c.b16 %v816, %v810
  %v1297 = vpack.c.b16 %v817, %v811
  %v1298 = vpack.c.b16 %v818, %v812
  %v1299 = vpack.c.b16 %v819, %v813
  %v1300 = vpack.c.b16 %v826, %v820
  %v1301 = vpack.c.b16 %v827, %v821
  %v1302 = vpack.c.b16 %v828, %v822
  %v1303 = vpack.c.b16 %v829, %v823
  %v1304 = vpack.c.b16 %v830, %v824
  %v1305 = vpack.c.b16 %v831, %v825
  %v1306 = vpack.c.b16 %v838, %v832
  %v1307 = vpack.c.b16 %v839, %v833
  %v1308 = vpack.c.b16 %v840, %v834
  %v1309 = vpack.c.b16 %v841, %v835
  %v1310 = vpack.c.b16 %v842, %v836
  %v1311 = vpack.c.b16 %v843, %v837
  %v1312 = vpack.c.b16 %v850, %v844
  %v1313 = vpack.c.b16 %v851, %v845
  %v1314 = vpack.c.b16 %v852, %v846
  %v1315 = vpack.c.b16 %v853, %v847
  %v1316 = vpack.c.b16 %v854, %v848
  %v1317 = vpack.c.b16 %v855, %v849
  %v1318 = vpack.c.b16 %v862, %v856
  %v1319 = vpack.c.b16 %v863, %v857
  %v1320 = vpack.c.b16 %v864, %v858
  %v1321 = vpack.c.b16 %v865, %v859
  %v1322 = vpack.c.b16 %v866, %v860
  %v1323 = vpack.c.b16 %v867, %v861
  %v1324 = vpack.c.b16 %v874, %v868
  %v1325 = vpack.c.b16 %v875, %v869
  %v1326 = vpack.c.b16 %v876, %v870
  %v1327 = vpack.c.b16 %v877, %v871
  %v1328 = vpack.c.b16 %v878, %v872
  %v1329 = vpack.c.b16 %v879, %v873
  %v1330 = vpack.c.b16 %v886, %v880
  %v1331 = vpack.c.b16 %v887, %v881
  %v1332 = vpack.c.b16 %v888, %v882
  %v1333 = vpack.c.b16 %v889, %v883
  %v1334 = vpack.c.b16 %v890, %v884
  %v1335 = vpack.c.b16 %v891, %v885
  %v1336 = vpack.c.b16 %v898, %v892
  %v1337 = vpack.c.b16 %v899, %v893
  %v1338 = vpack.c.b16 %v900, %v894
  %v1339 = vpack.c.b16 %v901, %v895
  %v1340 = vpack.c.b16 %v902, %v896
  %v1341 = vpack.c.b16 %v903, %v897
  %v1342 = vpack.c.b16 %v910, %v904
  %v1343 = vpack.c.b16 %v911, %v905
  %v1344 = vpack.c.b16 %v912, %v906
  %v1345 = vpack.c.b16 %v913, %v907
  %v1346 = vpack.c.b16 %v914, %v908
  %v1347 = vpack.c.b16 %v915, %v909
  %v1348 = vpack.c.b16 %v922, %v916
  %v1349 = vpack.c.b16 %v923, %v917
  %v1350 = vpack.c.b16 %v924, %v918
  %v1351 = vpack.c.b16 %v925, %v919
  %v1352 = vpack.c.b16 %v926, %v920
  %v1353 = vpack.c.b16 %v927, %v921
  %v1354 = vpack.c.b16 %v934, %v928
  %v1355 = vpack.c.b16 %v935, %v929
  %v1356 = vpack.c.b16 %v936, %v930
  %v1357 = vpack.c.b16 %v937, %v931
  %v1358 = vpack.c.b16 %v938, %v932
  %v1359 = vpack.c.b16 %v939, %v933
  %v1360 = vpack.c.b16 %v946, %v940
  %v1361 = vpack.c.b16 %v947, %v941
  %v1362 = vpack.c.b16 %v948, %v942
  %v1363 = vpack.c.b16 %v949, %v943
  %v1364 = vpack.c.b16 %v950, %v944
  %v1365 = vpack.c.b16 %v951, %v945
  %v1366 = vpack.c.b16 %v958, %v952
  %v1367 = vpack.c.b16 %v959, %v953
  %v1368 = vpack.c.b16 %v960, %v954
  %v1369 = vpack.c.b16 %v961, %v955
  %v1370 = vpack.c.b16 %v962, %v956
  %v1371 = vpack.c.b16 %v963, %v957
  %v1372 = vpack.c.b16 %v970, %v964
  %v1373 = vpack.c.b16 %v971, %v965
  %v1374 = vpack.c.b16 %v972, %v966
  %v1375 = vpack.c.b16 %v973, %v967
  %v1376 = vpack.c.b16 %v974, %v968
  %v1377 = vpack.c.b16 %v975, %v969
  %v1378 = vpack.c.b16 %v982, %v976
  %v1379 = vpack.c.b16 %v983, %v977
  %v1380 = vpack.c.b16 %v984, %v978
  %v1381 = vpack.c.b16 %v985, %v979
  %v1382 = vpack.c.b16 %v986, %v980
  %v1383 = vpack.c.b16 %v987, %v981
  %v1384 = vpack.c.b16 %v994, %v988
  %v1385 = vpack.c.b16 %v995, %v989
  %v1386 = vpack.c.b16 %v996, %v990
  %v1387 = vpack.c.b16 %v997, %v991
  %v1388 = vpack.c.b16 %v998, %v992
  %v1389 = vpack.c.b16 %v999, %v993
  %v1390 = vpack.c.b16 %v1006, %v1000
  %v1391 = vpack.c.b16 %v1007, %v1001
  %v1392 = vpack.c.b16 %v1008, %v1002
  %v1393 = vpack.c.b16 %v1009, %v1003
  %v1394 = vpack.c.b16 %v1010, %v1004
  %v1395 = vpack.c.b16 %v1011, %v1005
  %v1396 = vpack.c.b16 %v1018, %v1012
  %v1397 = vpack.c.b16 %v1019, %v1013
  %v1398 = vpack.c.b16 %v1020, %v1014
  %v1399 = vpack.c.b16 %v1021, %v1015
  %v1400 = vpack.c.b16 %v1022, %v1016
  %v1401 = vpack.c.b16 %v1023, %v1017
  %v1402 = vpack.c.b16 %v1030, %v1024
  %v1403 = vpack.c.b16 %v1031, %v1025
  %v1404 = vpack.c.b16 %v1032, %v1026
  %v1405 = vpack.c.b16 %v1033, %v1027
  %v1406 = vpack.c.b16 %v1034, %v1028
  %v1407 = vpack.c.b16 %v1035, %v1029
  %v1408 = vpack.c.b16 %v1042, %v1036
  %v1409 = vpack.c.b16 %v1043, %v1037
  %v1410 = vpack.c.b16 %v1044, %v1038
  %v1411 = vpack.c.b16 %v1045, %v1039
  %v1412 = vpack.c.b16 %v1046, %v1040
  %v1413 = vpack.c.b16 %v1047, %v1041
  %v1414 = vpack.c.b16 %v1054, %v1048
  %v1415 = vpack.c.b16 %v1055, %v1049
  %v1416 = vpack.c.b16 %v1056, %v1050
  %v1417 = vpack.c.b16 %v1057, %v1051
  %v1418 = vpack.c.b16 %v1058, %v1052
  %v1419 = vpack.c.b16 %v1059, %v1053
  %v1420 = vpack.c.b16 %v1066, %v1060
  %v1421 = vpack.c.b16 %v1067, %v1061
  %v1422 = vpack.c.b16 %v1068, %v1062
  %v1423 = vpack.c.b16 %v1069, %v1063
  %v1424 = vpack.c.b16 %v1070, %v1064
  %v1425 = vpack.c.b16 %v1071, %v1065
  %v1426 = vpack.c.b16 %v1078, %v1072
  %v1427 = vpack.c.b16 %v1079, %v1073
  %v1428 = vpack.c.b16 %v1080, %v1074
  %v1429 = vpack.c.b16 %v1081, %v1075
  %v1430 = vpack.c.b16 %v1082, %v1076
  %v1431 = vpack.c.b16 %v1083, %v1077
  %v1432 = vpack.c.b16 %v1090, %v1084
  %v1433 = vpack.c.b16 %v1091, %v1085
  %v1434 = vpack.c.b16 %v1092, %v1086
  %v1435 = vpack.c.b16 %v1093, %v1087
  %v1436 = vpack.c.b16 %v1094, %v1088
  %v1437 = vpack.c.b16 %v1095, %v1089
  %v1438 = vpack.c.b16 %v1102, %v1096
  %v1439 = vpack.c.b16 %v1103, %v1097
  %v1440 = vpack.c.b16 %v1104, %v1098
  %v1441 = vpack.c.b16 %v1105, %v1099
  %v1442 = vpack.c.b16 %v1106, %v1100
  %v1443 = vpack.c.b16 %v1107, %v1101
  %v1444 = vpack.c.b16 %v1114, %v1108
  %v1445 = vpack.c.b16 %v1115, %v1109
  %v1446 = vpack.c.b16 %v1116, %v1110
  %v1447 = vpack.c.b16 %v1117, %v1111
  %v1448 = vpack.c.b16 %v1118, %v1112
  %v1449 = vpack.c.b16 %v1119, %v1113
  %v1450 = vpack.c.b16 %v1126, %v1120
  %v1451 = vpack.c.b16 %v1127, %v1121
  %v1452 = vpack.c.b16 %v1128, %v1122
  %v1453 = vpack.c.b16 %v1129, %v1123
  %v1454 = vpack.c.b16 %v1130, %v1124
  %v1455 = vpack.c.b16 %v1131, %v1125
  %v1456 = vpack.c.b16 %v1138, %v1132
  %v1457 = vpack.c.b16 %v1139, %v1133
  %v1458 = vpack.c.b16 %v1140, %v1134
  %v1459 = vpack.c.b16 %v1141, %v1135
  %v1460 = vpack.c.b16 %v1142, %v1136
  %v1461 = vpack.c.b16 %v1143, %v1137
  %v1462 = vpack.c.b16 %v1150, %v1144
  %v1463 = vpack.c.b16 %v1151, %v1145
  %v1464 = vpack.c.b16 %v1152, %v1146
  %v1465 = vpack.c.b16 %v1153, %v1147
  %v1466 = vpack.c.b16 %v1154, %v1148
  %v1467 = vpack.c.b16 %v1155, %v1149
  %v1468 = vpack.c.b16 %v1162, %v1156
  %v1469 = vpack.c.b16 %v1163, %v1157
  %v1470 = vpack.c.b16 %v1164, %v1158
  %v1471 = vpack.c.b16 %v1165, %v1159
  %v1472 = vpack.c.b16 %v1166, %v1160
  %v1473 = vpack.c.b16 %v1167, %v1161
  %v1474 = vpack.c.b16 %v1174, %v1168
  %v1475 = vpack.c.b16 %v1175, %v1169
  %v1476 = vpack.c.b16 %v1176, %v1170
  %v1477 = vpack.c.b16 %v1177, %v1171
  %v1478 = vpack.c.b16 %v1178, %v1172
  %v1479 = vpack.c.b16 %v1179, %v1173
  %v1480 = vpack.c.b16 %v1186, %v1180
  %v1481 = vpack.c.b16 %v1187, %v1181
  %v1482 = vpack.c.b16 %v1188, %v1182
  %v1483 = vpack.c.b16 %v1189, %v1183
  %v1484 = vpack.c.b16 %v1190, %v1184
  %v1485 = vpack.c.b16 %v1191, %v1185
  %v1486 = vpack.c.b16 %v1198, %v1192
  %v1487 = vpack.c.b16 %v1199, %v1193
  %v1488 = vpack.c.b16 %v1200, %v1194
  %v1489 = vpack.c.b16 %v1201, %v1195
  %v1490 = vpack.c.b16 %v1202, %v1196
  %v1491 = vpack.c.b16 %v1203, %v1197
  %1780 = vmatprep.subr.bf16.mxu0 %v1247
  %1781 = vmatpush1.bf16.msra.mxu0 %v1246
  %1782 = vmatprep.subr.bf16.mxu0 %v1241
  %1783 = vmatpush1.bf16.msra.mxu0 %v1240
  %1784 = vmatprep.subr.bf16.mxu0 %v1235
  %1785 = vmatpush1.bf16.msra.mxu0 %v1234
  %1786 = vmatprep.subr.bf16.mxu0 %v1229
  %1787 = vmatpush1.bf16.msra.mxu0 %v1228
  %1788 = vmatprep.subr.bf16.mxu0 %v1223
  %1789 = vmatpush1.bf16.msra.mxu0 %v1222
  %1790 = vmatprep.subr.bf16.mxu0 %v1217
  %1791 = vmatpush1.bf16.msra.mxu0 %v1216
  %1792 = vmatprep.subr.bf16.mxu0 %v1211
  %1793 = vmatpush1.bf16.msra.mxu0 %v1210
  %1794 = vmatprep.subr.bf16.mxu0 %v1205
  %1795 = vmatpush1.bf16.msra.mxu0 %v1204
  %1796 = vmatprep.subr.bf16.mxu0 %v1295
  %1797 = vmatpush2.bf16.msra.mxu0 %v1294
  %1798 = vmatprep.subr.bf16.mxu0 %v1289
  %1799 = vmatpush2.bf16.msra.mxu0 %v1288
  %1800 = vmatprep.subr.bf16.mxu0 %v1283
  %1801 = vmatpush2.bf16.msra.mxu0 %v1282
  %1802 = vmatprep.subr.bf16.mxu0 %v1277
  %1803 = vmatpush2.bf16.msra.mxu0 %v1276
  %1804 = vmatprep.subr.bf16.mxu0 %v1271
  %1805 = vmatpush2.bf16.msra.mxu0 %v1270
  %1806 = vmatprep.subr.bf16.mxu0 %v1265
  %1807 = vmatpush2.bf16.msra.mxu0 %v1264
  %1808 = vmatprep.subr.bf16.mxu0 %v1259
  %1809 = vmatpush2.bf16.msra.mxu0 %v1258
  %1810 = vmatprep.subr.bf16.mxu0 %v1253
  %1811 = vmatpush2.bf16.msra.mxu0 %v1252
  %1812 = vmatprep.mubr.bf16.mxu0 %v47
  %1813 = vmatmul.mubr.bf16.gmra.mxu0 %v46
  %v1814 = vpop.f32.mrf.mxu0
  %v1815 = vadd.f32 0.0, %v1814
  %v1816 = vpop.f32.mrf.mxu0
  %v1817 = vadd.f32 0.0, %v1816
  %v1818 = vpop.f32.mrf.mxu0
  %v1819 = vadd.f32 0.0, %v1818
  %v1820 = vpop.f32.mrf.mxu0
  %v1821 = vadd.f32 0.0, %v1820
  %1822 = vdwg.mxu0
  %1823 = vmatprep.subr.bf16.mxu0 %v1343
  %1824 = vmatpush1.bf16.msra.mxu0 %v1342
  %1825 = vmatprep.subr.bf16.mxu0 %v1337
  %1826 = vmatpush1.bf16.msra.mxu0 %v1336
  %1827 = vmatprep.subr.bf16.mxu0 %v1331
  %1828 = vmatpush1.bf16.msra.mxu0 %v1330
  %1829 = vmatprep.subr.bf16.mxu0 %v1325
  %1830 = vmatpush1.bf16.msra.mxu0 %v1324
  %1831 = vmatprep.subr.bf16.mxu0 %v1319
  %1832 = vmatpush1.bf16.msra.mxu0 %v1318
  %1833 = vmatprep.subr.bf16.mxu0 %v1313
  %1834 = vmatpush1.bf16.msra.mxu0 %v1312
  %1835 = vmatprep.subr.bf16.mxu0 %v1307
  %1836 = vmatpush1.bf16.msra.mxu0 %v1306
  %1837 = vmatprep.subr.bf16.mxu0 %v1301
  %1838 = vmatpush1.bf16.msra.mxu0 %v1300
  %1839 = vmatprep.subr.bf16.mxu0 %v1391
  %1840 = vmatpush2.bf16.msra.mxu0 %v1390
  %1841 = vmatprep.subr.bf16.mxu0 %v1385
  %1842 = vmatpush2.bf16.msra.mxu0 %v1384
  %1843 = vmatprep.subr.bf16.mxu0 %v1379
  %1844 = vmatpush2.bf16.msra.mxu0 %v1378
  %1845 = vmatprep.subr.bf16.mxu0 %v1373
  %1846 = vmatpush2.bf16.msra.mxu0 %v1372
  %1847 = vmatprep.subr.bf16.mxu0 %v1367
  %1848 = vmatpush2.bf16.msra.mxu0 %v1366
  %1849 = vmatprep.subr.bf16.mxu0 %v1361
  %1850 = vmatpush2.bf16.msra.mxu0 %v1360
  %1851 = vmatprep.subr.bf16.mxu0 %v1355
  %1852 = vmatpush2.bf16.msra.mxu0 %v1354
  %1853 = vmatprep.subr.bf16.mxu0 %v1349
  %1854 = vmatpush2.bf16.msra.mxu0 %v1348
  %1855 = vmatprep.mubr.bf16.mxu0 %v49
  %1856 = vmatmul.mubr.bf16.gmra.mxu0 %v48
  %v1857 = vpop.f32.mrf.mxu0
  %v1858 = vadd.f32 %v1815, %v1857
  %v1859 = vpop.f32.mrf.mxu0
  %v1860 = vadd.f32 %v1817, %v1859
  %v1861 = vpop.f32.mrf.mxu0
  %v1862 = vadd.f32 %v1819, %v1861
  %v1863 = vpop.f32.mrf.mxu0
  %v1864 = vadd.f32 %v1821, %v1863
  %1865 = vdwg.mxu0
  %1866 = vmatprep.subr.bf16.mxu0 %v1439
  %1867 = vmatpush1.bf16.msra.mxu0 %v1438
  %1868 = vmatprep.subr.bf16.mxu0 %v1433
  %1869 = vmatpush1.bf16.msra.mxu0 %v1432
  %1870 = vmatprep.subr.bf16.mxu0 %v1427
  %1871 = vmatpush1.bf16.msra.mxu0 %v1426
  %1872 = vmatprep.subr.bf16.mxu0 %v1421
  %1873 = vmatpush1.bf16.msra.mxu0 %v1420
  %1874 = vmatprep.subr.bf16.mxu0 %v1415
  %1875 = vmatpush1.bf16.msra.mxu0 %v1414
  %1876 = vmatprep.subr.bf16.mxu0 %v1409
  %1877 = vmatpush1.bf16.msra.mxu0 %v1408
  %1878 = vmatprep.subr.bf16.mxu0 %v1403
  %1879 = vmatpush1.bf16.msra.mxu0 %v1402
  %1880 = vmatprep.subr.bf16.mxu0 %v1397
  %1881 = vmatpush1.bf16.msra.mxu0 %v1396
  %1882 = vmatprep.subr.bf16.mxu0 %v1487
  %1883 = vmatpush2.bf16.msra.mxu0 %v1486
  %1884 = vmatprep.subr.bf16.mxu0 %v1481
  %1885 = vmatpush2.bf16.msra.mxu0 %v1480
  %1886 = vmatprep.subr.bf16.mxu0 %v1475
  %1887 = vmatpush2.bf16.msra.mxu0 %v1474
  %1888 = vmatprep.subr.bf16.mxu0 %v1469
  %1889 = vmatpush2.bf16.msra.mxu0 %v1468
  %1890 = vmatprep.subr.bf16.mxu0 %v1463
  %1891 = vmatpush2.bf16.msra.mxu0 %v1462
  %1892 = vmatprep.subr.bf16.mxu0 %v1457
  %1893 = vmatpush2.bf16.msra.mxu0 %v1456
  %1894 = vmatprep.subr.bf16.mxu0 %v1451
  %1895 = vmatpush2.bf16.msra.mxu0 %v1450
  %1896 = vmatprep.subr.bf16.mxu0 %v1445
  %1897 = vmatpush2.bf16.msra.mxu0 %v1444
  %1898 = vmatprep.mubr.bf16.mxu0 %v51
  %1899 = vmatmul.mubr.bf16.gmra.mxu0 %v50
  %v1900 = vpop.f32.mrf.mxu0
  %v1901 = vadd.f32 %v1858, %v1900
  %v1902 = vpop.f32.mrf.mxu0
  %v1903 = vadd.f32 %v1860, %v1902
  %v1904 = vpop.f32.mrf.mxu0
  %v1905 = vadd.f32 %v1862, %v1904
  %v1906 = vpop.f32.mrf.mxu0
  %v1907 = vadd.f32 %v1864, %v1906
  %1908 = vdwg.mxu0
  %1909 = vmatprep.subr.bf16.mxu0 %v1249
  %1910 = vmatpush1.bf16.msra.mxu0 %v1248
  %1911 = vmatprep.subr.bf16.mxu0 %v1243
  %1912 = vmatpush1.bf16.msra.mxu0 %v1242
  %1913 = vmatprep.subr.bf16.mxu0 %v1237
  %1914 = vmatpush1.bf16.msra.mxu0 %v1236
  %1915 = vmatprep.subr.bf16.mxu0 %v1231
  %1916 = vmatpush1.bf16.msra.mxu0 %v1230
  %1917 = vmatprep.subr.bf16.mxu0 %v1225
  %1918 = vmatpush1.bf16.msra.mxu0 %v1224
  %1919 = vmatprep.subr.bf16.mxu0 %v1219
  %1920 = vmatpush1.bf16.msra.mxu0 %v1218
  %1921 = vmatprep.subr.bf16.mxu0 %v1213
  %1922 = vmatpush1.bf16.msra.mxu0 %v1212
  %1923 = vmatprep.subr.bf16.mxu0 %v1207
  %1924 = vmatpush1.bf16.msra.mxu0 %v1206
  %1925 = vmatprep.subr.bf16.mxu0 %v1297
  %1926 = vmatpush2.bf16.msra.mxu0 %v1296
  %1927 = vmatprep.subr.bf16.mxu0 %v1291
  %1928 = vmatpush2.bf16.msra.mxu0 %v1290
  %1929 = vmatprep.subr.bf16.mxu0 %v1285
  %1930 = vmatpush2.bf16.msra.mxu0 %v1284
  %1931 = vmatprep.subr.bf16.mxu0 %v1279
  %1932 = vmatpush2.bf16.msra.mxu0 %v1278
  %1933 = vmatprep.subr.bf16.mxu0 %v1273
  %1934 = vmatpush2.bf16.msra.mxu0 %v1272
  %1935 = vmatprep.subr.bf16.mxu0 %v1267
  %1936 = vmatpush2.bf16.msra.mxu0 %v1266
  %1937 = vmatprep.subr.bf16.mxu0 %v1261
  %1938 = vmatpush2.bf16.msra.mxu0 %v1260
  %1939 = vmatprep.subr.bf16.mxu0 %v1255
  %1940 = vmatpush2.bf16.msra.mxu0 %v1254
  %1941 = vmatprep.mubr.bf16.mxu0 %v47
  %1942 = vmatmul.mubr.bf16.gmra.mxu0 %v46
  %v1943 = vpop.f32.mrf.mxu0
  %v1944 = vadd.f32 0.0, %v1943
  %v1945 = vpop.f32.mrf.mxu0
  %v1946 = vadd.f32 0.0, %v1945
  %v1947 = vpop.f32.mrf.mxu0
  %v1948 = vadd.f32 0.0, %v1947
  %v1949 = vpop.f32.mrf.mxu0
  %v1950 = vadd.f32 0.0, %v1949
  %1951 = vdwg.mxu0
  %1952 = vmatprep.subr.bf16.mxu0 %v1345
  %1953 = vmatpush1.bf16.msra.mxu0 %v1344
  %1954 = vmatprep.subr.bf16.mxu0 %v1339
  %1955 = vmatpush1.bf16.msra.mxu0 %v1338
  %1956 = vmatprep.subr.bf16.mxu0 %v1333
  %1957 = vmatpush1.bf16.msra.mxu0 %v1332
  %1958 = vmatprep.subr.bf16.mxu0 %v1327
  %1959 = vmatpush1.bf16.msra.mxu0 %v1326
  %1960 = vmatprep.subr.bf16.mxu0 %v1321
  %1961 = vmatpush1.bf16.msra.mxu0 %v1320
  %1962 = vmatprep.subr.bf16.mxu0 %v1315
  %1963 = vmatpush1.bf16.msra.mxu0 %v1314
  %1964 = vmatprep.subr.bf16.mxu0 %v1309
  %1965 = vmatpush1.bf16.msra.mxu0 %v1308
  %1966 = vmatprep.subr.bf16.mxu0 %v1303
  %1967 = vmatpush1.bf16.msra.mxu0 %v1302
  %1968 = vmatprep.subr.bf16.mxu0 %v1393
  %1969 = vmatpush2.bf16.msra.mxu0 %v1392
  %1970 = vmatprep.subr.bf16.mxu0 %v1387
  %1971 = vmatpush2.bf16.msra.mxu0 %v1386
  %1972 = vmatprep.subr.bf16.mxu0 %v1381
  %1973 = vmatpush2.bf16.msra.mxu0 %v1380
  %1974 = vmatprep.subr.bf16.mxu0 %v1375
  %1975 = vmatpush2.bf16.msra.mxu0 %v1374
  %1976 = vmatprep.subr.bf16.mxu0 %v1369
  %1977 = vmatpush2.bf16.msra.mxu0 %v1368
  %1978 = vmatprep.subr.bf16.mxu0 %v1363
  %1979 = vmatpush2.bf16.msra.mxu0 %v1362
  %1980 = vmatprep.subr.bf16.mxu0 %v1357
  %1981 = vmatpush2.bf16.msra.mxu0 %v1356
  %1982 = vmatprep.subr.bf16.mxu0 %v1351
  %1983 = vmatpush2.bf16.msra.mxu0 %v1350
  %1984 = vmatprep.mubr.bf16.mxu0 %v49
  %1985 = vmatmul.mubr.bf16.gmra.mxu0 %v48
  %v1986 = vpop.f32.mrf.mxu0
  %v1987 = vadd.f32 %v1944, %v1986
  %v1988 = vpop.f32.mrf.mxu0
  %v1989 = vadd.f32 %v1946, %v1988
  %v1990 = vpop.f32.mrf.mxu0
  %v1991 = vadd.f32 %v1948, %v1990
  %v1992 = vpop.f32.mrf.mxu0
  %v1993 = vadd.f32 %v1950, %v1992
  %1994 = vdwg.mxu0
  %1995 = vmatprep.subr.bf16.mxu0 %v1441
  %1996 = vmatpush1.bf16.msra.mxu0 %v1440
  %1997 = vmatprep.subr.bf16.mxu0 %v1435
  %1998 = vmatpush1.bf16.msra.mxu0 %v1434
  %1999 = vmatprep.subr.bf16.mxu0 %v1429
  %2000 = vmatpush1.bf16.msra.mxu0 %v1428
  %2001 = vmatprep.subr.bf16.mxu0 %v1423
  %2002 = vmatpush1.bf16.msra.mxu0 %v1422
  %2003 = vmatprep.subr.bf16.mxu0 %v1417
  %2004 = vmatpush1.bf16.msra.mxu0 %v1416
  %2005 = vmatprep.subr.bf16.mxu0 %v1411
  %2006 = vmatpush1.bf16.msra.mxu0 %v1410
  %2007 = vmatprep.subr.bf16.mxu0 %v1405
  %2008 = vmatpush1.bf16.msra.mxu0 %v1404
  %2009 = vmatprep.subr.bf16.mxu0 %v1399
  %2010 = vmatpush1.bf16.msra.mxu0 %v1398
  %2011 = vmatprep.subr.bf16.mxu0 %v1489
  %2012 = vmatpush2.bf16.msra.mxu0 %v1488
  %2013 = vmatprep.subr.bf16.mxu0 %v1483
  %2014 = vmatpush2.bf16.msra.mxu0 %v1482
  %2015 = vmatprep.subr.bf16.mxu0 %v1477
  %2016 = vmatpush2.bf16.msra.mxu0 %v1476
  %2017 = vmatprep.subr.bf16.mxu0 %v1471
  %2018 = vmatpush2.bf16.msra.mxu0 %v1470
  %2019 = vmatprep.subr.bf16.mxu0 %v1465
  %2020 = vmatpush2.bf16.msra.mxu0 %v1464
  %2021 = vmatprep.subr.bf16.mxu0 %v1459
  %2022 = vmatpush2.bf16.msra.mxu0 %v1458
  %2023 = vmatprep.subr.bf16.mxu0 %v1453
  %2024 = vmatpush2.bf16.msra.mxu0 %v1452
  %2025 = vmatprep.subr.bf16.mxu0 %v1447
  %2026 = vmatpush2.bf16.msra.mxu0 %v1446
  %2027 = vmatprep.mubr.bf16.mxu0 %v51
  %2028 = vmatmul.mubr.bf16.gmra.mxu0 %v50
  %v2029 = vpop.f32.mrf.mxu0
  %v2030 = vadd.f32 %v1987, %v2029
  %v2031 = vpop.f32.mrf.mxu0
  %v2032 = vadd.f32 %v1989, %v2031
  %v2033 = vpop.f32.mrf.mxu0
  %v2034 = vadd.f32 %v1991, %v2033
  %v2035 = vpop.f32.mrf.mxu0
  %v2036 = vadd.f32 %v1993, %v2035
  %2037 = vdwg.mxu0
  %2038 = vmatprep.subr.bf16.mxu0 %v1251
  %2039 = vmatpush1.bf16.msra.mxu0 %v1250
  %2040 = vmatprep.subr.bf16.mxu0 %v1245
  %2041 = vmatpush1.bf16.msra.mxu0 %v1244
  %2042 = vmatprep.subr.bf16.mxu0 %v1239
  %2043 = vmatpush1.bf16.msra.mxu0 %v1238
  %2044 = vmatprep.subr.bf16.mxu0 %v1233
  %2045 = vmatpush1.bf16.msra.mxu0 %v1232
  %2046 = vmatprep.subr.bf16.mxu0 %v1227
  %2047 = vmatpush1.bf16.msra.mxu0 %v1226
  %2048 = vmatprep.subr.bf16.mxu0 %v1221
  %2049 = vmatpush1.bf16.msra.mxu0 %v1220
  %2050 = vmatprep.subr.bf16.mxu0 %v1215
  %2051 = vmatpush1.bf16.msra.mxu0 %v1214
  %2052 = vmatprep.subr.bf16.mxu0 %v1209
  %2053 = vmatpush1.bf16.msra.mxu0 %v1208
  %2054 = vmatprep.subr.bf16.mxu0 %v1299
  %2055 = vmatpush2.bf16.msra.mxu0 %v1298
  %2056 = vmatprep.subr.bf16.mxu0 %v1293
  %2057 = vmatpush2.bf16.msra.mxu0 %v1292
  %2058 = vmatprep.subr.bf16.mxu0 %v1287
  %2059 = vmatpush2.bf16.msra.mxu0 %v1286
  %2060 = vmatprep.subr.bf16.mxu0 %v1281
  %2061 = vmatpush2.bf16.msra.mxu0 %v1280
  %2062 = vmatprep.subr.bf16.mxu0 %v1275
  %2063 = vmatpush2.bf16.msra.mxu0 %v1274
  %2064 = vmatprep.subr.bf16.mxu0 %v1269
  %2065 = vmatpush2.bf16.msra.mxu0 %v1268
  %2066 = vmatprep.subr.bf16.mxu0 %v1263
  %2067 = vmatpush2.bf16.msra.mxu0 %v1262
  %2068 = vmatprep.subr.bf16.mxu0 %v1257
  %2069 = vmatpush2.bf16.msra.mxu0 %v1256
  %2070 = vmatprep.mubr.bf16.mxu0 %v47
  %2071 = vmatmul.mubr.bf16.gmra.mxu0 %v46
  %v2072 = vpop.f32.mrf.mxu0
  %v2073 = vadd.f32 0.0, %v2072
  %v2074 = vpop.f32.mrf.mxu0
  %v2075 = vadd.f32 0.0, %v2074
  %v2076 = vpop.f32.mrf.mxu0
  %v2077 = vadd.f32 0.0, %v2076
  %v2078 = vpop.f32.mrf.mxu0
  %v2079 = vadd.f32 0.0, %v2078
  %2080 = vdwg.mxu0
  %2081 = vmatprep.subr.bf16.mxu0 %v1347
  %2082 = vmatpush1.bf16.msra.mxu0 %v1346
  %2083 = vmatprep.subr.bf16.mxu0 %v1341
  %2084 = vmatpush1.bf16.msra.mxu0 %v1340
  %2085 = vmatprep.subr.bf16.mxu0 %v1335
  %2086 = vmatpush1.bf16.msra.mxu0 %v1334
  %2087 = vmatprep.subr.bf16.mxu0 %v1329
  %2088 = vmatpush1.bf16.msra.mxu0 %v1328
  %2089 = vmatprep.subr.bf16.mxu0 %v1323
  %2090 = vmatpush1.bf16.msra.mxu0 %v1322
  %2091 = vmatprep.subr.bf16.mxu0 %v1317
  %2092 = vmatpush1.bf16.msra.mxu0 %v1316
  %2093 = vmatprep.subr.bf16.mxu0 %v1311
  %2094 = vmatpush1.bf16.msra.mxu0 %v1310
  %2095 = vmatprep.subr.bf16.mxu0 %v1305
  %2096 = vmatpush1.bf16.msra.mxu0 %v1304
  %2097 = vmatprep.subr.bf16.mxu0 %v1395
  %2098 = vmatpush2.bf16.msra.mxu0 %v1394
  %2099 = vmatprep.subr.bf16.mxu0 %v1389
  %2100 = vmatpush2.bf16.msra.mxu0 %v1388
  %2101 = vmatprep.subr.bf16.mxu0 %v1383
  %2102 = vmatpush2.bf16.msra.mxu0 %v1382
  %2103 = vmatprep.subr.bf16.mxu0 %v1377
  %2104 = vmatpush2.bf16.msra.mxu0 %v1376
  %2105 = vmatprep.subr.bf16.mxu0 %v1371
  %2106 = vmatpush2.bf16.msra.mxu0 %v1370
  %2107 = vmatprep.subr.bf16.mxu0 %v1365
  %2108 = vmatpush2.bf16.msra.mxu0 %v1364
  %2109 = vmatprep.subr.bf16.mxu0 %v1359
  %2110 = vmatpush2.bf16.msra.mxu0 %v1358
  %2111 = vmatprep.subr.bf16.mxu0 %v1353
  %2112 = vmatpush2.bf16.msra.mxu0 %v1352
  %2113 = vmatprep.mubr.bf16.mxu0 %v49
  %2114 = vmatmul.mubr.bf16.gmra.mxu0 %v48
  %v2115 = vpop.f32.mrf.mxu0
  %v2116 = vadd.f32 %v2073, %v2115
  %v2117 = vpop.f32.mrf.mxu0
  %v2118 = vadd.f32 %v2075, %v2117
  %v2119 = vpop.f32.mrf.mxu0
  %v2120 = vadd.f32 %v2077, %v2119
  %v2121 = vpop.f32.mrf.mxu0
  %v2122 = vadd.f32 %v2079, %v2121
  %2123 = vdwg.mxu0
  %2124 = vmatprep.subr.bf16.mxu0 %v1443
  %2125 = vmatpush1.bf16.msra.mxu0 %v1442
  %2126 = vmatprep.subr.bf16.mxu0 %v1437
  %2127 = vmatpush1.bf16.msra.mxu0 %v1436
  %2128 = vmatprep.subr.bf16.mxu0 %v1431
  %2129 = vmatpush1.bf16.msra.mxu0 %v1430
  %2130 = vmatprep.subr.bf16.mxu0 %v1425
  %2131 = vmatpush1.bf16.msra.mxu0 %v1424
  %2132 = vmatprep.subr.bf16.mxu0 %v1419
  %2133 = vmatpush1.bf16.msra.mxu0 %v1418
  %2134 = vmatprep.subr.bf16.mxu0 %v1413
  %2135 = vmatpush1.bf16.msra.mxu0 %v1412
  %2136 = vmatprep.subr.bf16.mxu0 %v1407
  %2137 = vmatpush1.bf16.msra.mxu0 %v1406
  %2138 = vmatprep.subr.bf16.mxu0 %v1401
  %2139 = vmatpush1.bf16.msra.mxu0 %v1400
  %2140 = vmatprep.subr.bf16.mxu0 %v1491
  %2141 = vmatpush2.bf16.msra.mxu0 %v1490
  %2142 = vmatprep.subr.bf16.mxu0 %v1485
  %2143 = vmatpush2.bf16.msra.mxu0 %v1484
  %2144 = vmatprep.subr.bf16.mxu0 %v1479
  %2145 = vmatpush2.bf16.msra.mxu0 %v1478
  %2146 = vmatprep.subr.bf16.mxu0 %v1473
  %2147 = vmatpush2.bf16.msra.mxu0 %v1472
  %2148 = vmatprep.subr.bf16.mxu0 %v1467
  %2149 = vmatpush2.bf16.msra.mxu0 %v1466
  %2150 = vmatprep.subr.bf16.mxu0 %v1461
  %2151 = vmatpush2.bf16.msra.mxu0 %v1460
  %2152 = vmatprep.subr.bf16.mxu0 %v1455
  %2153 = vmatpush2.bf16.msra.mxu0 %v1454
  %2154 = vmatprep.subr.bf16.mxu0 %v1449
  %2155 = vmatpush2.bf16.msra.mxu0 %v1448
  %2156 = vmatprep.mubr.bf16.mxu0 %v51
  %2157 = vmatmul.mubr.bf16.gmra.mxu0 %v50
  %v2158 = vpop.f32.mrf.mxu0
  %v2159 = vadd.f32 %v2116, %v2158
  %v2160 = vpop.f32.mrf.mxu0
  %v2161 = vadd.f32 %v2118, %v2160
  %v2162 = vpop.f32.mrf.mxu0
  %v2163 = vadd.f32 %v2120, %v2162
  %v2164 = vpop.f32.mrf.mxu0
  %v2165 = vadd.f32 %v2122, %v2164
  %2166 = vdwg.mxu0
  %vm2167 = vcmask 130048
  %v2169 = vsel %vm2167, %v44, 0
  %v2172 = vsel %vm2167, %v45, 0
  %2174 = vmatprep.subr.mxu0 0.0
  %2175 = vmatpush1.msra.mxu0 0.0
  %2176 = vmatprep.subr.mxu0 0.0
  %2177 = vmatpush1.msra.mxu0 0.0
  %2178 = vmatprep.subr.mxu0 0.0
  %2179 = vmatpush1.msra.mxu0 0.0
  %2180 = vmatprep.subr.mxu0 0.0
  %2181 = vmatpush1.msra.mxu0 0.0
  %2182 = vmatprep.subr.mxu0 0.0
  %2183 = vmatpush1.msra.mxu0 0.0
  %2184 = vmatprep.subr.mxu0 0.0
  %2185 = vmatpush1.msra.mxu0 0.0
  %2186 = vmatprep.subr.mxu0 0.0
  %2187 = vmatpush1.msra.mxu0 0.0
  %2188 = vmatprep.subr.mxu0 0.0
  %2189 = vmatpush1.msra.mxu0 0.0
  %2190 = vmatprep.subr.mxu0 0.0
  %2191 = vmatpush1.msra.mxu0 0.0
  %2192 = vmatprep.subr.mxu0 0.0
  %2193 = vmatpush1.msra.mxu0 0.0
  %2194 = vmatprep.subr.mxu0 0.0
  %2195 = vmatpush1.msra.mxu0 0.0
  %2196 = vmatprep.subr.mxu0 0.0
  %2197 = vmatpush1.msra.mxu0 0.0
  %2198 = vmatprep.subr.mxu0 0.0
  %2199 = vmatpush1.msra.mxu0 0.0
  %2200 = vmatprep.subr.mxu0 0.0
  %2201 = vmatpush1.msra.mxu0 0.0
  %2202 = vmatprep.subr.mxu0 %v1907
  %2203 = vmatpush1.msra.mxu0 %v1905
  %2204 = vmatprep.subr.mxu0 %v1903
  %2205 = vmatpush1.msra.mxu0 %v1901
  %2206 = vmatprep.subr.mxu0 0.0
  %2207 = vmatpush2.msra.mxu0 0.0
  %2208 = vmatprep.subr.mxu0 0.0
  %2209 = vmatpush2.msra.mxu0 0.0
  %2210 = vmatprep.subr.mxu0 0.0
  %2211 = vmatpush2.msra.mxu0 0.0
  %2212 = vmatprep.subr.mxu0 0.0
  %2213 = vmatpush2.msra.mxu0 0.0
  %2214 = vmatprep.subr.mxu0 0.0
  %2215 = vmatpush2.msra.mxu0 0.0
  %2216 = vmatprep.subr.mxu0 0.0
  %2217 = vmatpush2.msra.mxu0 0.0
  %2218 = vmatprep.subr.mxu0 0.0
  %2219 = vmatpush2.msra.mxu0 0.0
  %2220 = vmatprep.subr.mxu0 0.0
  %2221 = vmatpush2.msra.mxu0 0.0
  %2222 = vmatprep.subr.mxu0 0.0
  %2223 = vmatpush2.msra.mxu0 0.0
  %2224 = vmatprep.subr.mxu0 0.0
  %2225 = vmatpush2.msra.mxu0 0.0
  %2226 = vmatprep.subr.mxu0 0.0
  %2227 = vmatpush2.msra.mxu0 0.0
  %2228 = vmatprep.subr.mxu0 0.0
  %2229 = vmatpush2.msra.mxu0 0.0
  %2230 = vmatprep.subr.mxu0 0.0
  %2231 = vmatpush2.msra.mxu0 0.0
  %2232 = vmatprep.subr.mxu0 0.0
  %2233 = vmatpush2.msra.mxu0 0.0
  %2234 = vmatprep.subr.mxu0 0.0
  %2235 = vmatpush2.msra.mxu0 0.0
  %2236 = vmatprep.subr.mxu0 0.0
  %2237 = vmatpush2.msra.mxu0 0.0
  %2238 = vmatprep.mubr.f32.mxu0 0.0
  %2239 = vmatmul.mubr.f32.gmra.mxu0 %v2169
  %v2240 = vpop.f32.mrf.mxu0
  %v2241 = vadd.f32 0.0, %v2240
  %v2242 = vpop.f32.mrf.mxu0
  %v2243 = vadd.f32 0.0, %v2242
  %2244 = vmatprep.mubr.f32.mxu0 0.0
  %2245 = vmatmul.mubr.f32.gmra.mxu0 %v2172
  %v2246 = vpop.f32.mrf.mxu0
  %v2247 = vadd.f32 0.0, %v2246
  %v2248 = vpop.f32.mrf.mxu0
  %v2249 = vadd.f32 0.0, %v2248
  %2250 = vdwg.mxu0
  %2251 = vmatprep.subr.mxu0 0.0
  %2252 = vmatpush1.msra.mxu0 0.0
  %2253 = vmatprep.subr.mxu0 0.0
  %2254 = vmatpush1.msra.mxu0 0.0
  %2255 = vmatprep.subr.mxu0 0.0
  %2256 = vmatpush1.msra.mxu0 0.0
  %2257 = vmatprep.subr.mxu0 0.0
  %2258 = vmatpush1.msra.mxu0 0.0
  %2259 = vmatprep.subr.mxu0 0.0
  %2260 = vmatpush1.msra.mxu0 0.0
  %2261 = vmatprep.subr.mxu0 0.0
  %2262 = vmatpush1.msra.mxu0 0.0
  %2263 = vmatprep.subr.mxu0 0.0
  %2264 = vmatpush1.msra.mxu0 0.0
  %2265 = vmatprep.subr.mxu0 0.0
  %2266 = vmatpush1.msra.mxu0 0.0
  %2267 = vmatprep.subr.mxu0 0.0
  %2268 = vmatpush1.msra.mxu0 0.0
  %2269 = vmatprep.subr.mxu0 0.0
  %2270 = vmatpush1.msra.mxu0 0.0
  %2271 = vmatprep.subr.mxu0 0.0
  %2272 = vmatpush1.msra.mxu0 0.0
  %2273 = vmatprep.subr.mxu0 0.0
  %2274 = vmatpush1.msra.mxu0 0.0
  %2275 = vmatprep.subr.mxu0 0.0
  %2276 = vmatpush1.msra.mxu0 0.0
  %2277 = vmatprep.subr.mxu0 0.0
  %2278 = vmatpush1.msra.mxu0 0.0
  %2279 = vmatprep.subr.mxu0 %v2036
  %2280 = vmatpush1.msra.mxu0 %v2034
  %2281 = vmatprep.subr.mxu0 %v2032
  %2282 = vmatpush1.msra.mxu0 %v2030
  %2283 = vmatprep.subr.mxu0 0.0
  %2284 = vmatpush2.msra.mxu0 0.0
  %2285 = vmatprep.subr.mxu0 0.0
  %2286 = vmatpush2.msra.mxu0 0.0
  %2287 = vmatprep.subr.mxu0 0.0
  %2288 = vmatpush2.msra.mxu0 0.0
  %2289 = vmatprep.subr.mxu0 0.0
  %2290 = vmatpush2.msra.mxu0 0.0
  %2291 = vmatprep.subr.mxu0 0.0
  %2292 = vmatpush2.msra.mxu0 0.0
  %2293 = vmatprep.subr.mxu0 0.0
  %2294 = vmatpush2.msra.mxu0 0.0
  %2295 = vmatprep.subr.mxu0 0.0
  %2296 = vmatpush2.msra.mxu0 0.0
  %2297 = vmatprep.subr.mxu0 0.0
  %2298 = vmatpush2.msra.mxu0 0.0
  %2299 = vmatprep.subr.mxu0 0.0
  %2300 = vmatpush2.msra.mxu0 0.0
  %2301 = vmatprep.subr.mxu0 0.0
  %2302 = vmatpush2.msra.mxu0 0.0
  %2303 = vmatprep.subr.mxu0 0.0
  %2304 = vmatpush2.msra.mxu0 0.0
  %2305 = vmatprep.subr.mxu0 0.0
  %2306 = vmatpush2.msra.mxu0 0.0
  %2307 = vmatprep.subr.mxu0 0.0
  %2308 = vmatpush2.msra.mxu0 0.0
  %2309 = vmatprep.subr.mxu0 0.0
  %2310 = vmatpush2.msra.mxu0 0.0
  %2311 = vmatprep.subr.mxu0 0.0
  %2312 = vmatpush2.msra.mxu0 0.0
  %2313 = vmatprep.subr.mxu0 0.0
  %2314 = vmatpush2.msra.mxu0 0.0
  %2315 = vmatprep.mubr.f32.mxu0 0.0
  %2316 = vmatmul.mubr.f32.gmra.mxu0 %v2169
  %v2317 = vpop.f32.mrf.mxu0
  %v2318 = vadd.f32 0.0, %v2317
  %v2319 = vpop.f32.mrf.mxu0
  %v2320 = vadd.f32 0.0, %v2319
  %2321 = vmatprep.mubr.f32.mxu0 0.0
  %2322 = vmatmul.mubr.f32.gmra.mxu0 %v2172
  %v2323 = vpop.f32.mrf.mxu0
  %v2324 = vadd.f32 0.0, %v2323
  %v2325 = vpop.f32.mrf.mxu0
  %v2326 = vadd.f32 0.0, %v2325
  %2327 = vdwg.mxu0
  %2328 = vmatprep.subr.mxu0 0.0
  %2329 = vmatpush1.msra.mxu0 0.0
  %2330 = vmatprep.subr.mxu0 0.0
  %2331 = vmatpush1.msra.mxu0 0.0
  %2332 = vmatprep.subr.mxu0 0.0
  %2333 = vmatpush1.msra.mxu0 0.0
  %2334 = vmatprep.subr.mxu0 0.0
  %2335 = vmatpush1.msra.mxu0 0.0
  %2336 = vmatprep.subr.mxu0 0.0
  %2337 = vmatpush1.msra.mxu0 0.0
  %2338 = vmatprep.subr.mxu0 0.0
  %2339 = vmatpush1.msra.mxu0 0.0
  %2340 = vmatprep.subr.mxu0 0.0
  %2341 = vmatpush1.msra.mxu0 0.0
  %2342 = vmatprep.subr.mxu0 0.0
  %2343 = vmatpush1.msra.mxu0 0.0
  %2344 = vmatprep.subr.mxu0 0.0
  %2345 = vmatpush1.msra.mxu0 0.0
  %2346 = vmatprep.subr.mxu0 0.0
  %2347 = vmatpush1.msra.mxu0 0.0
  %2348 = vmatprep.subr.mxu0 0.0
  %2349 = vmatpush1.msra.mxu0 0.0
  %2350 = vmatprep.subr.mxu0 0.0
  %2351 = vmatpush1.msra.mxu0 0.0
  %2352 = vmatprep.subr.mxu0 0.0
  %2353 = vmatpush1.msra.mxu0 0.0
  %2354 = vmatprep.subr.mxu0 0.0
  %2355 = vmatpush1.msra.mxu0 0.0
  %2356 = vmatprep.subr.mxu0 %v2165
  %2357 = vmatpush1.msra.mxu0 %v2163
  %2358 = vmatprep.subr.mxu0 %v2161
  %2359 = vmatpush1.msra.mxu0 %v2159
  %2360 = vmatprep.subr.mxu0 0.0
  %2361 = vmatpush2.msra.mxu0 0.0
  %2362 = vmatprep.subr.mxu0 0.0
  %2363 = vmatpush2.msra.mxu0 0.0
  %2364 = vmatprep.subr.mxu0 0.0
  %2365 = vmatpush2.msra.mxu0 0.0
  %2366 = vmatprep.subr.mxu0 0.0
  %2367 = vmatpush2.msra.mxu0 0.0
  %2368 = vmatprep.subr.mxu0 0.0
  %2369 = vmatpush2.msra.mxu0 0.0
  %2370 = vmatprep.subr.mxu0 0.0
  %2371 = vmatpush2.msra.mxu0 0.0
  %2372 = vmatprep.subr.mxu0 0.0
  %2373 = vmatpush2.msra.mxu0 0.0
  %2374 = vmatprep.subr.mxu0 0.0
  %2375 = vmatpush2.msra.mxu0 0.0
  %2376 = vmatprep.subr.mxu0 0.0
  %2377 = vmatpush2.msra.mxu0 0.0
  %2378 = vmatprep.subr.mxu0 0.0
  %2379 = vmatpush2.msra.mxu0 0.0
  %2380 = vmatprep.subr.mxu0 0.0
  %2381 = vmatpush2.msra.mxu0 0.0
  %2382 = vmatprep.subr.mxu0 0.0
  %2383 = vmatpush2.msra.mxu0 0.0
  %2384 = vmatprep.subr.mxu0 0.0
  %2385 = vmatpush2.msra.mxu0 0.0
  %2386 = vmatprep.subr.mxu0 0.0
  %2387 = vmatpush2.msra.mxu0 0.0
  %2388 = vmatprep.subr.mxu0 0.0
  %2389 = vmatpush2.msra.mxu0 0.0
  %2390 = vmatprep.subr.mxu0 0.0
  %2391 = vmatpush2.msra.mxu0 0.0
  %2392 = vmatprep.mubr.f32.mxu0 0.0
  %2393 = vmatmul.mubr.f32.gmra.mxu0 %v2169
  %v2394 = vpop.f32.mrf.mxu0
  %v2395 = vadd.f32 0.0, %v2394
  %v2396 = vpop.f32.mrf.mxu0
  %v2397 = vadd.f32 0.0, %v2396
  %2398 = vmatprep.mubr.f32.mxu0 0.0
  %2399 = vmatmul.mubr.f32.gmra.mxu0 %v2172
  %v2400 = vpop.f32.mrf.mxu0
  %v2401 = vadd.f32 0.0, %v2400
  %v2402 = vpop.f32.mrf.mxu0
  %v2403 = vadd.f32 0.0, %v2402
  %2404 = vdwg.mxu0
  %vm2405 = vcmp.ge.f32.partialorder %v2241, 0.0
  %vm2406 = vcmp.ge.f32.partialorder %v2243, 0.0
  %vm2407 = vcmp.ge.f32.partialorder %v2318, 0.0
  %vm2408 = vcmp.ge.f32.partialorder %v2320, 0.0
  %vm2409 = vcmp.ge.f32.partialorder %v2395, 0.0
  %vm2410 = vcmp.ge.f32.partialorder %v2397, 0.0
  %vm2411 = vcmp.ge.f32.partialorder %v2247, 0.0
  %vm2412 = vcmp.ge.f32.partialorder %v2249, 0.0
  %vm2413 = vcmp.ge.f32.partialorder %v2324, 0.0
  %vm2414 = vcmp.ge.f32.partialorder %v2326, 0.0
  %vm2415 = vcmp.ge.f32.partialorder %v2401, 0.0
  %vm2416 = vcmp.ge.f32.partialorder %v2403, 0.0
  %v2417 = vmul.f32 %v2241, 0.2
  %v2418 = vmul.f32 %v2243, 0.2
  %v2419 = vmul.f32 %v2318, 0.2
  %v2420 = vmul.f32 %v2320, 0.2
  %v2421 = vmul.f32 %v2395, 0.2
  %v2422 = vmul.f32 %v2397, 0.2
  %v2423 = vmul.f32 %v2247, 0.2
  %v2424 = vmul.f32 %v2249, 0.2
  %v2425 = vmul.f32 %v2324, 0.2
  %v2426 = vmul.f32 %v2326, 0.2
  %v2427 = vmul.f32 %v2401, 0.2
  %v2428 = vmul.f32 %v2403, 0.2
  %v2429 = vsel %vm2405, %v2241, %v2417
  %v2430 = vsel %vm2406, %v2243, %v2418
  %v2431 = vsel %vm2407, %v2318, %v2419
  %v2432 = vsel %vm2408, %v2320, %v2420
  %v2433 = vsel %vm2409, %v2395, %v2421
  %v2434 = vsel %vm2410, %v2397, %v2422
  %v2435 = vsel %vm2411, %v2247, %v2423
  %v2436 = vsel %vm2412, %v2249, %v2424
  %v2437 = vsel %vm2413, %v2324, %v2425
  %v2438 = vsel %vm2414, %v2326, %v2426
  %v2439 = vsel %vm2415, %v2401, %v2427
  %v2440 = vsel %vm2416, %v2403, %v2428
  %v2441 = vpack.c.bf16 %v2435, %v2429
  %v2442 = vpack.c.bf16 %v2436, %v2430
  %v2443 = vpack.c.bf16 %v2437, %v2431
  %v2444 = vpack.c.bf16 %v2438, %v2432
  %v2445 = vpack.c.bf16 %v2439, %v2433
  %v2446 = vpack.c.bf16 %v2440, %v2434
  %v2447 = vld [vmem:[%s3] sm:$0xff]
  %v2448 = vld [vmem:[%s3 + $0x8] sm:$0xff]
  %v2449 = vld [vmem:[%s3 + $0x10] sm:$0xff]
  %v2450 = vld [vmem:[%s3 + $0x18] sm:$0xff]
  %v2451 = vld [vmem:[%s3 + $0x20] sm:$0xff]
  %v2452 = vld [vmem:[%s3 + $0x28] sm:$0xff]
  %v2453 = vld [vmem:[%s3 + $0x30] sm:$0xff]
  %v2454 = vld [vmem:[%s3 + $0x38] sm:$0xff]
  %v2455 = vld [vmem:[%s3 + $0x40] sm:$0xff]
  %v2456 = vld [vmem:[%s3 + $0x48] sm:$0xff]
  %v2457 = vld [vmem:[%s3 + $0x50] sm:$0xff]
  %v2458 = vld [vmem:[%s3 + $0x58] sm:$0xff]
  %v2459 = vld [vmem:[%s3 + $0x60] sm:$0xff]
  %v2460 = vld [vmem:[%s3 + $0x68] sm:$0xff]
  %v2461 = vld [vmem:[%s3 + $0x70] sm:$0xff]
  %v2462 = vld [vmem:[%s3 + $0x78] sm:$0xff]
  %v2463 = vld [vmem:[%s3 + $0x80] sm:$0xff]
  %v2464 = vld [vmem:[%s3 + $0x88] sm:$0xff]
  %v2465 = vld [vmem:[%s3 + $0x90] sm:$0xff]
  %v2466 = vld [vmem:[%s3 + $0x98] sm:$0xff]
  %v2467 = vld [vmem:[%s3 + $0xa0] sm:$0xff]
  %v2468 = vld [vmem:[%s3 + $0xa8] sm:$0xff]
  %v2469 = vld [vmem:[%s3 + $0xb0] sm:$0xff]
  %v2470 = vld [vmem:[%s3 + $0xb8] sm:$0xff]
  %v2471 = vld [vmem:[%s3 + $0xc0] sm:$0xff]
  %v2472 = vld [vmem:[%s3 + $0xc8] sm:$0xff]
  %v2473 = vld [vmem:[%s3 + $0xd0] sm:$0xff]
  %v2474 = vld [vmem:[%s3 + $0xd8] sm:$0xff]
  %v2475 = vld [vmem:[%s3 + $0xe0] sm:$0xff]
  %v2476 = vld [vmem:[%s3 + $0xe8] sm:$0xff]
  %v2477 = vld [vmem:[%s3 + $0xf0] sm:$0xff]
  %v2478 = vld [vmem:[%s3 + $0xf8] sm:$0xff]
  %v2479 = vld [vmem:[%s3 + $0x100] sm:$0xff]
  %v2480 = vld [vmem:[%s3 + $0x108] sm:$0xff]
  %v2481 = vld [vmem:[%s3 + $0x110] sm:$0xff]
  %v2482 = vld [vmem:[%s3 + $0x118] sm:$0xff]
  %v2483 = vld [vmem:[%s3 + $0x120] sm:$0xff]
  %v2484 = vld [vmem:[%s3 + $0x128] sm:$0xff]
  %v2485 = vld [vmem:[%s3 + $0x130] sm:$0xff]
  %v2486 = vld [vmem:[%s3 + $0x138] sm:$0xff]
  %v2487 = vld [vmem:[%s3 + $0x140] sm:$0xff]
  %v2488 = vld [vmem:[%s3 + $0x148] sm:$0xff]
  %v2489 = vld [vmem:[%s3 + $0x150] sm:$0xff]
  %v2490 = vld [vmem:[%s3 + $0x158] sm:$0xff]
  %v2491 = vld [vmem:[%s3 + $0x160] sm:$0xff]
  %v2492 = vld [vmem:[%s3 + $0x168] sm:$0xff]
  %v2493 = vld [vmem:[%s3 + $0x170] sm:$0xff]
  %v2494 = vld [vmem:[%s3 + $0x178] sm:$0xff]
  %v2495 = vld [vmem:[%s3 + $0x180] sm:$0xff]
  %v2496 = vld [vmem:[%s3 + $0x188] sm:$0xff]
  %v2497 = vld [vmem:[%s3 + $0x190] sm:$0xff]
  %v2498 = vld [vmem:[%s3 + $0x198] sm:$0xff]
  %v2499 = vld [vmem:[%s3 + $0x1a0] sm:$0xff]
  %v2500 = vld [vmem:[%s3 + $0x1a8] sm:$0xff]
  %v2501 = vld [vmem:[%s3 + $0x1b0] sm:$0xff]
  %v2502 = vld [vmem:[%s3 + $0x1b8] sm:$0xff]
  %v2503 = vld [vmem:[%s3 + $0x1c0] sm:$0xff]
  %v2504 = vld [vmem:[%s3 + $0x1c8] sm:$0xff]
  %v2505 = vld [vmem:[%s3 + $0x1d0] sm:$0xff]
  %v2506 = vld [vmem:[%s3 + $0x1d8] sm:$0xff]
  %v2507 = vld [vmem:[%s3 + $0x1e0] sm:$0xff]
  %v2508 = vld [vmem:[%s3 + $0x1e8] sm:$0xff]
  %v2509 = vld [vmem:[%s3 + $0x1f0] sm:$0xff]
  %v2510 = vld [vmem:[%s3 + $0x1f8] sm:$0xff]
  %v2511 = vld [vmem:[%s3 + $0x200] sm:$0xff]
  %v2512 = vld [vmem:[%s3 + $0x208] sm:$0xff]
  %v2513 = vld [vmem:[%s3 + $0x210] sm:$0xff]
  %v2514 = vld [vmem:[%s3 + $0x218] sm:$0xff]
  %v2515 = vld [vmem:[%s3 + $0x220] sm:$0xff]
  %v2516 = vld [vmem:[%s3 + $0x228] sm:$0xff]
  %v2517 = vld [vmem:[%s3 + $0x230] sm:$0xff]
  %v2518 = vld [vmem:[%s3 + $0x238] sm:$0xff]
  %v2519 = vld [vmem:[%s3 + $0x240] sm:$0xff]
  %v2520 = vld [vmem:[%s3 + $0x248] sm:$0xff]
  %v2521 = vld [vmem:[%s3 + $0x250] sm:$0xff]
  %v2522 = vld [vmem:[%s3 + $0x258] sm:$0xff]
  %v2523 = vld [vmem:[%s3 + $0x260] sm:$0xff]
  %v2524 = vld [vmem:[%s3 + $0x268] sm:$0xff]
  %v2525 = vld [vmem:[%s3 + $0x270] sm:$0xff]
  %v2526 = vld [vmem:[%s3 + $0x278] sm:$0xff]
  %v2527 = vld [vmem:[%s3 + $0x280] sm:$0xff]
  %v2528 = vld [vmem:[%s3 + $0x288] sm:$0xff]
  %v2529 = vld [vmem:[%s3 + $0x290] sm:$0xff]
  %v2530 = vld [vmem:[%s3 + $0x298] sm:$0xff]
  %v2531 = vld [vmem:[%s3 + $0x2a0] sm:$0xff]
  %v2532 = vld [vmem:[%s3 + $0x2a8] sm:$0xff]
  %v2533 = vld [vmem:[%s3 + $0x2b0] sm:$0xff]
  %v2534 = vld [vmem:[%s3 + $0x2b8] sm:$0xff]
  %v2535 = vld [vmem:[%s3 + $0x2c0] sm:$0xff]
  %v2536 = vld [vmem:[%s3 + $0x2c8] sm:$0xff]
  %v2537 = vld [vmem:[%s3 + $0x2d0] sm:$0xff]
  %v2538 = vld [vmem:[%s3 + $0x2d8] sm:$0xff]
  %v2539 = vld [vmem:[%s3 + $0x2e0] sm:$0xff]
  %v2540 = vld [vmem:[%s3 + $0x2e8] sm:$0xff]
  %v2541 = vld [vmem:[%s3 + $0x2f0] sm:$0xff]
  %v2542 = vld [vmem:[%s3 + $0x2f8] sm:$0xff]
  %v2543 = vld [vmem:[%s3 + $0x300] sm:$0xff]
  %v2544 = vld [vmem:[%s3 + $0x308] sm:$0xff]
  %v2545 = vld [vmem:[%s3 + $0x310] sm:$0xff]
  %v2546 = vld [vmem:[%s3 + $0x318] sm:$0xff]
  %v2547 = vld [vmem:[%s3 + $0x320] sm:$0xff]
  %v2548 = vld [vmem:[%s3 + $0x328] sm:$0xff]
  %v2549 = vld [vmem:[%s3 + $0x330] sm:$0xff]
  %v2550 = vld [vmem:[%s3 + $0x338] sm:$0xff]
  %v2551 = vld [vmem:[%s3 + $0x340] sm:$0xff]
  %v2552 = vld [vmem:[%s3 + $0x348] sm:$0xff]
  %v2553 = vld [vmem:[%s3 + $0x350] sm:$0xff]
  %v2554 = vld [vmem:[%s3 + $0x358] sm:$0xff]
  %v2555 = vld [vmem:[%s3 + $0x360] sm:$0xff]
  %v2556 = vld [vmem:[%s3 + $0x368] sm:$0xff]
  %v2557 = vld [vmem:[%s3 + $0x370] sm:$0xff]
  %v2558 = vld [vmem:[%s3 + $0x378] sm:$0xff]
  %v2559 = vld [vmem:[%s3 + $0x380] sm:$0xff]
  %v2560 = vld [vmem:[%s3 + $0x388] sm:$0xff]
  %v2561 = vld [vmem:[%s3 + $0x390] sm:$0xff]
  %v2562 = vld [vmem:[%s3 + $0x398] sm:$0xff]
  %v2563 = vld [vmem:[%s3 + $0x3a0] sm:$0xff]
  %v2564 = vld [vmem:[%s3 + $0x3a8] sm:$0xff]
  %v2565 = vld [vmem:[%s3 + $0x3b0] sm:$0xff]
  %v2566 = vld [vmem:[%s3 + $0x3b8] sm:$0xff]
  %v2567 = vld [vmem:[%s3 + $0x3c0] sm:$0xff]
  %v2568 = vld [vmem:[%s3 + $0x3c8] sm:$0xff]
  %v2569 = vld [vmem:[%s3 + $0x3d0] sm:$0xff]
  %v2570 = vld [vmem:[%s3 + $0x3d8] sm:$0xff]
  %v2571 = vld [vmem:[%s3 + $0x3e0] sm:$0xff]
  %v2572 = vld [vmem:[%s3 + $0x3e8] sm:$0xff]
  %v2573 = vld [vmem:[%s3 + $0x3f0] sm:$0xff]
  %v2574 = vld [vmem:[%s3 + $0x3f8] sm:$0xff]
  %v2575 = vld [vmem:[%s3 + $0x400] sm:$0xff]
  %v2576 = vld [vmem:[%s3 + $0x408] sm:$0xff]
  %v2577 = vld [vmem:[%s3 + $0x410] sm:$0xff]
  %v2578 = vld [vmem:[%s3 + $0x418] sm:$0xff]
  %v2579 = vld [vmem:[%s3 + $0x420] sm:$0xff]
  %v2580 = vld [vmem:[%s3 + $0x428] sm:$0xff]
  %v2581 = vld [vmem:[%s3 + $0x430] sm:$0xff]
  %v2582 = vld [vmem:[%s3 + $0x438] sm:$0xff]
  %v2583 = vld [vmem:[%s3 + $0x440] sm:$0xff]
  %v2584 = vld [vmem:[%s3 + $0x448] sm:$0xff]
  %v2585 = vld [vmem:[%s3 + $0x450] sm:$0xff]
  %v2586 = vld [vmem:[%s3 + $0x458] sm:$0xff]
  %v2587 = vld [vmem:[%s3 + $0x460] sm:$0xff]
  %v2588 = vld [vmem:[%s3 + $0x468] sm:$0xff]
  %v2589 = vld [vmem:[%s3 + $0x470] sm:$0xff]
  %v2590 = vld [vmem:[%s3 + $0x478] sm:$0xff]
  %v2591 = vld [vmem:[%s3 + $0x480] sm:$0xff]
  %v2592 = vld [vmem:[%s3 + $0x488] sm:$0xff]
  %v2593 = vld [vmem:[%s3 + $0x490] sm:$0xff]
  %v2594 = vld [vmem:[%s3 + $0x498] sm:$0xff]
  %v2595 = vld [vmem:[%s3 + $0x4a0] sm:$0xff]
  %v2596 = vld [vmem:[%s3 + $0x4a8] sm:$0xff]
  %v2597 = vld [vmem:[%s3 + $0x4b0] sm:$0xff]
  %v2598 = vld [vmem:[%s3 + $0x4b8] sm:$0xff]
  %v2599 = vld [vmem:[%s3 + $0x4c0] sm:$0xff]
  %v2600 = vld [vmem:[%s3 + $0x4c8] sm:$0xff]
  %v2601 = vld [vmem:[%s3 + $0x4d0] sm:$0xff]
  %v2602 = vld [vmem:[%s3 + $0x4d8] sm:$0xff]
  %v2603 = vld [vmem:[%s3 + $0x4e0] sm:$0xff]
  %v2604 = vld [vmem:[%s3 + $0x4e8] sm:$0xff]
  %v2605 = vld [vmem:[%s3 + $0x4f0] sm:$0xff]
  %v2606 = vld [vmem:[%s3 + $0x4f8] sm:$0xff]
  %v2607 = vld [vmem:[%s3 + $0x500] sm:$0xff]
  %v2608 = vld [vmem:[%s3 + $0x508] sm:$0xff]
  %v2609 = vld [vmem:[%s3 + $0x510] sm:$0xff]
  %v2610 = vld [vmem:[%s3 + $0x518] sm:$0xff]
  %v2611 = vld [vmem:[%s3 + $0x520] sm:$0xff]
  %v2612 = vld [vmem:[%s3 + $0x528] sm:$0xff]
  %v2613 = vld [vmem:[%s3 + $0x530] sm:$0xff]
  %v2614 = vld [vmem:[%s3 + $0x538] sm:$0xff]
  %v2615 = vld [vmem:[%s3 + $0x540] sm:$0xff]
  %v2616 = vld [vmem:[%s3 + $0x548] sm:$0xff]
  %v2617 = vld [vmem:[%s3 + $0x550] sm:$0xff]
  %v2618 = vld [vmem:[%s3 + $0x558] sm:$0xff]
  %v2619 = vld [vmem:[%s3 + $0x560] sm:$0xff]
  %v2620 = vld [vmem:[%s3 + $0x568] sm:$0xff]
  %v2621 = vld [vmem:[%s3 + $0x570] sm:$0xff]
  %v2622 = vld [vmem:[%s3 + $0x578] sm:$0xff]
  %v2623 = vld [vmem:[%s3 + $0x580] sm:$0xff]
  %v2624 = vld [vmem:[%s3 + $0x588] sm:$0xff]
  %v2625 = vld [vmem:[%s3 + $0x590] sm:$0xff]
  %v2626 = vld [vmem:[%s3 + $0x598] sm:$0xff]
  %v2627 = vld [vmem:[%s3 + $0x5a0] sm:$0xff]
  %v2628 = vld [vmem:[%s3 + $0x5a8] sm:$0xff]
  %v2629 = vld [vmem:[%s3 + $0x5b0] sm:$0xff]
  %v2630 = vld [vmem:[%s3 + $0x5b8] sm:$0xff]
  %v2631 = vld [vmem:[%s3 + $0x5c0] sm:$0xff]
  %v2632 = vld [vmem:[%s3 + $0x5c8] sm:$0xff]
  %v2633 = vld [vmem:[%s3 + $0x5d0] sm:$0xff]
  %v2634 = vld [vmem:[%s3 + $0x5d8] sm:$0xff]
  %v2635 = vld [vmem:[%s3 + $0x5e0] sm:$0xff]
  %v2636 = vld [vmem:[%s3 + $0x5e8] sm:$0xff]
  %v2637 = vld [vmem:[%s3 + $0x5f0] sm:$0xff]
  %v2638 = vld [vmem:[%s3 + $0x5f8] sm:$0xff]
  %v2639 = vld [vmem:[%s3 + $0x600] sm:$0xff]
  %v2640 = vld [vmem:[%s3 + $0x608] sm:$0xff]
  %v2641 = vld [vmem:[%s3 + $0x610] sm:$0xff]
  %v2642 = vld [vmem:[%s3 + $0x618] sm:$0xff]
  %v2643 = vld [vmem:[%s3 + $0x620] sm:$0xff]
  %v2644 = vld [vmem:[%s3 + $0x628] sm:$0xff]
  %v2645 = vld [vmem:[%s3 + $0x630] sm:$0xff]
  %v2646 = vld [vmem:[%s3 + $0x638] sm:$0xff]
  %v2647 = vld [vmem:[%s3 + $0x640] sm:$0xff]
  %v2648 = vld [vmem:[%s3 + $0x648] sm:$0xff]
  %v2649 = vld [vmem:[%s3 + $0x650] sm:$0xff]
  %v2650 = vld [vmem:[%s3 + $0x658] sm:$0xff]
  %v2651 = vld [vmem:[%s3 + $0x660] sm:$0xff]
  %v2652 = vld [vmem:[%s3 + $0x668] sm:$0xff]
  %v2653 = vld [vmem:[%s3 + $0x670] sm:$0xff]
  %v2654 = vld [vmem:[%s3 + $0x678] sm:$0xff]
  %v2655 = vld [vmem:[%s3 + $0x680] sm:$0xff]
  %v2656 = vld [vmem:[%s3 + $0x688] sm:$0xff]
  %v2657 = vld [vmem:[%s3 + $0x690] sm:$0xff]
  %v2658 = vld [vmem:[%s3 + $0x698] sm:$0xff]
  %v2659 = vld [vmem:[%s3 + $0x6a0] sm:$0xff]
  %v2660 = vld [vmem:[%s3 + $0x6a8] sm:$0xff]
  %v2661 = vld [vmem:[%s3 + $0x6b0] sm:$0xff]
  %v2662 = vld [vmem:[%s3 + $0x6b8] sm:$0xff]
  %v2663 = vld [vmem:[%s3 + $0x6c0] sm:$0xff]
  %v2664 = vld [vmem:[%s3 + $0x6c8] sm:$0xff]
  %v2665 = vld [vmem:[%s3 + $0x6d0] sm:$0xff]
  %v2666 = vld [vmem:[%s3 + $0x6d8] sm:$0xff]
  %v2667 = vld [vmem:[%s3 + $0x6e0] sm:$0xff]
  %v2668 = vld [vmem:[%s3 + $0x6e8] sm:$0xff]
  %v2669 = vld [vmem:[%s3 + $0x6f0] sm:$0xff]
  %v2670 = vld [vmem:[%s3 + $0x6f8] sm:$0xff]
  %v2671 = vld [vmem:[%s3 + $0x700] sm:$0xff]
  %v2672 = vld [vmem:[%s3 + $0x708] sm:$0xff]
  %v2673 = vld [vmem:[%s3 + $0x710] sm:$0xff]
  %v2674 = vld [vmem:[%s3 + $0x718] sm:$0xff]
  %v2675 = vld [vmem:[%s3 + $0x720] sm:$0xff]
  %v2676 = vld [vmem:[%s3 + $0x728] sm:$0xff]
  %v2677 = vld [vmem:[%s3 + $0x730] sm:$0xff]
  %v2678 = vld [vmem:[%s3 + $0x738] sm:$0xff]
  %v2679 = vld [vmem:[%s3 + $0x740] sm:$0xff]
  %v2680 = vld [vmem:[%s3 + $0x748] sm:$0xff]
  %v2681 = vld [vmem:[%s3 + $0x750] sm:$0xff]
  %v2682 = vld [vmem:[%s3 + $0x758] sm:$0xff]
  %v2683 = vld [vmem:[%s3 + $0x760] sm:$0xff]
  %v2684 = vld [vmem:[%s3 + $0x768] sm:$0xff]
  %v2685 = vld [vmem:[%s3 + $0x770] sm:$0xff]
  %v2686 = vld [vmem:[%s3 + $0x778] sm:$0xff]
  %v2687 = vld [vmem:[%s3 + $0x780] sm:$0xff]
  %v2688 = vld [vmem:[%s3 + $0x788] sm:$0xff]
  %v2689 = vld [vmem:[%s3 + $0x790] sm:$0xff]
  %v2690 = vld [vmem:[%s3 + $0x798] sm:$0xff]
  %v2691 = vld [vmem:[%s3 + $0x7a0] sm:$0xff]
  %v2692 = vld [vmem:[%s3 + $0x7a8] sm:$0xff]
  %v2693 = vld [vmem:[%s3 + $0x7b0] sm:$0xff]
  %v2694 = vld [vmem:[%s3 + $0x7b8] sm:$0xff]
  %v2695 = vld [vmem:[%s3 + $0x7c0] sm:$0xff]
  %v2696 = vld [vmem:[%s3 + $0x7c8] sm:$0xff]
  %v2697 = vld [vmem:[%s3 + $0x7d0] sm:$0xff]
  %v2698 = vld [vmem:[%s3 + $0x7d8] sm:$0xff]
  %v2699 = vld [vmem:[%s3 + $0x7e0] sm:$0xff]
  %v2700 = vld [vmem:[%s3 + $0x7e8] sm:$0xff]
  %v2701 = vld [vmem:[%s3 + $0x7f0] sm:$0xff]
  %v2702 = vld [vmem:[%s3 + $0x7f8] sm:$0xff]
  %v2703 = vld [vmem:[%s3 + $0x800] sm:$0xff]
  %v2704 = vld [vmem:[%s3 + $0x808] sm:$0xff]
  %v2705 = vld [vmem:[%s3 + $0x810] sm:$0xff]
  %v2706 = vld [vmem:[%s3 + $0x818] sm:$0xff]
  %v2707 = vld [vmem:[%s3 + $0x820] sm:$0xff]
  %v2708 = vld [vmem:[%s3 + $0x828] sm:$0xff]
  %v2709 = vld [vmem:[%s3 + $0x830] sm:$0xff]
  %v2710 = vld [vmem:[%s3 + $0x838] sm:$0xff]
  %v2711 = vld [vmem:[%s3 + $0x840] sm:$0xff]
  %v2712 = vld [vmem:[%s3 + $0x848] sm:$0xff]
  %v2713 = vld [vmem:[%s3 + $0x850] sm:$0xff]
  %v2714 = vld [vmem:[%s3 + $0x858] sm:$0xff]
  %v2715 = vld [vmem:[%s3 + $0x860] sm:$0xff]
  %v2716 = vld [vmem:[%s3 + $0x868] sm:$0xff]
  %v2717 = vld [vmem:[%s3 + $0x870] sm:$0xff]
  %v2718 = vld [vmem:[%s3 + $0x878] sm:$0xff]
  %v2719 = vld [vmem:[%s3 + $0x880] sm:$0xff]
  %v2720 = vld [vmem:[%s3 + $0x888] sm:$0xff]
  %v2721 = vld [vmem:[%s3 + $0x890] sm:$0xff]
  %v2722 = vld [vmem:[%s3 + $0x898] sm:$0xff]
  %v2723 = vld [vmem:[%s3 + $0x8a0] sm:$0xff]
  %v2724 = vld [vmem:[%s3 + $0x8a8] sm:$0xff]
  %v2725 = vld [vmem:[%s3 + $0x8b0] sm:$0xff]
  %v2726 = vld [vmem:[%s3 + $0x8b8] sm:$0xff]
  %v2727 = vld [vmem:[%s3 + $0x8c0] sm:$0xff]
  %v2728 = vld [vmem:[%s3 + $0x8c8] sm:$0xff]
  %v2729 = vld [vmem:[%s3 + $0x8d0] sm:$0xff]
  %v2730 = vld [vmem:[%s3 + $0x8d8] sm:$0xff]
  %v2731 = vld [vmem:[%s3 + $0x8e0] sm:$0xff]
  %v2732 = vld [vmem:[%s3 + $0x8e8] sm:$0xff]
  %v2733 = vld [vmem:[%s3 + $0x8f0] sm:$0xff]
  %v2734 = vld [vmem:[%s3 + $0x8f8] sm:$0xff]
  %v2735 = vld [vmem:[%s3 + $0x900] sm:$0xff]
  %v2736 = vld [vmem:[%s3 + $0x908] sm:$0xff]
  %v2737 = vld [vmem:[%s3 + $0x910] sm:$0xff]
  %v2738 = vld [vmem:[%s3 + $0x918] sm:$0xff]
  %v2739 = vld [vmem:[%s3 + $0x920] sm:$0xff]
  %v2740 = vld [vmem:[%s3 + $0x928] sm:$0xff]
  %v2741 = vld [vmem:[%s3 + $0x930] sm:$0xff]
  %v2742 = vld [vmem:[%s3 + $0x938] sm:$0xff]
  %v2743 = vld [vmem:[%s3 + $0x940] sm:$0xff]
  %v2744 = vld [vmem:[%s3 + $0x948] sm:$0xff]
  %v2745 = vld [vmem:[%s3 + $0x950] sm:$0xff]
  %v2746 = vld [vmem:[%s3 + $0x958] sm:$0xff]
  %v2747 = vld [vmem:[%s3 + $0x960] sm:$0xff]
  %v2748 = vld [vmem:[%s3 + $0x968] sm:$0xff]
  %v2749 = vld [vmem:[%s3 + $0x970] sm:$0xff]
  %v2750 = vld [vmem:[%s3 + $0x978] sm:$0xff]
  %v2751 = vld [vmem:[%s3 + $0x980] sm:$0xff]
  %v2752 = vld [vmem:[%s3 + $0x988] sm:$0xff]
  %v2753 = vld [vmem:[%s3 + $0x990] sm:$0xff]
  %v2754 = vld [vmem:[%s3 + $0x998] sm:$0xff]
  %v2755 = vld [vmem:[%s3 + $0x9a0] sm:$0xff]
  %v2756 = vld [vmem:[%s3 + $0x9a8] sm:$0xff]
  %v2757 = vld [vmem:[%s3 + $0x9b0] sm:$0xff]
  %v2758 = vld [vmem:[%s3 + $0x9b8] sm:$0xff]
  %v2759 = vld [vmem:[%s3 + $0x9c0] sm:$0xff]
  %v2760 = vld [vmem:[%s3 + $0x9c8] sm:$0xff]
  %v2761 = vld [vmem:[%s3 + $0x9d0] sm:$0xff]
  %v2762 = vld [vmem:[%s3 + $0x9d8] sm:$0xff]
  %v2763 = vld [vmem:[%s3 + $0x9e0] sm:$0xff]
  %v2764 = vld [vmem:[%s3 + $0x9e8] sm:$0xff]
  %v2765 = vld [vmem:[%s3 + $0x9f0] sm:$0xff]
  %v2766 = vld [vmem:[%s3 + $0x9f8] sm:$0xff]
  %v2767 = vld [vmem:[%s3 + $0xa00] sm:$0xff]
  %v2768 = vld [vmem:[%s3 + $0xa08] sm:$0xff]
  %v2769 = vld [vmem:[%s3 + $0xa10] sm:$0xff]
  %v2770 = vld [vmem:[%s3 + $0xa18] sm:$0xff]
  %v2771 = vld [vmem:[%s3 + $0xa20] sm:$0xff]
  %v2772 = vld [vmem:[%s3 + $0xa28] sm:$0xff]
  %v2773 = vld [vmem:[%s3 + $0xa30] sm:$0xff]
  %v2774 = vld [vmem:[%s3 + $0xa38] sm:$0xff]
  %v2775 = vld [vmem:[%s3 + $0xa40] sm:$0xff]
  %v2776 = vld [vmem:[%s3 + $0xa48] sm:$0xff]
  %v2777 = vld [vmem:[%s3 + $0xa50] sm:$0xff]
  %v2778 = vld [vmem:[%s3 + $0xa58] sm:$0xff]
  %v2779 = vld [vmem:[%s3 + $0xa60] sm:$0xff]
  %v2780 = vld [vmem:[%s3 + $0xa68] sm:$0xff]
  %v2781 = vld [vmem:[%s3 + $0xa70] sm:$0xff]
  %v2782 = vld [vmem:[%s3 + $0xa78] sm:$0xff]
  %v2783 = vld [vmem:[%s3 + $0xa80] sm:$0xff]
  %v2784 = vld [vmem:[%s3 + $0xa88] sm:$0xff]
  %v2785 = vld [vmem:[%s3 + $0xa90] sm:$0xff]
  %v2786 = vld [vmem:[%s3 + $0xa98] sm:$0xff]
  %v2787 = vld [vmem:[%s3 + $0xaa0] sm:$0xff]
  %v2788 = vld [vmem:[%s3 + $0xaa8] sm:$0xff]
  %v2789 = vld [vmem:[%s3 + $0xab0] sm:$0xff]
  %v2790 = vld [vmem:[%s3 + $0xab8] sm:$0xff]
  %v2791 = vld [vmem:[%s3 + $0xac0] sm:$0xff]
  %v2792 = vld [vmem:[%s3 + $0xac8] sm:$0xff]
  %v2793 = vld [vmem:[%s3 + $0xad0] sm:$0xff]
  %v2794 = vld [vmem:[%s3 + $0xad8] sm:$0xff]
  %v2795 = vld [vmem:[%s3 + $0xae0] sm:$0xff]
  %v2796 = vld [vmem:[%s3 + $0xae8] sm:$0xff]
  %v2797 = vld [vmem:[%s3 + $0xaf0] sm:$0xff]
  %v2798 = vld [vmem:[%s3 + $0xaf8] sm:$0xff]
  %v2799 = vld [vmem:[%s3 + $0xb00] sm:$0xff]
  %v2800 = vld [vmem:[%s3 + $0xb08] sm:$0xff]
  %v2801 = vld [vmem:[%s3 + $0xb10] sm:$0xff]
  %v2802 = vld [vmem:[%s3 + $0xb18] sm:$0xff]
  %v2803 = vld [vmem:[%s3 + $0xb20] sm:$0xff]
  %v2804 = vld [vmem:[%s3 + $0xb28] sm:$0xff]
  %v2805 = vld [vmem:[%s3 + $0xb30] sm:$0xff]
  %v2806 = vld [vmem:[%s3 + $0xb38] sm:$0xff]
  %v2807 = vld [vmem:[%s3 + $0xb40] sm:$0xff]
  %v2808 = vld [vmem:[%s3 + $0xb48] sm:$0xff]
  %v2809 = vld [vmem:[%s3 + $0xb50] sm:$0xff]
  %v2810 = vld [vmem:[%s3 + $0xb58] sm:$0xff]
  %v2811 = vld [vmem:[%s3 + $0xb60] sm:$0xff]
  %v2812 = vld [vmem:[%s3 + $0xb68] sm:$0xff]
  %v2813 = vld [vmem:[%s3 + $0xb70] sm:$0xff]
  %v2814 = vld [vmem:[%s3 + $0xb78] sm:$0xff]
  %v2815 = vld [vmem:[%s3 + $0xb80] sm:$0xff]
  %v2816 = vld [vmem:[%s3 + $0xb88] sm:$0xff]
  %v2817 = vld [vmem:[%s3 + $0xb90] sm:$0xff]
  %v2818 = vld [vmem:[%s3 + $0xb98] sm:$0xff]
  %v2819 = vld [vmem:[%s3 + $0xba0] sm:$0xff]
  %v2820 = vld [vmem:[%s3 + $0xba8] sm:$0xff]
  %v2821 = vld [vmem:[%s3 + $0xbb0] sm:$0xff]
  %v2822 = vld [vmem:[%s3 + $0xbb8] sm:$0xff]
  %v2823 = vld [vmem:[%s3 + $0xbc0] sm:$0xff]
  %v2824 = vld [vmem:[%s3 + $0xbc8] sm:$0xff]
  %v2825 = vld [vmem:[%s3 + $0xbd0] sm:$0xff]
  %v2826 = vld [vmem:[%s3 + $0xbd8] sm:$0xff]
  %v2827 = vld [vmem:[%s3 + $0xbe0] sm:$0xff]
  %v2828 = vld [vmem:[%s3 + $0xbe8] sm:$0xff]
  %v2829 = vld [vmem:[%s3 + $0xbf0] sm:$0xff]
  %v2830 = vld [vmem:[%s3 + $0xbf8] sm:$0xff]
  %v2831 = vld [vmem:[%s3 + $0xc00] sm:$0xff]
  %v2832 = vld [vmem:[%s3 + $0xc08] sm:$0xff]
  %v2833 = vld [vmem:[%s3 + $0xc10] sm:$0xff]
  %v2834 = vld [vmem:[%s3 + $0xc18] sm:$0xff]
  %v2835 = vld [vmem:[%s3 + $0xc20] sm:$0xff]
  %v2836 = vld [vmem:[%s3 + $0xc28] sm:$0xff]
  %v2837 = vld [vmem:[%s3 + $0xc30] sm:$0xff]
  %v2838 = vld [vmem:[%s3 + $0xc38] sm:$0xff]
  %v2839 = vld [vmem:[%s3 + $0xc40] sm:$0xff]
  %v2840 = vld [vmem:[%s3 + $0xc48] sm:$0xff]
  %v2841 = vld [vmem:[%s3 + $0xc50] sm:$0xff]
  %v2842 = vld [vmem:[%s3 + $0xc58] sm:$0xff]
  %v2843 = vld [vmem:[%s3 + $0xc60] sm:$0xff]
  %v2844 = vld [vmem:[%s3 + $0xc68] sm:$0xff]
  %v2845 = vld [vmem:[%s3 + $0xc70] sm:$0xff]
  %v2846 = vld [vmem:[%s3 + $0xc78] sm:$0xff]
  %v2847 = vld [vmem:[%s3 + $0xc80] sm:$0xff]
  %v2848 = vld [vmem:[%s3 + $0xc88] sm:$0xff]
  %v2849 = vld [vmem:[%s3 + $0xc90] sm:$0xff]
  %v2850 = vld [vmem:[%s3 + $0xc98] sm:$0xff]
  %v2851 = vld [vmem:[%s3 + $0xca0] sm:$0xff]
  %v2852 = vld [vmem:[%s3 + $0xca8] sm:$0xff]
  %v2853 = vld [vmem:[%s3 + $0xcb0] sm:$0xff]
  %v2854 = vld [vmem:[%s3 + $0xcb8] sm:$0xff]
  %v2855 = vld [vmem:[%s3 + $0xcc0] sm:$0xff]
  %v2856 = vld [vmem:[%s3 + $0xcc8] sm:$0xff]
  %v2857 = vld [vmem:[%s3 + $0xcd0] sm:$0xff]
  %v2858 = vld [vmem:[%s3 + $0xcd8] sm:$0xff]
  %v2859 = vld [vmem:[%s3 + $0xce0] sm:$0xff]
  %v2860 = vld [vmem:[%s3 + $0xce8] sm:$0xff]
  %v2861 = vld [vmem:[%s3 + $0xcf0] sm:$0xff]
  %v2862 = vld [vmem:[%s3 + $0xcf8] sm:$0xff]
  %v2863 = vld [vmem:[%s3 + $0xd00] sm:$0xff]
  %v2864 = vld [vmem:[%s3 + $0xd08] sm:$0xff]
  %v2865 = vld [vmem:[%s3 + $0xd10] sm:$0xff]
  %v2866 = vld [vmem:[%s3 + $0xd18] sm:$0xff]
  %v2867 = vld [vmem:[%s3 + $0xd20] sm:$0xff]
  %v2868 = vld [vmem:[%s3 + $0xd28] sm:$0xff]
  %v2869 = vld [vmem:[%s3 + $0xd30] sm:$0xff]
  %v2870 = vld [vmem:[%s3 + $0xd38] sm:$0xff]
  %v2871 = vld [vmem:[%s3 + $0xd40] sm:$0xff]
  %v2872 = vld [vmem:[%s3 + $0xd48] sm:$0xff]
  %v2873 = vld [vmem:[%s3 + $0xd50] sm:$0xff]
  %v2874 = vld [vmem:[%s3 + $0xd58] sm:$0xff]
  %v2875 = vld [vmem:[%s3 + $0xd60] sm:$0xff]
  %v2876 = vld [vmem:[%s3 + $0xd68] sm:$0xff]
  %v2877 = vld [vmem:[%s3 + $0xd70] sm:$0xff]
  %v2878 = vld [vmem:[%s3 + $0xd78] sm:$0xff]
  %v2879 = vld [vmem:[%s3 + $0xd80] sm:$0xff]
  %v2880 = vld [vmem:[%s3 + $0xd88] sm:$0xff]
  %v2881 = vld [vmem:[%s3 + $0xd90] sm:$0xff]
  %v2882 = vld [vmem:[%s3 + $0xd98] sm:$0xff]
  %v2883 = vld [vmem:[%s3 + $0xda0] sm:$0xff]
  %v2884 = vld [vmem:[%s3 + $0xda8] sm:$0xff]
  %v2885 = vld [vmem:[%s3 + $0xdb0] sm:$0xff]
  %v2886 = vld [vmem:[%s3 + $0xdb8] sm:$0xff]
  %v2887 = vld [vmem:[%s3 + $0xdc0] sm:$0xff]
  %v2888 = vld [vmem:[%s3 + $0xdc8] sm:$0xff]
  %v2889 = vld [vmem:[%s3 + $0xdd0] sm:$0xff]
  %v2890 = vld [vmem:[%s3 + $0xdd8] sm:$0xff]
  %v2891 = vld [vmem:[%s3 + $0xde0] sm:$0xff]
  %v2892 = vld [vmem:[%s3 + $0xde8] sm:$0xff]
  %v2893 = vld [vmem:[%s3 + $0xdf0] sm:$0xff]
  %v2894 = vld [vmem:[%s3 + $0xdf8] sm:$0xff]
  %v2895 = vld [vmem:[%s3 + $0xe00] sm:$0xff]
  %v2896 = vld [vmem:[%s3 + $0xe08] sm:$0xff]
  %v2897 = vld [vmem:[%s3 + $0xe10] sm:$0xff]
  %v2898 = vld [vmem:[%s3 + $0xe18] sm:$0xff]
  %v2899 = vld [vmem:[%s3 + $0xe20] sm:$0xff]
  %v2900 = vld [vmem:[%s3 + $0xe28] sm:$0xff]
  %v2901 = vld [vmem:[%s3 + $0xe30] sm:$0xff]
  %v2902 = vld [vmem:[%s3 + $0xe38] sm:$0xff]
  %v2903 = vld [vmem:[%s3 + $0xe40] sm:$0xff]
  %v2904 = vld [vmem:[%s3 + $0xe48] sm:$0xff]
  %v2905 = vld [vmem:[%s3 + $0xe50] sm:$0xff]
  %v2906 = vld [vmem:[%s3 + $0xe58] sm:$0xff]
  %v2907 = vld [vmem:[%s3 + $0xe60] sm:$0xff]
  %v2908 = vld [vmem:[%s3 + $0xe68] sm:$0xff]
  %v2909 = vld [vmem:[%s3 + $0xe70] sm:$0xff]
  %v2910 = vld [vmem:[%s3 + $0xe78] sm:$0xff]
  %v2911 = vld [vmem:[%s3 + $0xe80] sm:$0xff]
  %v2912 = vld [vmem:[%s3 + $0xe88] sm:$0xff]
  %v2913 = vld [vmem:[%s3 + $0xe90] sm:$0xff]
  %v2914 = vld [vmem:[%s3 + $0xe98] sm:$0xff]
  %v2915 = vld [vmem:[%s3 + $0xea0] sm:$0xff]
  %v2916 = vld [vmem:[%s3 + $0xea8] sm:$0xff]
  %v2917 = vld [vmem:[%s3 + $0xeb0] sm:$0xff]
  %v2918 = vld [vmem:[%s3 + $0xeb8] sm:$0xff]
  %v2919 = vld [vmem:[%s3 + $0xec0] sm:$0xff]
  %v2920 = vld [vmem:[%s3 + $0xec8] sm:$0xff]
  %v2921 = vld [vmem:[%s3 + $0xed0] sm:$0xff]
  %v2922 = vld [vmem:[%s3 + $0xed8] sm:$0xff]
  %v2923 = vld [vmem:[%s3 + $0xee0] sm:$0xff]
  %v2924 = vld [vmem:[%s3 + $0xee8] sm:$0xff]
  %v2925 = vld [vmem:[%s3 + $0xef0] sm:$0xff]
  %v2926 = vld [vmem:[%s3 + $0xef8] sm:$0xff]
  %v2927 = vld [vmem:[%s3 + $0xf00] sm:$0xff]
  %v2928 = vld [vmem:[%s3 + $0xf08] sm:$0xff]
  %v2929 = vld [vmem:[%s3 + $0xf10] sm:$0xff]
  %v2930 = vld [vmem:[%s3 + $0xf18] sm:$0xff]
  %v2931 = vld [vmem:[%s3 + $0xf20] sm:$0xff]
  %v2932 = vld [vmem:[%s3 + $0xf28] sm:$0xff]
  %v2933 = vld [vmem:[%s3 + $0xf30] sm:$0xff]
  %v2934 = vld [vmem:[%s3 + $0xf38] sm:$0xff]
  %v2935 = vld [vmem:[%s3 + $0xf40] sm:$0xff]
  %v2936 = vld [vmem:[%s3 + $0xf48] sm:$0xff]
  %v2937 = vld [vmem:[%s3 + $0xf50] sm:$0xff]
  %v2938 = vld [vmem:[%s3 + $0xf58] sm:$0xff]
  %v2939 = vld [vmem:[%s3 + $0xf60] sm:$0xff]
  %v2940 = vld [vmem:[%s3 + $0xf68] sm:$0xff]
  %v2941 = vld [vmem:[%s3 + $0xf70] sm:$0xff]
  %v2942 = vld [vmem:[%s3 + $0xf78] sm:$0xff]
  %v2943 = vld [vmem:[%s3 + $0xf80] sm:$0xff]
  %v2944 = vld [vmem:[%s3 + $0xf88] sm:$0xff]
  %v2945 = vld [vmem:[%s3 + $0xf90] sm:$0xff]
  %v2946 = vld [vmem:[%s3 + $0xf98] sm:$0xff]
  %v2947 = vld [vmem:[%s3 + $0xfa0] sm:$0xff]
  %v2948 = vld [vmem:[%s3 + $0xfa8] sm:$0xff]
  %v2949 = vld [vmem:[%s3 + $0xfb0] sm:$0xff]
  %v2950 = vld [vmem:[%s3 + $0xfb8] sm:$0xff]
  %v2951 = vld [vmem:[%s3 + $0xfc0] sm:$0xff]
  %v2952 = vld [vmem:[%s3 + $0xfc8] sm:$0xff]
  %v2953 = vld [vmem:[%s3 + $0xfd0] sm:$0xff]
  %v2954 = vld [vmem:[%s3 + $0xfd8] sm:$0xff]
  %v2955 = vld [vmem:[%s3 + $0xfe0] sm:$0xff]
  %v2956 = vld [vmem:[%s3 + $0xfe8] sm:$0xff]
  %v2957 = vld [vmem:[%s3 + $0xff0] sm:$0xff]
  %v2958 = vld [vmem:[%s3 + $0xff8] sm:$0xff]
  %v2959 = vld [vmem:[%s3 + $0x1000] sm:$0xff]
  %v2960 = vld [vmem:[%s3 + $0x1008] sm:$0xff]
  %v2961 = vld [vmem:[%s3 + $0x1010] sm:$0xff]
  %v2962 = vld [vmem:[%s3 + $0x1018] sm:$0xff]
  %v2963 = vld [vmem:[%s3 + $0x1020] sm:$0xff]
  %v2964 = vld [vmem:[%s3 + $0x1028] sm:$0xff]
  %v2965 = vld [vmem:[%s3 + $0x1030] sm:$0xff]
  %v2966 = vld [vmem:[%s3 + $0x1038] sm:$0xff]
  %v2967 = vld [vmem:[%s3 + $0x1040] sm:$0xff]
  %v2968 = vld [vmem:[%s3 + $0x1048] sm:$0xff]
  %v2969 = vld [vmem:[%s3 + $0x1050] sm:$0xff]
  %v2970 = vld [vmem:[%s3 + $0x1058] sm:$0xff]
  %v2971 = vld [vmem:[%s3 + $0x1060] sm:$0xff]
  %v2972 = vld [vmem:[%s3 + $0x1068] sm:$0xff]
  %v2973 = vld [vmem:[%s3 + $0x1070] sm:$0xff]
  %v2974 = vld [vmem:[%s3 + $0x1078] sm:$0xff]
  %v2975 = vld [vmem:[%s3 + $0x1080] sm:$0xff]
  %v2976 = vld [vmem:[%s3 + $0x1088] sm:$0xff]
  %v2977 = vld [vmem:[%s3 + $0x1090] sm:$0xff]
  %v2978 = vld [vmem:[%s3 + $0x1098] sm:$0xff]
  %v2979 = vld [vmem:[%s3 + $0x10a0] sm:$0xff]
  %v2980 = vld [vmem:[%s3 + $0x10a8] sm:$0xff]
  %v2981 = vld [vmem:[%s3 + $0x10b0] sm:$0xff]
  %v2982 = vld [vmem:[%s3 + $0x10b8] sm:$0xff]
  %v2983 = vld [vmem:[%s3 + $0x10c0] sm:$0xff]
  %v2984 = vld [vmem:[%s3 + $0x10c8] sm:$0xff]
  %v2985 = vld [vmem:[%s3 + $0x10d0] sm:$0xff]
  %v2986 = vld [vmem:[%s3 + $0x10d8] sm:$0xff]
  %v2987 = vld [vmem:[%s3 + $0x10e0] sm:$0xff]
  %v2988 = vld [vmem:[%s3 + $0x10e8] sm:$0xff]
  %v2989 = vld [vmem:[%s3 + $0x10f0] sm:$0xff]
  %v2990 = vld [vmem:[%s3 + $0x10f8] sm:$0xff]
  %v2991 = vld [vmem:[%s3 + $0x1100] sm:$0xff]
  %v2992 = vld [vmem:[%s3 + $0x1108] sm:$0xff]
  %v2993 = vld [vmem:[%s3 + $0x1110] sm:$0xff]
  %v2994 = vld [vmem:[%s3 + $0x1118] sm:$0xff]
  %v2995 = vld [vmem:[%s3 + $0x1120] sm:$0xff]
  %v2996 = vld [vmem:[%s3 + $0x1128] sm:$0xff]
  %v2997 = vld [vmem:[%s3 + $0x1130] sm:$0xff]
  %v2998 = vld [vmem:[%s3 + $0x1138] sm:$0xff]
  %v2999 = vld [vmem:[%s3 + $0x1140] sm:$0xff]
  %v3000 = vld [vmem:[%s3 + $0x1148] sm:$0xff]
  %v3001 = vld [vmem:[%s3 + $0x1150] sm:$0xff]
  %v3002 = vld [vmem:[%s3 + $0x1158] sm:$0xff]
  %v3003 = vld [vmem:[%s3 + $0x1160] sm:$0xff]
  %v3004 = vld [vmem:[%s3 + $0x1168] sm:$0xff]
  %v3005 = vld [vmem:[%s3 + $0x1170] sm:$0xff]
  %v3006 = vld [vmem:[%s3 + $0x1178] sm:$0xff]
  %v3007 = vld [vmem:[%s3 + $0x1180] sm:$0xff]
  %v3008 = vld [vmem:[%s3 + $0x1188] sm:$0xff]
  %v3009 = vld [vmem:[%s3 + $0x1190] sm:$0xff]
  %v3010 = vld [vmem:[%s3 + $0x1198] sm:$0xff]
  %v3011 = vld [vmem:[%s3 + $0x11a0] sm:$0xff]
  %v3012 = vld [vmem:[%s3 + $0x11a8] sm:$0xff]
  %v3013 = vld [vmem:[%s3 + $0x11b0] sm:$0xff]
  %v3014 = vld [vmem:[%s3 + $0x11b8] sm:$0xff]
  %v3015 = vld [vmem:[%s3 + $0x11c0] sm:$0xff]
  %v3016 = vld [vmem:[%s3 + $0x11c8] sm:$0xff]
  %v3017 = vld [vmem:[%s3 + $0x11d0] sm:$0xff]
  %v3018 = vld [vmem:[%s3 + $0x11d8] sm:$0xff]
  %v3019 = vld [vmem:[%s3 + $0x11e0] sm:$0xff]
  %v3020 = vld [vmem:[%s3 + $0x11e8] sm:$0xff]
  %v3021 = vld [vmem:[%s3 + $0x11f0] sm:$0xff]
  %v3022 = vld [vmem:[%s3 + $0x11f8] sm:$0xff]
  %v3023 = vld [vmem:[%s4] sm:$0xff]
  %v3024 = vld [vmem:[%s4 + $0x8] sm:$0xf]
  %v3027 = vlaneseq
  %v3028 = vshrl.u32 %v3027, 7
  %v3029 = vsub.s32 0, %v3028
  %v3030 = vrot.slane %v3023, %v3029
  %v3031 = vlaneseq
  %v3032 = vshrl.u32 %v3031, 7
  %v3033 = vsub.s32 1, %v3032
  %v3034 = vrot.slane %v3023, %v3033
  %v3035 = vlaneseq
  %v3036 = vshrl.u32 %v3035, 7
  %v3037 = vsub.s32 2, %v3036
  %v3038 = vrot.slane %v3023, %v3037
  %v3039 = vlaneseq
  %v3040 = vshrl.u32 %v3039, 7
  %v3041 = vsub.s32 3, %v3040
  %v3042 = vrot.slane %v3023, %v3041
  %v3043 = vlaneseq
  %v3044 = vshrl.u32 %v3043, 7
  %v3045 = vsub.s32 4, %v3044
  %v3046 = vrot.slane %v3023, %v3045
  %v3047 = vlaneseq
  %v3048 = vshrl.u32 %v3047, 7
  %v3049 = vsub.s32 5, %v3048
  %v3050 = vrot.slane %v3023, %v3049
  %v3051 = vlaneseq
  %v3052 = vshrl.u32 %v3051, 7
  %v3053 = vsub.s32 6, %v3052
  %v3054 = vrot.slane %v3023, %v3053
  %v3055 = vlaneseq
  %v3056 = vshrl.u32 %v3055, 7
  %v3057 = vsub.s32 7, %v3056
  %v3058 = vrot.slane %v3023, %v3057
  %v3059 = vlaneseq
  %v3060 = vshrl.u32 %v3059, 7
  %v3061 = vsub.s32 0, %v3060
  %v3062 = vrot.slane %v3024, %v3061
  %v3063 = vlaneseq
  %v3064 = vshrl.u32 %v3063, 7
  %v3065 = vsub.s32 1, %v3064
  %v3066 = vrot.slane %v3024, %v3065
  %v3067 = vlaneseq
  %v3068 = vshrl.u32 %v3067, 7
  %v3069 = vsub.s32 2, %v3068
  %v3070 = vrot.slane %v3024, %v3069
  %v3071 = vlaneseq
  %v3072 = vshrl.u32 %v3071, 7
  %v3073 = vsub.s32 3, %v3072
  %v3074 = vrot.slane %v3024, %v3073
  %v3663 = vunpack.c.l.b16 %v2447
  %v3664 = vunpack.c.h.b16 %v2447
  %v3665 = vunpack.c.l.b16 %v2448
  %v3666 = vunpack.c.h.b16 %v2448
  %v3667 = vunpack.c.l.b16 %v2449
  %v3668 = vunpack.c.h.b16 %v2449
  %v3669 = vunpack.c.l.b16 %v2450
  %v3670 = vunpack.c.h.b16 %v2450
  %v3671 = vunpack.c.l.b16 %v2451
  %v3672 = vunpack.c.h.b16 %v2451
  %v3673 = vunpack.c.l.b16 %v2452
  %v3674 = vunpack.c.h.b16 %v2452
  %v3675 = vunpack.c.l.b16 %v2453
  %v3676 = vunpack.c.h.b16 %v2453
  %v3677 = vunpack.c.l.b16 %v2454
  %v3678 = vunpack.c.h.b16 %v2454
  %v3679 = vunpack.c.l.b16 %v2455
  %v3680 = vunpack.c.h.b16 %v2455
  %v3681 = vunpack.c.l.b16 %v2456
  %v3682 = vunpack.c.h.b16 %v2456
  %v3683 = vunpack.c.l.b16 %v2457
  %v3684 = vunpack.c.h.b16 %v2457
  %v3685 = vunpack.c.l.b16 %v2458
  %v3686 = vunpack.c.h.b16 %v2458
  %v3687 = vunpack.c.l.b16 %v2459
  %v3688 = vunpack.c.h.b16 %v2459
  %v3689 = vunpack.c.l.b16 %v2460
  %v3690 = vunpack.c.h.b16 %v2460
  %v3691 = vunpack.c.l.b16 %v2461
  %v3692 = vunpack.c.h.b16 %v2461
  %v3693 = vunpack.c.l.b16 %v2462
  %v3694 = vunpack.c.h.b16 %v2462
  %v3695 = vunpack.c.l.b16 %v2463
  %v3696 = vunpack.c.h.b16 %v2463
  %v3697 = vunpack.c.l.b16 %v2464
  %v3698 = vunpack.c.h.b16 %v2464
  %v3699 = vunpack.c.l.b16 %v2465
  %v3700 = vunpack.c.h.b16 %v2465
  %v3701 = vunpack.c.l.b16 %v2466
  %v3702 = vunpack.c.h.b16 %v2466
  %v3703 = vunpack.c.l.b16 %v2467
  %v3704 = vunpack.c.h.b16 %v2467
  %v3705 = vunpack.c.l.b16 %v2468
  %v3706 = vunpack.c.h.b16 %v2468
  %v3707 = vunpack.c.l.b16 %v2469
  %v3708 = vunpack.c.h.b16 %v2469
  %v3709 = vunpack.c.l.b16 %v2470
  %v3710 = vunpack.c.h.b16 %v2470
  %v3711 = vunpack.c.l.b16 %v2471
  %v3712 = vunpack.c.h.b16 %v2471
  %v3713 = vunpack.c.l.b16 %v2472
  %v3714 = vunpack.c.h.b16 %v2472
  %v3715 = vunpack.c.l.b16 %v2473
  %v3716 = vunpack.c.h.b16 %v2473
  %v3717 = vunpack.c.l.b16 %v2474
  %v3718 = vunpack.c.h.b16 %v2474
  %v3719 = vunpack.c.l.b16 %v2475
  %v3720 = vunpack.c.h.b16 %v2475
  %v3721 = vunpack.c.l.b16 %v2476
  %v3722 = vunpack.c.h.b16 %v2476
  %v3723 = vunpack.c.l.b16 %v2477
  %v3724 = vunpack.c.h.b16 %v2477
  %v3725 = vunpack.c.l.b16 %v2478
  %v3726 = vunpack.c.h.b16 %v2478
  %v3727 = vunpack.c.l.b16 %v2479
  %v3728 = vunpack.c.h.b16 %v2479
  %v3729 = vunpack.c.l.b16 %v2480
  %v3730 = vunpack.c.h.b16 %v2480
  %v3731 = vunpack.c.l.b16 %v2481
  %v3732 = vunpack.c.h.b16 %v2481
  %v3733 = vunpack.c.l.b16 %v2482
  %v3734 = vunpack.c.h.b16 %v2482
  %v3735 = vunpack.c.l.b16 %v2483
  %v3736 = vunpack.c.h.b16 %v2483
  %v3737 = vunpack.c.l.b16 %v2484
  %v3738 = vunpack.c.h.b16 %v2484
  %v3739 = vunpack.c.l.b16 %v2485
  %v3740 = vunpack.c.h.b16 %v2485
  %v3741 = vunpack.c.l.b16 %v2486
  %v3742 = vunpack.c.h.b16 %v2486
  %v3743 = vunpack.c.l.b16 %v2487
  %v3744 = vunpack.c.h.b16 %v2487
  %v3745 = vunpack.c.l.b16 %v2488
  %v3746 = vunpack.c.h.b16 %v2488
  %v3747 = vunpack.c.l.b16 %v2489
  %v3748 = vunpack.c.h.b16 %v2489
  %v3749 = vunpack.c.l.b16 %v2490
  %v3750 = vunpack.c.h.b16 %v2490
  %v3751 = vunpack.c.l.b16 %v2491
  %v3752 = vunpack.c.h.b16 %v2491
  %v3753 = vunpack.c.l.b16 %v2492
  %v3754 = vunpack.c.h.b16 %v2492
  %v3755 = vunpack.c.l.b16 %v2493
  %v3756 = vunpack.c.h.b16 %v2493
  %v3757 = vunpack.c.l.b16 %v2494
  %v3758 = vunpack.c.h.b16 %v2494
  %v3759 = vunpack.c.l.b16 %v2495
  %v3760 = vunpack.c.h.b16 %v2495
  %v3761 = vunpack.c.l.b16 %v2496
  %v3762 = vunpack.c.h.b16 %v2496
  %v3763 = vunpack.c.l.b16 %v2497
  %v3764 = vunpack.c.h.b16 %v2497
  %v3765 = vunpack.c.l.b16 %v2498
  %v3766 = vunpack.c.h.b16 %v2498
  %v3767 = vunpack.c.l.b16 %v2499
  %v3768 = vunpack.c.h.b16 %v2499
  %v3769 = vunpack.c.l.b16 %v2500
  %v3770 = vunpack.c.h.b16 %v2500
  %v3771 = vunpack.c.l.b16 %v2501
  %v3772 = vunpack.c.h.b16 %v2501
  %v3773 = vunpack.c.l.b16 %v2502
  %v3774 = vunpack.c.h.b16 %v2502
  %v3775 = vunpack.c.l.b16 %v2503
  %v3776 = vunpack.c.h.b16 %v2503
  %v3777 = vunpack.c.l.b16 %v2504
  %v3778 = vunpack.c.h.b16 %v2504
  %v3779 = vunpack.c.l.b16 %v2505
  %v3780 = vunpack.c.h.b16 %v2505
  %v3781 = vunpack.c.l.b16 %v2506
  %v3782 = vunpack.c.h.b16 %v2506
  %v3783 = vunpack.c.l.b16 %v2507
  %v3784 = vunpack.c.h.b16 %v2507
  %v3785 = vunpack.c.l.b16 %v2508
  %v3786 = vunpack.c.h.b16 %v2508
  %v3787 = vunpack.c.l.b16 %v2509
  %v3788 = vunpack.c.h.b16 %v2509
  %v3789 = vunpack.c.l.b16 %v2510
  %v3790 = vunpack.c.h.b16 %v2510
  %v3791 = vunpack.c.l.b16 %v2511
  %v3792 = vunpack.c.h.b16 %v2511
  %v3793 = vunpack.c.l.b16 %v2512
  %v3794 = vunpack.c.h.b16 %v2512
  %v3795 = vunpack.c.l.b16 %v2513
  %v3796 = vunpack.c.h.b16 %v2513
  %v3797 = vunpack.c.l.b16 %v2514
  %v3798 = vunpack.c.h.b16 %v2514
  %v3799 = vunpack.c.l.b16 %v2515
  %v3800 = vunpack.c.h.b16 %v2515
  %v3801 = vunpack.c.l.b16 %v2516
  %v3802 = vunpack.c.h.b16 %v2516
  %v3803 = vunpack.c.l.b16 %v2517
  %v3804 = vunpack.c.h.b16 %v2517
  %v3805 = vunpack.c.l.b16 %v2518
  %v3806 = vunpack.c.h.b16 %v2518
  %v3807 = vunpack.c.l.b16 %v2519
  %v3808 = vunpack.c.h.b16 %v2519
  %v3809 = vunpack.c.l.b16 %v2520
  %v3810 = vunpack.c.h.b16 %v2520
  %v3811 = vunpack.c.l.b16 %v2521
  %v3812 = vunpack.c.h.b16 %v2521
  %v3813 = vunpack.c.l.b16 %v2522
  %v3814 = vunpack.c.h.b16 %v2522
  %v3815 = vunpack.c.l.b16 %v2523
  %v3816 = vunpack.c.h.b16 %v2523
  %v3817 = vunpack.c.l.b16 %v2524
  %v3818 = vunpack.c.h.b16 %v2524
  %v3819 = vunpack.c.l.b16 %v2525
  %v3820 = vunpack.c.h.b16 %v2525
  %v3821 = vunpack.c.l.b16 %v2526
  %v3822 = vunpack.c.h.b16 %v2526
  %v3823 = vunpack.c.l.b16 %v2527
  %v3824 = vunpack.c.h.b16 %v2527
  %v3825 = vunpack.c.l.b16 %v2528
  %v3826 = vunpack.c.h.b16 %v2528
  %v3827 = vunpack.c.l.b16 %v2529
  %v3828 = vunpack.c.h.b16 %v2529
  %v3829 = vunpack.c.l.b16 %v2530
  %v3830 = vunpack.c.h.b16 %v2530
  %v3831 = vunpack.c.l.b16 %v2531
  %v3832 = vunpack.c.h.b16 %v2531
  %v3833 = vunpack.c.l.b16 %v2532
  %v3834 = vunpack.c.h.b16 %v2532
  %v3835 = vunpack.c.l.b16 %v2533
  %v3836 = vunpack.c.h.b16 %v2533
  %v3837 = vunpack.c.l.b16 %v2534
  %v3838 = vunpack.c.h.b16 %v2534
  %v3839 = vunpack.c.l.b16 %v2535
  %v3840 = vunpack.c.h.b16 %v2535
  %v3841 = vunpack.c.l.b16 %v2536
  %v3842 = vunpack.c.h.b16 %v2536
  %v3843 = vunpack.c.l.b16 %v2537
  %v3844 = vunpack.c.h.b16 %v2537
  %v3845 = vunpack.c.l.b16 %v2538
  %v3846 = vunpack.c.h.b16 %v2538
  %v3847 = vunpack.c.l.b16 %v2539
  %v3848 = vunpack.c.h.b16 %v2539
  %v3849 = vunpack.c.l.b16 %v2540
  %v3850 = vunpack.c.h.b16 %v2540
  %v3851 = vunpack.c.l.b16 %v2541
  %v3852 = vunpack.c.h.b16 %v2541
  %v3853 = vunpack.c.l.b16 %v2542
  %v3854 = vunpack.c.h.b16 %v2542
  %v3855 = vunpack.c.l.b16 %v2543
  %v3856 = vunpack.c.h.b16 %v2543
  %v3857 = vunpack.c.l.b16 %v2544
  %v3858 = vunpack.c.h.b16 %v2544
  %v3859 = vunpack.c.l.b16 %v2545
  %v3860 = vunpack.c.h.b16 %v2545
  %v3861 = vunpack.c.l.b16 %v2546
  %v3862 = vunpack.c.h.b16 %v2546
  %v3863 = vunpack.c.l.b16 %v2547
  %v3864 = vunpack.c.h.b16 %v2547
  %v3865 = vunpack.c.l.b16 %v2548
  %v3866 = vunpack.c.h.b16 %v2548
  %v3867 = vunpack.c.l.b16 %v2549
  %v3868 = vunpack.c.h.b16 %v2549
  %v3869 = vunpack.c.l.b16 %v2550
  %v3870 = vunpack.c.h.b16 %v2550
  %v3871 = vunpack.c.l.b16 %v2551
  %v3872 = vunpack.c.h.b16 %v2551
  %v3873 = vunpack.c.l.b16 %v2552
  %v3874 = vunpack.c.h.b16 %v2552
  %v3875 = vunpack.c.l.b16 %v2553
  %v3876 = vunpack.c.h.b16 %v2553
  %v3877 = vunpack.c.l.b16 %v2554
  %v3878 = vunpack.c.h.b16 %v2554
  %v3879 = vunpack.c.l.b16 %v2555
  %v3880 = vunpack.c.h.b16 %v2555
  %v3881 = vunpack.c.l.b16 %v2556
  %v3882 = vunpack.c.h.b16 %v2556
  %v3883 = vunpack.c.l.b16 %v2557
  %v3884 = vunpack.c.h.b16 %v2557
  %v3885 = vunpack.c.l.b16 %v2558
  %v3886 = vunpack.c.h.b16 %v2558
  %v3887 = vunpack.c.l.b16 %v2559
  %v3888 = vunpack.c.h.b16 %v2559
  %v3889 = vunpack.c.l.b16 %v2560
  %v3890 = vunpack.c.h.b16 %v2560
  %v3891 = vunpack.c.l.b16 %v2561
  %v3892 = vunpack.c.h.b16 %v2561
  %v3893 = vunpack.c.l.b16 %v2562
  %v3894 = vunpack.c.h.b16 %v2562
  %v3895 = vunpack.c.l.b16 %v2563
  %v3896 = vunpack.c.h.b16 %v2563
  %v3897 = vunpack.c.l.b16 %v2564
  %v3898 = vunpack.c.h.b16 %v2564
  %v3899 = vunpack.c.l.b16 %v2565
  %v3900 = vunpack.c.h.b16 %v2565
  %v3901 = vunpack.c.l.b16 %v2566
  %v3902 = vunpack.c.h.b16 %v2566
  %v3903 = vunpack.c.l.b16 %v2567
  %v3904 = vunpack.c.h.b16 %v2567
  %v3905 = vunpack.c.l.b16 %v2568
  %v3906 = vunpack.c.h.b16 %v2568
  %v3907 = vunpack.c.l.b16 %v2569
  %v3908 = vunpack.c.h.b16 %v2569
  %v3909 = vunpack.c.l.b16 %v2570
  %v3910 = vunpack.c.h.b16 %v2570
  %v3911 = vunpack.c.l.b16 %v2571
  %v3912 = vunpack.c.h.b16 %v2571
  %v3913 = vunpack.c.l.b16 %v2572
  %v3914 = vunpack.c.h.b16 %v2572
  %v3915 = vunpack.c.l.b16 %v2573
  %v3916 = vunpack.c.h.b16 %v2573
  %v3917 = vunpack.c.l.b16 %v2574
  %v3918 = vunpack.c.h.b16 %v2574
  %v3919 = vunpack.c.l.b16 %v2575
  %v3920 = vunpack.c.h.b16 %v2575
  %v3921 = vunpack.c.l.b16 %v2576
  %v3922 = vunpack.c.h.b16 %v2576
  %v3923 = vunpack.c.l.b16 %v2577
  %v3924 = vunpack.c.h.b16 %v2577
  %v3925 = vunpack.c.l.b16 %v2578
  %v3926 = vunpack.c.h.b16 %v2578
  %v3927 = vunpack.c.l.b16 %v2579
  %v3928 = vunpack.c.h.b16 %v2579
  %v3929 = vunpack.c.l.b16 %v2580
  %v3930 = vunpack.c.h.b16 %v2580
  %v3931 = vunpack.c.l.b16 %v2581
  %v3932 = vunpack.c.h.b16 %v2581
  %v3933 = vunpack.c.l.b16 %v2582
  %v3934 = vunpack.c.h.b16 %v2582
  %v3935 = vunpack.c.l.b16 %v2583
  %v3936 = vunpack.c.h.b16 %v2583
  %v3937 = vunpack.c.l.b16 %v2584
  %v3938 = vunpack.c.h.b16 %v2584
  %v3939 = vunpack.c.l.b16 %v2585
  %v3940 = vunpack.c.h.b16 %v2585
  %v3941 = vunpack.c.l.b16 %v2586
  %v3942 = vunpack.c.h.b16 %v2586
  %v3943 = vunpack.c.l.b16 %v2587
  %v3944 = vunpack.c.h.b16 %v2587
  %v3945 = vunpack.c.l.b16 %v2588
  %v3946 = vunpack.c.h.b16 %v2588
  %v3947 = vunpack.c.l.b16 %v2589
  %v3948 = vunpack.c.h.b16 %v2589
  %v3949 = vunpack.c.l.b16 %v2590
  %v3950 = vunpack.c.h.b16 %v2590
  %v3951 = vunpack.c.l.b16 %v2591
  %v3952 = vunpack.c.h.b16 %v2591
  %v3953 = vunpack.c.l.b16 %v2592
  %v3954 = vunpack.c.h.b16 %v2592
  %v3955 = vunpack.c.l.b16 %v2593
  %v3956 = vunpack.c.h.b16 %v2593
  %v3957 = vunpack.c.l.b16 %v2594
  %v3958 = vunpack.c.h.b16 %v2594
  %v3959 = vunpack.c.l.b16 %v2595
  %v3960 = vunpack.c.h.b16 %v2595
  %v3961 = vunpack.c.l.b16 %v2596
  %v3962 = vunpack.c.h.b16 %v2596
  %v3963 = vunpack.c.l.b16 %v2597
  %v3964 = vunpack.c.h.b16 %v2597
  %v3965 = vunpack.c.l.b16 %v2598
  %v3966 = vunpack.c.h.b16 %v2598
  %v3967 = vunpack.c.l.b16 %v2599
  %v3968 = vunpack.c.h.b16 %v2599
  %v3969 = vunpack.c.l.b16 %v2600
  %v3970 = vunpack.c.h.b16 %v2600
  %v3971 = vunpack.c.l.b16 %v2601
  %v3972 = vunpack.c.h.b16 %v2601
  %v3973 = vunpack.c.l.b16 %v2602
  %v3974 = vunpack.c.h.b16 %v2602
  %v3975 = vunpack.c.l.b16 %v2603
  %v3976 = vunpack.c.h.b16 %v2603
  %v3977 = vunpack.c.l.b16 %v2604
  %v3978 = vunpack.c.h.b16 %v2604
  %v3979 = vunpack.c.l.b16 %v2605
  %v3980 = vunpack.c.h.b16 %v2605
  %v3981 = vunpack.c.l.b16 %v2606
  %v3982 = vunpack.c.h.b16 %v2606
  %v3983 = vunpack.c.l.b16 %v2607
  %v3984 = vunpack.c.h.b16 %v2607
  %v3985 = vunpack.c.l.b16 %v2608
  %v3986 = vunpack.c.h.b16 %v2608
  %v3987 = vunpack.c.l.b16 %v2609
  %v3988 = vunpack.c.h.b16 %v2609
  %v3989 = vunpack.c.l.b16 %v2610
  %v3990 = vunpack.c.h.b16 %v2610
  %v3991 = vunpack.c.l.b16 %v2611
  %v3992 = vunpack.c.h.b16 %v2611
  %v3993 = vunpack.c.l.b16 %v2612
  %v3994 = vunpack.c.h.b16 %v2612
  %v3995 = vunpack.c.l.b16 %v2613
  %v3996 = vunpack.c.h.b16 %v2613
  %v3997 = vunpack.c.l.b16 %v2614
  %v3998 = vunpack.c.h.b16 %v2614
  %v3999 = vunpack.c.l.b16 %v2615
  %v4000 = vunpack.c.h.b16 %v2615
  %v4001 = vunpack.c.l.b16 %v2616
  %v4002 = vunpack.c.h.b16 %v2616
  %v4003 = vunpack.c.l.b16 %v2617
  %v4004 = vunpack.c.h.b16 %v2617
  %v4005 = vunpack.c.l.b16 %v2618
  %v4006 = vunpack.c.h.b16 %v2618
  %v4007 = vunpack.c.l.b16 %v2619
  %v4008 = vunpack.c.h.b16 %v2619
  %v4009 = vunpack.c.l.b16 %v2620
  %v4010 = vunpack.c.h.b16 %v2620
  %v4011 = vunpack.c.l.b16 %v2621
  %v4012 = vunpack.c.h.b16 %v2621
  %v4013 = vunpack.c.l.b16 %v2622
  %v4014 = vunpack.c.h.b16 %v2622
  %v4015 = vunpack.c.l.b16 %v2623
  %v4016 = vunpack.c.h.b16 %v2623
  %v4017 = vunpack.c.l.b16 %v2624
  %v4018 = vunpack.c.h.b16 %v2624
  %v4019 = vunpack.c.l.b16 %v2625
  %v4020 = vunpack.c.h.b16 %v2625
  %v4021 = vunpack.c.l.b16 %v2626
  %v4022 = vunpack.c.h.b16 %v2626
  %v4023 = vunpack.c.l.b16 %v2627
  %v4024 = vunpack.c.h.b16 %v2627
  %v4025 = vunpack.c.l.b16 %v2628
  %v4026 = vunpack.c.h.b16 %v2628
  %v4027 = vunpack.c.l.b16 %v2629
  %v4028 = vunpack.c.h.b16 %v2629
  %v4029 = vunpack.c.l.b16 %v2630
  %v4030 = vunpack.c.h.b16 %v2630
  %v4031 = vunpack.c.l.b16 %v2631
  %v4032 = vunpack.c.h.b16 %v2631
  %v4033 = vunpack.c.l.b16 %v2632
  %v4034 = vunpack.c.h.b16 %v2632
  %v4035 = vunpack.c.l.b16 %v2633
  %v4036 = vunpack.c.h.b16 %v2633
  %v4037 = vunpack.c.l.b16 %v2634
  %v4038 = vunpack.c.h.b16 %v2634
  %v4039 = vunpack.c.l.b16 %v2635
  %v4040 = vunpack.c.h.b16 %v2635
  %v4041 = vunpack.c.l.b16 %v2636
  %v4042 = vunpack.c.h.b16 %v2636
  %v4043 = vunpack.c.l.b16 %v2637
  %v4044 = vunpack.c.h.b16 %v2637
  %v4045 = vunpack.c.l.b16 %v2638
  %v4046 = vunpack.c.h.b16 %v2638
  %v4047 = vunpack.c.l.b16 %v2639
  %v4048 = vunpack.c.h.b16 %v2639
  %v4049 = vunpack.c.l.b16 %v2640
  %v4050 = vunpack.c.h.b16 %v2640
  %v4051 = vunpack.c.l.b16 %v2641
  %v4052 = vunpack.c.h.b16 %v2641
  %v4053 = vunpack.c.l.b16 %v2642
  %v4054 = vunpack.c.h.b16 %v2642
  %v4055 = vunpack.c.l.b16 %v2643
  %v4056 = vunpack.c.h.b16 %v2643
  %v4057 = vunpack.c.l.b16 %v2644
  %v4058 = vunpack.c.h.b16 %v2644
  %v4059 = vunpack.c.l.b16 %v2645
  %v4060 = vunpack.c.h.b16 %v2645
  %v4061 = vunpack.c.l.b16 %v2646
  %v4062 = vunpack.c.h.b16 %v2646
  %v4063 = vunpack.c.l.b16 %v2647
  %v4064 = vunpack.c.h.b16 %v2647
  %v4065 = vunpack.c.l.b16 %v2648
  %v4066 = vunpack.c.h.b16 %v2648
  %v4067 = vunpack.c.l.b16 %v2649
  %v4068 = vunpack.c.h.b16 %v2649
  %v4069 = vunpack.c.l.b16 %v2650
  %v4070 = vunpack.c.h.b16 %v2650
  %v4071 = vunpack.c.l.b16 %v2651
  %v4072 = vunpack.c.h.b16 %v2651
  %v4073 = vunpack.c.l.b16 %v2652
  %v4074 = vunpack.c.h.b16 %v2652
  %v4075 = vunpack.c.l.b16 %v2653
  %v4076 = vunpack.c.h.b16 %v2653
  %v4077 = vunpack.c.l.b16 %v2654
  %v4078 = vunpack.c.h.b16 %v2654
  %v4079 = vunpack.c.l.b16 %v2655
  %v4080 = vunpack.c.h.b16 %v2655
  %v4081 = vunpack.c.l.b16 %v2656
  %v4082 = vunpack.c.h.b16 %v2656
  %v4083 = vunpack.c.l.b16 %v2657
  %v4084 = vunpack.c.h.b16 %v2657
  %v4085 = vunpack.c.l.b16 %v2658
  %v4086 = vunpack.c.h.b16 %v2658
  %v4087 = vunpack.c.l.b16 %v2659
  %v4088 = vunpack.c.h.b16 %v2659
  %v4089 = vunpack.c.l.b16 %v2660
  %v4090 = vunpack.c.h.b16 %v2660
  %v4091 = vunpack.c.l.b16 %v2661
  %v4092 = vunpack.c.h.b16 %v2661
  %v4093 = vunpack.c.l.b16 %v2662
  %v4094 = vunpack.c.h.b16 %v2662
  %v4095 = vunpack.c.l.b16 %v2663
  %v4096 = vunpack.c.h.b16 %v2663
  %v4097 = vunpack.c.l.b16 %v2664
  %v4098 = vunpack.c.h.b16 %v2664
  %v4099 = vunpack.c.l.b16 %v2665
  %v4100 = vunpack.c.h.b16 %v2665
  %v4101 = vunpack.c.l.b16 %v2666
  %v4102 = vunpack.c.h.b16 %v2666
  %v4103 = vunpack.c.l.b16 %v2667
  %v4104 = vunpack.c.h.b16 %v2667
  %v4105 = vunpack.c.l.b16 %v2668
  %v4106 = vunpack.c.h.b16 %v2668
  %v4107 = vunpack.c.l.b16 %v2669
  %v4108 = vunpack.c.h.b16 %v2669
  %v4109 = vunpack.c.l.b16 %v2670
  %v4110 = vunpack.c.h.b16 %v2670
  %v4111 = vunpack.c.l.b16 %v2671
  %v4112 = vunpack.c.h.b16 %v2671
  %v4113 = vunpack.c.l.b16 %v2672
  %v4114 = vunpack.c.h.b16 %v2672
  %v4115 = vunpack.c.l.b16 %v2673
  %v4116 = vunpack.c.h.b16 %v2673
  %v4117 = vunpack.c.l.b16 %v2674
  %v4118 = vunpack.c.h.b16 %v2674
  %v4119 = vunpack.c.l.b16 %v2675
  %v4120 = vunpack.c.h.b16 %v2675
  %v4121 = vunpack.c.l.b16 %v2676
  %v4122 = vunpack.c.h.b16 %v2676
  %v4123 = vunpack.c.l.b16 %v2677
  %v4124 = vunpack.c.h.b16 %v2677
  %v4125 = vunpack.c.l.b16 %v2678
  %v4126 = vunpack.c.h.b16 %v2678
  %v4127 = vunpack.c.l.b16 %v2679
  %v4128 = vunpack.c.h.b16 %v2679
  %v4129 = vunpack.c.l.b16 %v2680
  %v4130 = vunpack.c.h.b16 %v2680
  %v4131 = vunpack.c.l.b16 %v2681
  %v4132 = vunpack.c.h.b16 %v2681
  %v4133 = vunpack.c.l.b16 %v2682
  %v4134 = vunpack.c.h.b16 %v2682
  %v4135 = vunpack.c.l.b16 %v2683
  %v4136 = vunpack.c.h.b16 %v2683
  %v4137 = vunpack.c.l.b16 %v2684
  %v4138 = vunpack.c.h.b16 %v2684
  %v4139 = vunpack.c.l.b16 %v2685
  %v4140 = vunpack.c.h.b16 %v2685
  %v4141 = vunpack.c.l.b16 %v2686
  %v4142 = vunpack.c.h.b16 %v2686
  %v4143 = vunpack.c.l.b16 %v2687
  %v4144 = vunpack.c.h.b16 %v2687
  %v4145 = vunpack.c.l.b16 %v2688
  %v4146 = vunpack.c.h.b16 %v2688
  %v4147 = vunpack.c.l.b16 %v2689
  %v4148 = vunpack.c.h.b16 %v2689
  %v4149 = vunpack.c.l.b16 %v2690
  %v4150 = vunpack.c.h.b16 %v2690
  %v4151 = vunpack.c.l.b16 %v2691
  %v4152 = vunpack.c.h.b16 %v2691
  %v4153 = vunpack.c.l.b16 %v2692
  %v4154 = vunpack.c.h.b16 %v2692
  %v4155 = vunpack.c.l.b16 %v2693
  %v4156 = vunpack.c.h.b16 %v2693
  %v4157 = vunpack.c.l.b16 %v2694
  %v4158 = vunpack.c.h.b16 %v2694
  %v4159 = vunpack.c.l.b16 %v2695
  %v4160 = vunpack.c.h.b16 %v2695
  %v4161 = vunpack.c.l.b16 %v2696
  %v4162 = vunpack.c.h.b16 %v2696
  %v4163 = vunpack.c.l.b16 %v2697
  %v4164 = vunpack.c.h.b16 %v2697
  %v4165 = vunpack.c.l.b16 %v2698
  %v4166 = vunpack.c.h.b16 %v2698
  %v4167 = vunpack.c.l.b16 %v2699
  %v4168 = vunpack.c.h.b16 %v2699
  %v4169 = vunpack.c.l.b16 %v2700
  %v4170 = vunpack.c.h.b16 %v2700
  %v4171 = vunpack.c.l.b16 %v2701
  %v4172 = vunpack.c.h.b16 %v2701
  %v4173 = vunpack.c.l.b16 %v2702
  %v4174 = vunpack.c.h.b16 %v2702
  %v4175 = vunpack.c.l.b16 %v2703
  %v4176 = vunpack.c.h.b16 %v2703
  %v4177 = vunpack.c.l.b16 %v2704
  %v4178 = vunpack.c.h.b16 %v2704
  %v4179 = vunpack.c.l.b16 %v2705
  %v4180 = vunpack.c.h.b16 %v2705
  %v4181 = vunpack.c.l.b16 %v2706
  %v4182 = vunpack.c.h.b16 %v2706
  %v4183 = vunpack.c.l.b16 %v2707
  %v4184 = vunpack.c.h.b16 %v2707
  %v4185 = vunpack.c.l.b16 %v2708
  %v4186 = vunpack.c.h.b16 %v2708
  %v4187 = vunpack.c.l.b16 %v2709
  %v4188 = vunpack.c.h.b16 %v2709
  %v4189 = vunpack.c.l.b16 %v2710
  %v4190 = vunpack.c.h.b16 %v2710
  %v4191 = vunpack.c.l.b16 %v2711
  %v4192 = vunpack.c.h.b16 %v2711
  %v4193 = vunpack.c.l.b16 %v2712
  %v4194 = vunpack.c.h.b16 %v2712
  %v4195 = vunpack.c.l.b16 %v2713
  %v4196 = vunpack.c.h.b16 %v2713
  %v4197 = vunpack.c.l.b16 %v2714
  %v4198 = vunpack.c.h.b16 %v2714
  %v4199 = vunpack.c.l.b16 %v2715
  %v4200 = vunpack.c.h.b16 %v2715
  %v4201 = vunpack.c.l.b16 %v2716
  %v4202 = vunpack.c.h.b16 %v2716
  %v4203 = vunpack.c.l.b16 %v2717
  %v4204 = vunpack.c.h.b16 %v2717
  %v4205 = vunpack.c.l.b16 %v2718
  %v4206 = vunpack.c.h.b16 %v2718
  %v4207 = vunpack.c.l.b16 %v2719
  %v4208 = vunpack.c.h.b16 %v2719
  %v4209 = vunpack.c.l.b16 %v2720
  %v4210 = vunpack.c.h.b16 %v2720
  %v4211 = vunpack.c.l.b16 %v2721
  %v4212 = vunpack.c.h.b16 %v2721
  %v4213 = vunpack.c.l.b16 %v2722
  %v4214 = vunpack.c.h.b16 %v2722
  %v4215 = vunpack.c.l.b16 %v2723
  %v4216 = vunpack.c.h.b16 %v2723
  %v4217 = vunpack.c.l.b16 %v2724
  %v4218 = vunpack.c.h.b16 %v2724
  %v4219 = vunpack.c.l.b16 %v2725
  %v4220 = vunpack.c.h.b16 %v2725
  %v4221 = vunpack.c.l.b16 %v2726
  %v4222 = vunpack.c.h.b16 %v2726
  %v4223 = vunpack.c.l.b16 %v2727
  %v4224 = vunpack.c.h.b16 %v2727
  %v4225 = vunpack.c.l.b16 %v2728
  %v4226 = vunpack.c.h.b16 %v2728
  %v4227 = vunpack.c.l.b16 %v2729
  %v4228 = vunpack.c.h.b16 %v2729
  %v4229 = vunpack.c.l.b16 %v2730
  %v4230 = vunpack.c.h.b16 %v2730
  %v4231 = vunpack.c.l.b16 %v2731
  %v4232 = vunpack.c.h.b16 %v2731
  %v4233 = vunpack.c.l.b16 %v2732
  %v4234 = vunpack.c.h.b16 %v2732
  %v4235 = vunpack.c.l.b16 %v2733
  %v4236 = vunpack.c.h.b16 %v2733
  %v4237 = vunpack.c.l.b16 %v2734
  %v4238 = vunpack.c.h.b16 %v2734
  %v4239 = vunpack.c.l.b16 %v2735
  %v4240 = vunpack.c.h.b16 %v2735
  %v4241 = vunpack.c.l.b16 %v2736
  %v4242 = vunpack.c.h.b16 %v2736
  %v4243 = vunpack.c.l.b16 %v2737
  %v4244 = vunpack.c.h.b16 %v2737
  %v4245 = vunpack.c.l.b16 %v2738
  %v4246 = vunpack.c.h.b16 %v2738
  %v4247 = vunpack.c.l.b16 %v2739
  %v4248 = vunpack.c.h.b16 %v2739
  %v4249 = vunpack.c.l.b16 %v2740
  %v4250 = vunpack.c.h.b16 %v2740
  %v4251 = vunpack.c.l.b16 %v2741
  %v4252 = vunpack.c.h.b16 %v2741
  %v4253 = vunpack.c.l.b16 %v2742
  %v4254 = vunpack.c.h.b16 %v2742
  %v4255 = vunpack.c.l.b16 %v2743
  %v4256 = vunpack.c.h.b16 %v2743
  %v4257 = vunpack.c.l.b16 %v2744
  %v4258 = vunpack.c.h.b16 %v2744
  %v4259 = vunpack.c.l.b16 %v2745
  %v4260 = vunpack.c.h.b16 %v2745
  %v4261 = vunpack.c.l.b16 %v2746
  %v4262 = vunpack.c.h.b16 %v2746
  %v4263 = vunpack.c.l.b16 %v2747
  %v4264 = vunpack.c.h.b16 %v2747
  %v4265 = vunpack.c.l.b16 %v2748
  %v4266 = vunpack.c.h.b16 %v2748
  %v4267 = vunpack.c.l.b16 %v2749
  %v4268 = vunpack.c.h.b16 %v2749
  %v4269 = vunpack.c.l.b16 %v2750
  %v4270 = vunpack.c.h.b16 %v2750
  %v4271 = vunpack.c.l.b16 %v2751
  %v4272 = vunpack.c.h.b16 %v2751
  %v4273 = vunpack.c.l.b16 %v2752
  %v4274 = vunpack.c.h.b16 %v2752
  %v4275 = vunpack.c.l.b16 %v2753
  %v4276 = vunpack.c.h.b16 %v2753
  %v4277 = vunpack.c.l.b16 %v2754
  %v4278 = vunpack.c.h.b16 %v2754
  %v4279 = vunpack.c.l.b16 %v2755
  %v4280 = vunpack.c.h.b16 %v2755
  %v4281 = vunpack.c.l.b16 %v2756
  %v4282 = vunpack.c.h.b16 %v2756
  %v4283 = vunpack.c.l.b16 %v2757
  %v4284 = vunpack.c.h.b16 %v2757
  %v4285 = vunpack.c.l.b16 %v2758
  %v4286 = vunpack.c.h.b16 %v2758
  %v4287 = vunpack.c.l.b16 %v2759
  %v4288 = vunpack.c.h.b16 %v2759
  %v4289 = vunpack.c.l.b16 %v2760
  %v4290 = vunpack.c.h.b16 %v2760
  %v4291 = vunpack.c.l.b16 %v2761
  %v4292 = vunpack.c.h.b16 %v2761
  %v4293 = vunpack.c.l.b16 %v2762
  %v4294 = vunpack.c.h.b16 %v2762
  %v4295 = vunpack.c.l.b16 %v2763
  %v4296 = vunpack.c.h.b16 %v2763
  %v4297 = vunpack.c.l.b16 %v2764
  %v4298 = vunpack.c.h.b16 %v2764
  %v4299 = vunpack.c.l.b16 %v2765
  %v4300 = vunpack.c.h.b16 %v2765
  %v4301 = vunpack.c.l.b16 %v2766
  %v4302 = vunpack.c.h.b16 %v2766
  %v4303 = vunpack.c.l.b16 %v2767
  %v4304 = vunpack.c.h.b16 %v2767
  %v4305 = vunpack.c.l.b16 %v2768
  %v4306 = vunpack.c.h.b16 %v2768
  %v4307 = vunpack.c.l.b16 %v2769
  %v4308 = vunpack.c.h.b16 %v2769
  %v4309 = vunpack.c.l.b16 %v2770
  %v4310 = vunpack.c.h.b16 %v2770
  %v4311 = vunpack.c.l.b16 %v2771
  %v4312 = vunpack.c.h.b16 %v2771
  %v4313 = vunpack.c.l.b16 %v2772
  %v4314 = vunpack.c.h.b16 %v2772
  %v4315 = vunpack.c.l.b16 %v2773
  %v4316 = vunpack.c.h.b16 %v2773
  %v4317 = vunpack.c.l.b16 %v2774
  %v4318 = vunpack.c.h.b16 %v2774
  %v4319 = vunpack.c.l.b16 %v2775
  %v4320 = vunpack.c.h.b16 %v2775
  %v4321 = vunpack.c.l.b16 %v2776
  %v4322 = vunpack.c.h.b16 %v2776
  %v4323 = vunpack.c.l.b16 %v2777
  %v4324 = vunpack.c.h.b16 %v2777
  %v4325 = vunpack.c.l.b16 %v2778
  %v4326 = vunpack.c.h.b16 %v2778
  %v4327 = vunpack.c.l.b16 %v2779
  %v4328 = vunpack.c.h.b16 %v2779
  %v4329 = vunpack.c.l.b16 %v2780
  %v4330 = vunpack.c.h.b16 %v2780
  %v4331 = vunpack.c.l.b16 %v2781
  %v4332 = vunpack.c.h.b16 %v2781
  %v4333 = vunpack.c.l.b16 %v2782
  %v4334 = vunpack.c.h.b16 %v2782
  %v4335 = vunpack.c.l.b16 %v2783
  %v4336 = vunpack.c.h.b16 %v2783
  %v4337 = vunpack.c.l.b16 %v2784
  %v4338 = vunpack.c.h.b16 %v2784
  %v4339 = vunpack.c.l.b16 %v2785
  %v4340 = vunpack.c.h.b16 %v2785
  %v4341 = vunpack.c.l.b16 %v2786
  %v4342 = vunpack.c.h.b16 %v2786
  %v4343 = vunpack.c.l.b16 %v2787
  %v4344 = vunpack.c.h.b16 %v2787
  %v4345 = vunpack.c.l.b16 %v2788
  %v4346 = vunpack.c.h.b16 %v2788
  %v4347 = vunpack.c.l.b16 %v2789
  %v4348 = vunpack.c.h.b16 %v2789
  %v4349 = vunpack.c.l.b16 %v2790
  %v4350 = vunpack.c.h.b16 %v2790
  %v4351 = vunpack.c.l.b16 %v2791
  %v4352 = vunpack.c.h.b16 %v2791
  %v4353 = vunpack.c.l.b16 %v2792
  %v4354 = vunpack.c.h.b16 %v2792
  %v4355 = vunpack.c.l.b16 %v2793
  %v4356 = vunpack.c.h.b16 %v2793
  %v4357 = vunpack.c.l.b16 %v2794
  %v4358 = vunpack.c.h.b16 %v2794
  %v4359 = vunpack.c.l.b16 %v2795
  %v4360 = vunpack.c.h.b16 %v2795
  %v4361 = vunpack.c.l.b16 %v2796
  %v4362 = vunpack.c.h.b16 %v2796
  %v4363 = vunpack.c.l.b16 %v2797
  %v4364 = vunpack.c.h.b16 %v2797
  %v4365 = vunpack.c.l.b16 %v2798
  %v4366 = vunpack.c.h.b16 %v2798
  %v4367 = vunpack.c.l.b16 %v2799
  %v4368 = vunpack.c.h.b16 %v2799
  %v4369 = vunpack.c.l.b16 %v2800
  %v4370 = vunpack.c.h.b16 %v2800
  %v4371 = vunpack.c.l.b16 %v2801
  %v4372 = vunpack.c.h.b16 %v2801
  %v4373 = vunpack.c.l.b16 %v2802
  %v4374 = vunpack.c.h.b16 %v2802
  %v4375 = vunpack.c.l.b16 %v2803
  %v4376 = vunpack.c.h.b16 %v2803
  %v4377 = vunpack.c.l.b16 %v2804
  %v4378 = vunpack.c.h.b16 %v2804
  %v4379 = vunpack.c.l.b16 %v2805
  %v4380 = vunpack.c.h.b16 %v2805
  %v4381 = vunpack.c.l.b16 %v2806
  %v4382 = vunpack.c.h.b16 %v2806
  %v4383 = vunpack.c.l.b16 %v2807
  %v4384 = vunpack.c.h.b16 %v2807
  %v4385 = vunpack.c.l.b16 %v2808
  %v4386 = vunpack.c.h.b16 %v2808
  %v4387 = vunpack.c.l.b16 %v2809
  %v4388 = vunpack.c.h.b16 %v2809
  %v4389 = vunpack.c.l.b16 %v2810
  %v4390 = vunpack.c.h.b16 %v2810
  %v4391 = vunpack.c.l.b16 %v2811
  %v4392 = vunpack.c.h.b16 %v2811
  %v4393 = vunpack.c.l.b16 %v2812
  %v4394 = vunpack.c.h.b16 %v2812
  %v4395 = vunpack.c.l.b16 %v2813
  %v4396 = vunpack.c.h.b16 %v2813
  %v4397 = vunpack.c.l.b16 %v2814
  %v4398 = vunpack.c.h.b16 %v2814
  %v4399 = vunpack.c.l.b16 %v2815
  %v4400 = vunpack.c.h.b16 %v2815
  %v4401 = vunpack.c.l.b16 %v2816
  %v4402 = vunpack.c.h.b16 %v2816
  %v4403 = vunpack.c.l.b16 %v2817
  %v4404 = vunpack.c.h.b16 %v2817
  %v4405 = vunpack.c.l.b16 %v2818
  %v4406 = vunpack.c.h.b16 %v2818
  %v4407 = vunpack.c.l.b16 %v2819
  %v4408 = vunpack.c.h.b16 %v2819
  %v4409 = vunpack.c.l.b16 %v2820
  %v4410 = vunpack.c.h.b16 %v2820
  %v4411 = vunpack.c.l.b16 %v2821
  %v4412 = vunpack.c.h.b16 %v2821
  %v4413 = vunpack.c.l.b16 %v2822
  %v4414 = vunpack.c.h.b16 %v2822
  %v4415 = vunpack.c.l.b16 %v2823
  %v4416 = vunpack.c.h.b16 %v2823
  %v4417 = vunpack.c.l.b16 %v2824
  %v4418 = vunpack.c.h.b16 %v2824
  %v4419 = vunpack.c.l.b16 %v2825
  %v4420 = vunpack.c.h.b16 %v2825
  %v4421 = vunpack.c.l.b16 %v2826
  %v4422 = vunpack.c.h.b16 %v2826
  %v4423 = vunpack.c.l.b16 %v2827
  %v4424 = vunpack.c.h.b16 %v2827
  %v4425 = vunpack.c.l.b16 %v2828
  %v4426 = vunpack.c.h.b16 %v2828
  %v4427 = vunpack.c.l.b16 %v2829
  %v4428 = vunpack.c.h.b16 %v2829
  %v4429 = vunpack.c.l.b16 %v2830
  %v4430 = vunpack.c.h.b16 %v2830
  %v4431 = vunpack.c.l.b16 %v2831
  %v4432 = vunpack.c.h.b16 %v2831
  %v4433 = vunpack.c.l.b16 %v2832
  %v4434 = vunpack.c.h.b16 %v2832
  %v4435 = vunpack.c.l.b16 %v2833
  %v4436 = vunpack.c.h.b16 %v2833
  %v4437 = vunpack.c.l.b16 %v2834
  %v4438 = vunpack.c.h.b16 %v2834
  %v4439 = vunpack.c.l.b16 %v2835
  %v4440 = vunpack.c.h.b16 %v2835
  %v4441 = vunpack.c.l.b16 %v2836
  %v4442 = vunpack.c.h.b16 %v2836
  %v4443 = vunpack.c.l.b16 %v2837
  %v4444 = vunpack.c.h.b16 %v2837
  %v4445 = vunpack.c.l.b16 %v2838
  %v4446 = vunpack.c.h.b16 %v2838
  %v4447 = vunpack.c.l.b16 %v2839
  %v4448 = vunpack.c.h.b16 %v2839
  %v4449 = vunpack.c.l.b16 %v2840
  %v4450 = vunpack.c.h.b16 %v2840
  %v4451 = vunpack.c.l.b16 %v2841
  %v4452 = vunpack.c.h.b16 %v2841
  %v4453 = vunpack.c.l.b16 %v2842
  %v4454 = vunpack.c.h.b16 %v2842
  %v4455 = vunpack.c.l.b16 %v2843
  %v4456 = vunpack.c.h.b16 %v2843
  %v4457 = vunpack.c.l.b16 %v2844
  %v4458 = vunpack.c.h.b16 %v2844
  %v4459 = vunpack.c.l.b16 %v2845
  %v4460 = vunpack.c.h.b16 %v2845
  %v4461 = vunpack.c.l.b16 %v2846
  %v4462 = vunpack.c.h.b16 %v2846
  %v4463 = vunpack.c.l.b16 %v2847
  %v4464 = vunpack.c.h.b16 %v2847
  %v4465 = vunpack.c.l.b16 %v2848
  %v4466 = vunpack.c.h.b16 %v2848
  %v4467 = vunpack.c.l.b16 %v2849
  %v4468 = vunpack.c.h.b16 %v2849
  %v4469 = vunpack.c.l.b16 %v2850
  %v4470 = vunpack.c.h.b16 %v2850
  %v4471 = vunpack.c.l.b16 %v2851
  %v4472 = vunpack.c.h.b16 %v2851
  %v4473 = vunpack.c.l.b16 %v2852
  %v4474 = vunpack.c.h.b16 %v2852
  %v4475 = vunpack.c.l.b16 %v2853
  %v4476 = vunpack.c.h.b16 %v2853
  %v4477 = vunpack.c.l.b16 %v2854
  %v4478 = vunpack.c.h.b16 %v2854
  %v4479 = vunpack.c.l.b16 %v2855
  %v4480 = vunpack.c.h.b16 %v2855
  %v4481 = vunpack.c.l.b16 %v2856
  %v4482 = vunpack.c.h.b16 %v2856
  %v4483 = vunpack.c.l.b16 %v2857
  %v4484 = vunpack.c.h.b16 %v2857
  %v4485 = vunpack.c.l.b16 %v2858
  %v4486 = vunpack.c.h.b16 %v2858
  %v4487 = vunpack.c.l.b16 %v2859
  %v4488 = vunpack.c.h.b16 %v2859
  %v4489 = vunpack.c.l.b16 %v2860
  %v4490 = vunpack.c.h.b16 %v2860
  %v4491 = vunpack.c.l.b16 %v2861
  %v4492 = vunpack.c.h.b16 %v2861
  %v4493 = vunpack.c.l.b16 %v2862
  %v4494 = vunpack.c.h.b16 %v2862
  %v4495 = vunpack.c.l.b16 %v2863
  %v4496 = vunpack.c.h.b16 %v2863
  %v4497 = vunpack.c.l.b16 %v2864
  %v4498 = vunpack.c.h.b16 %v2864
  %v4499 = vunpack.c.l.b16 %v2865
  %v4500 = vunpack.c.h.b16 %v2865
  %v4501 = vunpack.c.l.b16 %v2866
  %v4502 = vunpack.c.h.b16 %v2866
  %v4503 = vunpack.c.l.b16 %v2867
  %v4504 = vunpack.c.h.b16 %v2867
  %v4505 = vunpack.c.l.b16 %v2868
  %v4506 = vunpack.c.h.b16 %v2868
  %v4507 = vunpack.c.l.b16 %v2869
  %v4508 = vunpack.c.h.b16 %v2869
  %v4509 = vunpack.c.l.b16 %v2870
  %v4510 = vunpack.c.h.b16 %v2870
  %v4511 = vunpack.c.l.b16 %v2871
  %v4512 = vunpack.c.h.b16 %v2871
  %v4513 = vunpack.c.l.b16 %v2872
  %v4514 = vunpack.c.h.b16 %v2872
  %v4515 = vunpack.c.l.b16 %v2873
  %v4516 = vunpack.c.h.b16 %v2873
  %v4517 = vunpack.c.l.b16 %v2874
  %v4518 = vunpack.c.h.b16 %v2874
  %v4519 = vunpack.c.l.b16 %v2875
  %v4520 = vunpack.c.h.b16 %v2875
  %v4521 = vunpack.c.l.b16 %v2876
  %v4522 = vunpack.c.h.b16 %v2876
  %v4523 = vunpack.c.l.b16 %v2877
  %v4524 = vunpack.c.h.b16 %v2877
  %v4525 = vunpack.c.l.b16 %v2878
  %v4526 = vunpack.c.h.b16 %v2878
  %v4527 = vunpack.c.l.b16 %v2879
  %v4528 = vunpack.c.h.b16 %v2879
  %v4529 = vunpack.c.l.b16 %v2880
  %v4530 = vunpack.c.h.b16 %v2880
  %v4531 = vunpack.c.l.b16 %v2881
  %v4532 = vunpack.c.h.b16 %v2881
  %v4533 = vunpack.c.l.b16 %v2882
  %v4534 = vunpack.c.h.b16 %v2882
  %v4535 = vunpack.c.l.b16 %v2883
  %v4536 = vunpack.c.h.b16 %v2883
  %v4537 = vunpack.c.l.b16 %v2884
  %v4538 = vunpack.c.h.b16 %v2884
  %v4539 = vunpack.c.l.b16 %v2885
  %v4540 = vunpack.c.h.b16 %v2885
  %v4541 = vunpack.c.l.b16 %v2886
  %v4542 = vunpack.c.h.b16 %v2886
  %v4543 = vunpack.c.l.b16 %v2887
  %v4544 = vunpack.c.h.b16 %v2887
  %v4545 = vunpack.c.l.b16 %v2888
  %v4546 = vunpack.c.h.b16 %v2888
  %v4547 = vunpack.c.l.b16 %v2889
  %v4548 = vunpack.c.h.b16 %v2889
  %v4549 = vunpack.c.l.b16 %v2890
  %v4550 = vunpack.c.h.b16 %v2890
  %v4551 = vunpack.c.l.b16 %v2891
  %v4552 = vunpack.c.h.b16 %v2891
  %v4553 = vunpack.c.l.b16 %v2892
  %v4554 = vunpack.c.h.b16 %v2892
  %v4555 = vunpack.c.l.b16 %v2893
  %v4556 = vunpack.c.h.b16 %v2893
  %v4557 = vunpack.c.l.b16 %v2894
  %v4558 = vunpack.c.h.b16 %v2894
  %v4559 = vunpack.c.l.b16 %v2895
  %v4560 = vunpack.c.h.b16 %v2895
  %v4561 = vunpack.c.l.b16 %v2896
  %v4562 = vunpack.c.h.b16 %v2896
  %v4563 = vunpack.c.l.b16 %v2897
  %v4564 = vunpack.c.h.b16 %v2897
  %v4565 = vunpack.c.l.b16 %v2898
  %v4566 = vunpack.c.h.b16 %v2898
  %v4567 = vunpack.c.l.b16 %v2899
  %v4568 = vunpack.c.h.b16 %v2899
  %v4569 = vunpack.c.l.b16 %v2900
  %v4570 = vunpack.c.h.b16 %v2900
  %v4571 = vunpack.c.l.b16 %v2901
  %v4572 = vunpack.c.h.b16 %v2901
  %v4573 = vunpack.c.l.b16 %v2902
  %v4574 = vunpack.c.h.b16 %v2902
  %v4575 = vunpack.c.l.b16 %v2903
  %v4576 = vunpack.c.h.b16 %v2903
  %v4577 = vunpack.c.l.b16 %v2904
  %v4578 = vunpack.c.h.b16 %v2904
  %v4579 = vunpack.c.l.b16 %v2905
  %v4580 = vunpack.c.h.b16 %v2905
  %v4581 = vunpack.c.l.b16 %v2906
  %v4582 = vunpack.c.h.b16 %v2906
  %v4583 = vunpack.c.l.b16 %v2907
  %v4584 = vunpack.c.h.b16 %v2907
  %v4585 = vunpack.c.l.b16 %v2908
  %v4586 = vunpack.c.h.b16 %v2908
  %v4587 = vunpack.c.l.b16 %v2909
  %v4588 = vunpack.c.h.b16 %v2909
  %v4589 = vunpack.c.l.b16 %v2910
  %v4590 = vunpack.c.h.b16 %v2910
  %v4591 = vunpack.c.l.b16 %v2911
  %v4592 = vunpack.c.h.b16 %v2911
  %v4593 = vunpack.c.l.b16 %v2912
  %v4594 = vunpack.c.h.b16 %v2912
  %v4595 = vunpack.c.l.b16 %v2913
  %v4596 = vunpack.c.h.b16 %v2913
  %v4597 = vunpack.c.l.b16 %v2914
  %v4598 = vunpack.c.h.b16 %v2914
  %v4599 = vunpack.c.l.b16 %v2915
  %v4600 = vunpack.c.h.b16 %v2915
  %v4601 = vunpack.c.l.b16 %v2916
  %v4602 = vunpack.c.h.b16 %v2916
  %v4603 = vunpack.c.l.b16 %v2917
  %v4604 = vunpack.c.h.b16 %v2917
  %v4605 = vunpack.c.l.b16 %v2918
  %v4606 = vunpack.c.h.b16 %v2918
  %v4607 = vunpack.c.l.b16 %v2919
  %v4608 = vunpack.c.h.b16 %v2919
  %v4609 = vunpack.c.l.b16 %v2920
  %v4610 = vunpack.c.h.b16 %v2920
  %v4611 = vunpack.c.l.b16 %v2921
  %v4612 = vunpack.c.h.b16 %v2921
  %v4613 = vunpack.c.l.b16 %v2922
  %v4614 = vunpack.c.h.b16 %v2922
  %v4615 = vunpack.c.l.b16 %v2923
  %v4616 = vunpack.c.h.b16 %v2923
  %v4617 = vunpack.c.l.b16 %v2924
  %v4618 = vunpack.c.h.b16 %v2924
  %v4619 = vunpack.c.l.b16 %v2925
  %v4620 = vunpack.c.h.b16 %v2925
  %v4621 = vunpack.c.l.b16 %v2926
  %v4622 = vunpack.c.h.b16 %v2926
  %v4623 = vunpack.c.l.b16 %v2927
  %v4624 = vunpack.c.h.b16 %v2927
  %v4625 = vunpack.c.l.b16 %v2928
  %v4626 = vunpack.c.h.b16 %v2928
  %v4627 = vunpack.c.l.b16 %v2929
  %v4628 = vunpack.c.h.b16 %v2929
  %v4629 = vunpack.c.l.b16 %v2930
  %v4630 = vunpack.c.h.b16 %v2930
  %v4631 = vunpack.c.l.b16 %v2931
  %v4632 = vunpack.c.h.b16 %v2931
  %v4633 = vunpack.c.l.b16 %v2932
  %v4634 = vunpack.c.h.b16 %v2932
  %v4635 = vunpack.c.l.b16 %v2933
  %v4636 = vunpack.c.h.b16 %v2933
  %v4637 = vunpack.c.l.b16 %v2934
  %v4638 = vunpack.c.h.b16 %v2934
  %v4639 = vunpack.c.l.b16 %v2935
  %v4640 = vunpack.c.h.b16 %v2935
  %v4641 = vunpack.c.l.b16 %v2936
  %v4642 = vunpack.c.h.b16 %v2936
  %v4643 = vunpack.c.l.b16 %v2937
  %v4644 = vunpack.c.h.b16 %v2937
  %v4645 = vunpack.c.l.b16 %v2938
  %v4646 = vunpack.c.h.b16 %v2938
  %v4647 = vunpack.c.l.b16 %v2939
  %v4648 = vunpack.c.h.b16 %v2939
  %v4649 = vunpack.c.l.b16 %v2940
  %v4650 = vunpack.c.h.b16 %v2940
  %v4651 = vunpack.c.l.b16 %v2941
  %v4652 = vunpack.c.h.b16 %v2941
  %v4653 = vunpack.c.l.b16 %v2942
  %v4654 = vunpack.c.h.b16 %v2942
  %v4655 = vunpack.c.l.b16 %v2943
  %v4656 = vunpack.c.h.b16 %v2943
  %v4657 = vunpack.c.l.b16 %v2944
  %v4658 = vunpack.c.h.b16 %v2944
  %v4659 = vunpack.c.l.b16 %v2945
  %v4660 = vunpack.c.h.b16 %v2945
  %v4661 = vunpack.c.l.b16 %v2946
  %v4662 = vunpack.c.h.b16 %v2946
  %v4663 = vunpack.c.l.b16 %v2947
  %v4664 = vunpack.c.h.b16 %v2947
  %v4665 = vunpack.c.l.b16 %v2948
  %v4666 = vunpack.c.h.b16 %v2948
  %v4667 = vunpack.c.l.b16 %v2949
  %v4668 = vunpack.c.h.b16 %v2949
  %v4669 = vunpack.c.l.b16 %v2950
  %v4670 = vunpack.c.h.b16 %v2950
  %v4671 = vunpack.c.l.b16 %v2951
  %v4672 = vunpack.c.h.b16 %v2951
  %v4673 = vunpack.c.l.b16 %v2952
  %v4674 = vunpack.c.h.b16 %v2952
  %v4675 = vunpack.c.l.b16 %v2953
  %v4676 = vunpack.c.h.b16 %v2953
  %v4677 = vunpack.c.l.b16 %v2954
  %v4678 = vunpack.c.h.b16 %v2954
  %v4679 = vunpack.c.l.b16 %v2955
  %v4680 = vunpack.c.h.b16 %v2955
  %v4681 = vunpack.c.l.b16 %v2956
  %v4682 = vunpack.c.h.b16 %v2956
  %v4683 = vunpack.c.l.b16 %v2957
  %v4684 = vunpack.c.h.b16 %v2957
  %v4685 = vunpack.c.l.b16 %v2958
  %v4686 = vunpack.c.h.b16 %v2958
  %v4687 = vunpack.c.l.b16 %v2959
  %v4688 = vunpack.c.h.b16 %v2959
  %v4689 = vunpack.c.l.b16 %v2960
  %v4690 = vunpack.c.h.b16 %v2960
  %v4691 = vunpack.c.l.b16 %v2961
  %v4692 = vunpack.c.h.b16 %v2961
  %v4693 = vunpack.c.l.b16 %v2962
  %v4694 = vunpack.c.h.b16 %v2962
  %v4695 = vunpack.c.l.b16 %v2963
  %v4696 = vunpack.c.h.b16 %v2963
  %v4697 = vunpack.c.l.b16 %v2964
  %v4698 = vunpack.c.h.b16 %v2964
  %v4699 = vunpack.c.l.b16 %v2965
  %v4700 = vunpack.c.h.b16 %v2965
  %v4701 = vunpack.c.l.b16 %v2966
  %v4702 = vunpack.c.h.b16 %v2966
  %v4703 = vunpack.c.l.b16 %v2967
  %v4704 = vunpack.c.h.b16 %v2967
  %v4705 = vunpack.c.l.b16 %v2968
  %v4706 = vunpack.c.h.b16 %v2968
  %v4707 = vunpack.c.l.b16 %v2969
  %v4708 = vunpack.c.h.b16 %v2969
  %v4709 = vunpack.c.l.b16 %v2970
  %v4710 = vunpack.c.h.b16 %v2970
  %v4711 = vunpack.c.l.b16 %v2971
  %v4712 = vunpack.c.h.b16 %v2971
  %v4713 = vunpack.c.l.b16 %v2972
  %v4714 = vunpack.c.h.b16 %v2972
  %v4715 = vunpack.c.l.b16 %v2973
  %v4716 = vunpack.c.h.b16 %v2973
  %v4717 = vunpack.c.l.b16 %v2974
  %v4718 = vunpack.c.h.b16 %v2974
  %v4719 = vunpack.c.l.b16 %v2975
  %v4720 = vunpack.c.h.b16 %v2975
  %v4721 = vunpack.c.l.b16 %v2976
  %v4722 = vunpack.c.h.b16 %v2976
  %v4723 = vunpack.c.l.b16 %v2977
  %v4724 = vunpack.c.h.b16 %v2977
  %v4725 = vunpack.c.l.b16 %v2978
  %v4726 = vunpack.c.h.b16 %v2978
  %v4727 = vunpack.c.l.b16 %v2979
  %v4728 = vunpack.c.h.b16 %v2979
  %v4729 = vunpack.c.l.b16 %v2980
  %v4730 = vunpack.c.h.b16 %v2980
  %v4731 = vunpack.c.l.b16 %v2981
  %v4732 = vunpack.c.h.b16 %v2981
  %v4733 = vunpack.c.l.b16 %v2982
  %v4734 = vunpack.c.h.b16 %v2982
  %v4735 = vunpack.c.l.b16 %v2983
  %v4736 = vunpack.c.h.b16 %v2983
  %v4737 = vunpack.c.l.b16 %v2984
  %v4738 = vunpack.c.h.b16 %v2984
  %v4739 = vunpack.c.l.b16 %v2985
  %v4740 = vunpack.c.h.b16 %v2985
  %v4741 = vunpack.c.l.b16 %v2986
  %v4742 = vunpack.c.h.b16 %v2986
  %v4743 = vunpack.c.l.b16 %v2987
  %v4744 = vunpack.c.h.b16 %v2987
  %v4745 = vunpack.c.l.b16 %v2988
  %v4746 = vunpack.c.h.b16 %v2988
  %v4747 = vunpack.c.l.b16 %v2989
  %v4748 = vunpack.c.h.b16 %v2989
  %v4749 = vunpack.c.l.b16 %v2990
  %v4750 = vunpack.c.h.b16 %v2990
  %v4751 = vunpack.c.l.b16 %v2991
  %v4752 = vunpack.c.h.b16 %v2991
  %v4753 = vunpack.c.l.b16 %v2992
  %v4754 = vunpack.c.h.b16 %v2992
  %v4755 = vunpack.c.l.b16 %v2993
  %v4756 = vunpack.c.h.b16 %v2993
  %v4757 = vunpack.c.l.b16 %v2994
  %v4758 = vunpack.c.h.b16 %v2994
  %v4759 = vunpack.c.l.b16 %v2995
  %v4760 = vunpack.c.h.b16 %v2995
  %v4761 = vunpack.c.l.b16 %v2996
  %v4762 = vunpack.c.h.b16 %v2996
  %v4763 = vunpack.c.l.b16 %v2997
  %v4764 = vunpack.c.h.b16 %v2997
  %v4765 = vunpack.c.l.b16 %v2998
  %v4766 = vunpack.c.h.b16 %v2998
  %v4767 = vunpack.c.l.b16 %v2999
  %v4768 = vunpack.c.h.b16 %v2999
  %v4769 = vunpack.c.l.b16 %v3000
  %v4770 = vunpack.c.h.b16 %v3000
  %v4771 = vunpack.c.l.b16 %v3001
  %v4772 = vunpack.c.h.b16 %v3001
  %v4773 = vunpack.c.l.b16 %v3002
  %v4774 = vunpack.c.h.b16 %v3002
  %v4775 = vunpack.c.l.b16 %v3003
  %v4776 = vunpack.c.h.b16 %v3003
  %v4777 = vunpack.c.l.b16 %v3004
  %v4778 = vunpack.c.h.b16 %v3004
  %v4779 = vunpack.c.l.b16 %v3005
  %v4780 = vunpack.c.h.b16 %v3005
  %v4781 = vunpack.c.l.b16 %v3006
  %v4782 = vunpack.c.h.b16 %v3006
  %v4783 = vunpack.c.l.b16 %v3007
  %v4784 = vunpack.c.h.b16 %v3007
  %v4785 = vunpack.c.l.b16 %v3008
  %v4786 = vunpack.c.h.b16 %v3008
  %v4787 = vunpack.c.l.b16 %v3009
  %v4788 = vunpack.c.h.b16 %v3009
  %v4789 = vunpack.c.l.b16 %v3010
  %v4790 = vunpack.c.h.b16 %v3010
  %v4791 = vunpack.c.l.b16 %v3011
  %v4792 = vunpack.c.h.b16 %v3011
  %v4793 = vunpack.c.l.b16 %v3012
  %v4794 = vunpack.c.h.b16 %v3012
  %v4795 = vunpack.c.l.b16 %v3013
  %v4796 = vunpack.c.h.b16 %v3013
  %v4797 = vunpack.c.l.b16 %v3014
  %v4798 = vunpack.c.h.b16 %v3014
  %v4799 = vunpack.c.l.b16 %v3015
  %v4800 = vunpack.c.h.b16 %v3015
  %v4801 = vunpack.c.l.b16 %v3016
  %v4802 = vunpack.c.h.b16 %v3016
  %v4803 = vunpack.c.l.b16 %v3017
  %v4804 = vunpack.c.h.b16 %v3017
  %v4805 = vunpack.c.l.b16 %v3018
  %v4806 = vunpack.c.h.b16 %v3018
  %v4807 = vunpack.c.l.b16 %v3019
  %v4808 = vunpack.c.h.b16 %v3019
  %v4809 = vunpack.c.l.b16 %v3020
  %v4810 = vunpack.c.h.b16 %v3020
  %v4811 = vunpack.c.l.b16 %v3021
  %v4812 = vunpack.c.h.b16 %v3021
  %v4813 = vunpack.c.l.b16 %v3022
  %v4814 = vunpack.c.h.b16 %v3022
  %v4815 = vpack.c.b16 %v3675, %v3663
  %v4816 = vpack.c.b16 %v3676, %v3664
  %v4817 = vpack.c.b16 %v3677, %v3665
  %v4818 = vpack.c.b16 %v3678, %v3666
  %v4819 = vpack.c.b16 %v3679, %v3667
  %v4820 = vpack.c.b16 %v3680, %v3668
  %v4821 = vpack.c.b16 %v3681, %v3669
  %v4822 = vpack.c.b16 %v3682, %v3670
  %v4823 = vpack.c.b16 %v3683, %v3671
  %v4824 = vpack.c.b16 %v3684, %v3672
  %v4825 = vpack.c.b16 %v3685, %v3673
  %v4826 = vpack.c.b16 %v3686, %v3674
  %v4827 = vpack.c.b16 %v3699, %v3687
  %v4828 = vpack.c.b16 %v3700, %v3688
  %v4829 = vpack.c.b16 %v3701, %v3689
  %v4830 = vpack.c.b16 %v3702, %v3690
  %v4831 = vpack.c.b16 %v3703, %v3691
  %v4832 = vpack.c.b16 %v3704, %v3692
  %v4833 = vpack.c.b16 %v3705, %v3693
  %v4834 = vpack.c.b16 %v3706, %v3694
  %v4835 = vpack.c.b16 %v3707, %v3695
  %v4836 = vpack.c.b16 %v3708, %v3696
  %v4837 = vpack.c.b16 %v3709, %v3697
  %v4838 = vpack.c.b16 %v3710, %v3698
  %v4839 = vpack.c.b16 %v3723, %v3711
  %v4840 = vpack.c.b16 %v3724, %v3712
  %v4841 = vpack.c.b16 %v3725, %v3713
  %v4842 = vpack.c.b16 %v3726, %v3714
  %v4843 = vpack.c.b16 %v3727, %v3715
  %v4844 = vpack.c.b16 %v3728, %v3716
  %v4845 = vpack.c.b16 %v3729, %v3717
  %v4846 = vpack.c.b16 %v3730, %v3718
  %v4847 = vpack.c.b16 %v3731, %v3719
  %v4848 = vpack.c.b16 %v3732, %v3720
  %v4849 = vpack.c.b16 %v3733, %v3721
  %v4850 = vpack.c.b16 %v3734, %v3722
  %v4851 = vpack.c.b16 %v3747, %v3735
  %v4852 = vpack.c.b16 %v3748, %v3736
  %v4853 = vpack.c.b16 %v3749, %v3737
  %v4854 = vpack.c.b16 %v3750, %v3738
  %v4855 = vpack.c.b16 %v3751, %v3739
  %v4856 = vpack.c.b16 %v3752, %v3740
  %v4857 = vpack.c.b16 %v3753, %v3741
  %v4858 = vpack.c.b16 %v3754, %v3742
  %v4859 = vpack.c.b16 %v3755, %v3743
  %v4860 = vpack.c.b16 %v3756, %v3744
  %v4861 = vpack.c.b16 %v3757, %v3745
  %v4862 = vpack.c.b16 %v3758, %v3746
  %v4863 = vpack.c.b16 %v3771, %v3759
  %v4864 = vpack.c.b16 %v3772, %v3760
  %v4865 = vpack.c.b16 %v3773, %v3761
  %v4866 = vpack.c.b16 %v3774, %v3762
  %v4867 = vpack.c.b16 %v3775, %v3763
  %v4868 = vpack.c.b16 %v3776, %v3764
  %v4869 = vpack.c.b16 %v3777, %v3765
  %v4870 = vpack.c.b16 %v3778, %v3766
  %v4871 = vpack.c.b16 %v3779, %v3767
  %v4872 = vpack.c.b16 %v3780, %v3768
  %v4873 = vpack.c.b16 %v3781, %v3769
  %v4874 = vpack.c.b16 %v3782, %v3770
  %v4875 = vpack.c.b16 %v3795, %v3783
  %v4876 = vpack.c.b16 %v3796, %v3784
  %v4877 = vpack.c.b16 %v3797, %v3785
  %v4878 = vpack.c.b16 %v3798, %v3786
  %v4879 = vpack.c.b16 %v3799, %v3787
  %v4880 = vpack.c.b16 %v3800, %v3788
  %v4881 = vpack.c.b16 %v3801, %v3789
  %v4882 = vpack.c.b16 %v3802, %v3790
  %v4883 = vpack.c.b16 %v3803, %v3791
  %v4884 = vpack.c.b16 %v3804, %v3792
  %v4885 = vpack.c.b16 %v3805, %v3793
  %v4886 = vpack.c.b16 %v3806, %v3794
  %v4887 = vpack.c.b16 %v3819, %v3807
  %v4888 = vpack.c.b16 %v3820, %v3808
  %v4889 = vpack.c.b16 %v3821, %v3809
  %v4890 = vpack.c.b16 %v3822, %v3810
  %v4891 = vpack.c.b16 %v3823, %v3811
  %v4892 = vpack.c.b16 %v3824, %v3812
  %v4893 = vpack.c.b16 %v3825, %v3813
  %v4894 = vpack.c.b16 %v3826, %v3814
  %v4895 = vpack.c.b16 %v3827, %v3815
  %v4896 = vpack.c.b16 %v3828, %v3816
  %v4897 = vpack.c.b16 %v3829, %v3817
  %v4898 = vpack.c.b16 %v3830, %v3818
  %v4899 = vpack.c.b16 %v3843, %v3831
  %v4900 = vpack.c.b16 %v3844, %v3832
  %v4901 = vpack.c.b16 %v3845, %v3833
  %v4902 = vpack.c.b16 %v3846, %v3834
  %v4903 = vpack.c.b16 %v3847, %v3835
  %v4904 = vpack.c.b16 %v3848, %v3836
  %v4905 = vpack.c.b16 %v3849, %v3837
  %v4906 = vpack.c.b16 %v3850, %v3838
  %v4907 = vpack.c.b16 %v3851, %v3839
  %v4908 = vpack.c.b16 %v3852, %v3840
  %v4909 = vpack.c.b16 %v3853, %v3841
  %v4910 = vpack.c.b16 %v3854, %v3842
  %v4911 = vpack.c.b16 %v3867, %v3855
  %v4912 = vpack.c.b16 %v3868, %v3856
  %v4913 = vpack.c.b16 %v3869, %v3857
  %v4914 = vpack.c.b16 %v3870, %v3858
  %v4915 = vpack.c.b16 %v3871, %v3859
  %v4916 = vpack.c.b16 %v3872, %v3860
  %v4917 = vpack.c.b16 %v3873, %v3861
  %v4918 = vpack.c.b16 %v3874, %v3862
  %v4919 = vpack.c.b16 %v3875, %v3863
  %v4920 = vpack.c.b16 %v3876, %v3864
  %v4921 = vpack.c.b16 %v3877, %v3865
  %v4922 = vpack.c.b16 %v3878, %v3866
  %v4923 = vpack.c.b16 %v3891, %v3879
  %v4924 = vpack.c.b16 %v3892, %v3880
  %v4925 = vpack.c.b16 %v3893, %v3881
  %v4926 = vpack.c.b16 %v3894, %v3882
  %v4927 = vpack.c.b16 %v3895, %v3883
  %v4928 = vpack.c.b16 %v3896, %v3884
  %v4929 = vpack.c.b16 %v3897, %v3885
  %v4930 = vpack.c.b16 %v3898, %v3886
  %v4931 = vpack.c.b16 %v3899, %v3887
  %v4932 = vpack.c.b16 %v3900, %v3888
  %v4933 = vpack.c.b16 %v3901, %v3889
  %v4934 = vpack.c.b16 %v3902, %v3890
  %v4935 = vpack.c.b16 %v3915, %v3903
  %v4936 = vpack.c.b16 %v3916, %v3904
  %v4937 = vpack.c.b16 %v3917, %v3905
  %v4938 = vpack.c.b16 %v3918, %v3906
  %v4939 = vpack.c.b16 %v3919, %v3907
  %v4940 = vpack.c.b16 %v3920, %v3908
  %v4941 = vpack.c.b16 %v3921, %v3909
  %v4942 = vpack.c.b16 %v3922, %v3910
  %v4943 = vpack.c.b16 %v3923, %v3911
  %v4944 = vpack.c.b16 %v3924, %v3912
  %v4945 = vpack.c.b16 %v3925, %v3913
  %v4946 = vpack.c.b16 %v3926, %v3914
  %v4947 = vpack.c.b16 %v3939, %v3927
  %v4948 = vpack.c.b16 %v3940, %v3928
  %v4949 = vpack.c.b16 %v3941, %v3929
  %v4950 = vpack.c.b16 %v3942, %v3930
  %v4951 = vpack.c.b16 %v3943, %v3931
  %v4952 = vpack.c.b16 %v3944, %v3932
  %v4953 = vpack.c.b16 %v3945, %v3933
  %v4954 = vpack.c.b16 %v3946, %v3934
  %v4955 = vpack.c.b16 %v3947, %v3935
  %v4956 = vpack.c.b16 %v3948, %v3936
  %v4957 = vpack.c.b16 %v3949, %v3937
  %v4958 = vpack.c.b16 %v3950, %v3938
  %v4959 = vpack.c.b16 %v3963, %v3951
  %v4960 = vpack.c.b16 %v3964, %v3952
  %v4961 = vpack.c.b16 %v3965, %v3953
  %v4962 = vpack.c.b16 %v3966, %v3954
  %v4963 = vpack.c.b16 %v3967, %v3955
  %v4964 = vpack.c.b16 %v3968, %v3956
  %v4965 = vpack.c.b16 %v3969, %v3957
  %v4966 = vpack.c.b16 %v3970, %v3958
  %v4967 = vpack.c.b16 %v3971, %v3959
  %v4968 = vpack.c.b16 %v3972, %v3960
  %v4969 = vpack.c.b16 %v3973, %v3961
  %v4970 = vpack.c.b16 %v3974, %v3962
  %v4971 = vpack.c.b16 %v3987, %v3975
  %v4972 = vpack.c.b16 %v3988, %v3976
  %v4973 = vpack.c.b16 %v3989, %v3977
  %v4974 = vpack.c.b16 %v3990, %v3978
  %v4975 = vpack.c.b16 %v3991, %v3979
  %v4976 = vpack.c.b16 %v3992, %v3980
  %v4977 = vpack.c.b16 %v3993, %v3981
  %v4978 = vpack.c.b16 %v3994, %v3982
  %v4979 = vpack.c.b16 %v3995, %v3983
  %v4980 = vpack.c.b16 %v3996, %v3984
  %v4981 = vpack.c.b16 %v3997, %v3985
  %v4982 = vpack.c.b16 %v3998, %v3986
  %v4983 = vpack.c.b16 %v4011, %v3999
  %v4984 = vpack.c.b16 %v4012, %v4000
  %v4985 = vpack.c.b16 %v4013, %v4001
  %v4986 = vpack.c.b16 %v4014, %v4002
  %v4987 = vpack.c.b16 %v4015, %v4003
  %v4988 = vpack.c.b16 %v4016, %v4004
  %v4989 = vpack.c.b16 %v4017, %v4005
  %v4990 = vpack.c.b16 %v4018, %v4006
  %v4991 = vpack.c.b16 %v4019, %v4007
  %v4992 = vpack.c.b16 %v4020, %v4008
  %v4993 = vpack.c.b16 %v4021, %v4009
  %v4994 = vpack.c.b16 %v4022, %v4010
  %v4995 = vpack.c.b16 %v4035, %v4023
  %v4996 = vpack.c.b16 %v4036, %v4024
  %v4997 = vpack.c.b16 %v4037, %v4025
  %v4998 = vpack.c.b16 %v4038, %v4026
  %v4999 = vpack.c.b16 %v4039, %v4027
  %v5000 = vpack.c.b16 %v4040, %v4028
  %v5001 = vpack.c.b16 %v4041, %v4029
  %v5002 = vpack.c.b16 %v4042, %v4030
  %v5003 = vpack.c.b16 %v4043, %v4031
  %v5004 = vpack.c.b16 %v4044, %v4032
  %v5005 = vpack.c.b16 %v4045, %v4033
  %v5006 = vpack.c.b16 %v4046, %v4034
  %v5007 = vpack.c.b16 %v4059, %v4047
  %v5008 = vpack.c.b16 %v4060, %v4048
  %v5009 = vpack.c.b16 %v4061, %v4049
  %v5010 = vpack.c.b16 %v4062, %v4050
  %v5011 = vpack.c.b16 %v4063, %v4051
  %v5012 = vpack.c.b16 %v4064, %v4052
  %v5013 = vpack.c.b16 %v4065, %v4053
  %v5014 = vpack.c.b16 %v4066, %v4054
  %v5015 = vpack.c.b16 %v4067, %v4055
  %v5016 = vpack.c.b16 %v4068, %v4056
  %v5017 = vpack.c.b16 %v4069, %v4057
  %v5018 = vpack.c.b16 %v4070, %v4058
  %v5019 = vpack.c.b16 %v4083, %v4071
  %v5020 = vpack.c.b16 %v4084, %v4072
  %v5021 = vpack.c.b16 %v4085, %v4073
  %v5022 = vpack.c.b16 %v4086, %v4074
  %v5023 = vpack.c.b16 %v4087, %v4075
  %v5024 = vpack.c.b16 %v4088, %v4076
  %v5025 = vpack.c.b16 %v4089, %v4077
  %v5026 = vpack.c.b16 %v4090, %v4078
  %v5027 = vpack.c.b16 %v4091, %v4079
  %v5028 = vpack.c.b16 %v4092, %v4080
  %v5029 = vpack.c.b16 %v4093, %v4081
  %v5030 = vpack.c.b16 %v4094, %v4082
  %v5031 = vpack.c.b16 %v4107, %v4095
  %v5032 = vpack.c.b16 %v4108, %v4096
  %v5033 = vpack.c.b16 %v4109, %v4097
  %v5034 = vpack.c.b16 %v4110, %v4098
  %v5035 = vpack.c.b16 %v4111, %v4099
  %v5036 = vpack.c.b16 %v4112, %v4100
  %v5037 = vpack.c.b16 %v4113, %v4101
  %v5038 = vpack.c.b16 %v4114, %v4102
  %v5039 = vpack.c.b16 %v4115, %v4103
  %v5040 = vpack.c.b16 %v4116, %v4104
  %v5041 = vpack.c.b16 %v4117, %v4105
  %v5042 = vpack.c.b16 %v4118, %v4106
  %v5043 = vpack.c.b16 %v4131, %v4119
  %v5044 = vpack.c.b16 %v4132, %v4120
  %v5045 = vpack.c.b16 %v4133, %v4121
  %v5046 = vpack.c.b16 %v4134, %v4122
  %v5047 = vpack.c.b16 %v4135, %v4123
  %v5048 = vpack.c.b16 %v4136, %v4124
  %v5049 = vpack.c.b16 %v4137, %v4125
  %v5050 = vpack.c.b16 %v4138, %v4126
  %v5051 = vpack.c.b16 %v4139, %v4127
  %v5052 = vpack.c.b16 %v4140, %v4128
  %v5053 = vpack.c.b16 %v4141, %v4129
  %v5054 = vpack.c.b16 %v4142, %v4130
  %v5055 = vpack.c.b16 %v4155, %v4143
  %v5056 = vpack.c.b16 %v4156, %v4144
  %v5057 = vpack.c.b16 %v4157, %v4145
  %v5058 = vpack.c.b16 %v4158, %v4146
  %v5059 = vpack.c.b16 %v4159, %v4147
  %v5060 = vpack.c.b16 %v4160, %v4148
  %v5061 = vpack.c.b16 %v4161, %v4149
  %v5062 = vpack.c.b16 %v4162, %v4150
  %v5063 = vpack.c.b16 %v4163, %v4151
  %v5064 = vpack.c.b16 %v4164, %v4152
  %v5065 = vpack.c.b16 %v4165, %v4153
  %v5066 = vpack.c.b16 %v4166, %v4154
  %v5067 = vpack.c.b16 %v4179, %v4167
  %v5068 = vpack.c.b16 %v4180, %v4168
  %v5069 = vpack.c.b16 %v4181, %v4169
  %v5070 = vpack.c.b16 %v4182, %v4170
  %v5071 = vpack.c.b16 %v4183, %v4171
  %v5072 = vpack.c.b16 %v4184, %v4172
  %v5073 = vpack.c.b16 %v4185, %v4173
  %v5074 = vpack.c.b16 %v4186, %v4174
  %v5075 = vpack.c.b16 %v4187, %v4175
  %v5076 = vpack.c.b16 %v4188, %v4176
  %v5077 = vpack.c.b16 %v4189, %v4177
  %v5078 = vpack.c.b16 %v4190, %v4178
  %v5079 = vpack.c.b16 %v4203, %v4191
  %v5080 = vpack.c.b16 %v4204, %v4192
  %v5081 = vpack.c.b16 %v4205, %v4193
  %v5082 = vpack.c.b16 %v4206, %v4194
  %v5083 = vpack.c.b16 %v4207, %v4195
  %v5084 = vpack.c.b16 %v4208, %v4196
  %v5085 = vpack.c.b16 %v4209, %v4197
  %v5086 = vpack.c.b16 %v4210, %v4198
  %v5087 = vpack.c.b16 %v4211, %v4199
  %v5088 = vpack.c.b16 %v4212, %v4200
  %v5089 = vpack.c.b16 %v4213, %v4201
  %v5090 = vpack.c.b16 %v4214, %v4202
  %v5091 = vpack.c.b16 %v4227, %v4215
  %v5092 = vpack.c.b16 %v4228, %v4216
  %v5093 = vpack.c.b16 %v4229, %v4217
  %v5094 = vpack.c.b16 %v4230, %v4218
  %v5095 = vpack.c.b16 %v4231, %v4219
  %v5096 = vpack.c.b16 %v4232, %v4220
  %v5097 = vpack.c.b16 %v4233, %v4221
  %v5098 = vpack.c.b16 %v4234, %v4222
  %v5099 = vpack.c.b16 %v4235, %v4223
  %v5100 = vpack.c.b16 %v4236, %v4224
  %v5101 = vpack.c.b16 %v4237, %v4225
  %v5102 = vpack.c.b16 %v4238, %v4226
  %v5103 = vpack.c.b16 %v4251, %v4239
  %v5104 = vpack.c.b16 %v4252, %v4240
  %v5105 = vpack.c.b16 %v4253, %v4241
  %v5106 = vpack.c.b16 %v4254, %v4242
  %v5107 = vpack.c.b16 %v4255, %v4243
  %v5108 = vpack.c.b16 %v4256, %v4244
  %v5109 = vpack.c.b16 %v4257, %v4245
  %v5110 = vpack.c.b16 %v4258, %v4246
  %v5111 = vpack.c.b16 %v4259, %v4247
  %v5112 = vpack.c.b16 %v4260, %v4248
  %v5113 = vpack.c.b16 %v4261, %v4249
  %v5114 = vpack.c.b16 %v4262, %v4250
  %v5115 = vpack.c.b16 %v4275, %v4263
  %v5116 = vpack.c.b16 %v4276, %v4264
  %v5117 = vpack.c.b16 %v4277, %v4265
  %v5118 = vpack.c.b16 %v4278, %v4266
  %v5119 = vpack.c.b16 %v4279, %v4267
  %v5120 = vpack.c.b16 %v4280, %v4268
  %v5121 = vpack.c.b16 %v4281, %v4269
  %v5122 = vpack.c.b16 %v4282, %v4270
  %v5123 = vpack.c.b16 %v4283, %v4271
  %v5124 = vpack.c.b16 %v4284, %v4272
  %v5125 = vpack.c.b16 %v4285, %v4273
  %v5126 = vpack.c.b16 %v4286, %v4274
  %v5127 = vpack.c.b16 %v4299, %v4287
  %v5128 = vpack.c.b16 %v4300, %v4288
  %v5129 = vpack.c.b16 %v4301, %v4289
  %v5130 = vpack.c.b16 %v4302, %v4290
  %v5131 = vpack.c.b16 %v4303, %v4291
  %v5132 = vpack.c.b16 %v4304, %v4292
  %v5133 = vpack.c.b16 %v4305, %v4293
  %v5134 = vpack.c.b16 %v4306, %v4294
  %v5135 = vpack.c.b16 %v4307, %v4295
  %v5136 = vpack.c.b16 %v4308, %v4296
  %v5137 = vpack.c.b16 %v4309, %v4297
  %v5138 = vpack.c.b16 %v4310, %v4298
  %v5139 = vpack.c.b16 %v4323, %v4311
  %v5140 = vpack.c.b16 %v4324, %v4312
  %v5141 = vpack.c.b16 %v4325, %v4313
  %v5142 = vpack.c.b16 %v4326, %v4314
  %v5143 = vpack.c.b16 %v4327, %v4315
  %v5144 = vpack.c.b16 %v4328, %v4316
  %v5145 = vpack.c.b16 %v4329, %v4317
  %v5146 = vpack.c.b16 %v4330, %v4318
  %v5147 = vpack.c.b16 %v4331, %v4319
  %v5148 = vpack.c.b16 %v4332, %v4320
  %v5149 = vpack.c.b16 %v4333, %v4321
  %v5150 = vpack.c.b16 %v4334, %v4322
  %v5151 = vpack.c.b16 %v4347, %v4335
  %v5152 = vpack.c.b16 %v4348, %v4336
  %v5153 = vpack.c.b16 %v4349, %v4337
  %v5154 = vpack.c.b16 %v4350, %v4338
  %v5155 = vpack.c.b16 %v4351, %v4339
  %v5156 = vpack.c.b16 %v4352, %v4340
  %v5157 = vpack.c.b16 %v4353, %v4341
  %v5158 = vpack.c.b16 %v4354, %v4342
  %v5159 = vpack.c.b16 %v4355, %v4343
  %v5160 = vpack.c.b16 %v4356, %v4344
  %v5161 = vpack.c.b16 %v4357, %v4345
  %v5162 = vpack.c.b16 %v4358, %v4346
  %v5163 = vpack.c.b16 %v4371, %v4359
  %v5164 = vpack.c.b16 %v4372, %v4360
  %v5165 = vpack.c.b16 %v4373, %v4361
  %v5166 = vpack.c.b16 %v4374, %v4362
  %v5167 = vpack.c.b16 %v4375, %v4363
  %v5168 = vpack.c.b16 %v4376, %v4364
  %v5169 = vpack.c.b16 %v4377, %v4365
  %v5170 = vpack.c.b16 %v4378, %v4366
  %v5171 = vpack.c.b16 %v4379, %v4367
  %v5172 = vpack.c.b16 %v4380, %v4368
  %v5173 = vpack.c.b16 %v4381, %v4369
  %v5174 = vpack.c.b16 %v4382, %v4370
  %v5175 = vpack.c.b16 %v4395, %v4383
  %v5176 = vpack.c.b16 %v4396, %v4384
  %v5177 = vpack.c.b16 %v4397, %v4385
  %v5178 = vpack.c.b16 %v4398, %v4386
  %v5179 = vpack.c.b16 %v4399, %v4387
  %v5180 = vpack.c.b16 %v4400, %v4388
  %v5181 = vpack.c.b16 %v4401, %v4389
  %v5182 = vpack.c.b16 %v4402, %v4390
  %v5183 = vpack.c.b16 %v4403, %v4391
  %v5184 = vpack.c.b16 %v4404, %v4392
  %v5185 = vpack.c.b16 %v4405, %v4393
  %v5186 = vpack.c.b16 %v4406, %v4394
  %v5187 = vpack.c.b16 %v4419, %v4407
  %v5188 = vpack.c.b16 %v4420, %v4408
  %v5189 = vpack.c.b16 %v4421, %v4409
  %v5190 = vpack.c.b16 %v4422, %v4410
  %v5191 = vpack.c.b16 %v4423, %v4411
  %v5192 = vpack.c.b16 %v4424, %v4412
  %v5193 = vpack.c.b16 %v4425, %v4413
  %v5194 = vpack.c.b16 %v4426, %v4414
  %v5195 = vpack.c.b16 %v4427, %v4415
  %v5196 = vpack.c.b16 %v4428, %v4416
  %v5197 = vpack.c.b16 %v4429, %v4417
  %v5198 = vpack.c.b16 %v4430, %v4418
  %v5199 = vpack.c.b16 %v4443, %v4431
  %v5200 = vpack.c.b16 %v4444, %v4432
  %v5201 = vpack.c.b16 %v4445, %v4433
  %v5202 = vpack.c.b16 %v4446, %v4434
  %v5203 = vpack.c.b16 %v4447, %v4435
  %v5204 = vpack.c.b16 %v4448, %v4436
  %v5205 = vpack.c.b16 %v4449, %v4437
  %v5206 = vpack.c.b16 %v4450, %v4438
  %v5207 = vpack.c.b16 %v4451, %v4439
  %v5208 = vpack.c.b16 %v4452, %v4440
  %v5209 = vpack.c.b16 %v4453, %v4441
  %v5210 = vpack.c.b16 %v4454, %v4442
  %v5211 = vpack.c.b16 %v4467, %v4455
  %v5212 = vpack.c.b16 %v4468, %v4456
  %v5213 = vpack.c.b16 %v4469, %v4457
  %v5214 = vpack.c.b16 %v4470, %v4458
  %v5215 = vpack.c.b16 %v4471, %v4459
  %v5216 = vpack.c.b16 %v4472, %v4460
  %v5217 = vpack.c.b16 %v4473, %v4461
  %v5218 = vpack.c.b16 %v4474, %v4462
  %v5219 = vpack.c.b16 %v4475, %v4463
  %v5220 = vpack.c.b16 %v4476, %v4464
  %v5221 = vpack.c.b16 %v4477, %v4465
  %v5222 = vpack.c.b16 %v4478, %v4466
  %v5223 = vpack.c.b16 %v4491, %v4479
  %v5224 = vpack.c.b16 %v4492, %v4480
  %v5225 = vpack.c.b16 %v4493, %v4481
  %v5226 = vpack.c.b16 %v4494, %v4482
  %v5227 = vpack.c.b16 %v4495, %v4483
  %v5228 = vpack.c.b16 %v4496, %v4484
  %v5229 = vpack.c.b16 %v4497, %v4485
  %v5230 = vpack.c.b16 %v4498, %v4486
  %v5231 = vpack.c.b16 %v4499, %v4487
  %v5232 = vpack.c.b16 %v4500, %v4488
  %v5233 = vpack.c.b16 %v4501, %v4489
  %v5234 = vpack.c.b16 %v4502, %v4490
  %v5235 = vpack.c.b16 %v4515, %v4503
  %v5236 = vpack.c.b16 %v4516, %v4504
  %v5237 = vpack.c.b16 %v4517, %v4505
  %v5238 = vpack.c.b16 %v4518, %v4506
  %v5239 = vpack.c.b16 %v4519, %v4507
  %v5240 = vpack.c.b16 %v4520, %v4508
  %v5241 = vpack.c.b16 %v4521, %v4509
  %v5242 = vpack.c.b16 %v4522, %v4510
  %v5243 = vpack.c.b16 %v4523, %v4511
  %v5244 = vpack.c.b16 %v4524, %v4512
  %v5245 = vpack.c.b16 %v4525, %v4513
  %v5246 = vpack.c.b16 %v4526, %v4514
  %v5247 = vpack.c.b16 %v4539, %v4527
  %v5248 = vpack.c.b16 %v4540, %v4528
  %v5249 = vpack.c.b16 %v4541, %v4529
  %v5250 = vpack.c.b16 %v4542, %v4530
  %v5251 = vpack.c.b16 %v4543, %v4531
  %v5252 = vpack.c.b16 %v4544, %v4532
  %v5253 = vpack.c.b16 %v4545, %v4533
  %v5254 = vpack.c.b16 %v4546, %v4534
  %v5255 = vpack.c.b16 %v4547, %v4535
  %v5256 = vpack.c.b16 %v4548, %v4536
  %v5257 = vpack.c.b16 %v4549, %v4537
  %v5258 = vpack.c.b16 %v4550, %v4538
  %v5259 = vpack.c.b16 %v4563, %v4551
  %v5260 = vpack.c.b16 %v4564, %v4552
  %v5261 = vpack.c.b16 %v4565, %v4553
  %v5262 = vpack.c.b16 %v4566, %v4554
  %v5263 = vpack.c.b16 %v4567, %v4555
  %v5264 = vpack.c.b16 %v4568, %v4556
  %v5265 = vpack.c.b16 %v4569, %v4557
  %v5266 = vpack.c.b16 %v4570, %v4558
  %v5267 = vpack.c.b16 %v4571, %v4559
  %v5268 = vpack.c.b16 %v4572, %v4560
  %v5269 = vpack.c.b16 %v4573, %v4561
  %v5270 = vpack.c.b16 %v4574, %v4562
  %v5271 = vpack.c.b16 %v4587, %v4575
  %v5272 = vpack.c.b16 %v4588, %v4576
  %v5273 = vpack.c.b16 %v4589, %v4577
  %v5274 = vpack.c.b16 %v4590, %v4578
  %v5275 = vpack.c.b16 %v4591, %v4579
  %v5276 = vpack.c.b16 %v4592, %v4580
  %v5277 = vpack.c.b16 %v4593, %v4581
  %v5278 = vpack.c.b16 %v4594, %v4582
  %v5279 = vpack.c.b16 %v4595, %v4583
  %v5280 = vpack.c.b16 %v4596, %v4584
  %v5281 = vpack.c.b16 %v4597, %v4585
  %v5282 = vpack.c.b16 %v4598, %v4586
  %v5283 = vpack.c.b16 %v4611, %v4599
  %v5284 = vpack.c.b16 %v4612, %v4600
  %v5285 = vpack.c.b16 %v4613, %v4601
  %v5286 = vpack.c.b16 %v4614, %v4602
  %v5287 = vpack.c.b16 %v4615, %v4603
  %v5288 = vpack.c.b16 %v4616, %v4604
  %v5289 = vpack.c.b16 %v4617, %v4605
  %v5290 = vpack.c.b16 %v4618, %v4606
  %v5291 = vpack.c.b16 %v4619, %v4607
  %v5292 = vpack.c.b16 %v4620, %v4608
  %v5293 = vpack.c.b16 %v4621, %v4609
  %v5294 = vpack.c.b16 %v4622, %v4610
  %v5295 = vpack.c.b16 %v4635, %v4623
  %v5296 = vpack.c.b16 %v4636, %v4624
  %v5297 = vpack.c.b16 %v4637, %v4625
  %v5298 = vpack.c.b16 %v4638, %v4626
  %v5299 = vpack.c.b16 %v4639, %v4627
  %v5300 = vpack.c.b16 %v4640, %v4628
  %v5301 = vpack.c.b16 %v4641, %v4629
  %v5302 = vpack.c.b16 %v4642, %v4630
  %v5303 = vpack.c.b16 %v4643, %v4631
  %v5304 = vpack.c.b16 %v4644, %v4632
  %v5305 = vpack.c.b16 %v4645, %v4633
  %v5306 = vpack.c.b16 %v4646, %v4634
  %v5307 = vpack.c.b16 %v4659, %v4647
  %v5308 = vpack.c.b16 %v4660, %v4648
  %v5309 = vpack.c.b16 %v4661, %v4649
  %v5310 = vpack.c.b16 %v4662, %v4650
  %v5311 = vpack.c.b16 %v4663, %v4651
  %v5312 = vpack.c.b16 %v4664, %v4652
  %v5313 = vpack.c.b16 %v4665, %v4653
  %v5314 = vpack.c.b16 %v4666, %v4654
  %v5315 = vpack.c.b16 %v4667, %v4655
  %v5316 = vpack.c.b16 %v4668, %v4656
  %v5317 = vpack.c.b16 %v4669, %v4657
  %v5318 = vpack.c.b16 %v4670, %v4658
  %v5319 = vpack.c.b16 %v4683, %v4671
  %v5320 = vpack.c.b16 %v4684, %v4672
  %v5321 = vpack.c.b16 %v4685, %v4673
  %v5322 = vpack.c.b16 %v4686, %v4674
  %v5323 = vpack.c.b16 %v4687, %v4675
  %v5324 = vpack.c.b16 %v4688, %v4676
  %v5325 = vpack.c.b16 %v4689, %v4677
  %v5326 = vpack.c.b16 %v4690, %v4678
  %v5327 = vpack.c.b16 %v4691, %v4679
  %v5328 = vpack.c.b16 %v4692, %v4680
  %v5329 = vpack.c.b16 %v4693, %v4681
  %v5330 = vpack.c.b16 %v4694, %v4682
  %v5331 = vpack.c.b16 %v4707, %v4695
  %v5332 = vpack.c.b16 %v4708, %v4696
  %v5333 = vpack.c.b16 %v4709, %v4697
  %v5334 = vpack.c.b16 %v4710, %v4698
  %v5335 = vpack.c.b16 %v4711, %v4699
  %v5336 = vpack.c.b16 %v4712, %v4700
  %v5337 = vpack.c.b16 %v4713, %v4701
  %v5338 = vpack.c.b16 %v4714, %v4702
  %v5339 = vpack.c.b16 %v4715, %v4703
  %v5340 = vpack.c.b16 %v4716, %v4704
  %v5341 = vpack.c.b16 %v4717, %v4705
  %v5342 = vpack.c.b16 %v4718, %v4706
  %v5343 = vpack.c.b16 %v4731, %v4719
  %v5344 = vpack.c.b16 %v4732, %v4720
  %v5345 = vpack.c.b16 %v4733, %v4721
  %v5346 = vpack.c.b16 %v4734, %v4722
  %v5347 = vpack.c.b16 %v4735, %v4723
  %v5348 = vpack.c.b16 %v4736, %v4724
  %v5349 = vpack.c.b16 %v4737, %v4725
  %v5350 = vpack.c.b16 %v4738, %v4726
  %v5351 = vpack.c.b16 %v4739, %v4727
  %v5352 = vpack.c.b16 %v4740, %v4728
  %v5353 = vpack.c.b16 %v4741, %v4729
  %v5354 = vpack.c.b16 %v4742, %v4730
  %v5355 = vpack.c.b16 %v4755, %v4743
  %v5356 = vpack.c.b16 %v4756, %v4744
  %v5357 = vpack.c.b16 %v4757, %v4745
  %v5358 = vpack.c.b16 %v4758, %v4746
  %v5359 = vpack.c.b16 %v4759, %v4747
  %v5360 = vpack.c.b16 %v4760, %v4748
  %v5361 = vpack.c.b16 %v4761, %v4749
  %v5362 = vpack.c.b16 %v4762, %v4750
  %v5363 = vpack.c.b16 %v4763, %v4751
  %v5364 = vpack.c.b16 %v4764, %v4752
  %v5365 = vpack.c.b16 %v4765, %v4753
  %v5366 = vpack.c.b16 %v4766, %v4754
  %v5367 = vpack.c.b16 %v4779, %v4767
  %v5368 = vpack.c.b16 %v4780, %v4768
  %v5369 = vpack.c.b16 %v4781, %v4769
  %v5370 = vpack.c.b16 %v4782, %v4770
  %v5371 = vpack.c.b16 %v4783, %v4771
  %v5372 = vpack.c.b16 %v4784, %v4772
  %v5373 = vpack.c.b16 %v4785, %v4773
  %v5374 = vpack.c.b16 %v4786, %v4774
  %v5375 = vpack.c.b16 %v4787, %v4775
  %v5376 = vpack.c.b16 %v4788, %v4776
  %v5377 = vpack.c.b16 %v4789, %v4777
  %v5378 = vpack.c.b16 %v4790, %v4778
  %v5379 = vpack.c.b16 %v4803, %v4791
  %v5380 = vpack.c.b16 %v4804, %v4792
  %v5381 = vpack.c.b16 %v4805, %v4793
  %v5382 = vpack.c.b16 %v4806, %v4794
  %v5383 = vpack.c.b16 %v4807, %v4795
  %v5384 = vpack.c.b16 %v4808, %v4796
  %v5385 = vpack.c.b16 %v4809, %v4797
  %v5386 = vpack.c.b16 %v4810, %v4798
  %v5387 = vpack.c.b16 %v4811, %v4799
  %v5388 = vpack.c.b16 %v4812, %v4800
  %v5389 = vpack.c.b16 %v4813, %v4801
  %v5390 = vpack.c.b16 %v4814, %v4802
  %5967 = vmatprep.subr.bf16.mxu0 %v4900
  %5968 = vmatpush1.bf16.msra.mxu0 %v4899
  %5969 = vmatprep.subr.bf16.mxu0 %v4888
  %5970 = vmatpush1.bf16.msra.mxu0 %v4887
  %5971 = vmatprep.subr.bf16.mxu0 %v4876
  %5972 = vmatpush1.bf16.msra.mxu0 %v4875
  %5973 = vmatprep.subr.bf16.mxu0 %v4864
  %5974 = vmatpush1.bf16.msra.mxu0 %v4863
  %5975 = vmatprep.subr.bf16.mxu0 %v4852
  %5976 = vmatpush1.bf16.msra.mxu0 %v4851
  %5977 = vmatprep.subr.bf16.mxu0 %v4840
  %5978 = vmatpush1.bf16.msra.mxu0 %v4839
  %5979 = vmatprep.subr.bf16.mxu0 %v4828
  %5980 = vmatpush1.bf16.msra.mxu0 %v4827
  %5981 = vmatprep.subr.bf16.mxu0 %v4816
  %5982 = vmatpush1.bf16.msra.mxu0 %v4815
  %5983 = vmatprep.subr.bf16.mxu0 %v4996
  %5984 = vmatpush2.bf16.msra.mxu0 %v4995
  %5985 = vmatprep.subr.bf16.mxu0 %v4984
  %5986 = vmatpush2.bf16.msra.mxu0 %v4983
  %5987 = vmatprep.subr.bf16.mxu0 %v4972
  %5988 = vmatpush2.bf16.msra.mxu0 %v4971
  %5989 = vmatprep.subr.bf16.mxu0 %v4960
  %5990 = vmatpush2.bf16.msra.mxu0 %v4959
  %5991 = vmatprep.subr.bf16.mxu0 %v4948
  %5992 = vmatpush2.bf16.msra.mxu0 %v4947
  %5993 = vmatprep.subr.bf16.mxu0 %v4936
  %5994 = vmatpush2.bf16.msra.mxu0 %v4935
  %5995 = vmatprep.subr.bf16.mxu0 %v4924
  %5996 = vmatpush2.bf16.msra.mxu0 %v4923
  %5997 = vmatprep.subr.bf16.mxu0 %v4912
  %5998 = vmatpush2.bf16.msra.mxu0 %v4911
  %5999 = vmatprep.mubr.bf16.mxu0 %v2442
  %6000 = vmatmul.mubr.bf16.gmra.mxu0 %v2441
  %v6001 = vpop.f32.mrf.mxu0
  %v6002 = vadd.f32 %v3030, %v6001
  %v6003 = vpop.f32.mrf.mxu0
  %v6004 = vadd.f32 %v3034, %v6003
  %v6005 = vpop.f32.mrf.mxu0
  %v6006 = vadd.f32 %v3030, %v6005
  %v6007 = vpop.f32.mrf.mxu0
  %v6008 = vadd.f32 %v3034, %v6007
  %6009 = vdwg.mxu0
  %6010 = vmatprep.subr.bf16.mxu0 %v5092
  %6011 = vmatpush1.bf16.msra.mxu0 %v5091
  %6012 = vmatprep.subr.bf16.mxu0 %v5080
  %6013 = vmatpush1.bf16.msra.mxu0 %v5079
  %6014 = vmatprep.subr.bf16.mxu0 %v5068
  %6015 = vmatpush1.bf16.msra.mxu0 %v5067
  %6016 = vmatprep.subr.bf16.mxu0 %v5056
  %6017 = vmatpush1.bf16.msra.mxu0 %v5055
  %6018 = vmatprep.subr.bf16.mxu0 %v5044
  %6019 = vmatpush1.bf16.msra.mxu0 %v5043
  %6020 = vmatprep.subr.bf16.mxu0 %v5032
  %6021 = vmatpush1.bf16.msra.mxu0 %v5031
  %6022 = vmatprep.subr.bf16.mxu0 %v5020
  %6023 = vmatpush1.bf16.msra.mxu0 %v5019
  %6024 = vmatprep.subr.bf16.mxu0 %v5008
  %6025 = vmatpush1.bf16.msra.mxu0 %v5007
  %6026 = vmatprep.subr.bf16.mxu0 %v5188
  %6027 = vmatpush2.bf16.msra.mxu0 %v5187
  %6028 = vmatprep.subr.bf16.mxu0 %v5176
  %6029 = vmatpush2.bf16.msra.mxu0 %v5175
  %6030 = vmatprep.subr.bf16.mxu0 %v5164
  %6031 = vmatpush2.bf16.msra.mxu0 %v5163
  %6032 = vmatprep.subr.bf16.mxu0 %v5152
  %6033 = vmatpush2.bf16.msra.mxu0 %v5151
  %6034 = vmatprep.subr.bf16.mxu0 %v5140
  %6035 = vmatpush2.bf16.msra.mxu0 %v5139
  %6036 = vmatprep.subr.bf16.mxu0 %v5128
  %6037 = vmatpush2.bf16.msra.mxu0 %v5127
  %6038 = vmatprep.subr.bf16.mxu0 %v5116
  %6039 = vmatpush2.bf16.msra.mxu0 %v5115
  %6040 = vmatprep.subr.bf16.mxu0 %v5104
  %6041 = vmatpush2.bf16.msra.mxu0 %v5103
  %6042 = vmatprep.mubr.bf16.mxu0 %v2444
  %6043 = vmatmul.mubr.bf16.gmra.mxu0 %v2443
  %v6044 = vpop.f32.mrf.mxu0
  %v6045 = vadd.f32 %v6002, %v6044
  %v6046 = vpop.f32.mrf.mxu0
  %v6047 = vadd.f32 %v6004, %v6046
  %v6048 = vpop.f32.mrf.mxu0
  %v6049 = vadd.f32 %v6006, %v6048
  %v6050 = vpop.f32.mrf.mxu0
  %v6051 = vadd.f32 %v6008, %v6050
  %6052 = vdwg.mxu0
  %6053 = vmatprep.subr.bf16.mxu0 %v5284
  %6054 = vmatpush1.bf16.msra.mxu0 %v5283
  %6055 = vmatprep.subr.bf16.mxu0 %v5272
  %6056 = vmatpush1.bf16.msra.mxu0 %v5271
  %6057 = vmatprep.subr.bf16.mxu0 %v5260
  %6058 = vmatpush1.bf16.msra.mxu0 %v5259
  %6059 = vmatprep.subr.bf16.mxu0 %v5248
  %6060 = vmatpush1.bf16.msra.mxu0 %v5247
  %6061 = vmatprep.subr.bf16.mxu0 %v5236
  %6062 = vmatpush1.bf16.msra.mxu0 %v5235
  %6063 = vmatprep.subr.bf16.mxu0 %v5224
  %6064 = vmatpush1.bf16.msra.mxu0 %v5223
  %6065 = vmatprep.subr.bf16.mxu0 %v5212
  %6066 = vmatpush1.bf16.msra.mxu0 %v5211
  %6067 = vmatprep.subr.bf16.mxu0 %v5200
  %6068 = vmatpush1.bf16.msra.mxu0 %v5199
  %6069 = vmatprep.subr.bf16.mxu0 %v5380
  %6070 = vmatpush2.bf16.msra.mxu0 %v5379
  %6071 = vmatprep.subr.bf16.mxu0 %v5368
  %6072 = vmatpush2.bf16.msra.mxu0 %v5367
  %6073 = vmatprep.subr.bf16.mxu0 %v5356
  %6074 = vmatpush2.bf16.msra.mxu0 %v5355
  %6075 = vmatprep.subr.bf16.mxu0 %v5344
  %6076 = vmatpush2.bf16.msra.mxu0 %v5343
  %6077 = vmatprep.subr.bf16.mxu0 %v5332
  %6078 = vmatpush2.bf16.msra.mxu0 %v5331
  %6079 = vmatprep.subr.bf16.mxu0 %v5320
  %6080 = vmatpush2.bf16.msra.mxu0 %v5319
  %6081 = vmatprep.subr.bf16.mxu0 %v5308
  %6082 = vmatpush2.bf16.msra.mxu0 %v5307
  %6083 = vmatprep.subr.bf16.mxu0 %v5296
  %6084 = vmatpush2.bf16.msra.mxu0 %v5295
  %6085 = vmatprep.mubr.bf16.mxu0 %v2446
  %6086 = vmatmul.mubr.bf16.gmra.mxu0 %v2445
  %v6087 = vpop.f32.mrf.mxu0
  %v6088 = vadd.f32 %v6045, %v6087
  %v6089 = vpop.f32.mrf.mxu0
  %v6090 = vadd.f32 %v6047, %v6089
  %v6091 = vpop.f32.mrf.mxu0
  %v6092 = vadd.f32 %v6049, %v6091
  %v6093 = vpop.f32.mrf.mxu0
  %v6094 = vadd.f32 %v6051, %v6093
  %6095 = vdwg.mxu0
  %6096 = vmatprep.subr.bf16.mxu0 %v4902
  %6097 = vmatpush1.bf16.msra.mxu0 %v4901
  %6098 = vmatprep.subr.bf16.mxu0 %v4890
  %6099 = vmatpush1.bf16.msra.mxu0 %v4889
  %6100 = vmatprep.subr.bf16.mxu0 %v4878
  %6101 = vmatpush1.bf16.msra.mxu0 %v4877
  %6102 = vmatprep.subr.bf16.mxu0 %v4866
  %6103 = vmatpush1.bf16.msra.mxu0 %v4865
  %6104 = vmatprep.subr.bf16.mxu0 %v4854
  %6105 = vmatpush1.bf16.msra.mxu0 %v4853
  %6106 = vmatprep.subr.bf16.mxu0 %v4842
  %6107 = vmatpush1.bf16.msra.mxu0 %v4841
  %6108 = vmatprep.subr.bf16.mxu0 %v4830
  %6109 = vmatpush1.bf16.msra.mxu0 %v4829
  %6110 = vmatprep.subr.bf16.mxu0 %v4818
  %6111 = vmatpush1.bf16.msra.mxu0 %v4817
  %6112 = vmatprep.subr.bf16.mxu0 %v4998
  %6113 = vmatpush2.bf16.msra.mxu0 %v4997
  %6114 = vmatprep.subr.bf16.mxu0 %v4986
  %6115 = vmatpush2.bf16.msra.mxu0 %v4985
  %6116 = vmatprep.subr.bf16.mxu0 %v4974
  %6117 = vmatpush2.bf16.msra.mxu0 %v4973
  %6118 = vmatprep.subr.bf16.mxu0 %v4962
  %6119 = vmatpush2.bf16.msra.mxu0 %v4961
  %6120 = vmatprep.subr.bf16.mxu0 %v4950
  %6121 = vmatpush2.bf16.msra.mxu0 %v4949
  %6122 = vmatprep.subr.bf16.mxu0 %v4938
  %6123 = vmatpush2.bf16.msra.mxu0 %v4937
  %6124 = vmatprep.subr.bf16.mxu0 %v4926
  %6125 = vmatpush2.bf16.msra.mxu0 %v4925
  %6126 = vmatprep.subr.bf16.mxu0 %v4914
  %6127 = vmatpush2.bf16.msra.mxu0 %v4913
  %6128 = vmatprep.mubr.bf16.mxu0 %v2442
  %6129 = vmatmul.mubr.bf16.gmra.mxu0 %v2441
  %v6130 = vpop.f32.mrf.mxu0
  %v6131 = vadd.f32 %v3038, %v6130
  %v6132 = vpop.f32.mrf.mxu0
  %v6133 = vadd.f32 %v3042, %v6132
  %v6134 = vpop.f32.mrf.mxu0
  %v6135 = vadd.f32 %v3038, %v6134
  %v6136 = vpop.f32.mrf.mxu0
  %v6137 = vadd.f32 %v3042, %v6136
  %6138 = vdwg.mxu0
  %6139 = vmatprep.subr.bf16.mxu0 %v5094
  %6140 = vmatpush1.bf16.msra.mxu0 %v5093
  %6141 = vmatprep.subr.bf16.mxu0 %v5082
  %6142 = vmatpush1.bf16.msra.mxu0 %v5081
  %6143 = vmatprep.subr.bf16.mxu0 %v5070
  %6144 = vmatpush1.bf16.msra.mxu0 %v5069
  %6145 = vmatprep.subr.bf16.mxu0 %v5058
  %6146 = vmatpush1.bf16.msra.mxu0 %v5057
  %6147 = vmatprep.subr.bf16.mxu0 %v5046
  %6148 = vmatpush1.bf16.msra.mxu0 %v5045
  %6149 = vmatprep.subr.bf16.mxu0 %v5034
  %6150 = vmatpush1.bf16.msra.mxu0 %v5033
  %6151 = vmatprep.subr.bf16.mxu0 %v5022
  %6152 = vmatpush1.bf16.msra.mxu0 %v5021
  %6153 = vmatprep.subr.bf16.mxu0 %v5010
  %6154 = vmatpush1.bf16.msra.mxu0 %v5009
  %6155 = vmatprep.subr.bf16.mxu0 %v5190
  %6156 = vmatpush2.bf16.msra.mxu0 %v5189
  %6157 = vmatprep.subr.bf16.mxu0 %v5178
  %6158 = vmatpush2.bf16.msra.mxu0 %v5177
  %6159 = vmatprep.subr.bf16.mxu0 %v5166
  %6160 = vmatpush2.bf16.msra.mxu0 %v5165
  %6161 = vmatprep.subr.bf16.mxu0 %v5154
  %6162 = vmatpush2.bf16.msra.mxu0 %v5153
  %6163 = vmatprep.subr.bf16.mxu0 %v5142
  %6164 = vmatpush2.bf16.msra.mxu0 %v5141
  %6165 = vmatprep.subr.bf16.mxu0 %v5130
  %6166 = vmatpush2.bf16.msra.mxu0 %v5129
  %6167 = vmatprep.subr.bf16.mxu0 %v5118
  %6168 = vmatpush2.bf16.msra.mxu0 %v5117
  %6169 = vmatprep.subr.bf16.mxu0 %v5106
  %6170 = vmatpush2.bf16.msra.mxu0 %v5105
  %6171 = vmatprep.mubr.bf16.mxu0 %v2444
  %6172 = vmatmul.mubr.bf16.gmra.mxu0 %v2443
  %v6173 = vpop.f32.mrf.mxu0
  %v6174 = vadd.f32 %v6131, %v6173
  %v6175 = vpop.f32.mrf.mxu0
  %v6176 = vadd.f32 %v6133, %v6175
  %v6177 = vpop.f32.mrf.mxu0
  %v6178 = vadd.f32 %v6135, %v6177
  %v6179 = vpop.f32.mrf.mxu0
  %v6180 = vadd.f32 %v6137, %v6179
  %6181 = vdwg.mxu0
  %6182 = vmatprep.subr.bf16.mxu0 %v5286
  %6183 = vmatpush1.bf16.msra.mxu0 %v5285
  %6184 = vmatprep.subr.bf16.mxu0 %v5274
  %6185 = vmatpush1.bf16.msra.mxu0 %v5273
  %6186 = vmatprep.subr.bf16.mxu0 %v5262
  %6187 = vmatpush1.bf16.msra.mxu0 %v5261
  %6188 = vmatprep.subr.bf16.mxu0 %v5250
  %6189 = vmatpush1.bf16.msra.mxu0 %v5249
  %6190 = vmatprep.subr.bf16.mxu0 %v5238
  %6191 = vmatpush1.bf16.msra.mxu0 %v5237
  %6192 = vmatprep.subr.bf16.mxu0 %v5226
  %6193 = vmatpush1.bf16.msra.mxu0 %v5225
  %6194 = vmatprep.subr.bf16.mxu0 %v5214
  %6195 = vmatpush1.bf16.msra.mxu0 %v5213
  %6196 = vmatprep.subr.bf16.mxu0 %v5202
  %6197 = vmatpush1.bf16.msra.mxu0 %v5201
  %6198 = vmatprep.subr.bf16.mxu0 %v5382
  %6199 = vmatpush2.bf16.msra.mxu0 %v5381
  %6200 = vmatprep.subr.bf16.mxu0 %v5370
  %6201 = vmatpush2.bf16.msra.mxu0 %v5369
  %6202 = vmatprep.subr.bf16.mxu0 %v5358
  %6203 = vmatpush2.bf16.msra.mxu0 %v5357
  %6204 = vmatprep.subr.bf16.mxu0 %v5346
  %6205 = vmatpush2.bf16.msra.mxu0 %v5345
  %6206 = vmatprep.subr.bf16.mxu0 %v5334
  %6207 = vmatpush2.bf16.msra.mxu0 %v5333
  %6208 = vmatprep.subr.bf16.mxu0 %v5322
  %6209 = vmatpush2.bf16.msra.mxu0 %v5321
  %6210 = vmatprep.subr.bf16.mxu0 %v5310
  %6211 = vmatpush2.bf16.msra.mxu0 %v5309
  %6212 = vmatprep.subr.bf16.mxu0 %v5298
  %6213 = vmatpush2.bf16.msra.mxu0 %v5297
  %6214 = vmatprep.mubr.bf16.mxu0 %v2446
  %6215 = vmatmul.mubr.bf16.gmra.mxu0 %v2445
  %v6216 = vpop.f32.mrf.mxu0
  %v6217 = vadd.f32 %v6174, %v6216
  %v6218 = vpop.f32.mrf.mxu0
  %v6219 = vadd.f32 %v6176, %v6218
  %v6220 = vpop.f32.mrf.mxu0
  %v6221 = vadd.f32 %v6178, %v6220
  %v6222 = vpop.f32.mrf.mxu0
  %v6223 = vadd.f32 %v6180, %v6222
  %6224 = vdwg.mxu0
  %6225 = vmatprep.subr.bf16.mxu0 %v4904
  %6226 = vmatpush1.bf16.msra.mxu0 %v4903
  %6227 = vmatprep.subr.bf16.mxu0 %v4892
  %6228 = vmatpush1.bf16.msra.mxu0 %v4891
  %6229 = vmatprep.subr.bf16.mxu0 %v4880
  %6230 = vmatpush1.bf16.msra.mxu0 %v4879
  %6231 = vmatprep.subr.bf16.mxu0 %v4868
  %6232 = vmatpush1.bf16.msra.mxu0 %v4867
  %6233 = vmatprep.subr.bf16.mxu0 %v4856
  %6234 = vmatpush1.bf16.msra.mxu0 %v4855
  %6235 = vmatprep.subr.bf16.mxu0 %v4844
  %6236 = vmatpush1.bf16.msra.mxu0 %v4843
  %6237 = vmatprep.subr.bf16.mxu0 %v4832
  %6238 = vmatpush1.bf16.msra.mxu0 %v4831
  %6239 = vmatprep.subr.bf16.mxu0 %v4820
  %6240 = vmatpush1.bf16.msra.mxu0 %v4819
  %6241 = vmatprep.subr.bf16.mxu0 %v5000
  %6242 = vmatpush2.bf16.msra.mxu0 %v4999
  %6243 = vmatprep.subr.bf16.mxu0 %v4988
  %6244 = vmatpush2.bf16.msra.mxu0 %v4987
  %6245 = vmatprep.subr.bf16.mxu0 %v4976
  %6246 = vmatpush2.bf16.msra.mxu0 %v4975
  %6247 = vmatprep.subr.bf16.mxu0 %v4964
  %6248 = vmatpush2.bf16.msra.mxu0 %v4963
  %6249 = vmatprep.subr.bf16.mxu0 %v4952
  %6250 = vmatpush2.bf16.msra.mxu0 %v4951
  %6251 = vmatprep.subr.bf16.mxu0 %v4940
  %6252 = vmatpush2.bf16.msra.mxu0 %v4939
  %6253 = vmatprep.subr.bf16.mxu0 %v4928
  %6254 = vmatpush2.bf16.msra.mxu0 %v4927
  %6255 = vmatprep.subr.bf16.mxu0 %v4916
  %6256 = vmatpush2.bf16.msra.mxu0 %v4915
  %6257 = vmatprep.mubr.bf16.mxu0 %v2442
  %6258 = vmatmul.mubr.bf16.gmra.mxu0 %v2441
  %v6259 = vpop.f32.mrf.mxu0
  %v6260 = vadd.f32 %v3046, %v6259
  %v6261 = vpop.f32.mrf.mxu0
  %v6262 = vadd.f32 %v3050, %v6261
  %v6263 = vpop.f32.mrf.mxu0
  %v6264 = vadd.f32 %v3046, %v6263
  %v6265 = vpop.f32.mrf.mxu0
  %v6266 = vadd.f32 %v3050, %v6265
  %6267 = vdwg.mxu0
  %6268 = vmatprep.subr.bf16.mxu0 %v5096
  %6269 = vmatpush1.bf16.msra.mxu0 %v5095
  %6270 = vmatprep.subr.bf16.mxu0 %v5084
  %6271 = vmatpush1.bf16.msra.mxu0 %v5083
  %6272 = vmatprep.subr.bf16.mxu0 %v5072
  %6273 = vmatpush1.bf16.msra.mxu0 %v5071
  %6274 = vmatprep.subr.bf16.mxu0 %v5060
  %6275 = vmatpush1.bf16.msra.mxu0 %v5059
  %6276 = vmatprep.subr.bf16.mxu0 %v5048
  %6277 = vmatpush1.bf16.msra.mxu0 %v5047
  %6278 = vmatprep.subr.bf16.mxu0 %v5036
  %6279 = vmatpush1.bf16.msra.mxu0 %v5035
  %6280 = vmatprep.subr.bf16.mxu0 %v5024
  %6281 = vmatpush1.bf16.msra.mxu0 %v5023
  %6282 = vmatprep.subr.bf16.mxu0 %v5012
  %6283 = vmatpush1.bf16.msra.mxu0 %v5011
  %6284 = vmatprep.subr.bf16.mxu0 %v5192
  %6285 = vmatpush2.bf16.msra.mxu0 %v5191
  %6286 = vmatprep.subr.bf16.mxu0 %v5180
  %6287 = vmatpush2.bf16.msra.mxu0 %v5179
  %6288 = vmatprep.subr.bf16.mxu0 %v5168
  %6289 = vmatpush2.bf16.msra.mxu0 %v5167
  %6290 = vmatprep.subr.bf16.mxu0 %v5156
  %6291 = vmatpush2.bf16.msra.mxu0 %v5155
  %6292 = vmatprep.subr.bf16.mxu0 %v5144
  %6293 = vmatpush2.bf16.msra.mxu0 %v5143
  %6294 = vmatprep.subr.bf16.mxu0 %v5132
  %6295 = vmatpush2.bf16.msra.mxu0 %v5131
  %6296 = vmatprep.subr.bf16.mxu0 %v5120
  %6297 = vmatpush2.bf16.msra.mxu0 %v5119
  %6298 = vmatprep.subr.bf16.mxu0 %v5108
  %6299 = vmatpush2.bf16.msra.mxu0 %v5107
  %6300 = vmatprep.mubr.bf16.mxu0 %v2444
  %6301 = vmatmul.mubr.bf16.gmra.mxu0 %v2443
  %v6302 = vpop.f32.mrf.mxu0
  %v6303 = vadd.f32 %v6260, %v6302
  %v6304 = vpop.f32.mrf.mxu0
  %v6305 = vadd.f32 %v6262, %v6304
  %v6306 = vpop.f32.mrf.mxu0
  %v6307 = vadd.f32 %v6264, %v6306
  %v6308 = vpop.f32.mrf.mxu0
  %v6309 = vadd.f32 %v6266, %v6308
  %6310 = vdwg.mxu0
  %6311 = vmatprep.subr.bf16.mxu0 %v5288
  %6312 = vmatpush1.bf16.msra.mxu0 %v5287
  %6313 = vmatprep.subr.bf16.mxu0 %v5276
  %6314 = vmatpush1.bf16.msra.mxu0 %v5275
  %6315 = vmatprep.subr.bf16.mxu0 %v5264
  %6316 = vmatpush1.bf16.msra.mxu0 %v5263
  %6317 = vmatprep.subr.bf16.mxu0 %v5252
  %6318 = vmatpush1.bf16.msra.mxu0 %v5251
  %6319 = vmatprep.subr.bf16.mxu0 %v5240
  %6320 = vmatpush1.bf16.msra.mxu0 %v5239
  %6321 = vmatprep.subr.bf16.mxu0 %v5228
  %6322 = vmatpush1.bf16.msra.mxu0 %v5227
  %6323 = vmatprep.subr.bf16.mxu0 %v5216
  %6324 = vmatpush1.bf16.msra.mxu0 %v5215
  %6325 = vmatprep.subr.bf16.mxu0 %v5204
  %6326 = vmatpush1.bf16.msra.mxu0 %v5203
  %6327 = vmatprep.subr.bf16.mxu0 %v5384
  %6328 = vmatpush2.bf16.msra.mxu0 %v5383
  %6329 = vmatprep.subr.bf16.mxu0 %v5372
  %6330 = vmatpush2.bf16.msra.mxu0 %v5371
  %6331 = vmatprep.subr.bf16.mxu0 %v5360
  %6332 = vmatpush2.bf16.msra.mxu0 %v5359
  %6333 = vmatprep.subr.bf16.mxu0 %v5348
  %6334 = vmatpush2.bf16.msra.mxu0 %v5347
  %6335 = vmatprep.subr.bf16.mxu0 %v5336
  %6336 = vmatpush2.bf16.msra.mxu0 %v5335
  %6337 = vmatprep.subr.bf16.mxu0 %v5324
  %6338 = vmatpush2.bf16.msra.mxu0 %v5323
  %6339 = vmatprep.subr.bf16.mxu0 %v5312
  %6340 = vmatpush2.bf16.msra.mxu0 %v5311
  %6341 = vmatprep.subr.bf16.mxu0 %v5300
  %6342 = vmatpush2.bf16.msra.mxu0 %v5299
  %6343 = vmatprep.mubr.bf16.mxu0 %v2446
  %6344 = vmatmul.mubr.bf16.gmra.mxu0 %v2445
  %v6345 = vpop.f32.mrf.mxu0
  %v6346 = vadd.f32 %v6303, %v6345
  %v6347 = vpop.f32.mrf.mxu0
  %v6348 = vadd.f32 %v6305, %v6347
  %v6349 = vpop.f32.mrf.mxu0
  %v6350 = vadd.f32 %v6307, %v6349
  %v6351 = vpop.f32.mrf.mxu0
  %v6352 = vadd.f32 %v6309, %v6351
  %6353 = vdwg.mxu0
  %6354 = vmatprep.subr.bf16.mxu0 %v4906
  %6355 = vmatpush1.bf16.msra.mxu0 %v4905
  %6356 = vmatprep.subr.bf16.mxu0 %v4894
  %6357 = vmatpush1.bf16.msra.mxu0 %v4893
  %6358 = vmatprep.subr.bf16.mxu0 %v4882
  %6359 = vmatpush1.bf16.msra.mxu0 %v4881
  %6360 = vmatprep.subr.bf16.mxu0 %v4870
  %6361 = vmatpush1.bf16.msra.mxu0 %v4869
  %6362 = vmatprep.subr.bf16.mxu0 %v4858
  %6363 = vmatpush1.bf16.msra.mxu0 %v4857
  %6364 = vmatprep.subr.bf16.mxu0 %v4846
  %6365 = vmatpush1.bf16.msra.mxu0 %v4845
  %6366 = vmatprep.subr.bf16.mxu0 %v4834
  %6367 = vmatpush1.bf16.msra.mxu0 %v4833
  %6368 = vmatprep.subr.bf16.mxu0 %v4822
  %6369 = vmatpush1.bf16.msra.mxu0 %v4821
  %6370 = vmatprep.subr.bf16.mxu0 %v5002
  %6371 = vmatpush2.bf16.msra.mxu0 %v5001
  %6372 = vmatprep.subr.bf16.mxu0 %v4990
  %6373 = vmatpush2.bf16.msra.mxu0 %v4989
  %6374 = vmatprep.subr.bf16.mxu0 %v4978
  %6375 = vmatpush2.bf16.msra.mxu0 %v4977
  %6376 = vmatprep.subr.bf16.mxu0 %v4966
  %6377 = vmatpush2.bf16.msra.mxu0 %v4965
  %6378 = vmatprep.subr.bf16.mxu0 %v4954
  %6379 = vmatpush2.bf16.msra.mxu0 %v4953
  %6380 = vmatprep.subr.bf16.mxu0 %v4942
  %6381 = vmatpush2.bf16.msra.mxu0 %v4941
  %6382 = vmatprep.subr.bf16.mxu0 %v4930
  %6383 = vmatpush2.bf16.msra.mxu0 %v4929
  %6384 = vmatprep.subr.bf16.mxu0 %v4918
  %6385 = vmatpush2.bf16.msra.mxu0 %v4917
  %6386 = vmatprep.mubr.bf16.mxu0 %v2442
  %6387 = vmatmul.mubr.bf16.gmra.mxu0 %v2441
  %v6388 = vpop.f32.mrf.mxu0
  %v6389 = vadd.f32 %v3054, %v6388
  %v6390 = vpop.f32.mrf.mxu0
  %v6391 = vadd.f32 %v3058, %v6390
  %v6392 = vpop.f32.mrf.mxu0
  %v6393 = vadd.f32 %v3054, %v6392
  %v6394 = vpop.f32.mrf.mxu0
  %v6395 = vadd.f32 %v3058, %v6394
  %6396 = vdwg.mxu0
  %6397 = vmatprep.subr.bf16.mxu0 %v5098
  %6398 = vmatpush1.bf16.msra.mxu0 %v5097
  %6399 = vmatprep.subr.bf16.mxu0 %v5086
  %6400 = vmatpush1.bf16.msra.mxu0 %v5085
  %6401 = vmatprep.subr.bf16.mxu0 %v5074
  %6402 = vmatpush1.bf16.msra.mxu0 %v5073
  %6403 = vmatprep.subr.bf16.mxu0 %v5062
  %6404 = vmatpush1.bf16.msra.mxu0 %v5061
  %6405 = vmatprep.subr.bf16.mxu0 %v5050
  %6406 = vmatpush1.bf16.msra.mxu0 %v5049
  %6407 = vmatprep.subr.bf16.mxu0 %v5038
  %6408 = vmatpush1.bf16.msra.mxu0 %v5037
  %6409 = vmatprep.subr.bf16.mxu0 %v5026
  %6410 = vmatpush1.bf16.msra.mxu0 %v5025
  %6411 = vmatprep.subr.bf16.mxu0 %v5014
  %6412 = vmatpush1.bf16.msra.mxu0 %v5013
  %6413 = vmatprep.subr.bf16.mxu0 %v5194
  %6414 = vmatpush2.bf16.msra.mxu0 %v5193
  %6415 = vmatprep.subr.bf16.mxu0 %v5182
  %6416 = vmatpush2.bf16.msra.mxu0 %v5181
  %6417 = vmatprep.subr.bf16.mxu0 %v5170
  %6418 = vmatpush2.bf16.msra.mxu0 %v5169
  %6419 = vmatprep.subr.bf16.mxu0 %v5158
  %6420 = vmatpush2.bf16.msra.mxu0 %v5157
  %6421 = vmatprep.subr.bf16.mxu0 %v5146
  %6422 = vmatpush2.bf16.msra.mxu0 %v5145
  %6423 = vmatprep.subr.bf16.mxu0 %v5134
  %6424 = vmatpush2.bf16.msra.mxu0 %v5133
  %6425 = vmatprep.subr.bf16.mxu0 %v5122
  %6426 = vmatpush2.bf16.msra.mxu0 %v5121
  %6427 = vmatprep.subr.bf16.mxu0 %v5110
  %6428 = vmatpush2.bf16.msra.mxu0 %v5109
  %6429 = vmatprep.mubr.bf16.mxu0 %v2444
  %6430 = vmatmul.mubr.bf16.gmra.mxu0 %v2443
  %v6431 = vpop.f32.mrf.mxu0
  %v6432 = vadd.f32 %v6389, %v6431
  %v6433 = vpop.f32.mrf.mxu0
  %v6434 = vadd.f32 %v6391, %v6433
  %v6435 = vpop.f32.mrf.mxu0
  %v6436 = vadd.f32 %v6393, %v6435
  %v6437 = vpop.f32.mrf.mxu0
  %v6438 = vadd.f32 %v6395, %v6437
  %6439 = vdwg.mxu0
  %6440 = vmatprep.subr.bf16.mxu0 %v5290
  %6441 = vmatpush1.bf16.msra.mxu0 %v5289
  %6442 = vmatprep.subr.bf16.mxu0 %v5278
  %6443 = vmatpush1.bf16.msra.mxu0 %v5277
  %6444 = vmatprep.subr.bf16.mxu0 %v5266
  %6445 = vmatpush1.bf16.msra.mxu0 %v5265
  %6446 = vmatprep.subr.bf16.mxu0 %v5254
  %6447 = vmatpush1.bf16.msra.mxu0 %v5253
  %6448 = vmatprep.subr.bf16.mxu0 %v5242
  %6449 = vmatpush1.bf16.msra.mxu0 %v5241
  %6450 = vmatprep.subr.bf16.mxu0 %v5230
  %6451 = vmatpush1.bf16.msra.mxu0 %v5229
  %6452 = vmatprep.subr.bf16.mxu0 %v5218
  %6453 = vmatpush1.bf16.msra.mxu0 %v5217
  %6454 = vmatprep.subr.bf16.mxu0 %v5206
  %6455 = vmatpush1.bf16.msra.mxu0 %v5205
  %6456 = vmatprep.subr.bf16.mxu0 %v5386
  %6457 = vmatpush2.bf16.msra.mxu0 %v5385
  %6458 = vmatprep.subr.bf16.mxu0 %v5374
  %6459 = vmatpush2.bf16.msra.mxu0 %v5373
  %6460 = vmatprep.subr.bf16.mxu0 %v5362
  %6461 = vmatpush2.bf16.msra.mxu0 %v5361
  %6462 = vmatprep.subr.bf16.mxu0 %v5350
  %6463 = vmatpush2.bf16.msra.mxu0 %v5349
  %6464 = vmatprep.subr.bf16.mxu0 %v5338
  %6465 = vmatpush2.bf16.msra.mxu0 %v5337
  %6466 = vmatprep.subr.bf16.mxu0 %v5326
  %6467 = vmatpush2.bf16.msra.mxu0 %v5325
  %6468 = vmatprep.subr.bf16.mxu0 %v5314
  %6469 = vmatpush2.bf16.msra.mxu0 %v5313
  %6470 = vmatprep.subr.bf16.mxu0 %v5302
  %6471 = vmatpush2.bf16.msra.mxu0 %v5301
  %6472 = vmatprep.mubr.bf16.mxu0 %v2446
  %6473 = vmatmul.mubr.bf16.gmra.mxu0 %v2445
  %v6474 = vpop.f32.mrf.mxu0
  %v6475 = vadd.f32 %v6432, %v6474
  %v6476 = vpop.f32.mrf.mxu0
  %v6477 = vadd.f32 %v6434, %v6476
  %v6478 = vpop.f32.mrf.mxu0
  %v6479 = vadd.f32 %v6436, %v6478
  %v6480 = vpop.f32.mrf.mxu0
  %v6481 = vadd.f32 %v6438, %v6480
  %6482 = vdwg.mxu0
  %6483 = vmatprep.subr.bf16.mxu0 %v4908
  %6484 = vmatpush1.bf16.msra.mxu0 %v4907
  %6485 = vmatprep.subr.bf16.mxu0 %v4896
  %6486 = vmatpush1.bf16.msra.mxu0 %v4895
  %6487 = vmatprep.subr.bf16.mxu0 %v4884
  %6488 = vmatpush1.bf16.msra.mxu0 %v4883
  %6489 = vmatprep.subr.bf16.mxu0 %v4872
  %6490 = vmatpush1.bf16.msra.mxu0 %v4871
  %6491 = vmatprep.subr.bf16.mxu0 %v4860
  %6492 = vmatpush1.bf16.msra.mxu0 %v4859
  %6493 = vmatprep.subr.bf16.mxu0 %v4848
  %6494 = vmatpush1.bf16.msra.mxu0 %v4847
  %6495 = vmatprep.subr.bf16.mxu0 %v4836
  %6496 = vmatpush1.bf16.msra.mxu0 %v4835
  %6497 = vmatprep.subr.bf16.mxu0 %v4824
  %6498 = vmatpush1.bf16.msra.mxu0 %v4823
  %6499 = vmatprep.subr.bf16.mxu0 %v5004
  %6500 = vmatpush2.bf16.msra.mxu0 %v5003
  %6501 = vmatprep.subr.bf16.mxu0 %v4992
  %6502 = vmatpush2.bf16.msra.mxu0 %v4991
  %6503 = vmatprep.subr.bf16.mxu0 %v4980
  %6504 = vmatpush2.bf16.msra.mxu0 %v4979
  %6505 = vmatprep.subr.bf16.mxu0 %v4968
  %6506 = vmatpush2.bf16.msra.mxu0 %v4967
  %6507 = vmatprep.subr.bf16.mxu0 %v4956
  %6508 = vmatpush2.bf16.msra.mxu0 %v4955
  %6509 = vmatprep.subr.bf16.mxu0 %v4944
  %6510 = vmatpush2.bf16.msra.mxu0 %v4943
  %6511 = vmatprep.subr.bf16.mxu0 %v4932
  %6512 = vmatpush2.bf16.msra.mxu0 %v4931
  %6513 = vmatprep.subr.bf16.mxu0 %v4920
  %6514 = vmatpush2.bf16.msra.mxu0 %v4919
  %6515 = vmatprep.mubr.bf16.mxu0 %v2442
  %6516 = vmatmul.mubr.bf16.gmra.mxu0 %v2441
  %v6517 = vpop.f32.mrf.mxu0
  %v6518 = vadd.f32 %v3062, %v6517
  %v6519 = vpop.f32.mrf.mxu0
  %v6520 = vadd.f32 %v3066, %v6519
  %v6521 = vpop.f32.mrf.mxu0
  %v6522 = vadd.f32 %v3062, %v6521
  %v6523 = vpop.f32.mrf.mxu0
  %v6524 = vadd.f32 %v3066, %v6523
  %6525 = vdwg.mxu0
  %6526 = vmatprep.subr.bf16.mxu0 %v5100
  %6527 = vmatpush1.bf16.msra.mxu0 %v5099
  %6528 = vmatprep.subr.bf16.mxu0 %v5088
  %6529 = vmatpush1.bf16.msra.mxu0 %v5087
  %6530 = vmatprep.subr.bf16.mxu0 %v5076
  %6531 = vmatpush1.bf16.msra.mxu0 %v5075
  %6532 = vmatprep.subr.bf16.mxu0 %v5064
  %6533 = vmatpush1.bf16.msra.mxu0 %v5063
  %6534 = vmatprep.subr.bf16.mxu0 %v5052
  %6535 = vmatpush1.bf16.msra.mxu0 %v5051
  %6536 = vmatprep.subr.bf16.mxu0 %v5040
  %6537 = vmatpush1.bf16.msra.mxu0 %v5039
  %6538 = vmatprep.subr.bf16.mxu0 %v5028
  %6539 = vmatpush1.bf16.msra.mxu0 %v5027
  %6540 = vmatprep.subr.bf16.mxu0 %v5016
  %6541 = vmatpush1.bf16.msra.mxu0 %v5015
  %6542 = vmatprep.subr.bf16.mxu0 %v5196
  %6543 = vmatpush2.bf16.msra.mxu0 %v5195
  %6544 = vmatprep.subr.bf16.mxu0 %v5184
  %6545 = vmatpush2.bf16.msra.mxu0 %v5183
  %6546 = vmatprep.subr.bf16.mxu0 %v5172
  %6547 = vmatpush2.bf16.msra.mxu0 %v5171
  %6548 = vmatprep.subr.bf16.mxu0 %v5160
  %6549 = vmatpush2.bf16.msra.mxu0 %v5159
  %6550 = vmatprep.subr.bf16.mxu0 %v5148
  %6551 = vmatpush2.bf16.msra.mxu0 %v5147
  %6552 = vmatprep.subr.bf16.mxu0 %v5136
  %6553 = vmatpush2.bf16.msra.mxu0 %v5135
  %6554 = vmatprep.subr.bf16.mxu0 %v5124
  %6555 = vmatpush2.bf16.msra.mxu0 %v5123
  %6556 = vmatprep.subr.bf16.mxu0 %v5112
  %6557 = vmatpush2.bf16.msra.mxu0 %v5111
  %6558 = vmatprep.mubr.bf16.mxu0 %v2444
  %6559 = vmatmul.mubr.bf16.gmra.mxu0 %v2443
  %v6560 = vpop.f32.mrf.mxu0
  %v6561 = vadd.f32 %v6518, %v6560
  %v6562 = vpop.f32.mrf.mxu0
  %v6563 = vadd.f32 %v6520, %v6562
  %v6564 = vpop.f32.mrf.mxu0
  %v6565 = vadd.f32 %v6522, %v6564
  %v6566 = vpop.f32.mrf.mxu0
  %v6567 = vadd.f32 %v6524, %v6566
  %6568 = vdwg.mxu0
  %6569 = vmatprep.subr.bf16.mxu0 %v5292
  %6570 = vmatpush1.bf16.msra.mxu0 %v5291
  %6571 = vmatprep.subr.bf16.mxu0 %v5280
  %6572 = vmatpush1.bf16.msra.mxu0 %v5279
  %6573 = vmatprep.subr.bf16.mxu0 %v5268
  %6574 = vmatpush1.bf16.msra.mxu0 %v5267
  %6575 = vmatprep.subr.bf16.mxu0 %v5256
  %6576 = vmatpush1.bf16.msra.mxu0 %v5255
  %6577 = vmatprep.subr.bf16.mxu0 %v5244
  %6578 = vmatpush1.bf16.msra.mxu0 %v5243
  %6579 = vmatprep.subr.bf16.mxu0 %v5232
  %6580 = vmatpush1.bf16.msra.mxu0 %v5231
  %6581 = vmatprep.subr.bf16.mxu0 %v5220
  %6582 = vmatpush1.bf16.msra.mxu0 %v5219
  %6583 = vmatprep.subr.bf16.mxu0 %v5208
  %6584 = vmatpush1.bf16.msra.mxu0 %v5207
  %6585 = vmatprep.subr.bf16.mxu0 %v5388
  %6586 = vmatpush2.bf16.msra.mxu0 %v5387
  %6587 = vmatprep.subr.bf16.mxu0 %v5376
  %6588 = vmatpush2.bf16.msra.mxu0 %v5375
  %6589 = vmatprep.subr.bf16.mxu0 %v5364
  %6590 = vmatpush2.bf16.msra.mxu0 %v5363
  %6591 = vmatprep.subr.bf16.mxu0 %v5352
  %6592 = vmatpush2.bf16.msra.mxu0 %v5351
  %6593 = vmatprep.subr.bf16.mxu0 %v5340
  %6594 = vmatpush2.bf16.msra.mxu0 %v5339
  %6595 = vmatprep.subr.bf16.mxu0 %v5328
  %6596 = vmatpush2.bf16.msra.mxu0 %v5327
  %6597 = vmatprep.subr.bf16.mxu0 %v5316
  %6598 = vmatpush2.bf16.msra.mxu0 %v5315
  %6599 = vmatprep.subr.bf16.mxu0 %v5304
  %6600 = vmatpush2.bf16.msra.mxu0 %v5303
  %6601 = vmatprep.mubr.bf16.mxu0 %v2446
  %6602 = vmatmul.mubr.bf16.gmra.mxu0 %v2445
  %v6603 = vpop.f32.mrf.mxu0
  %v6604 = vadd.f32 %v6561, %v6603
  %v6605 = vpop.f32.mrf.mxu0
  %v6606 = vadd.f32 %v6563, %v6605
  %v6607 = vpop.f32.mrf.mxu0
  %v6608 = vadd.f32 %v6565, %v6607
  %v6609 = vpop.f32.mrf.mxu0
  %v6610 = vadd.f32 %v6567, %v6609
  %6611 = vdwg.mxu0
  %6612 = vmatprep.subr.bf16.mxu0 %v4910
  %6613 = vmatpush1.bf16.msra.mxu0 %v4909
  %6614 = vmatprep.subr.bf16.mxu0 %v4898
  %6615 = vmatpush1.bf16.msra.mxu0 %v4897
  %6616 = vmatprep.subr.bf16.mxu0 %v4886
  %6617 = vmatpush1.bf16.msra.mxu0 %v4885
  %6618 = vmatprep.subr.bf16.mxu0 %v4874
  %6619 = vmatpush1.bf16.msra.mxu0 %v4873
  %6620 = vmatprep.subr.bf16.mxu0 %v4862
  %6621 = vmatpush1.bf16.msra.mxu0 %v4861
  %6622 = vmatprep.subr.bf16.mxu0 %v4850
  %6623 = vmatpush1.bf16.msra.mxu0 %v4849
  %6624 = vmatprep.subr.bf16.mxu0 %v4838
  %6625 = vmatpush1.bf16.msra.mxu0 %v4837
  %6626 = vmatprep.subr.bf16.mxu0 %v4826
  %6627 = vmatpush1.bf16.msra.mxu0 %v4825
  %6628 = vmatprep.subr.bf16.mxu0 %v5006
  %6629 = vmatpush2.bf16.msra.mxu0 %v5005
  %6630 = vmatprep.subr.bf16.mxu0 %v4994
  %6631 = vmatpush2.bf16.msra.mxu0 %v4993
  %6632 = vmatprep.subr.bf16.mxu0 %v4982
  %6633 = vmatpush2.bf16.msra.mxu0 %v4981
  %6634 = vmatprep.subr.bf16.mxu0 %v4970
  %6635 = vmatpush2.bf16.msra.mxu0 %v4969
  %6636 = vmatprep.subr.bf16.mxu0 %v4958
  %6637 = vmatpush2.bf16.msra.mxu0 %v4957
  %6638 = vmatprep.subr.bf16.mxu0 %v4946
  %6639 = vmatpush2.bf16.msra.mxu0 %v4945
  %6640 = vmatprep.subr.bf16.mxu0 %v4934
  %6641 = vmatpush2.bf16.msra.mxu0 %v4933
  %6642 = vmatprep.subr.bf16.mxu0 %v4922
  %6643 = vmatpush2.bf16.msra.mxu0 %v4921
  %6644 = vmatprep.mubr.bf16.mxu0 %v2442
  %6645 = vmatmul.mubr.bf16.gmra.mxu0 %v2441
  %v6646 = vpop.f32.mrf.mxu0
  %v6647 = vadd.f32 %v3070, %v6646
  %v6648 = vpop.f32.mrf.mxu0
  %v6649 = vadd.f32 %v3074, %v6648
  %v6650 = vpop.f32.mrf.mxu0
  %v6651 = vadd.f32 %v3070, %v6650
  %v6652 = vpop.f32.mrf.mxu0
  %v6653 = vadd.f32 %v3074, %v6652
  %6654 = vdwg.mxu0
  %6655 = vmatprep.subr.bf16.mxu0 %v5102
  %6656 = vmatpush1.bf16.msra.mxu0 %v5101
  %6657 = vmatprep.subr.bf16.mxu0 %v5090
  %6658 = vmatpush1.bf16.msra.mxu0 %v5089
  %6659 = vmatprep.subr.bf16.mxu0 %v5078
  %6660 = vmatpush1.bf16.msra.mxu0 %v5077
  %6661 = vmatprep.subr.bf16.mxu0 %v5066
  %6662 = vmatpush1.bf16.msra.mxu0 %v5065
  %6663 = vmatprep.subr.bf16.mxu0 %v5054
  %6664 = vmatpush1.bf16.msra.mxu0 %v5053
  %6665 = vmatprep.subr.bf16.mxu0 %v5042
  %6666 = vmatpush1.bf16.msra.mxu0 %v5041
  %6667 = vmatprep.subr.bf16.mxu0 %v5030
  %6668 = vmatpush1.bf16.msra.mxu0 %v5029
  %6669 = vmatprep.subr.bf16.mxu0 %v5018
  %6670 = vmatpush1.bf16.msra.mxu0 %v5017
  %6671 = vmatprep.subr.bf16.mxu0 %v5198
  %6672 = vmatpush2.bf16.msra.mxu0 %v5197
  %6673 = vmatprep.subr.bf16.mxu0 %v5186
  %6674 = vmatpush2.bf16.msra.mxu0 %v5185
  %6675 = vmatprep.subr.bf16.mxu0 %v5174
  %6676 = vmatpush2.bf16.msra.mxu0 %v5173
  %6677 = vmatprep.subr.bf16.mxu0 %v5162
  %6678 = vmatpush2.bf16.msra.mxu0 %v5161
  %6679 = vmatprep.subr.bf16.mxu0 %v5150
  %6680 = vmatpush2.bf16.msra.mxu0 %v5149
  %6681 = vmatprep.subr.bf16.mxu0 %v5138
  %6682 = vmatpush2.bf16.msra.mxu0 %v5137
  %6683 = vmatprep.subr.bf16.mxu0 %v5126
  %6684 = vmatpush2.bf16.msra.mxu0 %v5125
  %6685 = vmatprep.subr.bf16.mxu0 %v5114
  %6686 = vmatpush2.bf16.msra.mxu0 %v5113
  %6687 = vmatprep.mubr.bf16.mxu0 %v2444
  %6688 = vmatmul.mubr.bf16.gmra.mxu0 %v2443
  %v6689 = vpop.f32.mrf.mxu0
  %v6690 = vadd.f32 %v6647, %v6689
  %v6691 = vpop.f32.mrf.mxu0
  %v6692 = vadd.f32 %v6649, %v6691
  %v6693 = vpop.f32.mrf.mxu0
  %v6694 = vadd.f32 %v6651, %v6693
  %v6695 = vpop.f32.mrf.mxu0
  %v6696 = vadd.f32 %v6653, %v6695
  %6697 = vdwg.mxu0
  %6698 = vmatprep.subr.bf16.mxu0 %v5294
  %6699 = vmatpush1.bf16.msra.mxu0 %v5293
  %6700 = vmatprep.subr.bf16.mxu0 %v5282
  %6701 = vmatpush1.bf16.msra.mxu0 %v5281
  %6702 = vmatprep.subr.bf16.mxu0 %v5270
  %6703 = vmatpush1.bf16.msra.mxu0 %v5269
  %6704 = vmatprep.subr.bf16.mxu0 %v5258
  %6705 = vmatpush1.bf16.msra.mxu0 %v5257
  %6706 = vmatprep.subr.bf16.mxu0 %v5246
  %6707 = vmatpush1.bf16.msra.mxu0 %v5245
  %6708 = vmatprep.subr.bf16.mxu0 %v5234
  %6709 = vmatpush1.bf16.msra.mxu0 %v5233
  %6710 = vmatprep.subr.bf16.mxu0 %v5222
  %6711 = vmatpush1.bf16.msra.mxu0 %v5221
  %6712 = vmatprep.subr.bf16.mxu0 %v5210
  %6713 = vmatpush1.bf16.msra.mxu0 %v5209
  %6714 = vmatprep.subr.bf16.mxu0 %v5390
  %6715 = vmatpush2.bf16.msra.mxu0 %v5389
  %6716 = vmatprep.subr.bf16.mxu0 %v5378
  %6717 = vmatpush2.bf16.msra.mxu0 %v5377
  %6718 = vmatprep.subr.bf16.mxu0 %v5366
  %6719 = vmatpush2.bf16.msra.mxu0 %v5365
  %6720 = vmatprep.subr.bf16.mxu0 %v5354
  %6721 = vmatpush2.bf16.msra.mxu0 %v5353
  %6722 = vmatprep.subr.bf16.mxu0 %v5342
  %6723 = vmatpush2.bf16.msra.mxu0 %v5341
  %6724 = vmatprep.subr.bf16.mxu0 %v5330
  %6725 = vmatpush2.bf16.msra.mxu0 %v5329
  %6726 = vmatprep.subr.bf16.mxu0 %v5318
  %6727 = vmatpush2.bf16.msra.mxu0 %v5317
  %6728 = vmatprep.subr.bf16.mxu0 %v5306
  %6729 = vmatpush2.bf16.msra.mxu0 %v5305
  %6730 = vmatprep.mubr.bf16.mxu0 %v2446
  %6731 = vmatmul.mubr.bf16.gmra.mxu0 %v2445
  %v6732 = vpop.f32.mrf.mxu0
  %v6733 = vadd.f32 %v6690, %v6732
  %v6734 = vpop.f32.mrf.mxu0
  %v6735 = vadd.f32 %v6692, %v6734
  %v6736 = vpop.f32.mrf.mxu0
  %v6737 = vadd.f32 %v6694, %v6736
  %v6738 = vpop.f32.mrf.mxu0
  %v6739 = vadd.f32 %v6696, %v6738
  %6740 = vdwg.mxu0
  %6741 = vmatprep.subr.mxu0 0.0
  %6742 = vmatpush1.xpose.msra.mxu0 0.0
  %6743 = vmatprep.subr.mxu0 0.0
  %6744 = vmatpush1.xpose.msra.mxu0 0.0
  %6745 = vmatprep.subr.mxu0 0.0
  %6746 = vmatpush1.xpose.msra.mxu0 0.0
  %6747 = vmatprep.subr.mxu0 0.0
  %6748 = vmatpush1.xpose.msra.mxu0 0.0
  %6749 = vmatprep.subr.mxu0 0.0
  %6750 = vmatpush1.xpose.msra.mxu0 0.0
  %6751 = vmatprep.subr.mxu0 0.0
  %6752 = vmatpush1.xpose.msra.mxu0 0.0
  %6753 = vmatprep.subr.mxu0 0.0
  %6754 = vmatpush1.xpose.msra.mxu0 0.0
  %6755 = vmatprep.subr.mxu0 0.0
  %6756 = vmatpush1.xpose.msra.mxu0 0.0
  %6757 = vmatprep.subr.mxu0 0.0
  %6758 = vmatpush1.xpose.msra.mxu0 0.0
  %6759 = vmatprep.subr.mxu0 0.0
  %6760 = vmatpush1.xpose.msra.mxu0 0.0
  %6761 = vmatprep.subr.mxu0 0.0
  %6762 = vmatpush1.xpose.msra.mxu0 0.0
  %6763 = vmatprep.subr.mxu0 0.0
  %6764 = vmatpush1.xpose.msra.mxu0 0.0
  %6765 = vmatprep.subr.mxu0 0.0
  %6766 = vmatpush1.xpose.msra.mxu0 0.0
  %6767 = vmatprep.subr.mxu0 0.0
  %6768 = vmatpush1.xpose.msra.mxu0 0.0
  %6769 = vmatprep.subr.mxu0 %v6481
  %6770 = vmatpush1.xpose.msra.mxu0 %v6479
  %6771 = vmatprep.subr.mxu0 %v6477
  %6772 = vmatpush1.xpose.msra.mxu0 %v6475
  %6773 = vmatprep.subr.mxu0 0.0
  %6774 = vmatpush2.xpose.msra.mxu0 0.0
  %6775 = vmatprep.subr.mxu0 0.0
  %6776 = vmatpush2.xpose.msra.mxu0 0.0
  %6777 = vmatprep.subr.mxu0 0.0
  %6778 = vmatpush2.xpose.msra.mxu0 0.0
  %6779 = vmatprep.subr.mxu0 0.0
  %6780 = vmatpush2.xpose.msra.mxu0 0.0
  %6781 = vmatprep.subr.mxu0 0.0
  %6782 = vmatpush2.xpose.msra.mxu0 0.0
  %6783 = vmatprep.subr.mxu0 0.0
  %6784 = vmatpush2.xpose.msra.mxu0 0.0
  %6785 = vmatprep.subr.mxu0 0.0
  %6786 = vmatpush2.xpose.msra.mxu0 0.0
  %6787 = vmatprep.subr.mxu0 0.0
  %6788 = vmatpush2.xpose.msra.mxu0 0.0
  %6789 = vmatprep.subr.mxu0 0.0
  %6790 = vmatpush2.xpose.msra.mxu0 0.0
  %6791 = vmatprep.subr.mxu0 0.0
  %6792 = vmatpush2.xpose.msra.mxu0 0.0
  %6793 = vmatprep.subr.mxu0 0.0
  %6794 = vmatpush2.xpose.msra.mxu0 0.0
  %6795 = vmatprep.subr.mxu0 0.0
  %6796 = vmatpush2.xpose.msra.mxu0 0.0
  %6797 = vmatprep.subr.mxu0 0.0
  %6798 = vmatpush2.xpose.msra.mxu0 0.0
  %6799 = vmatprep.subr.mxu0 0.0
  %6800 = vmatpush2.xpose.msra.mxu0 0.0
  %6801 = vmatprep.subr.mxu0 0.0
  %6802 = vmatpush2.xpose.msra.mxu0 0.0
  %6803 = vmatprep.subr.mxu0 0.0
  %6804 = vmatpush2.xpose.msra.mxu0 0.0
  %6805 = vmatprep.mubr.f32.mxu0 %v6090
  %6806 = vmatmul.mubr.f32.gmra.mxu0 %v6088
  %v6807 = vpop.f32.mrf.mxu0
  %v6808 = vadd.f32 0.0, %v6807
  %v6809 = vpop.f32.mrf.mxu0
  %6810 = vmatprep.mubr.f32.mxu0 %v6094
  %6811 = vmatmul.mubr.f32.gmra.mxu0 %v6092
  %v6812 = vpop.f32.mrf.mxu0
  %v6813 = vadd.f32 0.0, %v6812
  %v6814 = vpop.f32.mrf.mxu0
  %6815 = vdwg.mxu0
  %6816 = vmatprep.subr.mxu0 0.0
  %6817 = vmatpush1.xpose.msra.mxu0 0.0
  %6818 = vmatprep.subr.mxu0 0.0
  %6819 = vmatpush1.xpose.msra.mxu0 0.0
  %6820 = vmatprep.subr.mxu0 0.0
  %6821 = vmatpush1.xpose.msra.mxu0 0.0
  %6822 = vmatprep.subr.mxu0 0.0
  %6823 = vmatpush1.xpose.msra.mxu0 0.0
  %6824 = vmatprep.subr.mxu0 0.0
  %6825 = vmatpush1.xpose.msra.mxu0 0.0
  %6826 = vmatprep.subr.mxu0 0.0
  %6827 = vmatpush1.xpose.msra.mxu0 0.0
  %6828 = vmatprep.subr.mxu0 0.0
  %6829 = vmatpush1.xpose.msra.mxu0 0.0
  %6830 = vmatprep.subr.mxu0 0.0
  %6831 = vmatpush1.xpose.msra.mxu0 0.0
  %6832 = vmatprep.subr.mxu0 0.0
  %6833 = vmatpush1.xpose.msra.mxu0 0.0
  %6834 = vmatprep.subr.mxu0 0.0
  %6835 = vmatpush1.xpose.msra.mxu0 0.0
  %6836 = vmatprep.subr.mxu0 0.0
  %6837 = vmatpush1.xpose.msra.mxu0 0.0
  %6838 = vmatprep.subr.mxu0 0.0
  %6839 = vmatpush1.xpose.msra.mxu0 0.0
  %6840 = vmatprep.subr.mxu0 0.0
  %6841 = vmatpush1.xpose.msra.mxu0 0.0
  %6842 = vmatprep.subr.mxu0 0.0
  %6843 = vmatpush1.xpose.msra.mxu0 0.0
  %6844 = vmatprep.subr.mxu0 %v6610
  %6845 = vmatpush1.xpose.msra.mxu0 %v6608
  %6846 = vmatprep.subr.mxu0 %v6606
  %6847 = vmatpush1.xpose.msra.mxu0 %v6604
  %6848 = vmatprep.subr.mxu0 0.0
  %6849 = vmatpush2.xpose.msra.mxu0 0.0
  %6850 = vmatprep.subr.mxu0 0.0
  %6851 = vmatpush2.xpose.msra.mxu0 0.0
  %6852 = vmatprep.subr.mxu0 0.0
  %6853 = vmatpush2.xpose.msra.mxu0 0.0
  %6854 = vmatprep.subr.mxu0 0.0
  %6855 = vmatpush2.xpose.msra.mxu0 0.0
  %6856 = vmatprep.subr.mxu0 0.0
  %6857 = vmatpush2.xpose.msra.mxu0 0.0
  %6858 = vmatprep.subr.mxu0 0.0
  %6859 = vmatpush2.xpose.msra.mxu0 0.0
  %6860 = vmatprep.subr.mxu0 0.0
  %6861 = vmatpush2.xpose.msra.mxu0 0.0
  %6862 = vmatprep.subr.mxu0 0.0
  %6863 = vmatpush2.xpose.msra.mxu0 0.0
  %6864 = vmatprep.subr.mxu0 0.0
  %6865 = vmatpush2.xpose.msra.mxu0 0.0
  %6866 = vmatprep.subr.mxu0 0.0
  %6867 = vmatpush2.xpose.msra.mxu0 0.0
  %6868 = vmatprep.subr.mxu0 0.0
  %6869 = vmatpush2.xpose.msra.mxu0 0.0
  %6870 = vmatprep.subr.mxu0 0.0
  %6871 = vmatpush2.xpose.msra.mxu0 0.0
  %6872 = vmatprep.subr.mxu0 0.0
  %6873 = vmatpush2.xpose.msra.mxu0 0.0
  %6874 = vmatprep.subr.mxu0 0.0
  %6875 = vmatpush2.xpose.msra.mxu0 0.0
  %6876 = vmatprep.subr.mxu0 0.0
  %6877 = vmatpush2.xpose.msra.mxu0 0.0
  %6878 = vmatprep.subr.mxu0 0.0
  %6879 = vmatpush2.xpose.msra.mxu0 0.0
  %6880 = vmatprep.mubr.f32.mxu0 %v6219
  %6881 = vmatmul.mubr.f32.gmra.mxu0 %v6217
  %v6882 = vpop.f32.mrf.mxu0
  %v6883 = vadd.f32 %v6808, %v6882
  %v6884 = vpop.f32.mrf.mxu0
  %6885 = vmatprep.mubr.f32.mxu0 %v6223
  %6886 = vmatmul.mubr.f32.gmra.mxu0 %v6221
  %v6887 = vpop.f32.mrf.mxu0
  %v6888 = vadd.f32 %v6813, %v6887
  %v6889 = vpop.f32.mrf.mxu0
  %6890 = vdwg.mxu0
  %6891 = vmatprep.subr.mxu0 0.0
  %6892 = vmatpush1.xpose.msra.mxu0 0.0
  %6893 = vmatprep.subr.mxu0 0.0
  %6894 = vmatpush1.xpose.msra.mxu0 0.0
  %6895 = vmatprep.subr.mxu0 0.0
  %6896 = vmatpush1.xpose.msra.mxu0 0.0
  %6897 = vmatprep.subr.mxu0 0.0
  %6898 = vmatpush1.xpose.msra.mxu0 0.0
  %6899 = vmatprep.subr.mxu0 0.0
  %6900 = vmatpush1.xpose.msra.mxu0 0.0
  %6901 = vmatprep.subr.mxu0 0.0
  %6902 = vmatpush1.xpose.msra.mxu0 0.0
  %6903 = vmatprep.subr.mxu0 0.0
  %6904 = vmatpush1.xpose.msra.mxu0 0.0
  %6905 = vmatprep.subr.mxu0 0.0
  %6906 = vmatpush1.xpose.msra.mxu0 0.0
  %6907 = vmatprep.subr.mxu0 0.0
  %6908 = vmatpush1.xpose.msra.mxu0 0.0
  %6909 = vmatprep.subr.mxu0 0.0
  %6910 = vmatpush1.xpose.msra.mxu0 0.0
  %6911 = vmatprep.subr.mxu0 0.0
  %6912 = vmatpush1.xpose.msra.mxu0 0.0
  %6913 = vmatprep.subr.mxu0 0.0
  %6914 = vmatpush1.xpose.msra.mxu0 0.0
  %6915 = vmatprep.subr.mxu0 0.0
  %6916 = vmatpush1.xpose.msra.mxu0 0.0
  %6917 = vmatprep.subr.mxu0 0.0
  %6918 = vmatpush1.xpose.msra.mxu0 0.0
  %6919 = vmatprep.subr.mxu0 %v6739
  %6920 = vmatpush1.xpose.msra.mxu0 %v6737
  %6921 = vmatprep.subr.mxu0 %v6735
  %6922 = vmatpush1.xpose.msra.mxu0 %v6733
  %6923 = vmatprep.subr.mxu0 0.0
  %6924 = vmatpush2.xpose.msra.mxu0 0.0
  %6925 = vmatprep.subr.mxu0 0.0
  %6926 = vmatpush2.xpose.msra.mxu0 0.0
  %6927 = vmatprep.subr.mxu0 0.0
  %6928 = vmatpush2.xpose.msra.mxu0 0.0
  %6929 = vmatprep.subr.mxu0 0.0
  %6930 = vmatpush2.xpose.msra.mxu0 0.0
  %6931 = vmatprep.subr.mxu0 0.0
  %6932 = vmatpush2.xpose.msra.mxu0 0.0
  %6933 = vmatprep.subr.mxu0 0.0
  %6934 = vmatpush2.xpose.msra.mxu0 0.0
  %6935 = vmatprep.subr.mxu0 0.0
  %6936 = vmatpush2.xpose.msra.mxu0 0.0
  %6937 = vmatprep.subr.mxu0 0.0
  %6938 = vmatpush2.xpose.msra.mxu0 0.0
  %6939 = vmatprep.subr.mxu0 0.0
  %6940 = vmatpush2.xpose.msra.mxu0 0.0
  %6941 = vmatprep.subr.mxu0 0.0
  %6942 = vmatpush2.xpose.msra.mxu0 0.0
  %6943 = vmatprep.subr.mxu0 0.0
  %6944 = vmatpush2.xpose.msra.mxu0 0.0
  %6945 = vmatprep.subr.mxu0 0.0
  %6946 = vmatpush2.xpose.msra.mxu0 0.0
  %6947 = vmatprep.subr.mxu0 0.0
  %6948 = vmatpush2.xpose.msra.mxu0 0.0
  %6949 = vmatprep.subr.mxu0 0.0
  %6950 = vmatpush2.xpose.msra.mxu0 0.0
  %6951 = vmatprep.subr.mxu0 0.0
  %6952 = vmatpush2.xpose.msra.mxu0 0.0
  %6953 = vmatprep.subr.mxu0 0.0
  %6954 = vmatpush2.xpose.msra.mxu0 0.0
  %6955 = vmatprep.mubr.f32.mxu0 %v6348
  %6956 = vmatmul.mubr.f32.gmra.mxu0 %v6346
  %v6957 = vpop.f32.mrf.mxu0
  %v6958 = vadd.f32 %v6883, %v6957
  %v6959 = vpop.f32.mrf.mxu0
  %6960 = vmatprep.mubr.f32.mxu0 %v6352
  %6961 = vmatmul.mubr.f32.gmra.mxu0 %v6350
  %v6962 = vpop.f32.mrf.mxu0
  %v6963 = vadd.f32 %v6888, %v6962
  %v6964 = vpop.f32.mrf.mxu0
  %6965 = vdwg.mxu0
  %v6966 = vxor.u32 %v6958, 2147483648
  %v6967 = vxor.u32 %v6963, 2147483648
  %v6968 = vmul.f32 %v6966, 1.442695
  %v6969 = vpow.pop %v6968
  %v6970 = vmul.f32 %v6967, 1.442695
  %v6971 = vpow.pop %v6970
  %v6972 = vadd.f32 %v6969, 1.0
  %v6973 = vadd.f32 %v6971, 1.0
  %v6974 = vrcp.pop %v6972
  %v6975 = vmul.f32 1.0, %v6974
  %v6976 = vrcp.pop %v6973
  %v6977 = vmul.f32 1.0, %v6976
  %v6978 = vsel %vm2167, %v6975, 0.0
  %v6979 = vsel %vm2167, %v6977, 0.0
  %v6980 = vadd.f32 %v6978, %v6979
  %v6981 = vrot.slane %v6980, 4
  %v6982 = vadd.f32 %v6980, %v6981
  %v6983 = vrot.slane %v6982, 2
  %v6984 = vadd.f32 %v6982, %v6983
  %v6985 = vrot.slane %v6984, 1
  %v6986 = vadd.f32 %v6984, %v6985
  %vm6987 = vcmp.gt.f32.partialorder %v6986, 0.0
  %v6988 = vrsqrt.pop %v6986
  %v6989 = vsel %vm6987, %v6988, 0.0
  %6990 = vxpose.xlu0.b32.start [1/16] %v6975, 128
  %6991 = vxpose.xlu0.b32.cont [2/16] %v6977, 128
  %6992 = vxpose.xlu0.b32.cont [3/16] 0.0, 128
  %6993 = vxpose.xlu0.b32.cont [4/16] 0.0, 128
  %6994 = vxpose.xlu0.b32.cont [5/16] 0.0, 128
  %6995 = vxpose.xlu0.b32.cont [6/16] 0.0, 128
  %6996 = vxpose.xlu0.b32.cont [7/16] 0.0, 128
  %6997 = vxpose.xlu0.b32.cont [8/16] 0.0, 128
  %6998 = vxpose.xlu0.b32.cont [9/16] 0.0, 128
  %6999 = vxpose.xlu0.b32.cont [10/16] 0.0, 128
  %7000 = vxpose.xlu0.b32.cont [11/16] 0.0, 128
  %7001 = vxpose.xlu0.b32.cont [12/16] 0.0, 128
  %7002 = vxpose.xlu0.b32.cont [13/16] 0.0, 128
  %7003 = vxpose.xlu0.b32.cont [14/16] 0.0, 128
  %7004 = vxpose.xlu0.b32.cont [15/16] 0.0, 128
  %7005 = vxpose.xlu0.b32.end [16/16] 0.0, 128
  %v7006 = vpop.trf.xlu0
  %v7007 = vpop.trf.xlu0
  %v7008 = vpop.trf.xlu0
  %v7009 = vpop.trf.xlu0
  %v7010 = vpop.trf.xlu0
  %v7011 = vpop.trf.xlu0
  %v7012 = vpop.trf.xlu0
  %v7013 = vpop.trf.xlu0
  %v7014 = vpop.trf.xlu0
  %v7015 = vpop.trf.xlu0
  %v7016 = vpop.trf.xlu0
  %v7017 = vpop.trf.xlu0
  %v7018 = vpop.trf.xlu0
  %v7019 = vpop.trf.xlu0
  %v7020 = vpop.trf.xlu0
  %v7021 = vpop.trf.xlu0
  %v7022 = vmul.f32 %v7006, %v6989
  %v7023 = vmul.f32 %v7007, %v6989
  %7024 = vxpose.xlu0.b32.start [1/16] %v6989, 128
  %7025 = vxpose.xlu0.b32.cont [2/16] 0.0, 128
  %7026 = vxpose.xlu0.b32.cont [3/16] 0.0, 128
  %7027 = vxpose.xlu0.b32.cont [4/16] 0.0, 128
  %7028 = vxpose.xlu0.b32.cont [5/16] 0.0, 128
  %7029 = vxpose.xlu0.b32.cont [6/16] 0.0, 128
  %7030 = vxpose.xlu0.b32.cont [7/16] 0.0, 128
  %7031 = vxpose.xlu0.b32.cont [8/16] 0.0, 128
  %7032 = vxpose.xlu0.b32.cont [9/16] 0.0, 128
  %7033 = vxpose.xlu0.b32.cont [10/16] 0.0, 128
  %7034 = vxpose.xlu0.b32.cont [11/16] 0.0, 128
  %7035 = vxpose.xlu0.b32.cont [12/16] 0.0, 128
  %7036 = vxpose.xlu0.b32.cont [13/16] 0.0, 128
  %7037 = vxpose.xlu0.b32.cont [14/16] 0.0, 128
  %7038 = vxpose.xlu0.b32.cont [15/16] 0.0, 128
  %7039 = vxpose.xlu0.b32.end [16/16] 0.0, 128
  %v7040 = vpop.trf.xlu0
  %v7041 = vpop.trf.xlu0
  %v7042 = vpop.trf.xlu0
  %v7043 = vpop.trf.xlu0
  %v7044 = vpop.trf.xlu0
  %v7045 = vpop.trf.xlu0
  %v7046 = vpop.trf.xlu0
  %v7047 = vpop.trf.xlu0
  %v7048 = vpop.trf.xlu0
  %v7049 = vpop.trf.xlu0
  %v7050 = vpop.trf.xlu0
  %v7051 = vpop.trf.xlu0
  %v7052 = vpop.trf.xlu0
  %v7053 = vpop.trf.xlu0
  %v7054 = vpop.trf.xlu0
  %v7055 = vpop.trf.xlu0
  %7057 = vset.pattern.permute.xlu0 0
  %7058 = vperm.xlu0 %7057, %v7040
  %v7059 = vpop.permute.xlu0 %7058
  %7062 = vset.pattern.permute.xlu0 0
  %7063 = vperm.xlu0 %7062, %v7041
  %v7064 = vpop.permute.xlu0 %7063
  %v7066 = vmul.f32 %v7022, %v7059
  %v7067 = vmul.f32 %v7023, %v7064
  %v7068 = vld [vmem:[%s5] sm:$0xff]
  %v7069 = vld [vmem:[%s5 + $0x8] sm:$0xff]
  %v7070 = vld [vmem:[%s5 + $0x10] sm:$0xff]
  %v7071 = vld [vmem:[%s5 + $0x18] sm:$0xff]
  %v7072 = vld [vmem:[%s5 + $0x20] sm:$0xff]
  %v7073 = vld [vmem:[%s5 + $0x28] sm:$0xff]
  %v7074 = vld [vmem:[%s5 + $0x30] sm:$0xff]
  %v7075 = vld [vmem:[%s5 + $0x38] sm:$0xff]
  %v7076 = vld [vmem:[%s5 + $0x40] sm:$0xff]
  %v7077 = vld [vmem:[%s5 + $0x48] sm:$0xff]
  %v7078 = vld [vmem:[%s5 + $0x50] sm:$0xff]
  %v7079 = vld [vmem:[%s5 + $0x58] sm:$0xff]
  %v7080 = vld [vmem:[%s5 + $0x60] sm:$0xff]
  %v7081 = vld [vmem:[%s5 + $0x68] sm:$0xff]
  %v7082 = vld [vmem:[%s5 + $0x70] sm:$0xff]
  %v7083 = vld [vmem:[%s5 + $0x78] sm:$0xff]
  %v7084 = vld [vmem:[%s5 + $0x80] sm:$0xff]
  %v7085 = vld [vmem:[%s5 + $0x88] sm:$0xff]
  %v7086 = vld [vmem:[%s5 + $0x90] sm:$0xff]
  %v7087 = vld [vmem:[%s5 + $0x98] sm:$0xff]
  %v7088 = vld [vmem:[%s5 + $0xa0] sm:$0xff]
  %v7089 = vld [vmem:[%s5 + $0xa8] sm:$0xff]
  %v7090 = vld [vmem:[%s5 + $0xb0] sm:$0xff]
  %v7091 = vld [vmem:[%s5 + $0xb8] sm:$0xff]
  %v7092 = vld [vmem:[%s5 + $0xc0] sm:$0xff]
  %v7093 = vld [vmem:[%s5 + $0xc8] sm:$0xff]
  %v7094 = vld [vmem:[%s5 + $0xd0] sm:$0xff]
  %v7095 = vld [vmem:[%s5 + $0xd8] sm:$0xff]
  %v7096 = vld [vmem:[%s5 + $0xe0] sm:$0xff]
  %v7097 = vld [vmem:[%s5 + $0xe8] sm:$0xff]
  %v7098 = vld [vmem:[%s5 + $0xf0] sm:$0xff]
  %v7099 = vld [vmem:[%s5 + $0xf8] sm:$0xff]
  %v7100 = vld [vmem:[%s5 + $0x100] sm:$0xff]
  %v7101 = vld [vmem:[%s5 + $0x108] sm:$0xff]
  %v7102 = vld [vmem:[%s5 + $0x110] sm:$0xff]
  %v7103 = vld [vmem:[%s5 + $0x118] sm:$0xff]
  %v7104 = vld [vmem:[%s5 + $0x120] sm:$0xff]
  %v7105 = vld [vmem:[%s5 + $0x128] sm:$0xff]
  %v7106 = vld [vmem:[%s5 + $0x130] sm:$0xff]
  %v7107 = vld [vmem:[%s5 + $0x138] sm:$0xff]
  %v7108 = vld [vmem:[%s5 + $0x140] sm:$0xff]
  %v7109 = vld [vmem:[%s5 + $0x148] sm:$0xff]
  %v7110 = vld [vmem:[%s5 + $0x150] sm:$0xff]
  %v7111 = vld [vmem:[%s5 + $0x158] sm:$0xff]
  %v7112 = vld [vmem:[%s5 + $0x160] sm:$0xff]
  %v7113 = vld [vmem:[%s5 + $0x168] sm:$0xff]
  %v7114 = vld [vmem:[%s5 + $0x170] sm:$0xff]
  %v7115 = vld [vmem:[%s5 + $0x178] sm:$0xff]
  %v7116 = vld [vmem:[%s5 + $0x180] sm:$0xff]
  %v7117 = vld [vmem:[%s5 + $0x188] sm:$0xff]
  %v7118 = vld [vmem:[%s5 + $0x190] sm:$0xff]
  %v7119 = vld [vmem:[%s5 + $0x198] sm:$0xff]
  %v7120 = vld [vmem:[%s5 + $0x1a0] sm:$0xff]
  %v7121 = vld [vmem:[%s5 + $0x1a8] sm:$0xff]
  %v7122 = vld [vmem:[%s5 + $0x1b0] sm:$0xff]
  %v7123 = vld [vmem:[%s5 + $0x1b8] sm:$0xff]
  %v7124 = vld [vmem:[%s5 + $0x1c0] sm:$0xff]
  %v7125 = vld [vmem:[%s5 + $0x1c8] sm:$0xff]
  %v7126 = vld [vmem:[%s5 + $0x1d0] sm:$0xff]
  %v7127 = vld [vmem:[%s5 + $0x1d8] sm:$0xff]
  %v7128 = vld [vmem:[%s5 + $0x1e0] sm:$0xff]
  %v7129 = vld [vmem:[%s5 + $0x1e8] sm:$0xff]
  %v7130 = vld [vmem:[%s5 + $0x1f0] sm:$0xff]
  %v7131 = vld [vmem:[%s5 + $0x1f8] sm:$0xff]
  %v7132 = vld [vmem:[%s5 + $0x200] sm:$0xff]
  %v7133 = vld [vmem:[%s5 + $0x208] sm:$0xff]
  %v7134 = vld [vmem:[%s5 + $0x210] sm:$0xff]
  %v7135 = vld [vmem:[%s5 + $0x218] sm:$0xff]
  %v7136 = vld [vmem:[%s5 + $0x220] sm:$0xff]
  %v7137 = vld [vmem:[%s5 + $0x228] sm:$0xff]
  %v7138 = vld [vmem:[%s5 + $0x230] sm:$0xff]
  %v7139 = vld [vmem:[%s5 + $0x238] sm:$0xff]
  %v7140 = vld [vmem:[%s5 + $0x240] sm:$0xff]
  %v7141 = vld [vmem:[%s5 + $0x248] sm:$0xff]
  %v7142 = vld [vmem:[%s5 + $0x250] sm:$0xff]
  %v7143 = vld [vmem:[%s5 + $0x258] sm:$0xff]
  %v7144 = vld [vmem:[%s5 + $0x260] sm:$0xff]
  %v7145 = vld [vmem:[%s5 + $0x268] sm:$0xff]
  %v7146 = vld [vmem:[%s5 + $0x270] sm:$0xff]
  %v7147 = vld [vmem:[%s5 + $0x278] sm:$0xff]
  %v7148 = vld [vmem:[%s5 + $0x280] sm:$0xff]
  %v7149 = vld [vmem:[%s5 + $0x288] sm:$0xff]
  %v7150 = vld [vmem:[%s5 + $0x290] sm:$0xff]
  %v7151 = vld [vmem:[%s5 + $0x298] sm:$0xff]
  %v7152 = vld [vmem:[%s5 + $0x2a0] sm:$0xff]
  %v7153 = vld [vmem:[%s5 + $0x2a8] sm:$0xff]
  %v7154 = vld [vmem:[%s5 + $0x2b0] sm:$0xff]
  %v7155 = vld [vmem:[%s5 + $0x2b8] sm:$0xff]
  %v7156 = vld [vmem:[%s5 + $0x2c0] sm:$0xff]
  %v7157 = vld [vmem:[%s5 + $0x2c8] sm:$0xff]
  %v7158 = vld [vmem:[%s5 + $0x2d0] sm:$0xff]
  %v7159 = vld [vmem:[%s5 + $0x2d8] sm:$0xff]
  %v7160 = vld [vmem:[%s5 + $0x2e0] sm:$0xff]
  %v7161 = vld [vmem:[%s5 + $0x2e8] sm:$0xff]
  %v7162 = vld [vmem:[%s5 + $0x2f0] sm:$0xff]
  %v7163 = vld [vmem:[%s5 + $0x2f8] sm:$0xff]
  %v7164 = vld [vmem:[%s5 + $0x300] sm:$0xff]
  %v7165 = vld [vmem:[%s5 + $0x308] sm:$0xff]
  %v7166 = vld [vmem:[%s5 + $0x310] sm:$0xff]
  %v7167 = vld [vmem:[%s5 + $0x318] sm:$0xff]
  %v7168 = vld [vmem:[%s5 + $0x320] sm:$0xff]
  %v7169 = vld [vmem:[%s5 + $0x328] sm:$0xff]
  %v7170 = vld [vmem:[%s5 + $0x330] sm:$0xff]
  %v7171 = vld [vmem:[%s5 + $0x338] sm:$0xff]
  %v7172 = vld [vmem:[%s5 + $0x340] sm:$0xff]
  %v7173 = vld [vmem:[%s5 + $0x348] sm:$0xff]
  %v7174 = vld [vmem:[%s5 + $0x350] sm:$0xff]
  %v7175 = vld [vmem:[%s5 + $0x358] sm:$0xff]
  %v7176 = vld [vmem:[%s5 + $0x360] sm:$0xff]
  %v7177 = vld [vmem:[%s5 + $0x368] sm:$0xff]
  %v7178 = vld [vmem:[%s5 + $0x370] sm:$0xff]
  %v7179 = vld [vmem:[%s5 + $0x378] sm:$0xff]
  %v7180 = vld [vmem:[%s5 + $0x380] sm:$0xff]
  %v7181 = vld [vmem:[%s5 + $0x388] sm:$0xff]
  %v7182 = vld [vmem:[%s5 + $0x390] sm:$0xff]
  %v7183 = vld [vmem:[%s5 + $0x398] sm:$0xff]
  %v7184 = vld [vmem:[%s5 + $0x3a0] sm:$0xff]
  %v7185 = vld [vmem:[%s5 + $0x3a8] sm:$0xff]
  %v7186 = vld [vmem:[%s5 + $0x3b0] sm:$0xff]
  %v7187 = vld [vmem:[%s5 + $0x3b8] sm:$0xff]
  %v7188 = vld [vmem:[%s5 + $0x3c0] sm:$0xff]
  %v7189 = vld [vmem:[%s5 + $0x3c8] sm:$0xff]
  %v7190 = vld [vmem:[%s5 + $0x3d0] sm:$0xff]
  %v7191 = vld [vmem:[%s5 + $0x3d8] sm:$0xff]
  %v7192 = vld [vmem:[%s5 + $0x3e0] sm:$0xff]
  %v7193 = vld [vmem:[%s5 + $0x3e8] sm:$0xff]
  %v7194 = vld [vmem:[%s5 + $0x3f0] sm:$0xff]
  %v7195 = vld [vmem:[%s5 + $0x3f8] sm:$0xff]
  %v7196 = vld [vmem:[%s5 + $0x400] sm:$0xff]
  %v7197 = vld [vmem:[%s5 + $0x408] sm:$0xff]
  %v7198 = vld [vmem:[%s5 + $0x410] sm:$0xff]
  %v7199 = vld [vmem:[%s5 + $0x418] sm:$0xff]
  %v7200 = vld [vmem:[%s5 + $0x420] sm:$0xff]
  %v7201 = vld [vmem:[%s5 + $0x428] sm:$0xff]
  %v7202 = vld [vmem:[%s5 + $0x430] sm:$0xff]
  %v7203 = vld [vmem:[%s5 + $0x438] sm:$0xff]
  %v7204 = vld [vmem:[%s5 + $0x440] sm:$0xff]
  %v7205 = vld [vmem:[%s5 + $0x448] sm:$0xff]
  %v7206 = vld [vmem:[%s5 + $0x450] sm:$0xff]
  %v7207 = vld [vmem:[%s5 + $0x458] sm:$0xff]
  %v7208 = vld [vmem:[%s5 + $0x460] sm:$0xff]
  %v7209 = vld [vmem:[%s5 + $0x468] sm:$0xff]
  %v7210 = vld [vmem:[%s5 + $0x470] sm:$0xff]
  %v7211 = vld [vmem:[%s5 + $0x478] sm:$0xff]
  %v7212 = vld [vmem:[%s5 + $0x480] sm:$0xff]
  %v7213 = vld [vmem:[%s5 + $0x488] sm:$0xff]
  %v7214 = vld [vmem:[%s5 + $0x490] sm:$0xff]
  %v7215 = vld [vmem:[%s5 + $0x498] sm:$0xff]
  %v7216 = vld [vmem:[%s5 + $0x4a0] sm:$0xff]
  %v7217 = vld [vmem:[%s5 + $0x4a8] sm:$0xff]
  %v7218 = vld [vmem:[%s5 + $0x4b0] sm:$0xff]
  %v7219 = vld [vmem:[%s5 + $0x4b8] sm:$0xff]
  %v7220 = vld [vmem:[%s5 + $0x4c0] sm:$0xff]
  %v7221 = vld [vmem:[%s5 + $0x4c8] sm:$0xff]
  %v7222 = vld [vmem:[%s5 + $0x4d0] sm:$0xff]
  %v7223 = vld [vmem:[%s5 + $0x4d8] sm:$0xff]
  %v7224 = vld [vmem:[%s5 + $0x4e0] sm:$0xff]
  %v7225 = vld [vmem:[%s5 + $0x4e8] sm:$0xff]
  %v7226 = vld [vmem:[%s5 + $0x4f0] sm:$0xff]
  %v7227 = vld [vmem:[%s5 + $0x4f8] sm:$0xff]
  %v7228 = vld [vmem:[%s5 + $0x500] sm:$0xff]
  %v7229 = vld [vmem:[%s5 + $0x508] sm:$0xff]
  %v7230 = vld [vmem:[%s5 + $0x510] sm:$0xff]
  %v7231 = vld [vmem:[%s5 + $0x518] sm:$0xff]
  %v7232 = vld [vmem:[%s5 + $0x520] sm:$0xff]
  %v7233 = vld [vmem:[%s5 + $0x528] sm:$0xff]
  %v7234 = vld [vmem:[%s5 + $0x530] sm:$0xff]
  %v7235 = vld [vmem:[%s5 + $0x538] sm:$0xff]
  %v7236 = vld [vmem:[%s5 + $0x540] sm:$0xff]
  %v7237 = vld [vmem:[%s5 + $0x548] sm:$0xff]
  %v7238 = vld [vmem:[%s5 + $0x550] sm:$0xff]
  %v7239 = vld [vmem:[%s5 + $0x558] sm:$0xff]
  %v7240 = vld [vmem:[%s5 + $0x560] sm:$0xff]
  %v7241 = vld [vmem:[%s5 + $0x568] sm:$0xff]
  %v7242 = vld [vmem:[%s5 + $0x570] sm:$0xff]
  %v7243 = vld [vmem:[%s5 + $0x578] sm:$0xff]
  %v7244 = vld [vmem:[%s5 + $0x580] sm:$0xff]
  %v7245 = vld [vmem:[%s5 + $0x588] sm:$0xff]
  %v7246 = vld [vmem:[%s5 + $0x590] sm:$0xff]
  %v7247 = vld [vmem:[%s5 + $0x598] sm:$0xff]
  %v7248 = vld [vmem:[%s5 + $0x5a0] sm:$0xff]
  %v7249 = vld [vmem:[%s5 + $0x5a8] sm:$0xff]
  %v7250 = vld [vmem:[%s5 + $0x5b0] sm:$0xff]
  %v7251 = vld [vmem:[%s5 + $0x5b8] sm:$0xff]
  %v7252 = vld [vmem:[%s5 + $0x5c0] sm:$0xff]
  %v7253 = vld [vmem:[%s5 + $0x5c8] sm:$0xff]
  %v7254 = vld [vmem:[%s5 + $0x5d0] sm:$0xff]
  %v7255 = vld [vmem:[%s5 + $0x5d8] sm:$0xff]
  %v7256 = vld [vmem:[%s5 + $0x5e0] sm:$0xff]
  %v7257 = vld [vmem:[%s5 + $0x5e8] sm:$0xff]
  %v7258 = vld [vmem:[%s5 + $0x5f0] sm:$0xff]
  %v7259 = vld [vmem:[%s5 + $0x5f8] sm:$0xff]
  %v7260 = vld [vmem:[%s5 + $0x600] sm:$0xff]
  %v7261 = vld [vmem:[%s5 + $0x608] sm:$0xff]
  %v7262 = vld [vmem:[%s5 + $0x610] sm:$0xff]
  %v7263 = vld [vmem:[%s5 + $0x618] sm:$0xff]
  %v7264 = vld [vmem:[%s5 + $0x620] sm:$0xff]
  %v7265 = vld [vmem:[%s5 + $0x628] sm:$0xff]
  %v7266 = vld [vmem:[%s5 + $0x630] sm:$0xff]
  %v7267 = vld [vmem:[%s5 + $0x638] sm:$0xff]
  %v7268 = vld [vmem:[%s5 + $0x640] sm:$0xff]
  %v7269 = vld [vmem:[%s5 + $0x648] sm:$0xff]
  %v7270 = vld [vmem:[%s5 + $0x650] sm:$0xff]
  %v7271 = vld [vmem:[%s5 + $0x658] sm:$0xff]
  %v7272 = vld [vmem:[%s5 + $0x660] sm:$0xff]
  %v7273 = vld [vmem:[%s5 + $0x668] sm:$0xff]
  %v7274 = vld [vmem:[%s5 + $0x670] sm:$0xff]
  %v7275 = vld [vmem:[%s5 + $0x678] sm:$0xff]
  %v7276 = vld [vmem:[%s5 + $0x680] sm:$0xff]
  %v7277 = vld [vmem:[%s5 + $0x688] sm:$0xff]
  %v7278 = vld [vmem:[%s5 + $0x690] sm:$0xff]
  %v7279 = vld [vmem:[%s5 + $0x698] sm:$0xff]
  %v7280 = vld [vmem:[%s5 + $0x6a0] sm:$0xff]
  %v7281 = vld [vmem:[%s5 + $0x6a8] sm:$0xff]
  %v7282 = vld [vmem:[%s5 + $0x6b0] sm:$0xff]
  %v7283 = vld [vmem:[%s5 + $0x6b8] sm:$0xff]
  %v7284 = vld [vmem:[%s5 + $0x6c0] sm:$0xff]
  %v7285 = vld [vmem:[%s5 + $0x6c8] sm:$0xff]
  %v7286 = vld [vmem:[%s5 + $0x6d0] sm:$0xff]
  %v7287 = vld [vmem:[%s5 + $0x6d8] sm:$0xff]
  %v7288 = vld [vmem:[%s5 + $0x6e0] sm:$0xff]
  %v7289 = vld [vmem:[%s5 + $0x6e8] sm:$0xff]
  %v7290 = vld [vmem:[%s5 + $0x6f0] sm:$0xff]
  %v7291 = vld [vmem:[%s5 + $0x6f8] sm:$0xff]
  %v7292 = vld [vmem:[%s5 + $0x700] sm:$0xff]
  %v7293 = vld [vmem:[%s5 + $0x708] sm:$0xff]
  %v7294 = vld [vmem:[%s5 + $0x710] sm:$0xff]
  %v7295 = vld [vmem:[%s5 + $0x718] sm:$0xff]
  %v7296 = vld [vmem:[%s5 + $0x720] sm:$0xff]
  %v7297 = vld [vmem:[%s5 + $0x728] sm:$0xff]
  %v7298 = vld [vmem:[%s5 + $0x730] sm:$0xff]
  %v7299 = vld [vmem:[%s5 + $0x738] sm:$0xff]
  %v7300 = vld [vmem:[%s5 + $0x740] sm:$0xff]
  %v7301 = vld [vmem:[%s5 + $0x748] sm:$0xff]
  %v7302 = vld [vmem:[%s5 + $0x750] sm:$0xff]
  %v7303 = vld [vmem:[%s5 + $0x758] sm:$0xff]
  %v7304 = vld [vmem:[%s5 + $0x760] sm:$0xff]
  %v7305 = vld [vmem:[%s5 + $0x768] sm:$0xff]
  %v7306 = vld [vmem:[%s5 + $0x770] sm:$0xff]
  %v7307 = vld [vmem:[%s5 + $0x778] sm:$0xff]
  %v7308 = vld [vmem:[%s5 + $0x780] sm:$0xff]
  %v7309 = vld [vmem:[%s5 + $0x788] sm:$0xff]
  %v7310 = vld [vmem:[%s5 + $0x790] sm:$0xff]
  %v7311 = vld [vmem:[%s5 + $0x798] sm:$0xff]
  %v7312 = vld [vmem:[%s5 + $0x7a0] sm:$0xff]
  %v7313 = vld [vmem:[%s5 + $0x7a8] sm:$0xff]
  %v7314 = vld [vmem:[%s5 + $0x7b0] sm:$0xff]
  %v7315 = vld [vmem:[%s5 + $0x7b8] sm:$0xff]
  %v7316 = vld [vmem:[%s5 + $0x7c0] sm:$0xff]
  %v7317 = vld [vmem:[%s5 + $0x7c8] sm:$0xff]
  %v7318 = vld [vmem:[%s5 + $0x7d0] sm:$0xff]
  %v7319 = vld [vmem:[%s5 + $0x7d8] sm:$0xff]
  %v7320 = vld [vmem:[%s5 + $0x7e0] sm:$0xff]
  %v7321 = vld [vmem:[%s5 + $0x7e8] sm:$0xff]
  %v7322 = vld [vmem:[%s5 + $0x7f0] sm:$0xff]
  %v7323 = vld [vmem:[%s5 + $0x7f8] sm:$0xff]
  %v7324 = vld [vmem:[%s5 + $0x800] sm:$0xff]
  %v7325 = vld [vmem:[%s5 + $0x808] sm:$0xff]
  %v7326 = vld [vmem:[%s5 + $0x810] sm:$0xff]
  %v7327 = vld [vmem:[%s5 + $0x818] sm:$0xff]
  %v7328 = vld [vmem:[%s5 + $0x820] sm:$0xff]
  %v7329 = vld [vmem:[%s5 + $0x828] sm:$0xff]
  %v7330 = vld [vmem:[%s5 + $0x830] sm:$0xff]
  %v7331 = vld [vmem:[%s5 + $0x838] sm:$0xff]
  %v7332 = vld [vmem:[%s5 + $0x840] sm:$0xff]
  %v7333 = vld [vmem:[%s5 + $0x848] sm:$0xff]
  %v7334 = vld [vmem:[%s5 + $0x850] sm:$0xff]
  %v7335 = vld [vmem:[%s5 + $0x858] sm:$0xff]
  %v7336 = vld [vmem:[%s5 + $0x860] sm:$0xff]
  %v7337 = vld [vmem:[%s5 + $0x868] sm:$0xff]
  %v7338 = vld [vmem:[%s5 + $0x870] sm:$0xff]
  %v7339 = vld [vmem:[%s5 + $0x878] sm:$0xff]
  %v7340 = vld [vmem:[%s5 + $0x880] sm:$0xff]
  %v7341 = vld [vmem:[%s5 + $0x888] sm:$0xff]
  %v7342 = vld [vmem:[%s5 + $0x890] sm:$0xff]
  %v7343 = vld [vmem:[%s5 + $0x898] sm:$0xff]
  %v7344 = vld [vmem:[%s5 + $0x8a0] sm:$0xff]
  %v7345 = vld [vmem:[%s5 + $0x8a8] sm:$0xff]
  %v7346 = vld [vmem:[%s5 + $0x8b0] sm:$0xff]
  %v7347 = vld [vmem:[%s5 + $0x8b8] sm:$0xff]
  %v7348 = vld [vmem:[%s5 + $0x8c0] sm:$0xff]
  %v7349 = vld [vmem:[%s5 + $0x8c8] sm:$0xff]
  %v7350 = vld [vmem:[%s5 + $0x8d0] sm:$0xff]
  %v7351 = vld [vmem:[%s5 + $0x8d8] sm:$0xff]
  %v7352 = vld [vmem:[%s5 + $0x8e0] sm:$0xff]
  %v7353 = vld [vmem:[%s5 + $0x8e8] sm:$0xff]
  %v7354 = vld [vmem:[%s5 + $0x8f0] sm:$0xff]
  %v7355 = vld [vmem:[%s5 + $0x8f8] sm:$0xff]
  %v7644 = vunpack.c.l.b16 %v7068
  %v7645 = vunpack.c.h.b16 %v7068
  %v7646 = vunpack.c.l.b16 %v7069
  %v7647 = vunpack.c.h.b16 %v7069
  %v7648 = vunpack.c.l.b16 %v7070
  %v7649 = vunpack.c.h.b16 %v7070
  %v7650 = vunpack.c.l.b16 %v7071
  %v7651 = vunpack.c.h.b16 %v7071
  %v7652 = vunpack.c.l.b16 %v7072
  %v7653 = vunpack.c.h.b16 %v7072
  %v7654 = vunpack.c.l.b16 %v7073
  %v7655 = vunpack.c.h.b16 %v7073
  %v7656 = vunpack.c.l.b16 %v7074
  %v7657 = vunpack.c.h.b16 %v7074
  %v7658 = vunpack.c.l.b16 %v7075
  %v7659 = vunpack.c.h.b16 %v7075
  %v7660 = vunpack.c.l.b16 %v7076
  %v7661 = vunpack.c.h.b16 %v7076
  %v7662 = vunpack.c.l.b16 %v7077
  %v7663 = vunpack.c.h.b16 %v7077
  %v7664 = vunpack.c.l.b16 %v7078
  %v7665 = vunpack.c.h.b16 %v7078
  %v7666 = vunpack.c.l.b16 %v7079
  %v7667 = vunpack.c.h.b16 %v7079
  %v7668 = vunpack.c.l.b16 %v7080
  %v7669 = vunpack.c.h.b16 %v7080
  %v7670 = vunpack.c.l.b16 %v7081
  %v7671 = vunpack.c.h.b16 %v7081
  %v7672 = vunpack.c.l.b16 %v7082
  %v7673 = vunpack.c.h.b16 %v7082
  %v7674 = vunpack.c.l.b16 %v7083
  %v7675 = vunpack.c.h.b16 %v7083
  %v7676 = vunpack.c.l.b16 %v7084
  %v7677 = vunpack.c.h.b16 %v7084
  %v7678 = vunpack.c.l.b16 %v7085
  %v7679 = vunpack.c.h.b16 %v7085
  %v7680 = vunpack.c.l.b16 %v7086
  %v7681 = vunpack.c.h.b16 %v7086
  %v7682 = vunpack.c.l.b16 %v7087
  %v7683 = vunpack.c.h.b16 %v7087
  %v7684 = vunpack.c.l.b16 %v7088
  %v7685 = vunpack.c.h.b16 %v7088
  %v7686 = vunpack.c.l.b16 %v7089
  %v7687 = vunpack.c.h.b16 %v7089
  %v7688 = vunpack.c.l.b16 %v7090
  %v7689 = vunpack.c.h.b16 %v7090
  %v7690 = vunpack.c.l.b16 %v7091
  %v7691 = vunpack.c.h.b16 %v7091
  %v7692 = vunpack.c.l.b16 %v7092
  %v7693 = vunpack.c.h.b16 %v7092
  %v7694 = vunpack.c.l.b16 %v7093
  %v7695 = vunpack.c.h.b16 %v7093
  %v7696 = vunpack.c.l.b16 %v7094
  %v7697 = vunpack.c.h.b16 %v7094
  %v7698 = vunpack.c.l.b16 %v7095
  %v7699 = vunpack.c.h.b16 %v7095
  %v7700 = vunpack.c.l.b16 %v7096
  %v7701 = vunpack.c.h.b16 %v7096
  %v7702 = vunpack.c.l.b16 %v7097
  %v7703 = vunpack.c.h.b16 %v7097
  %v7704 = vunpack.c.l.b16 %v7098
  %v7705 = vunpack.c.h.b16 %v7098
  %v7706 = vunpack.c.l.b16 %v7099
  %v7707 = vunpack.c.h.b16 %v7099
  %v7708 = vunpack.c.l.b16 %v7100
  %v7709 = vunpack.c.h.b16 %v7100
  %v7710 = vunpack.c.l.b16 %v7101
  %v7711 = vunpack.c.h.b16 %v7101
  %v7712 = vunpack.c.l.b16 %v7102
  %v7713 = vunpack.c.h.b16 %v7102
  %v7714 = vunpack.c.l.b16 %v7103
  %v7715 = vunpack.c.h.b16 %v7103
  %v7716 = vunpack.c.l.b16 %v7104
  %v7717 = vunpack.c.h.b16 %v7104
  %v7718 = vunpack.c.l.b16 %v7105
  %v7719 = vunpack.c.h.b16 %v7105
  %v7720 = vunpack.c.l.b16 %v7106
  %v7721 = vunpack.c.h.b16 %v7106
  %v7722 = vunpack.c.l.b16 %v7107
  %v7723 = vunpack.c.h.b16 %v7107
  %v7724 = vunpack.c.l.b16 %v7108
  %v7725 = vunpack.c.h.b16 %v7108
  %v7726 = vunpack.c.l.b16 %v7109
  %v7727 = vunpack.c.h.b16 %v7109
  %v7728 = vunpack.c.l.b16 %v7110
  %v7729 = vunpack.c.h.b16 %v7110
  %v7730 = vunpack.c.l.b16 %v7111
  %v7731 = vunpack.c.h.b16 %v7111
  %v7732 = vunpack.c.l.b16 %v7112
  %v7733 = vunpack.c.h.b16 %v7112
  %v7734 = vunpack.c.l.b16 %v7113
  %v7735 = vunpack.c.h.b16 %v7113
  %v7736 = vunpack.c.l.b16 %v7114
  %v7737 = vunpack.c.h.b16 %v7114
  %v7738 = vunpack.c.l.b16 %v7115
  %v7739 = vunpack.c.h.b16 %v7115
  %v7740 = vunpack.c.l.b16 %v7116
  %v7741 = vunpack.c.h.b16 %v7116
  %v7742 = vunpack.c.l.b16 %v7117
  %v7743 = vunpack.c.h.b16 %v7117
  %v7744 = vunpack.c.l.b16 %v7118
  %v7745 = vunpack.c.h.b16 %v7118
  %v7746 = vunpack.c.l.b16 %v7119
  %v7747 = vunpack.c.h.b16 %v7119
  %v7748 = vunpack.c.l.b16 %v7120
  %v7749 = vunpack.c.h.b16 %v7120
  %v7750 = vunpack.c.l.b16 %v7121
  %v7751 = vunpack.c.h.b16 %v7121
  %v7752 = vunpack.c.l.b16 %v7122
  %v7753 = vunpack.c.h.b16 %v7122
  %v7754 = vunpack.c.l.b16 %v7123
  %v7755 = vunpack.c.h.b16 %v7123
  %v7756 = vunpack.c.l.b16 %v7124
  %v7757 = vunpack.c.h.b16 %v7124
  %v7758 = vunpack.c.l.b16 %v7125
  %v7759 = vunpack.c.h.b16 %v7125
  %v7760 = vunpack.c.l.b16 %v7126
  %v7761 = vunpack.c.h.b16 %v7126
  %v7762 = vunpack.c.l.b16 %v7127
  %v7763 = vunpack.c.h.b16 %v7127
  %v7764 = vunpack.c.l.b16 %v7128
  %v7765 = vunpack.c.h.b16 %v7128
  %v7766 = vunpack.c.l.b16 %v7129
  %v7767 = vunpack.c.h.b16 %v7129
  %v7768 = vunpack.c.l.b16 %v7130
  %v7769 = vunpack.c.h.b16 %v7130
  %v7770 = vunpack.c.l.b16 %v7131
  %v7771 = vunpack.c.h.b16 %v7131
  %v7772 = vunpack.c.l.b16 %v7132
  %v7773 = vunpack.c.h.b16 %v7132
  %v7774 = vunpack.c.l.b16 %v7133
  %v7775 = vunpack.c.h.b16 %v7133
  %v7776 = vunpack.c.l.b16 %v7134
  %v7777 = vunpack.c.h.b16 %v7134
  %v7778 = vunpack.c.l.b16 %v7135
  %v7779 = vunpack.c.h.b16 %v7135
  %v7780 = vunpack.c.l.b16 %v7136
  %v7781 = vunpack.c.h.b16 %v7136
  %v7782 = vunpack.c.l.b16 %v7137
  %v7783 = vunpack.c.h.b16 %v7137
  %v7784 = vunpack.c.l.b16 %v7138
  %v7785 = vunpack.c.h.b16 %v7138
  %v7786 = vunpack.c.l.b16 %v7139
  %v7787 = vunpack.c.h.b16 %v7139
  %v7788 = vunpack.c.l.b16 %v7140
  %v7789 = vunpack.c.h.b16 %v7140
  %v7790 = vunpack.c.l.b16 %v7141
  %v7791 = vunpack.c.h.b16 %v7141
  %v7792 = vunpack.c.l.b16 %v7142
  %v7793 = vunpack.c.h.b16 %v7142
  %v7794 = vunpack.c.l.b16 %v7143
  %v7795 = vunpack.c.h.b16 %v7143
  %v7796 = vunpack.c.l.b16 %v7144
  %v7797 = vunpack.c.h.b16 %v7144
  %v7798 = vunpack.c.l.b16 %v7145
  %v7799 = vunpack.c.h.b16 %v7145
  %v7800 = vunpack.c.l.b16 %v7146
  %v7801 = vunpack.c.h.b16 %v7146
  %v7802 = vunpack.c.l.b16 %v7147
  %v7803 = vunpack.c.h.b16 %v7147
  %v7804 = vunpack.c.l.b16 %v7148
  %v7805 = vunpack.c.h.b16 %v7148
  %v7806 = vunpack.c.l.b16 %v7149
  %v7807 = vunpack.c.h.b16 %v7149
  %v7808 = vunpack.c.l.b16 %v7150
  %v7809 = vunpack.c.h.b16 %v7150
  %v7810 = vunpack.c.l.b16 %v7151
  %v7811 = vunpack.c.h.b16 %v7151
  %v7812 = vunpack.c.l.b16 %v7152
  %v7813 = vunpack.c.h.b16 %v7152
  %v7814 = vunpack.c.l.b16 %v7153
  %v7815 = vunpack.c.h.b16 %v7153
  %v7816 = vunpack.c.l.b16 %v7154
  %v7817 = vunpack.c.h.b16 %v7154
  %v7818 = vunpack.c.l.b16 %v7155
  %v7819 = vunpack.c.h.b16 %v7155
  %v7820 = vunpack.c.l.b16 %v7156
  %v7821 = vunpack.c.h.b16 %v7156
  %v7822 = vunpack.c.l.b16 %v7157
  %v7823 = vunpack.c.h.b16 %v7157
  %v7824 = vunpack.c.l.b16 %v7158
  %v7825 = vunpack.c.h.b16 %v7158
  %v7826 = vunpack.c.l.b16 %v7159
  %v7827 = vunpack.c.h.b16 %v7159
  %v7828 = vunpack.c.l.b16 %v7160
  %v7829 = vunpack.c.h.b16 %v7160
  %v7830 = vunpack.c.l.b16 %v7161
  %v7831 = vunpack.c.h.b16 %v7161
  %v7832 = vunpack.c.l.b16 %v7162
  %v7833 = vunpack.c.h.b16 %v7162
  %v7834 = vunpack.c.l.b16 %v7163
  %v7835 = vunpack.c.h.b16 %v7163
  %v7836 = vunpack.c.l.b16 %v7164
  %v7837 = vunpack.c.h.b16 %v7164
  %v7838 = vunpack.c.l.b16 %v7165
  %v7839 = vunpack.c.h.b16 %v7165
  %v7840 = vunpack.c.l.b16 %v7166
  %v7841 = vunpack.c.h.b16 %v7166
  %v7842 = vunpack.c.l.b16 %v7167
  %v7843 = vunpack.c.h.b16 %v7167
  %v7844 = vunpack.c.l.b16 %v7168
  %v7845 = vunpack.c.h.b16 %v7168
  %v7846 = vunpack.c.l.b16 %v7169
  %v7847 = vunpack.c.h.b16 %v7169
  %v7848 = vunpack.c.l.b16 %v7170
  %v7849 = vunpack.c.h.b16 %v7170
  %v7850 = vunpack.c.l.b16 %v7171
  %v7851 = vunpack.c.h.b16 %v7171
  %v7852 = vunpack.c.l.b16 %v7172
  %v7853 = vunpack.c.h.b16 %v7172
  %v7854 = vunpack.c.l.b16 %v7173
  %v7855 = vunpack.c.h.b16 %v7173
  %v7856 = vunpack.c.l.b16 %v7174
  %v7857 = vunpack.c.h.b16 %v7174
  %v7858 = vunpack.c.l.b16 %v7175
  %v7859 = vunpack.c.h.b16 %v7175
  %v7860 = vunpack.c.l.b16 %v7176
  %v7861 = vunpack.c.h.b16 %v7176
  %v7862 = vunpack.c.l.b16 %v7177
  %v7863 = vunpack.c.h.b16 %v7177
  %v7864 = vunpack.c.l.b16 %v7178
  %v7865 = vunpack.c.h.b16 %v7178
  %v7866 = vunpack.c.l.b16 %v7179
  %v7867 = vunpack.c.h.b16 %v7179
  %v7868 = vunpack.c.l.b16 %v7180
  %v7869 = vunpack.c.h.b16 %v7180
  %v7870 = vunpack.c.l.b16 %v7181
  %v7871 = vunpack.c.h.b16 %v7181
  %v7872 = vunpack.c.l.b16 %v7182
  %v7873 = vunpack.c.h.b16 %v7182
  %v7874 = vunpack.c.l.b16 %v7183
  %v7875 = vunpack.c.h.b16 %v7183
  %v7876 = vunpack.c.l.b16 %v7184
  %v7877 = vunpack.c.h.b16 %v7184
  %v7878 = vunpack.c.l.b16 %v7185
  %v7879 = vunpack.c.h.b16 %v7185
  %v7880 = vunpack.c.l.b16 %v7186
  %v7881 = vunpack.c.h.b16 %v7186
  %v7882 = vunpack.c.l.b16 %v7187
  %v7883 = vunpack.c.h.b16 %v7187
  %v7884 = vunpack.c.l.b16 %v7188
  %v7885 = vunpack.c.h.b16 %v7188
  %v7886 = vunpack.c.l.b16 %v7189
  %v7887 = vunpack.c.h.b16 %v7189
  %v7888 = vunpack.c.l.b16 %v7190
  %v7889 = vunpack.c.h.b16 %v7190
  %v7890 = vunpack.c.l.b16 %v7191
  %v7891 = vunpack.c.h.b16 %v7191
  %v7892 = vunpack.c.l.b16 %v7192
  %v7893 = vunpack.c.h.b16 %v7192
  %v7894 = vunpack.c.l.b16 %v7193
  %v7895 = vunpack.c.h.b16 %v7193
  %v7896 = vunpack.c.l.b16 %v7194
  %v7897 = vunpack.c.h.b16 %v7194
  %v7898 = vunpack.c.l.b16 %v7195
  %v7899 = vunpack.c.h.b16 %v7195
  %v7900 = vunpack.c.l.b16 %v7196
  %v7901 = vunpack.c.h.b16 %v7196
  %v7902 = vunpack.c.l.b16 %v7197
  %v7903 = vunpack.c.h.b16 %v7197
  %v7904 = vunpack.c.l.b16 %v7198
  %v7905 = vunpack.c.h.b16 %v7198
  %v7906 = vunpack.c.l.b16 %v7199
  %v7907 = vunpack.c.h.b16 %v7199
  %v7908 = vunpack.c.l.b16 %v7200
  %v7909 = vunpack.c.h.b16 %v7200
  %v7910 = vunpack.c.l.b16 %v7201
  %v7911 = vunpack.c.h.b16 %v7201
  %v7912 = vunpack.c.l.b16 %v7202
  %v7913 = vunpack.c.h.b16 %v7202
  %v7914 = vunpack.c.l.b16 %v7203
  %v7915 = vunpack.c.h.b16 %v7203
  %v7916 = vunpack.c.l.b16 %v7204
  %v7917 = vunpack.c.h.b16 %v7204
  %v7918 = vunpack.c.l.b16 %v7205
  %v7919 = vunpack.c.h.b16 %v7205
  %v7920 = vunpack.c.l.b16 %v7206
  %v7921 = vunpack.c.h.b16 %v7206
  %v7922 = vunpack.c.l.b16 %v7207
  %v7923 = vunpack.c.h.b16 %v7207
  %v7924 = vunpack.c.l.b16 %v7208
  %v7925 = vunpack.c.h.b16 %v7208
  %v7926 = vunpack.c.l.b16 %v7209
  %v7927 = vunpack.c.h.b16 %v7209
  %v7928 = vunpack.c.l.b16 %v7210
  %v7929 = vunpack.c.h.b16 %v7210
  %v7930 = vunpack.c.l.b16 %v7211
  %v7931 = vunpack.c.h.b16 %v7211
  %v7932 = vunpack.c.l.b16 %v7212
  %v7933 = vunpack.c.h.b16 %v7212
  %v7934 = vunpack.c.l.b16 %v7213
  %v7935 = vunpack.c.h.b16 %v7213
  %v7936 = vunpack.c.l.b16 %v7214
  %v7937 = vunpack.c.h.b16 %v7214
  %v7938 = vunpack.c.l.b16 %v7215
  %v7939 = vunpack.c.h.b16 %v7215
  %v7940 = vunpack.c.l.b16 %v7216
  %v7941 = vunpack.c.h.b16 %v7216
  %v7942 = vunpack.c.l.b16 %v7217
  %v7943 = vunpack.c.h.b16 %v7217
  %v7944 = vunpack.c.l.b16 %v7218
  %v7945 = vunpack.c.h.b16 %v7218
  %v7946 = vunpack.c.l.b16 %v7219
  %v7947 = vunpack.c.h.b16 %v7219
  %v7948 = vunpack.c.l.b16 %v7220
  %v7949 = vunpack.c.h.b16 %v7220
  %v7950 = vunpack.c.l.b16 %v7221
  %v7951 = vunpack.c.h.b16 %v7221
  %v7952 = vunpack.c.l.b16 %v7222
  %v7953 = vunpack.c.h.b16 %v7222
  %v7954 = vunpack.c.l.b16 %v7223
  %v7955 = vunpack.c.h.b16 %v7223
  %v7956 = vunpack.c.l.b16 %v7224
  %v7957 = vunpack.c.h.b16 %v7224
  %v7958 = vunpack.c.l.b16 %v7225
  %v7959 = vunpack.c.h.b16 %v7225
  %v7960 = vunpack.c.l.b16 %v7226
  %v7961 = vunpack.c.h.b16 %v7226
  %v7962 = vunpack.c.l.b16 %v7227
  %v7963 = vunpack.c.h.b16 %v7227
  %v7964 = vunpack.c.l.b16 %v7228
  %v7965 = vunpack.c.h.b16 %v7228
  %v7966 = vunpack.c.l.b16 %v7229
  %v7967 = vunpack.c.h.b16 %v7229
  %v7968 = vunpack.c.l.b16 %v7230
  %v7969 = vunpack.c.h.b16 %v7230
  %v7970 = vunpack.c.l.b16 %v7231
  %v7971 = vunpack.c.h.b16 %v7231
  %v7972 = vunpack.c.l.b16 %v7232
  %v7973 = vunpack.c.h.b16 %v7232
  %v7974 = vunpack.c.l.b16 %v7233
  %v7975 = vunpack.c.h.b16 %v7233
  %v7976 = vunpack.c.l.b16 %v7234
  %v7977 = vunpack.c.h.b16 %v7234
  %v7978 = vunpack.c.l.b16 %v7235
  %v7979 = vunpack.c.h.b16 %v7235
  %v7980 = vunpack.c.l.b16 %v7236
  %v7981 = vunpack.c.h.b16 %v7236
  %v7982 = vunpack.c.l.b16 %v7237
  %v7983 = vunpack.c.h.b16 %v7237
  %v7984 = vunpack.c.l.b16 %v7238
  %v7985 = vunpack.c.h.b16 %v7238
  %v7986 = vunpack.c.l.b16 %v7239
  %v7987 = vunpack.c.h.b16 %v7239
  %v7988 = vunpack.c.l.b16 %v7240
  %v7989 = vunpack.c.h.b16 %v7240
  %v7990 = vunpack.c.l.b16 %v7241
  %v7991 = vunpack.c.h.b16 %v7241
  %v7992 = vunpack.c.l.b16 %v7242
  %v7993 = vunpack.c.h.b16 %v7242
  %v7994 = vunpack.c.l.b16 %v7243
  %v7995 = vunpack.c.h.b16 %v7243
  %v7996 = vunpack.c.l.b16 %v7244
  %v7997 = vunpack.c.h.b16 %v7244
  %v7998 = vunpack.c.l.b16 %v7245
  %v7999 = vunpack.c.h.b16 %v7245
  %v8000 = vunpack.c.l.b16 %v7246
  %v8001 = vunpack.c.h.b16 %v7246
  %v8002 = vunpack.c.l.b16 %v7247
  %v8003 = vunpack.c.h.b16 %v7247
  %v8004 = vunpack.c.l.b16 %v7248
  %v8005 = vunpack.c.h.b16 %v7248
  %v8006 = vunpack.c.l.b16 %v7249
  %v8007 = vunpack.c.h.b16 %v7249
  %v8008 = vunpack.c.l.b16 %v7250
  %v8009 = vunpack.c.h.b16 %v7250
  %v8010 = vunpack.c.l.b16 %v7251
  %v8011 = vunpack.c.h.b16 %v7251
  %v8012 = vunpack.c.l.b16 %v7252
  %v8013 = vunpack.c.h.b16 %v7252
  %v8014 = vunpack.c.l.b16 %v7253
  %v8015 = vunpack.c.h.b16 %v7253
  %v8016 = vunpack.c.l.b16 %v7254
  %v8017 = vunpack.c.h.b16 %v7254
  %v8018 = vunpack.c.l.b16 %v7255
  %v8019 = vunpack.c.h.b16 %v7255
  %v8020 = vunpack.c.l.b16 %v7256
  %v8021 = vunpack.c.h.b16 %v7256
  %v8022 = vunpack.c.l.b16 %v7257
  %v8023 = vunpack.c.h.b16 %v7257
  %v8024 = vunpack.c.l.b16 %v7258
  %v8025 = vunpack.c.h.b16 %v7258
  %v8026 = vunpack.c.l.b16 %v7259
  %v8027 = vunpack.c.h.b16 %v7259
  %v8028 = vunpack.c.l.b16 %v7260
  %v8029 = vunpack.c.h.b16 %v7260
  %v8030 = vunpack.c.l.b16 %v7261
  %v8031 = vunpack.c.h.b16 %v7261
  %v8032 = vunpack.c.l.b16 %v7262
  %v8033 = vunpack.c.h.b16 %v7262
  %v8034 = vunpack.c.l.b16 %v7263
  %v8035 = vunpack.c.h.b16 %v7263
  %v8036 = vunpack.c.l.b16 %v7264
  %v8037 = vunpack.c.h.b16 %v7264
  %v8038 = vunpack.c.l.b16 %v7265
  %v8039 = vunpack.c.h.b16 %v7265
  %v8040 = vunpack.c.l.b16 %v7266
  %v8041 = vunpack.c.h.b16 %v7266
  %v8042 = vunpack.c.l.b16 %v7267
  %v8043 = vunpack.c.h.b16 %v7267
  %v8044 = vunpack.c.l.b16 %v7268
  %v8045 = vunpack.c.h.b16 %v7268
  %v8046 = vunpack.c.l.b16 %v7269
  %v8047 = vunpack.c.h.b16 %v7269
  %v8048 = vunpack.c.l.b16 %v7270
  %v8049 = vunpack.c.h.b16 %v7270
  %v8050 = vunpack.c.l.b16 %v7271
  %v8051 = vunpack.c.h.b16 %v7271
  %v8052 = vunpack.c.l.b16 %v7272
  %v8053 = vunpack.c.h.b16 %v7272
  %v8054 = vunpack.c.l.b16 %v7273
  %v8055 = vunpack.c.h.b16 %v7273
  %v8056 = vunpack.c.l.b16 %v7274
  %v8057 = vunpack.c.h.b16 %v7274
  %v8058 = vunpack.c.l.b16 %v7275
  %v8059 = vunpack.c.h.b16 %v7275
  %v8060 = vunpack.c.l.b16 %v7276
  %v8061 = vunpack.c.h.b16 %v7276
  %v8062 = vunpack.c.l.b16 %v7277
  %v8063 = vunpack.c.h.b16 %v7277
  %v8064 = vunpack.c.l.b16 %v7278
  %v8065 = vunpack.c.h.b16 %v7278
  %v8066 = vunpack.c.l.b16 %v7279
  %v8067 = vunpack.c.h.b16 %v7279
  %v8068 = vunpack.c.l.b16 %v7280
  %v8069 = vunpack.c.h.b16 %v7280
  %v8070 = vunpack.c.l.b16 %v7281
  %v8071 = vunpack.c.h.b16 %v7281
  %v8072 = vunpack.c.l.b16 %v7282
  %v8073 = vunpack.c.h.b16 %v7282
  %v8074 = vunpack.c.l.b16 %v7283
  %v8075 = vunpack.c.h.b16 %v7283
  %v8076 = vunpack.c.l.b16 %v7284
  %v8077 = vunpack.c.h.b16 %v7284
  %v8078 = vunpack.c.l.b16 %v7285
  %v8079 = vunpack.c.h.b16 %v7285
  %v8080 = vunpack.c.l.b16 %v7286
  %v8081 = vunpack.c.h.b16 %v7286
  %v8082 = vunpack.c.l.b16 %v7287
  %v8083 = vunpack.c.h.b16 %v7287
  %v8084 = vunpack.c.l.b16 %v7288
  %v8085 = vunpack.c.h.b16 %v7288
  %v8086 = vunpack.c.l.b16 %v7289
  %v8087 = vunpack.c.h.b16 %v7289
  %v8088 = vunpack.c.l.b16 %v7290
  %v8089 = vunpack.c.h.b16 %v7290
  %v8090 = vunpack.c.l.b16 %v7291
  %v8091 = vunpack.c.h.b16 %v7291
  %v8092 = vunpack.c.l.b16 %v7292
  %v8093 = vunpack.c.h.b16 %v7292
  %v8094 = vunpack.c.l.b16 %v7293
  %v8095 = vunpack.c.h.b16 %v7293
  %v8096 = vunpack.c.l.b16 %v7294
  %v8097 = vunpack.c.h.b16 %v7294
  %v8098 = vunpack.c.l.b16 %v7295
  %v8099 = vunpack.c.h.b16 %v7295
  %v8100 = vunpack.c.l.b16 %v7296
  %v8101 = vunpack.c.h.b16 %v7296
  %v8102 = vunpack.c.l.b16 %v7297
  %v8103 = vunpack.c.h.b16 %v7297
  %v8104 = vunpack.c.l.b16 %v7298
  %v8105 = vunpack.c.h.b16 %v7298
  %v8106 = vunpack.c.l.b16 %v7299
  %v8107 = vunpack.c.h.b16 %v7299
  %v8108 = vunpack.c.l.b16 %v7300
  %v8109 = vunpack.c.h.b16 %v7300
  %v8110 = vunpack.c.l.b16 %v7301
  %v8111 = vunpack.c.h.b16 %v7301
  %v8112 = vunpack.c.l.b16 %v7302
  %v8113 = vunpack.c.h.b16 %v7302
  %v8114 = vunpack.c.l.b16 %v7303
  %v8115 = vunpack.c.h.b16 %v7303
  %v8116 = vunpack.c.l.b16 %v7304
  %v8117 = vunpack.c.h.b16 %v7304
  %v8118 = vunpack.c.l.b16 %v7305
  %v8119 = vunpack.c.h.b16 %v7305
  %v8120 = vunpack.c.l.b16 %v7306
  %v8121 = vunpack.c.h.b16 %v7306
  %v8122 = vunpack.c.l.b16 %v7307
  %v8123 = vunpack.c.h.b16 %v7307
  %v8124 = vunpack.c.l.b16 %v7308
  %v8125 = vunpack.c.h.b16 %v7308
  %v8126 = vunpack.c.l.b16 %v7309
  %v8127 = vunpack.c.h.b16 %v7309
  %v8128 = vunpack.c.l.b16 %v7310
  %v8129 = vunpack.c.h.b16 %v7310
  %v8130 = vunpack.c.l.b16 %v7311
  %v8131 = vunpack.c.h.b16 %v7311
  %v8132 = vunpack.c.l.b16 %v7312
  %v8133 = vunpack.c.h.b16 %v7312
  %v8134 = vunpack.c.l.b16 %v7313
  %v8135 = vunpack.c.h.b16 %v7313
  %v8136 = vunpack.c.l.b16 %v7314
  %v8137 = vunpack.c.h.b16 %v7314
  %v8138 = vunpack.c.l.b16 %v7315
  %v8139 = vunpack.c.h.b16 %v7315
  %v8140 = vunpack.c.l.b16 %v7316
  %v8141 = vunpack.c.h.b16 %v7316
  %v8142 = vunpack.c.l.b16 %v7317
  %v8143 = vunpack.c.h.b16 %v7317
  %v8144 = vunpack.c.l.b16 %v7318
  %v8145 = vunpack.c.h.b16 %v7318
  %v8146 = vunpack.c.l.b16 %v7319
  %v8147 = vunpack.c.h.b16 %v7319
  %v8148 = vunpack.c.l.b16 %v7320
  %v8149 = vunpack.c.h.b16 %v7320
  %v8150 = vunpack.c.l.b16 %v7321
  %v8151 = vunpack.c.h.b16 %v7321
  %v8152 = vunpack.c.l.b16 %v7322
  %v8153 = vunpack.c.h.b16 %v7322
  %v8154 = vunpack.c.l.b16 %v7323
  %v8155 = vunpack.c.h.b16 %v7323
  %v8156 = vunpack.c.l.b16 %v7324
  %v8157 = vunpack.c.h.b16 %v7324
  %v8158 = vunpack.c.l.b16 %v7325
  %v8159 = vunpack.c.h.b16 %v7325
  %v8160 = vunpack.c.l.b16 %v7326
  %v8161 = vunpack.c.h.b16 %v7326
  %v8162 = vunpack.c.l.b16 %v7327
  %v8163 = vunpack.c.h.b16 %v7327
  %v8164 = vunpack.c.l.b16 %v7328
  %v8165 = vunpack.c.h.b16 %v7328
  %v8166 = vunpack.c.l.b16 %v7329
  %v8167 = vunpack.c.h.b16 %v7329
  %v8168 = vunpack.c.l.b16 %v7330
  %v8169 = vunpack.c.h.b16 %v7330
  %v8170 = vunpack.c.l.b16 %v7331
  %v8171 = vunpack.c.h.b16 %v7331
  %v8172 = vunpack.c.l.b16 %v7332
  %v8173 = vunpack.c.h.b16 %v7332
  %v8174 = vunpack.c.l.b16 %v7333
  %v8175 = vunpack.c.h.b16 %v7333
  %v8176 = vunpack.c.l.b16 %v7334
  %v8177 = vunpack.c.h.b16 %v7334
  %v8178 = vunpack.c.l.b16 %v7335
  %v8179 = vunpack.c.h.b16 %v7335
  %v8180 = vunpack.c.l.b16 %v7336
  %v8181 = vunpack.c.h.b16 %v7336
  %v8182 = vunpack.c.l.b16 %v7337
  %v8183 = vunpack.c.h.b16 %v7337
  %v8184 = vunpack.c.l.b16 %v7338
  %v8185 = vunpack.c.h.b16 %v7338
  %v8186 = vunpack.c.l.b16 %v7339
  %v8187 = vunpack.c.h.b16 %v7339
  %v8188 = vunpack.c.l.b16 %v7340
  %v8189 = vunpack.c.h.b16 %v7340
  %v8190 = vunpack.c.l.b16 %v7341
  %v8191 = vunpack.c.h.b16 %v7341
  %v8192 = vunpack.c.l.b16 %v7342
  %v8193 = vunpack.c.h.b16 %v7342
  %v8194 = vunpack.c.l.b16 %v7343
  %v8195 = vunpack.c.h.b16 %v7343
  %v8196 = vunpack.c.l.b16 %v7344
  %v8197 = vunpack.c.h.b16 %v7344
  %v8198 = vunpack.c.l.b16 %v7345
  %v8199 = vunpack.c.h.b16 %v7345
  %v8200 = vunpack.c.l.b16 %v7346
  %v8201 = vunpack.c.h.b16 %v7346
  %v8202 = vunpack.c.l.b16 %v7347
  %v8203 = vunpack.c.h.b16 %v7347
  %v8204 = vunpack.c.l.b16 %v7348
  %v8205 = vunpack.c.h.b16 %v7348
  %v8206 = vunpack.c.l.b16 %v7349
  %v8207 = vunpack.c.h.b16 %v7349
  %v8208 = vunpack.c.l.b16 %v7350
  %v8209 = vunpack.c.h.b16 %v7350
  %v8210 = vunpack.c.l.b16 %v7351
  %v8211 = vunpack.c.h.b16 %v7351
  %v8212 = vunpack.c.l.b16 %v7352
  %v8213 = vunpack.c.h.b16 %v7352
  %v8214 = vunpack.c.l.b16 %v7353
  %v8215 = vunpack.c.h.b16 %v7353
  %v8216 = vunpack.c.l.b16 %v7354
  %v8217 = vunpack.c.h.b16 %v7354
  %v8218 = vunpack.c.l.b16 %v7355
  %v8219 = vunpack.c.h.b16 %v7355
  %v8220 = vpack.c.b16 %v7650, %v7644
  %v8221 = vpack.c.b16 %v7651, %v7645
  %v8222 = vpack.c.b16 %v7652, %v7646
  %v8223 = vpack.c.b16 %v7653, %v7647
  %v8224 = vpack.c.b16 %v7654, %v7648
  %v8225 = vpack.c.b16 %v7655, %v7649
  %v8226 = vpack.c.b16 %v7662, %v7656
  %v8227 = vpack.c.b16 %v7663, %v7657
  %v8228 = vpack.c.b16 %v7664, %v7658
  %v8229 = vpack.c.b16 %v7665, %v7659
  %v8230 = vpack.c.b16 %v7666, %v7660
  %v8231 = vpack.c.b16 %v7667, %v7661
  %v8232 = vpack.c.b16 %v7674, %v7668
  %v8233 = vpack.c.b16 %v7675, %v7669
  %v8234 = vpack.c.b16 %v7676, %v7670
  %v8235 = vpack.c.b16 %v7677, %v7671
  %v8236 = vpack.c.b16 %v7678, %v7672
  %v8237 = vpack.c.b16 %v7679, %v7673
  %v8238 = vpack.c.b16 %v7686, %v7680
  %v8239 = vpack.c.b16 %v7687, %v7681
  %v8240 = vpack.c.b16 %v7688, %v7682
  %v8241 = vpack.c.b16 %v7689, %v7683
  %v8242 = vpack.c.b16 %v7690, %v7684
  %v8243 = vpack.c.b16 %v7691, %v7685
  %v8244 = vpack.c.b16 %v7698, %v7692
  %v8245 = vpack.c.b16 %v7699, %v7693
  %v8246 = vpack.c.b16 %v7700, %v7694
  %v8247 = vpack.c.b16 %v7701, %v7695
  %v8248 = vpack.c.b16 %v7702, %v7696
  %v8249 = vpack.c.b16 %v7703, %v7697
  %v8250 = vpack.c.b16 %v7710, %v7704
  %v8251 = vpack.c.b16 %v7711, %v7705
  %v8252 = vpack.c.b16 %v7712, %v7706
  %v8253 = vpack.c.b16 %v7713, %v7707
  %v8254 = vpack.c.b16 %v7714, %v7708
  %v8255 = vpack.c.b16 %v7715, %v7709
  %v8256 = vpack.c.b16 %v7722, %v7716
  %v8257 = vpack.c.b16 %v7723, %v7717
  %v8258 = vpack.c.b16 %v7724, %v7718
  %v8259 = vpack.c.b16 %v7725, %v7719
  %v8260 = vpack.c.b16 %v7726, %v7720
  %v8261 = vpack.c.b16 %v7727, %v7721
  %v8262 = vpack.c.b16 %v7734, %v7728
  %v8263 = vpack.c.b16 %v7735, %v7729
  %v8264 = vpack.c.b16 %v7736, %v7730
  %v8265 = vpack.c.b16 %v7737, %v7731
  %v8266 = vpack.c.b16 %v7738, %v7732
  %v8267 = vpack.c.b16 %v7739, %v7733
  %v8268 = vpack.c.b16 %v7746, %v7740
  %v8269 = vpack.c.b16 %v7747, %v7741
  %v8270 = vpack.c.b16 %v7748, %v7742
  %v8271 = vpack.c.b16 %v7749, %v7743
  %v8272 = vpack.c.b16 %v7750, %v7744
  %v8273 = vpack.c.b16 %v7751, %v7745
  %v8274 = vpack.c.b16 %v7758, %v7752
  %v8275 = vpack.c.b16 %v7759, %v7753
  %v8276 = vpack.c.b16 %v7760, %v7754
  %v8277 = vpack.c.b16 %v7761, %v7755
  %v8278 = vpack.c.b16 %v7762, %v7756
  %v8279 = vpack.c.b16 %v7763, %v7757
  %v8280 = vpack.c.b16 %v7770, %v7764
  %v8281 = vpack.c.b16 %v7771, %v7765
  %v8282 = vpack.c.b16 %v7772, %v7766
  %v8283 = vpack.c.b16 %v7773, %v7767
  %v8284 = vpack.c.b16 %v7774, %v7768
  %v8285 = vpack.c.b16 %v7775, %v7769
  %v8286 = vpack.c.b16 %v7782, %v7776
  %v8287 = vpack.c.b16 %v7783, %v7777
  %v8288 = vpack.c.b16 %v7784, %v7778
  %v8289 = vpack.c.b16 %v7785, %v7779
  %v8290 = vpack.c.b16 %v7786, %v7780
  %v8291 = vpack.c.b16 %v7787, %v7781
  %v8292 = vpack.c.b16 %v7794, %v7788
  %v8293 = vpack.c.b16 %v7795, %v7789
  %v8294 = vpack.c.b16 %v7796, %v7790
  %v8295 = vpack.c.b16 %v7797, %v7791
  %v8296 = vpack.c.b16 %v7798, %v7792
  %v8297 = vpack.c.b16 %v7799, %v7793
  %v8298 = vpack.c.b16 %v7806, %v7800
  %v8299 = vpack.c.b16 %v7807, %v7801
  %v8300 = vpack.c.b16 %v7808, %v7802
  %v8301 = vpack.c.b16 %v7809, %v7803
  %v8302 = vpack.c.b16 %v7810, %v7804
  %v8303 = vpack.c.b16 %v7811, %v7805
  %v8304 = vpack.c.b16 %v7818, %v7812
  %v8305 = vpack.c.b16 %v7819, %v7813
  %v8306 = vpack.c.b16 %v7820, %v7814
  %v8307 = vpack.c.b16 %v7821, %v7815
  %v8308 = vpack.c.b16 %v7822, %v7816
  %v8309 = vpack.c.b16 %v7823, %v7817
  %v8310 = vpack.c.b16 %v7830, %v7824
  %v8311 = vpack.c.b16 %v7831, %v7825
  %v8312 = vpack.c.b16 %v7832, %v7826
  %v8313 = vpack.c.b16 %v7833, %v7827
  %v8314 = vpack.c.b16 %v7834, %v7828
  %v8315 = vpack.c.b16 %v7835, %v7829
  %v8316 = vpack.c.b16 %v7842, %v7836
  %v8317 = vpack.c.b16 %v7843, %v7837
  %v8318 = vpack.c.b16 %v7844, %v7838
  %v8319 = vpack.c.b16 %v7845, %v7839
  %v8320 = vpack.c.b16 %v7846, %v7840
  %v8321 = vpack.c.b16 %v7847, %v7841
  %v8322 = vpack.c.b16 %v7854, %v7848
  %v8323 = vpack.c.b16 %v7855, %v7849
  %v8324 = vpack.c.b16 %v7856, %v7850
  %v8325 = vpack.c.b16 %v7857, %v7851
  %v8326 = vpack.c.b16 %v7858, %v7852
  %v8327 = vpack.c.b16 %v7859, %v7853
  %v8328 = vpack.c.b16 %v7866, %v7860
  %v8329 = vpack.c.b16 %v7867, %v7861
  %v8330 = vpack.c.b16 %v7868, %v7862
  %v8331 = vpack.c.b16 %v7869, %v7863
  %v8332 = vpack.c.b16 %v7870, %v7864
  %v8333 = vpack.c.b16 %v7871, %v7865
  %v8334 = vpack.c.b16 %v7878, %v7872
  %v8335 = vpack.c.b16 %v7879, %v7873
  %v8336 = vpack.c.b16 %v7880, %v7874
  %v8337 = vpack.c.b16 %v7881, %v7875
  %v8338 = vpack.c.b16 %v7882, %v7876
  %v8339 = vpack.c.b16 %v7883, %v7877
  %v8340 = vpack.c.b16 %v7890, %v7884
  %v8341 = vpack.c.b16 %v7891, %v7885
  %v8342 = vpack.c.b16 %v7892, %v7886
  %v8343 = vpack.c.b16 %v7893, %v7887
  %v8344 = vpack.c.b16 %v7894, %v7888
  %v8345 = vpack.c.b16 %v7895, %v7889
  %v8346 = vpack.c.b16 %v7902, %v7896
  %v8347 = vpack.c.b16 %v7903, %v7897
  %v8348 = vpack.c.b16 %v7904, %v7898
  %v8349 = vpack.c.b16 %v7905, %v7899
  %v8350 = vpack.c.b16 %v7906, %v7900
  %v8351 = vpack.c.b16 %v7907, %v7901
  %v8352 = vpack.c.b16 %v7914, %v7908
  %v8353 = vpack.c.b16 %v7915, %v7909
  %v8354 = vpack.c.b16 %v7916, %v7910
  %v8355 = vpack.c.b16 %v7917, %v7911
  %v8356 = vpack.c.b16 %v7918, %v7912
  %v8357 = vpack.c.b16 %v7919, %v7913
  %v8358 = vpack.c.b16 %v7926, %v7920
  %v8359 = vpack.c.b16 %v7927, %v7921
  %v8360 = vpack.c.b16 %v7928, %v7922
  %v8361 = vpack.c.b16 %v7929, %v7923
  %v8362 = vpack.c.b16 %v7930, %v7924
  %v8363 = vpack.c.b16 %v7931, %v7925
  %v8364 = vpack.c.b16 %v7938, %v7932
  %v8365 = vpack.c.b16 %v7939, %v7933
  %v8366 = vpack.c.b16 %v7940, %v7934
  %v8367 = vpack.c.b16 %v7941, %v7935
  %v8368 = vpack.c.b16 %v7942, %v7936
  %v8369 = vpack.c.b16 %v7943, %v7937
  %v8370 = vpack.c.b16 %v7950, %v7944
  %v8371 = vpack.c.b16 %v7951, %v7945
  %v8372 = vpack.c.b16 %v7952, %v7946
  %v8373 = vpack.c.b16 %v7953, %v7947
  %v8374 = vpack.c.b16 %v7954, %v7948
  %v8375 = vpack.c.b16 %v7955, %v7949
  %v8376 = vpack.c.b16 %v7962, %v7956
  %v8377 = vpack.c.b16 %v7963, %v7957
  %v8378 = vpack.c.b16 %v7964, %v7958
  %v8379 = vpack.c.b16 %v7965, %v7959
  %v8380 = vpack.c.b16 %v7966, %v7960
  %v8381 = vpack.c.b16 %v7967, %v7961
  %v8382 = vpack.c.b16 %v7974, %v7968
  %v8383 = vpack.c.b16 %v7975, %v7969
  %v8384 = vpack.c.b16 %v7976, %v7970
  %v8385 = vpack.c.b16 %v7977, %v7971
  %v8386 = vpack.c.b16 %v7978, %v7972
  %v8387 = vpack.c.b16 %v7979, %v7973
  %v8388 = vpack.c.b16 %v7986, %v7980
  %v8389 = vpack.c.b16 %v7987, %v7981
  %v8390 = vpack.c.b16 %v7988, %v7982
  %v8391 = vpack.c.b16 %v7989, %v7983
  %v8392 = vpack.c.b16 %v7990, %v7984
  %v8393 = vpack.c.b16 %v7991, %v7985
  %v8394 = vpack.c.b16 %v7998, %v7992
  %v8395 = vpack.c.b16 %v7999, %v7993
  %v8396 = vpack.c.b16 %v8000, %v7994
  %v8397 = vpack.c.b16 %v8001, %v7995
  %v8398 = vpack.c.b16 %v8002, %v7996
  %v8399 = vpack.c.b16 %v8003, %v7997
  %v8400 = vpack.c.b16 %v8010, %v8004
  %v8401 = vpack.c.b16 %v8011, %v8005
  %v8402 = vpack.c.b16 %v8012, %v8006
  %v8403 = vpack.c.b16 %v8013, %v8007
  %v8404 = vpack.c.b16 %v8014, %v8008
  %v8405 = vpack.c.b16 %v8015, %v8009
  %v8406 = vpack.c.b16 %v8022, %v8016
  %v8407 = vpack.c.b16 %v8023, %v8017
  %v8408 = vpack.c.b16 %v8024, %v8018
  %v8409 = vpack.c.b16 %v8025, %v8019
  %v8410 = vpack.c.b16 %v8026, %v8020
  %v8411 = vpack.c.b16 %v8027, %v8021
  %v8412 = vpack.c.b16 %v8034, %v8028
  %v8413 = vpack.c.b16 %v8035, %v8029
  %v8414 = vpack.c.b16 %v8036, %v8030
  %v8415 = vpack.c.b16 %v8037, %v8031
  %v8416 = vpack.c.b16 %v8038, %v8032
  %v8417 = vpack.c.b16 %v8039, %v8033
  %v8418 = vpack.c.b16 %v8046, %v8040
  %v8419 = vpack.c.b16 %v8047, %v8041
  %v8420 = vpack.c.b16 %v8048, %v8042
  %v8421 = vpack.c.b16 %v8049, %v8043
  %v8422 = vpack.c.b16 %v8050, %v8044
  %v8423 = vpack.c.b16 %v8051, %v8045
  %v8424 = vpack.c.b16 %v8058, %v8052
  %v8425 = vpack.c.b16 %v8059, %v8053
  %v8426 = vpack.c.b16 %v8060, %v8054
  %v8427 = vpack.c.b16 %v8061, %v8055
  %v8428 = vpack.c.b16 %v8062, %v8056
  %v8429 = vpack.c.b16 %v8063, %v8057
  %v8430 = vpack.c.b16 %v8070, %v8064
  %v8431 = vpack.c.b16 %v8071, %v8065
  %v8432 = vpack.c.b16 %v8072, %v8066
  %v8433 = vpack.c.b16 %v8073, %v8067
  %v8434 = vpack.c.b16 %v8074, %v8068
  %v8435 = vpack.c.b16 %v8075, %v8069
  %v8436 = vpack.c.b16 %v8082, %v8076
  %v8437 = vpack.c.b16 %v8083, %v8077
  %v8438 = vpack.c.b16 %v8084, %v8078
  %v8439 = vpack.c.b16 %v8085, %v8079
  %v8440 = vpack.c.b16 %v8086, %v8080
  %v8441 = vpack.c.b16 %v8087, %v8081
  %v8442 = vpack.c.b16 %v8094, %v8088
  %v8443 = vpack.c.b16 %v8095, %v8089
  %v8444 = vpack.c.b16 %v8096, %v8090
  %v8445 = vpack.c.b16 %v8097, %v8091
  %v8446 = vpack.c.b16 %v8098, %v8092
  %v8447 = vpack.c.b16 %v8099, %v8093
  %v8448 = vpack.c.b16 %v8106, %v8100
  %v8449 = vpack.c.b16 %v8107, %v8101
  %v8450 = vpack.c.b16 %v8108, %v8102
  %v8451 = vpack.c.b16 %v8109, %v8103
  %v8452 = vpack.c.b16 %v8110, %v8104
  %v8453 = vpack.c.b16 %v8111, %v8105
  %v8454 = vpack.c.b16 %v8118, %v8112
  %v8455 = vpack.c.b16 %v8119, %v8113
  %v8456 = vpack.c.b16 %v8120, %v8114
  %v8457 = vpack.c.b16 %v8121, %v8115
  %v8458 = vpack.c.b16 %v8122, %v8116
  %v8459 = vpack.c.b16 %v8123, %v8117
  %v8460 = vpack.c.b16 %v8130, %v8124
  %v8461 = vpack.c.b16 %v8131, %v8125
  %v8462 = vpack.c.b16 %v8132, %v8126
  %v8463 = vpack.c.b16 %v8133, %v8127
  %v8464 = vpack.c.b16 %v8134, %v8128
  %v8465 = vpack.c.b16 %v8135, %v8129
  %v8466 = vpack.c.b16 %v8142, %v8136
  %v8467 = vpack.c.b16 %v8143, %v8137
  %v8468 = vpack.c.b16 %v8144, %v8138
  %v8469 = vpack.c.b16 %v8145, %v8139
  %v8470 = vpack.c.b16 %v8146, %v8140
  %v8471 = vpack.c.b16 %v8147, %v8141
  %v8472 = vpack.c.b16 %v8154, %v8148
  %v8473 = vpack.c.b16 %v8155, %v8149
  %v8474 = vpack.c.b16 %v8156, %v8150
  %v8475 = vpack.c.b16 %v8157, %v8151
  %v8476 = vpack.c.b16 %v8158, %v8152
  %v8477 = vpack.c.b16 %v8159, %v8153
  %v8478 = vpack.c.b16 %v8166, %v8160
  %v8479 = vpack.c.b16 %v8167, %v8161
  %v8480 = vpack.c.b16 %v8168, %v8162
  %v8481 = vpack.c.b16 %v8169, %v8163
  %v8482 = vpack.c.b16 %v8170, %v8164
  %v8483 = vpack.c.b16 %v8171, %v8165
  %v8484 = vpack.c.b16 %v8178, %v8172
  %v8485 = vpack.c.b16 %v8179, %v8173
  %v8486 = vpack.c.b16 %v8180, %v8174
  %v8487 = vpack.c.b16 %v8181, %v8175
  %v8488 = vpack.c.b16 %v8182, %v8176
  %v8489 = vpack.c.b16 %v8183, %v8177
  %v8490 = vpack.c.b16 %v8190, %v8184
  %v8491 = vpack.c.b16 %v8191, %v8185
  %v8492 = vpack.c.b16 %v8192, %v8186
  %v8493 = vpack.c.b16 %v8193, %v8187
  %v8494 = vpack.c.b16 %v8194, %v8188
  %v8495 = vpack.c.b16 %v8195, %v8189
  %v8496 = vpack.c.b16 %v8202, %v8196
  %v8497 = vpack.c.b16 %v8203, %v8197
  %v8498 = vpack.c.b16 %v8204, %v8198
  %v8499 = vpack.c.b16 %v8205, %v8199
  %v8500 = vpack.c.b16 %v8206, %v8200
  %v8501 = vpack.c.b16 %v8207, %v8201
  %v8502 = vpack.c.b16 %v8214, %v8208
  %v8503 = vpack.c.b16 %v8215, %v8209
  %v8504 = vpack.c.b16 %v8216, %v8210
  %v8505 = vpack.c.b16 %v8217, %v8211
  %v8506 = vpack.c.b16 %v8218, %v8212
  %v8507 = vpack.c.b16 %v8219, %v8213
  %8796 = vmatprep.subr.bf16.mxu0 %v8263
  %8797 = vmatpush1.bf16.msra.mxu0 %v8262
  %8798 = vmatprep.subr.bf16.mxu0 %v8257
  %8799 = vmatpush1.bf16.msra.mxu0 %v8256
  %8800 = vmatprep.subr.bf16.mxu0 %v8251
  %8801 = vmatpush1.bf16.msra.mxu0 %v8250
  %8802 = vmatprep.subr.bf16.mxu0 %v8245
  %8803 = vmatpush1.bf16.msra.mxu0 %v8244
  %8804 = vmatprep.subr.bf16.mxu0 %v8239
  %8805 = vmatpush1.bf16.msra.mxu0 %v8238
  %8806 = vmatprep.subr.bf16.mxu0 %v8233
  %8807 = vmatpush1.bf16.msra.mxu0 %v8232
  %8808 = vmatprep.subr.bf16.mxu0 %v8227
  %8809 = vmatpush1.bf16.msra.mxu0 %v8226
  %8810 = vmatprep.subr.bf16.mxu0 %v8221
  %8811 = vmatpush1.bf16.msra.mxu0 %v8220
  %8812 = vmatprep.subr.bf16.mxu0 %v8311
  %8813 = vmatpush2.bf16.msra.mxu0 %v8310
  %8814 = vmatprep.subr.bf16.mxu0 %v8305
  %8815 = vmatpush2.bf16.msra.mxu0 %v8304
  %8816 = vmatprep.subr.bf16.mxu0 %v8299
  %8817 = vmatpush2.bf16.msra.mxu0 %v8298
  %8818 = vmatprep.subr.bf16.mxu0 %v8293
  %8819 = vmatpush2.bf16.msra.mxu0 %v8292
  %8820 = vmatprep.subr.bf16.mxu0 %v8287
  %8821 = vmatpush2.bf16.msra.mxu0 %v8286
  %8822 = vmatprep.subr.bf16.mxu0 %v8281
  %8823 = vmatpush2.bf16.msra.mxu0 %v8280
  %8824 = vmatprep.subr.bf16.mxu0 %v8275
  %8825 = vmatpush2.bf16.msra.mxu0 %v8274
  %8826 = vmatprep.subr.bf16.mxu0 %v8269
  %8827 = vmatpush2.bf16.msra.mxu0 %v8268
  %8828 = vmatprep.mubr.bf16.mxu0 %v2442
  %8829 = vmatmul.mubr.bf16.gmra.mxu0 %v2441
  %v8830 = vpop.f32.mrf.mxu0
  %v8831 = vadd.f32 0.0, %v8830
  %v8832 = vpop.f32.mrf.mxu0
  %v8833 = vadd.f32 0.0, %v8832
  %v8834 = vpop.f32.mrf.mxu0
  %v8835 = vadd.f32 0.0, %v8834
  %v8836 = vpop.f32.mrf.mxu0
  %v8837 = vadd.f32 0.0, %v8836
  %8838 = vdwg.mxu0
  %8839 = vmatprep.subr.bf16.mxu0 %v8359
  %8840 = vmatpush1.bf16.msra.mxu0 %v8358
  %8841 = vmatprep.subr.bf16.mxu0 %v8353
  %8842 = vmatpush1.bf16.msra.mxu0 %v8352
  %8843 = vmatprep.subr.bf16.mxu0 %v8347
  %8844 = vmatpush1.bf16.msra.mxu0 %v8346
  %8845 = vmatprep.subr.bf16.mxu0 %v8341
  %8846 = vmatpush1.bf16.msra.mxu0 %v8340
  %8847 = vmatprep.subr.bf16.mxu0 %v8335
  %8848 = vmatpush1.bf16.msra.mxu0 %v8334
  %8849 = vmatprep.subr.bf16.mxu0 %v8329
  %8850 = vmatpush1.bf16.msra.mxu0 %v8328
  %8851 = vmatprep.subr.bf16.mxu0 %v8323
  %8852 = vmatpush1.bf16.msra.mxu0 %v8322
  %8853 = vmatprep.subr.bf16.mxu0 %v8317
  %8854 = vmatpush1.bf16.msra.mxu0 %v8316
  %8855 = vmatprep.subr.bf16.mxu0 %v8407
  %8856 = vmatpush2.bf16.msra.mxu0 %v8406
  %8857 = vmatprep.subr.bf16.mxu0 %v8401
  %8858 = vmatpush2.bf16.msra.mxu0 %v8400
  %8859 = vmatprep.subr.bf16.mxu0 %v8395
  %8860 = vmatpush2.bf16.msra.mxu0 %v8394
  %8861 = vmatprep.subr.bf16.mxu0 %v8389
  %8862 = vmatpush2.bf16.msra.mxu0 %v8388
  %8863 = vmatprep.subr.bf16.mxu0 %v8383
  %8864 = vmatpush2.bf16.msra.mxu0 %v8382
  %8865 = vmatprep.subr.bf16.mxu0 %v8377
  %8866 = vmatpush2.bf16.msra.mxu0 %v8376
  %8867 = vmatprep.subr.bf16.mxu0 %v8371
  %8868 = vmatpush2.bf16.msra.mxu0 %v8370
  %8869 = vmatprep.subr.bf16.mxu0 %v8365
  %8870 = vmatpush2.bf16.msra.mxu0 %v8364
  %8871 = vmatprep.mubr.bf16.mxu0 %v2444
  %8872 = vmatmul.mubr.bf16.gmra.mxu0 %v2443
  %v8873 = vpop.f32.mrf.mxu0
  %v8874 = vadd.f32 %v8831, %v8873
  %v8875 = vpop.f32.mrf.mxu0
  %v8876 = vadd.f32 %v8833, %v8875
  %v8877 = vpop.f32.mrf.mxu0
  %v8878 = vadd.f32 %v8835, %v8877
  %v8879 = vpop.f32.mrf.mxu0
  %v8880 = vadd.f32 %v8837, %v8879
  %8881 = vdwg.mxu0
  %8882 = vmatprep.subr.bf16.mxu0 %v8455
  %8883 = vmatpush1.bf16.msra.mxu0 %v8454
  %8884 = vmatprep.subr.bf16.mxu0 %v8449
  %8885 = vmatpush1.bf16.msra.mxu0 %v8448
  %8886 = vmatprep.subr.bf16.mxu0 %v8443
  %8887 = vmatpush1.bf16.msra.mxu0 %v8442
  %8888 = vmatprep.subr.bf16.mxu0 %v8437
  %8889 = vmatpush1.bf16.msra.mxu0 %v8436
  %8890 = vmatprep.subr.bf16.mxu0 %v8431
  %8891 = vmatpush1.bf16.msra.mxu0 %v8430
  %8892 = vmatprep.subr.bf16.mxu0 %v8425
  %8893 = vmatpush1.bf16.msra.mxu0 %v8424
  %8894 = vmatprep.subr.bf16.mxu0 %v8419
  %8895 = vmatpush1.bf16.msra.mxu0 %v8418
  %8896 = vmatprep.subr.bf16.mxu0 %v8413
  %8897 = vmatpush1.bf16.msra.mxu0 %v8412
  %8898 = vmatprep.subr.bf16.mxu0 %v8503
  %8899 = vmatpush2.bf16.msra.mxu0 %v8502
  %8900 = vmatprep.subr.bf16.mxu0 %v8497
  %8901 = vmatpush2.bf16.msra.mxu0 %v8496
  %8902 = vmatprep.subr.bf16.mxu0 %v8491
  %8903 = vmatpush2.bf16.msra.mxu0 %v8490
  %8904 = vmatprep.subr.bf16.mxu0 %v8485
  %8905 = vmatpush2.bf16.msra.mxu0 %v8484
  %8906 = vmatprep.subr.bf16.mxu0 %v8479
  %8907 = vmatpush2.bf16.msra.mxu0 %v8478
  %8908 = vmatprep.subr.bf16.mxu0 %v8473
  %8909 = vmatpush2.bf16.msra.mxu0 %v8472
  %8910 = vmatprep.subr.bf16.mxu0 %v8467
  %8911 = vmatpush2.bf16.msra.mxu0 %v8466
  %8912 = vmatprep.subr.bf16.mxu0 %v8461
  %8913 = vmatpush2.bf16.msra.mxu0 %v8460
  %8914 = vmatprep.mubr.bf16.mxu0 %v2446
  %8915 = vmatmul.mubr.bf16.gmra.mxu0 %v2445
  %v8916 = vpop.f32.mrf.mxu0
  %v8917 = vadd.f32 %v8874, %v8916
  %v8918 = vpop.f32.mrf.mxu0
  %v8919 = vadd.f32 %v8876, %v8918
  %v8920 = vpop.f32.mrf.mxu0
  %v8921 = vadd.f32 %v8878, %v8920
  %v8922 = vpop.f32.mrf.mxu0
  %v8923 = vadd.f32 %v8880, %v8922
  %8924 = vdwg.mxu0
  %8925 = vmatprep.subr.bf16.mxu0 %v8265
  %8926 = vmatpush1.bf16.msra.mxu0 %v8264
  %8927 = vmatprep.subr.bf16.mxu0 %v8259
  %8928 = vmatpush1.bf16.msra.mxu0 %v8258
  %8929 = vmatprep.subr.bf16.mxu0 %v8253
  %8930 = vmatpush1.bf16.msra.mxu0 %v8252
  %8931 = vmatprep.subr.bf16.mxu0 %v8247
  %8932 = vmatpush1.bf16.msra.mxu0 %v8246
  %8933 = vmatprep.subr.bf16.mxu0 %v8241
  %8934 = vmatpush1.bf16.msra.mxu0 %v8240
  %8935 = vmatprep.subr.bf16.mxu0 %v8235
  %8936 = vmatpush1.bf16.msra.mxu0 %v8234
  %8937 = vmatprep.subr.bf16.mxu0 %v8229
  %8938 = vmatpush1.bf16.msra.mxu0 %v8228
  %8939 = vmatprep.subr.bf16.mxu0 %v8223
  %8940 = vmatpush1.bf16.msra.mxu0 %v8222
  %8941 = vmatprep.subr.bf16.mxu0 %v8313
  %8942 = vmatpush2.bf16.msra.mxu0 %v8312
  %8943 = vmatprep.subr.bf16.mxu0 %v8307
  %8944 = vmatpush2.bf16.msra.mxu0 %v8306
  %8945 = vmatprep.subr.bf16.mxu0 %v8301
  %8946 = vmatpush2.bf16.msra.mxu0 %v8300
  %8947 = vmatprep.subr.bf16.mxu0 %v8295
  %8948 = vmatpush2.bf16.msra.mxu0 %v8294
  %8949 = vmatprep.subr.bf16.mxu0 %v8289
  %8950 = vmatpush2.bf16.msra.mxu0 %v8288
  %8951 = vmatprep.subr.bf16.mxu0 %v8283
  %8952 = vmatpush2.bf16.msra.mxu0 %v8282
  %8953 = vmatprep.subr.bf16.mxu0 %v8277
  %8954 = vmatpush2.bf16.msra.mxu0 %v8276
  %8955 = vmatprep.subr.bf16.mxu0 %v8271
  %8956 = vmatpush2.bf16.msra.mxu0 %v8270
  %8957 = vmatprep.mubr.bf16.mxu0 %v2442
  %8958 = vmatmul.mubr.bf16.gmra.mxu0 %v2441
  %v8959 = vpop.f32.mrf.mxu0
  %v8960 = vadd.f32 0.0, %v8959
  %v8961 = vpop.f32.mrf.mxu0
  %v8962 = vadd.f32 0.0, %v8961
  %v8963 = vpop.f32.mrf.mxu0
  %v8964 = vadd.f32 0.0, %v8963
  %v8965 = vpop.f32.mrf.mxu0
  %v8966 = vadd.f32 0.0, %v8965
  %8967 = vdwg.mxu0
  %8968 = vmatprep.subr.bf16.mxu0 %v8361
  %8969 = vmatpush1.bf16.msra.mxu0 %v8360
  %8970 = vmatprep.subr.bf16.mxu0 %v8355
  %8971 = vmatpush1.bf16.msra.mxu0 %v8354
  %8972 = vmatprep.subr.bf16.mxu0 %v8349
  %8973 = vmatpush1.bf16.msra.mxu0 %v8348
  %8974 = vmatprep.subr.bf16.mxu0 %v8343
  %8975 = vmatpush1.bf16.msra.mxu0 %v8342
  %8976 = vmatprep.subr.bf16.mxu0 %v8337
  %8977 = vmatpush1.bf16.msra.mxu0 %v8336
  %8978 = vmatprep.subr.bf16.mxu0 %v8331
  %8979 = vmatpush1.bf16.msra.mxu0 %v8330
  %8980 = vmatprep.subr.bf16.mxu0 %v8325
  %8981 = vmatpush1.bf16.msra.mxu0 %v8324
  %8982 = vmatprep.subr.bf16.mxu0 %v8319
  %8983 = vmatpush1.bf16.msra.mxu0 %v8318
  %8984 = vmatprep.subr.bf16.mxu0 %v8409
  %8985 = vmatpush2.bf16.msra.mxu0 %v8408
  %8986 = vmatprep.subr.bf16.mxu0 %v8403
  %8987 = vmatpush2.bf16.msra.mxu0 %v8402
  %8988 = vmatprep.subr.bf16.mxu0 %v8397
  %8989 = vmatpush2.bf16.msra.mxu0 %v8396
  %8990 = vmatprep.subr.bf16.mxu0 %v8391
  %8991 = vmatpush2.bf16.msra.mxu0 %v8390
  %8992 = vmatprep.subr.bf16.mxu0 %v8385
  %8993 = vmatpush2.bf16.msra.mxu0 %v8384
  %8994 = vmatprep.subr.bf16.mxu0 %v8379
  %8995 = vmatpush2.bf16.msra.mxu0 %v8378
  %8996 = vmatprep.subr.bf16.mxu0 %v8373
  %8997 = vmatpush2.bf16.msra.mxu0 %v8372
  %8998 = vmatprep.subr.bf16.mxu0 %v8367
  %8999 = vmatpush2.bf16.msra.mxu0 %v8366
  %9000 = vmatprep.mubr.bf16.mxu0 %v2444
  %9001 = vmatmul.mubr.bf16.gmra.mxu0 %v2443
  %v9002 = vpop.f32.mrf.mxu0
  %v9003 = vadd.f32 %v8960, %v9002
  %v9004 = vpop.f32.mrf.mxu0
  %v9005 = vadd.f32 %v8962, %v9004
  %v9006 = vpop.f32.mrf.mxu0
  %v9007 = vadd.f32 %v8964, %v9006
  %v9008 = vpop.f32.mrf.mxu0
  %v9009 = vadd.f32 %v8966, %v9008
  %9010 = vdwg.mxu0
  %9011 = vmatprep.subr.bf16.mxu0 %v8457
  %9012 = vmatpush1.bf16.msra.mxu0 %v8456
  %9013 = vmatprep.subr.bf16.mxu0 %v8451
  %9014 = vmatpush1.bf16.msra.mxu0 %v8450
  %9015 = vmatprep.subr.bf16.mxu0 %v8445
  %9016 = vmatpush1.bf16.msra.mxu0 %v8444
  %9017 = vmatprep.subr.bf16.mxu0 %v8439
  %9018 = vmatpush1.bf16.msra.mxu0 %v8438
  %9019 = vmatprep.subr.bf16.mxu0 %v8433
  %9020 = vmatpush1.bf16.msra.mxu0 %v8432
  %9021 = vmatprep.subr.bf16.mxu0 %v8427
  %9022 = vmatpush1.bf16.msra.mxu0 %v8426
  %9023 = vmatprep.subr.bf16.mxu0 %v8421
  %9024 = vmatpush1.bf16.msra.mxu0 %v8420
  %9025 = vmatprep.subr.bf16.mxu0 %v8415
  %9026 = vmatpush1.bf16.msra.mxu0 %v8414
  %9027 = vmatprep.subr.bf16.mxu0 %v8505
  %9028 = vmatpush2.bf16.msra.mxu0 %v8504
  %9029 = vmatprep.subr.bf16.mxu0 %v8499
  %9030 = vmatpush2.bf16.msra.mxu0 %v8498
  %9031 = vmatprep.subr.bf16.mxu0 %v8493
  %9032 = vmatpush2.bf16.msra.mxu0 %v8492
  %9033 = vmatprep.subr.bf16.mxu0 %v8487
  %9034 = vmatpush2.bf16.msra.mxu0 %v8486
  %9035 = vmatprep.subr.bf16.mxu0 %v8481
  %9036 = vmatpush2.bf16.msra.mxu0 %v8480
  %9037 = vmatprep.subr.bf16.mxu0 %v8475
  %9038 = vmatpush2.bf16.msra.mxu0 %v8474
  %9039 = vmatprep.subr.bf16.mxu0 %v8469
  %9040 = vmatpush2.bf16.msra.mxu0 %v8468
  %9041 = vmatprep.subr.bf16.mxu0 %v8463
  %9042 = vmatpush2.bf16.msra.mxu0 %v8462
  %9043 = vmatprep.mubr.bf16.mxu0 %v2446
  %9044 = vmatmul.mubr.bf16.gmra.mxu0 %v2445
  %v9045 = vpop.f32.mrf.mxu0
  %v9046 = vadd.f32 %v9003, %v9045
  %v9047 = vpop.f32.mrf.mxu0
  %v9048 = vadd.f32 %v9005, %v9047
  %v9049 = vpop.f32.mrf.mxu0
  %v9050 = vadd.f32 %v9007, %v9049
  %v9051 = vpop.f32.mrf.mxu0
  %v9052 = vadd.f32 %v9009, %v9051
  %9053 = vdwg.mxu0
  %9054 = vmatprep.subr.bf16.mxu0 %v8267
  %9055 = vmatpush1.bf16.msra.mxu0 %v8266
  %9056 = vmatprep.subr.bf16.mxu0 %v8261
  %9057 = vmatpush1.bf16.msra.mxu0 %v8260
  %9058 = vmatprep.subr.bf16.mxu0 %v8255
  %9059 = vmatpush1.bf16.msra.mxu0 %v8254
  %9060 = vmatprep.subr.bf16.mxu0 %v8249
  %9061 = vmatpush1.bf16.msra.mxu0 %v8248
  %9062 = vmatprep.subr.bf16.mxu0 %v8243
  %9063 = vmatpush1.bf16.msra.mxu0 %v8242
  %9064 = vmatprep.subr.bf16.mxu0 %v8237
  %9065 = vmatpush1.bf16.msra.mxu0 %v8236
  %9066 = vmatprep.subr.bf16.mxu0 %v8231
  %9067 = vmatpush1.bf16.msra.mxu0 %v8230
  %9068 = vmatprep.subr.bf16.mxu0 %v8225
  %9069 = vmatpush1.bf16.msra.mxu0 %v8224
  %9070 = vmatprep.subr.bf16.mxu0 %v8315
  %9071 = vmatpush2.bf16.msra.mxu0 %v8314
  %9072 = vmatprep.subr.bf16.mxu0 %v8309
  %9073 = vmatpush2.bf16.msra.mxu0 %v8308
  %9074 = vmatprep.subr.bf16.mxu0 %v8303
  %9075 = vmatpush2.bf16.msra.mxu0 %v8302
  %9076 = vmatprep.subr.bf16.mxu0 %v8297
  %9077 = vmatpush2.bf16.msra.mxu0 %v8296
  %9078 = vmatprep.subr.bf16.mxu0 %v8291
  %9079 = vmatpush2.bf16.msra.mxu0 %v8290
  %9080 = vmatprep.subr.bf16.mxu0 %v8285
  %9081 = vmatpush2.bf16.msra.mxu0 %v8284
  %9082 = vmatprep.subr.bf16.mxu0 %v8279
  %9083 = vmatpush2.bf16.msra.mxu0 %v8278
  %9084 = vmatprep.subr.bf16.mxu0 %v8273
  %9085 = vmatpush2.bf16.msra.mxu0 %v8272
  %9086 = vmatprep.mubr.bf16.mxu0 %v2442
  %9087 = vmatmul.mubr.bf16.gmra.mxu0 %v2441
  %v9088 = vpop.f32.mrf.mxu0
  %v9089 = vadd.f32 0.0, %v9088
  %v9090 = vpop.f32.mrf.mxu0
  %v9091 = vadd.f32 0.0, %v9090
  %v9092 = vpop.f32.mrf.mxu0
  %v9093 = vadd.f32 0.0, %v9092
  %v9094 = vpop.f32.mrf.mxu0
  %v9095 = vadd.f32 0.0, %v9094
  %9096 = vdwg.mxu0
  %9097 = vmatprep.subr.bf16.mxu0 %v8363
  %9098 = vmatpush1.bf16.msra.mxu0 %v8362
  %9099 = vmatprep.subr.bf16.mxu0 %v8357
  %9100 = vmatpush1.bf16.msra.mxu0 %v8356
  %9101 = vmatprep.subr.bf16.mxu0 %v8351
  %9102 = vmatpush1.bf16.msra.mxu0 %v8350
  %9103 = vmatprep.subr.bf16.mxu0 %v8345
  %9104 = vmatpush1.bf16.msra.mxu0 %v8344
  %9105 = vmatprep.subr.bf16.mxu0 %v8339
  %9106 = vmatpush1.bf16.msra.mxu0 %v8338
  %9107 = vmatprep.subr.bf16.mxu0 %v8333
  %9108 = vmatpush1.bf16.msra.mxu0 %v8332
  %9109 = vmatprep.subr.bf16.mxu0 %v8327
  %9110 = vmatpush1.bf16.msra.mxu0 %v8326
  %9111 = vmatprep.subr.bf16.mxu0 %v8321
  %9112 = vmatpush1.bf16.msra.mxu0 %v8320
  %9113 = vmatprep.subr.bf16.mxu0 %v8411
  %9114 = vmatpush2.bf16.msra.mxu0 %v8410
  %9115 = vmatprep.subr.bf16.mxu0 %v8405
  %9116 = vmatpush2.bf16.msra.mxu0 %v8404
  %9117 = vmatprep.subr.bf16.mxu0 %v8399
  %9118 = vmatpush2.bf16.msra.mxu0 %v8398
  %9119 = vmatprep.subr.bf16.mxu0 %v8393
  %9120 = vmatpush2.bf16.msra.mxu0 %v8392
  %9121 = vmatprep.subr.bf16.mxu0 %v8387
  %9122 = vmatpush2.bf16.msra.mxu0 %v8386
  %9123 = vmatprep.subr.bf16.mxu0 %v8381
  %9124 = vmatpush2.bf16.msra.mxu0 %v8380
  %9125 = vmatprep.subr.bf16.mxu0 %v8375
  %9126 = vmatpush2.bf16.msra.mxu0 %v8374
  %9127 = vmatprep.subr.bf16.mxu0 %v8369
  %9128 = vmatpush2.bf16.msra.mxu0 %v8368
  %9129 = vmatprep.mubr.bf16.mxu0 %v2444
  %9130 = vmatmul.mubr.bf16.gmra.mxu0 %v2443
  %v9131 = vpop.f32.mrf.mxu0
  %v9132 = vadd.f32 %v9089, %v9131
  %v9133 = vpop.f32.mrf.mxu0
  %v9134 = vadd.f32 %v9091, %v9133
  %v9135 = vpop.f32.mrf.mxu0
  %v9136 = vadd.f32 %v9093, %v9135
  %v9137 = vpop.f32.mrf.mxu0
  %v9138 = vadd.f32 %v9095, %v9137
  %9139 = vdwg.mxu0
  %9140 = vmatprep.subr.bf16.mxu0 %v8459
  %9141 = vmatpush1.bf16.msra.mxu0 %v8458
  %9142 = vmatprep.subr.bf16.mxu0 %v8453
  %9143 = vmatpush1.bf16.msra.mxu0 %v8452
  %9144 = vmatprep.subr.bf16.mxu0 %v8447
  %9145 = vmatpush1.bf16.msra.mxu0 %v8446
  %9146 = vmatprep.subr.bf16.mxu0 %v8441
  %9147 = vmatpush1.bf16.msra.mxu0 %v8440
  %9148 = vmatprep.subr.bf16.mxu0 %v8435
  %9149 = vmatpush1.bf16.msra.mxu0 %v8434
  %9150 = vmatprep.subr.bf16.mxu0 %v8429
  %9151 = vmatpush1.bf16.msra.mxu0 %v8428
  %9152 = vmatprep.subr.bf16.mxu0 %v8423
  %9153 = vmatpush1.bf16.msra.mxu0 %v8422
  %9154 = vmatprep.subr.bf16.mxu0 %v8417
  %9155 = vmatpush1.bf16.msra.mxu0 %v8416
  %9156 = vmatprep.subr.bf16.mxu0 %v8507
  %9157 = vmatpush2.bf16.msra.mxu0 %v8506
  %9158 = vmatprep.subr.bf16.mxu0 %v8501
  %9159 = vmatpush2.bf16.msra.mxu0 %v8500
  %9160 = vmatprep.subr.bf16.mxu0 %v8495
  %9161 = vmatpush2.bf16.msra.mxu0 %v8494
  %9162 = vmatprep.subr.bf16.mxu0 %v8489
  %9163 = vmatpush2.bf16.msra.mxu0 %v8488
  %9164 = vmatprep.subr.bf16.mxu0 %v8483
  %9165 = vmatpush2.bf16.msra.mxu0 %v8482
  %9166 = vmatprep.subr.bf16.mxu0 %v8477
  %9167 = vmatpush2.bf16.msra.mxu0 %v8476
  %9168 = vmatprep.subr.bf16.mxu0 %v8471
  %9169 = vmatpush2.bf16.msra.mxu0 %v8470
  %9170 = vmatprep.subr.bf16.mxu0 %v8465
  %9171 = vmatpush2.bf16.msra.mxu0 %v8464
  %9172 = vmatprep.mubr.bf16.mxu0 %v2446
  %9173 = vmatmul.mubr.bf16.gmra.mxu0 %v2445
  %v9174 = vpop.f32.mrf.mxu0
  %v9175 = vadd.f32 %v9132, %v9174
  %v9176 = vpop.f32.mrf.mxu0
  %v9177 = vadd.f32 %v9134, %v9176
  %v9178 = vpop.f32.mrf.mxu0
  %v9179 = vadd.f32 %v9136, %v9178
  %v9180 = vpop.f32.mrf.mxu0
  %v9181 = vadd.f32 %v9138, %v9180
  %9182 = vdwg.mxu0
  %v9184 = vsel %vm2167, %v7066, 0
  %v9187 = vsel %vm2167, %v7067, 0
  %9189 = vmatprep.subr.mxu0 0.0
  %9190 = vmatpush1.msra.mxu0 0.0
  %9191 = vmatprep.subr.mxu0 0.0
  %9192 = vmatpush1.msra.mxu0 0.0
  %9193 = vmatprep.subr.mxu0 0.0
  %9194 = vmatpush1.msra.mxu0 0.0
  %9195 = vmatprep.subr.mxu0 0.0
  %9196 = vmatpush1.msra.mxu0 0.0
  %9197 = vmatprep.subr.mxu0 0.0
  %9198 = vmatpush1.msra.mxu0 0.0
  %9199 = vmatprep.subr.mxu0 0.0
  %9200 = vmatpush1.msra.mxu0 0.0
  %9201 = vmatprep.subr.mxu0 0.0
  %9202 = vmatpush1.msra.mxu0 0.0
  %9203 = vmatprep.subr.mxu0 0.0
  %9204 = vmatpush1.msra.mxu0 0.0
  %9205 = vmatprep.subr.mxu0 0.0
  %9206 = vmatpush1.msra.mxu0 0.0
  %9207 = vmatprep.subr.mxu0 0.0
  %9208 = vmatpush1.msra.mxu0 0.0
  %9209 = vmatprep.subr.mxu0 0.0
  %9210 = vmatpush1.msra.mxu0 0.0
  %9211 = vmatprep.subr.mxu0 0.0
  %9212 = vmatpush1.msra.mxu0 0.0
  %9213 = vmatprep.subr.mxu0 0.0
  %9214 = vmatpush1.msra.mxu0 0.0
  %9215 = vmatprep.subr.mxu0 0.0
  %9216 = vmatpush1.msra.mxu0 0.0
  %9217 = vmatprep.subr.mxu0 %v8923
  %9218 = vmatpush1.msra.mxu0 %v8921
  %9219 = vmatprep.subr.mxu0 %v8919
  %9220 = vmatpush1.msra.mxu0 %v8917
  %9221 = vmatprep.subr.mxu0 0.0
  %9222 = vmatpush2.msra.mxu0 0.0
  %9223 = vmatprep.subr.mxu0 0.0
  %9224 = vmatpush2.msra.mxu0 0.0
  %9225 = vmatprep.subr.mxu0 0.0
  %9226 = vmatpush2.msra.mxu0 0.0
  %9227 = vmatprep.subr.mxu0 0.0
  %9228 = vmatpush2.msra.mxu0 0.0
  %9229 = vmatprep.subr.mxu0 0.0
  %9230 = vmatpush2.msra.mxu0 0.0
  %9231 = vmatprep.subr.mxu0 0.0
  %9232 = vmatpush2.msra.mxu0 0.0
  %9233 = vmatprep.subr.mxu0 0.0
  %9234 = vmatpush2.msra.mxu0 0.0
  %9235 = vmatprep.subr.mxu0 0.0
  %9236 = vmatpush2.msra.mxu0 0.0
  %9237 = vmatprep.subr.mxu0 0.0
  %9238 = vmatpush2.msra.mxu0 0.0
  %9239 = vmatprep.subr.mxu0 0.0
  %9240 = vmatpush2.msra.mxu0 0.0
  %9241 = vmatprep.subr.mxu0 0.0
  %9242 = vmatpush2.msra.mxu0 0.0
  %9243 = vmatprep.subr.mxu0 0.0
  %9244 = vmatpush2.msra.mxu0 0.0
  %9245 = vmatprep.subr.mxu0 0.0
  %9246 = vmatpush2.msra.mxu0 0.0
  %9247 = vmatprep.subr.mxu0 0.0
  %9248 = vmatpush2.msra.mxu0 0.0
  %9249 = vmatprep.subr.mxu0 0.0
  %9250 = vmatpush2.msra.mxu0 0.0
  %9251 = vmatprep.subr.mxu0 0.0
  %9252 = vmatpush2.msra.mxu0 0.0
  %9253 = vmatprep.mubr.f32.mxu0 0.0
  %9254 = vmatmul.mubr.f32.gmra.mxu0 %v9184
  %v9255 = vpop.f32.mrf.mxu0
  %v9256 = vadd.f32 0.0, %v9255
  %v9257 = vpop.f32.mrf.mxu0
  %v9258 = vadd.f32 0.0, %v9257
  %9259 = vmatprep.mubr.f32.mxu0 0.0
  %9260 = vmatmul.mubr.f32.gmra.mxu0 %v9187
  %v9261 = vpop.f32.mrf.mxu0
  %v9262 = vadd.f32 0.0, %v9261
  %v9263 = vpop.f32.mrf.mxu0
  %v9264 = vadd.f32 0.0, %v9263
  %9265 = vdwg.mxu0
  %9266 = vmatprep.subr.mxu0 0.0
  %9267 = vmatpush1.msra.mxu0 0.0
  %9268 = vmatprep.subr.mxu0 0.0
  %9269 = vmatpush1.msra.mxu0 0.0
  %9270 = vmatprep.subr.mxu0 0.0
  %9271 = vmatpush1.msra.mxu0 0.0
  %9272 = vmatprep.subr.mxu0 0.0
  %9273 = vmatpush1.msra.mxu0 0.0
  %9274 = vmatprep.subr.mxu0 0.0
  %9275 = vmatpush1.msra.mxu0 0.0
  %9276 = vmatprep.subr.mxu0 0.0
  %9277 = vmatpush1.msra.mxu0 0.0
  %9278 = vmatprep.subr.mxu0 0.0
  %9279 = vmatpush1.msra.mxu0 0.0
  %9280 = vmatprep.subr.mxu0 0.0
  %9281 = vmatpush1.msra.mxu0 0.0
  %9282 = vmatprep.subr.mxu0 0.0
  %9283 = vmatpush1.msra.mxu0 0.0
  %9284 = vmatprep.subr.mxu0 0.0
  %9285 = vmatpush1.msra.mxu0 0.0
  %9286 = vmatprep.subr.mxu0 0.0
  %9287 = vmatpush1.msra.mxu0 0.0
  %9288 = vmatprep.subr.mxu0 0.0
  %9289 = vmatpush1.msra.mxu0 0.0
  %9290 = vmatprep.subr.mxu0 0.0
  %9291 = vmatpush1.msra.mxu0 0.0
  %9292 = vmatprep.subr.mxu0 0.0
  %9293 = vmatpush1.msra.mxu0 0.0
  %9294 = vmatprep.subr.mxu0 %v9052
  %9295 = vmatpush1.msra.mxu0 %v9050
  %9296 = vmatprep.subr.mxu0 %v9048
  %9297 = vmatpush1.msra.mxu0 %v9046
  %9298 = vmatprep.subr.mxu0 0.0
  %9299 = vmatpush2.msra.mxu0 0.0
  %9300 = vmatprep.subr.mxu0 0.0
  %9301 = vmatpush2.msra.mxu0 0.0
  %9302 = vmatprep.subr.mxu0 0.0
  %9303 = vmatpush2.msra.mxu0 0.0
  %9304 = vmatprep.subr.mxu0 0.0
  %9305 = vmatpush2.msra.mxu0 0.0
  %9306 = vmatprep.subr.mxu0 0.0
  %9307 = vmatpush2.msra.mxu0 0.0
  %9308 = vmatprep.subr.mxu0 0.0
  %9309 = vmatpush2.msra.mxu0 0.0
  %9310 = vmatprep.subr.mxu0 0.0
  %9311 = vmatpush2.msra.mxu0 0.0
  %9312 = vmatprep.subr.mxu0 0.0
  %9313 = vmatpush2.msra.mxu0 0.0
  %9314 = vmatprep.subr.mxu0 0.0
  %9315 = vmatpush2.msra.mxu0 0.0
  %9316 = vmatprep.subr.mxu0 0.0
  %9317 = vmatpush2.msra.mxu0 0.0
  %9318 = vmatprep.subr.mxu0 0.0
  %9319 = vmatpush2.msra.mxu0 0.0
  %9320 = vmatprep.subr.mxu0 0.0
  %9321 = vmatpush2.msra.mxu0 0.0
  %9322 = vmatprep.subr.mxu0 0.0
  %9323 = vmatpush2.msra.mxu0 0.0
  %9324 = vmatprep.subr.mxu0 0.0
  %9325 = vmatpush2.msra.mxu0 0.0
  %9326 = vmatprep.subr.mxu0 0.0
  %9327 = vmatpush2.msra.mxu0 0.0
  %9328 = vmatprep.subr.mxu0 0.0
  %9329 = vmatpush2.msra.mxu0 0.0
  %9330 = vmatprep.mubr.f32.mxu0 0.0
  %9331 = vmatmul.mubr.f32.gmra.mxu0 %v9184
  %v9332 = vpop.f32.mrf.mxu0
  %v9333 = vadd.f32 0.0, %v9332
  %v9334 = vpop.f32.mrf.mxu0
  %v9335 = vadd.f32 0.0, %v9334
  %9336 = vmatprep.mubr.f32.mxu0 0.0
  %9337 = vmatmul.mubr.f32.gmra.mxu0 %v9187
  %v9338 = vpop.f32.mrf.mxu0
  %v9339 = vadd.f32 0.0, %v9338
  %v9340 = vpop.f32.mrf.mxu0
  %v9341 = vadd.f32 0.0, %v9340
  %9342 = vdwg.mxu0
  %9343 = vmatprep.subr.mxu0 0.0
  %9344 = vmatpush1.msra.mxu0 0.0
  %9345 = vmatprep.subr.mxu0 0.0
  %9346 = vmatpush1.msra.mxu0 0.0
  %9347 = vmatprep.subr.mxu0 0.0
  %9348 = vmatpush1.msra.mxu0 0.0
  %9349 = vmatprep.subr.mxu0 0.0
  %9350 = vmatpush1.msra.mxu0 0.0
  %9351 = vmatprep.subr.mxu0 0.0
  %9352 = vmatpush1.msra.mxu0 0.0
  %9353 = vmatprep.subr.mxu0 0.0
  %9354 = vmatpush1.msra.mxu0 0.0
  %9355 = vmatprep.subr.mxu0 0.0
  %9356 = vmatpush1.msra.mxu0 0.0
  %9357 = vmatprep.subr.mxu0 0.0
  %9358 = vmatpush1.msra.mxu0 0.0
  %9359 = vmatprep.subr.mxu0 0.0
  %9360 = vmatpush1.msra.mxu0 0.0
  %9361 = vmatprep.subr.mxu0 0.0
  %9362 = vmatpush1.msra.mxu0 0.0
  %9363 = vmatprep.subr.mxu0 0.0
  %9364 = vmatpush1.msra.mxu0 0.0
  %9365 = vmatprep.subr.mxu0 0.0
  %9366 = vmatpush1.msra.mxu0 0.0
  %9367 = vmatprep.subr.mxu0 0.0
  %9368 = vmatpush1.msra.mxu0 0.0
  %9369 = vmatprep.subr.mxu0 0.0
  %9370 = vmatpush1.msra.mxu0 0.0
  %9371 = vmatprep.subr.mxu0 %v9181
  %9372 = vmatpush1.msra.mxu0 %v9179
  %9373 = vmatprep.subr.mxu0 %v9177
  %9374 = vmatpush1.msra.mxu0 %v9175
  %9375 = vmatprep.subr.mxu0 0.0
  %9376 = vmatpush2.msra.mxu0 0.0
  %9377 = vmatprep.subr.mxu0 0.0
  %9378 = vmatpush2.msra.mxu0 0.0
  %9379 = vmatprep.subr.mxu0 0.0
  %9380 = vmatpush2.msra.mxu0 0.0
  %9381 = vmatprep.subr.mxu0 0.0
  %9382 = vmatpush2.msra.mxu0 0.0
  %9383 = vmatprep.subr.mxu0 0.0
  %9384 = vmatpush2.msra.mxu0 0.0
  %9385 = vmatprep.subr.mxu0 0.0
  %9386 = vmatpush2.msra.mxu0 0.0
  %9387 = vmatprep.subr.mxu0 0.0
  %9388 = vmatpush2.msra.mxu0 0.0
  %9389 = vmatprep.subr.mxu0 0.0
  %9390 = vmatpush2.msra.mxu0 0.0
  %9391 = vmatprep.subr.mxu0 0.0
  %9392 = vmatpush2.msra.mxu0 0.0
  %9393 = vmatprep.subr.mxu0 0.0
  %9394 = vmatpush2.msra.mxu0 0.0
  %9395 = vmatprep.subr.mxu0 0.0
  %9396 = vmatpush2.msra.mxu0 0.0
  %9397 = vmatprep.subr.mxu0 0.0
  %9398 = vmatpush2.msra.mxu0 0.0
  %9399 = vmatprep.subr.mxu0 0.0
  %9400 = vmatpush2.msra.mxu0 0.0
  %9401 = vmatprep.subr.mxu0 0.0
  %9402 = vmatpush2.msra.mxu0 0.0
  %9403 = vmatprep.subr.mxu0 0.0
  %9404 = vmatpush2.msra.mxu0 0.0
  %9405 = vmatprep.subr.mxu0 0.0
  %9406 = vmatpush2.msra.mxu0 0.0
  %9407 = vmatprep.mubr.f32.mxu0 0.0
  %9408 = vmatmul.mubr.f32.gmra.mxu0 %v9184
  %v9409 = vpop.f32.mrf.mxu0
  %v9410 = vadd.f32 0.0, %v9409
  %v9411 = vpop.f32.mrf.mxu0
  %v9412 = vadd.f32 0.0, %v9411
  %9413 = vmatprep.mubr.f32.mxu0 0.0
  %9414 = vmatmul.mubr.f32.gmra.mxu0 %v9187
  %v9415 = vpop.f32.mrf.mxu0
  %v9416 = vadd.f32 0.0, %v9415
  %v9417 = vpop.f32.mrf.mxu0
  %v9418 = vadd.f32 0.0, %v9417
  %9419 = vdwg.mxu0
  %vm9420 = vcmp.ge.f32.partialorder %v9256, 0.0
  %vm9421 = vcmp.ge.f32.partialorder %v9258, 0.0
  %vm9422 = vcmp.ge.f32.partialorder %v9333, 0.0
  %vm9423 = vcmp.ge.f32.partialorder %v9335, 0.0
  %vm9424 = vcmp.ge.f32.partialorder %v9410, 0.0
  %vm9425 = vcmp.ge.f32.partialorder %v9412, 0.0
  %vm9426 = vcmp.ge.f32.partialorder %v9262, 0.0
  %vm9427 = vcmp.ge.f32.partialorder %v9264, 0.0
  %vm9428 = vcmp.ge.f32.partialorder %v9339, 0.0
  %vm9429 = vcmp.ge.f32.partialorder %v9341, 0.0
  %vm9430 = vcmp.ge.f32.partialorder %v9416, 0.0
  %vm9431 = vcmp.ge.f32.partialorder %v9418, 0.0
  %v9432 = vmul.f32 %v9256, 0.2
  %v9433 = vmul.f32 %v9258, 0.2
  %v9434 = vmul.f32 %v9333, 0.2
  %v9435 = vmul.f32 %v9335, 0.2
  %v9436 = vmul.f32 %v9410, 0.2
  %v9437 = vmul.f32 %v9412, 0.2
  %v9438 = vmul.f32 %v9262, 0.2
  %v9439 = vmul.f32 %v9264, 0.2
  %v9440 = vmul.f32 %v9339, 0.2
  %v9441 = vmul.f32 %v9341, 0.2
  %v9442 = vmul.f32 %v9416, 0.2
  %v9443 = vmul.f32 %v9418, 0.2
  %v9444 = vsel %vm9420, %v9256, %v9432
  %v9445 = vsel %vm9421, %v9258, %v9433
  %v9446 = vsel %vm9422, %v9333, %v9434
  %v9447 = vsel %vm9423, %v9335, %v9435
  %v9448 = vsel %vm9424, %v9410, %v9436
  %v9449 = vsel %vm9425, %v9412, %v9437
  %v9450 = vsel %vm9426, %v9262, %v9438
  %v9451 = vsel %vm9427, %v9264, %v9439
  %v9452 = vsel %vm9428, %v9339, %v9440
  %v9453 = vsel %vm9429, %v9341, %v9441
  %v9454 = vsel %vm9430, %v9416, %v9442
  %v9455 = vsel %vm9431, %v9418, %v9443
  %v9456 = vld [vmem:[%s6] sm:$0xff]
  %v9457 = vld [vmem:[%s6 + $0x8] sm:$0xff]
  %v9458 = vld [vmem:[%s6 + $0x10] sm:$0xff]
  %v9459 = vld [vmem:[%s6 + $0x18] sm:$0xff]
  %v9460 = vld [vmem:[%s6 + $0x20] sm:$0xff]
  %v9461 = vld [vmem:[%s6 + $0x28] sm:$0xff]
  %v9462 = vld [vmem:[%s6 + $0x30] sm:$0xff]
  %v9463 = vld [vmem:[%s6 + $0x38] sm:$0xff]
  %v9464 = vld [vmem:[%s6 + $0x40] sm:$0xff]
  %v9465 = vld [vmem:[%s6 + $0x48] sm:$0xff]
  %v9466 = vld [vmem:[%s6 + $0x50] sm:$0xff]
  %v9467 = vld [vmem:[%s6 + $0x58] sm:$0xff]
  %v9468 = vld [vmem:[%s6 + $0x60] sm:$0xff]
  %v9469 = vld [vmem:[%s6 + $0x68] sm:$0xff]
  %v9470 = vld [vmem:[%s6 + $0x70] sm:$0xff]
  %v9471 = vld [vmem:[%s6 + $0x78] sm:$0xff]
  %v9472 = vld [vmem:[%s6 + $0x80] sm:$0xff]
  %v9473 = vld [vmem:[%s6 + $0x88] sm:$0xff]
  %v9474 = vld [vmem:[%s6 + $0x90] sm:$0xff]
  %v9475 = vld [vmem:[%s6 + $0x98] sm:$0xff]
  %v9476 = vld [vmem:[%s6 + $0xa0] sm:$0xff]
  %v9477 = vld [vmem:[%s6 + $0xa8] sm:$0xff]
  %v9478 = vld [vmem:[%s6 + $0xb0] sm:$0xff]
  %v9479 = vld [vmem:[%s6 + $0xb8] sm:$0xff]
  %v9480 = vld [vmem:[%s6 + $0xc0] sm:$0xff]
  %v9481 = vld [vmem:[%s6 + $0xc8] sm:$0xff]
  %v9482 = vld [vmem:[%s6 + $0xd0] sm:$0xff]
  %v9483 = vld [vmem:[%s6 + $0xd8] sm:$0xff]
  %v9484 = vld [vmem:[%s6 + $0xe0] sm:$0xff]
  %v9485 = vld [vmem:[%s6 + $0xe8] sm:$0xff]
  %v9486 = vld [vmem:[%s6 + $0xf0] sm:$0xff]
  %v9487 = vld [vmem:[%s6 + $0xf8] sm:$0xff]
  %v9488 = vld [vmem:[%s6 + $0x100] sm:$0xff]
  %v9489 = vld [vmem:[%s6 + $0x108] sm:$0xff]
  %v9490 = vld [vmem:[%s6 + $0x110] sm:$0xff]
  %v9491 = vld [vmem:[%s6 + $0x118] sm:$0xff]
  %v9492 = vld [vmem:[%s6 + $0x120] sm:$0xff]
  %v9493 = vld [vmem:[%s6 + $0x128] sm:$0xff]
  %v9494 = vld [vmem:[%s6 + $0x130] sm:$0xff]
  %v9495 = vld [vmem:[%s6 + $0x138] sm:$0xff]
  %v9496 = vld [vmem:[%s6 + $0x140] sm:$0xff]
  %v9497 = vld [vmem:[%s6 + $0x148] sm:$0xff]
  %v9498 = vld [vmem:[%s6 + $0x150] sm:$0xff]
  %v9499 = vld [vmem:[%s6 + $0x158] sm:$0xff]
  %v9500 = vld [vmem:[%s6 + $0x160] sm:$0xff]
  %v9501 = vld [vmem:[%s6 + $0x168] sm:$0xff]
  %v9502 = vld [vmem:[%s6 + $0x170] sm:$0xff]
  %v9503 = vld [vmem:[%s6 + $0x178] sm:$0xff]
  %v9504 = vld [vmem:[%s6 + $0x180] sm:$0xff]
  %v9505 = vld [vmem:[%s6 + $0x188] sm:$0xff]
  %v9506 = vld [vmem:[%s6 + $0x190] sm:$0xff]
  %v9507 = vld [vmem:[%s6 + $0x198] sm:$0xff]
  %v9508 = vld [vmem:[%s6 + $0x1a0] sm:$0xff]
  %v9509 = vld [vmem:[%s6 + $0x1a8] sm:$0xff]
  %v9510 = vld [vmem:[%s6 + $0x1b0] sm:$0xff]
  %v9511 = vld [vmem:[%s6 + $0x1b8] sm:$0xff]
  %v9512 = vld [vmem:[%s6 + $0x1c0] sm:$0xff]
  %v9513 = vld [vmem:[%s6 + $0x1c8] sm:$0xff]
  %v9514 = vld [vmem:[%s6 + $0x1d0] sm:$0xff]
  %v9515 = vld [vmem:[%s6 + $0x1d8] sm:$0xff]
  %v9516 = vld [vmem:[%s6 + $0x1e0] sm:$0xff]
  %v9517 = vld [vmem:[%s6 + $0x1e8] sm:$0xff]
  %v9518 = vld [vmem:[%s6 + $0x1f0] sm:$0xff]
  %v9519 = vld [vmem:[%s6 + $0x1f8] sm:$0xff]
  %v9520 = vld [vmem:[%s6 + $0x200] sm:$0xff]
  %v9521 = vld [vmem:[%s6 + $0x208] sm:$0xff]
  %v9522 = vld [vmem:[%s6 + $0x210] sm:$0xff]
  %v9523 = vld [vmem:[%s6 + $0x218] sm:$0xff]
  %v9524 = vld [vmem:[%s6 + $0x220] sm:$0xff]
  %v9525 = vld [vmem:[%s6 + $0x228] sm:$0xff]
  %v9526 = vld [vmem:[%s6 + $0x230] sm:$0xff]
  %v9527 = vld [vmem:[%s6 + $0x238] sm:$0xff]
  %v9528 = vld [vmem:[%s6 + $0x240] sm:$0xff]
  %v9529 = vld [vmem:[%s6 + $0x248] sm:$0xff]
  %v9530 = vld [vmem:[%s6 + $0x250] sm:$0xff]
  %v9531 = vld [vmem:[%s6 + $0x258] sm:$0xff]
  %v9532 = vld [vmem:[%s6 + $0x260] sm:$0xff]
  %v9533 = vld [vmem:[%s6 + $0x268] sm:$0xff]
  %v9534 = vld [vmem:[%s6 + $0x270] sm:$0xff]
  %v9535 = vld [vmem:[%s6 + $0x278] sm:$0xff]
  %v9536 = vld [vmem:[%s6 + $0x280] sm:$0xff]
  %v9537 = vld [vmem:[%s6 + $0x288] sm:$0xff]
  %v9538 = vld [vmem:[%s6 + $0x290] sm:$0xff]
  %v9539 = vld [vmem:[%s6 + $0x298] sm:$0xff]
  %v9540 = vld [vmem:[%s6 + $0x2a0] sm:$0xff]
  %v9541 = vld [vmem:[%s6 + $0x2a8] sm:$0xff]
  %v9542 = vld [vmem:[%s6 + $0x2b0] sm:$0xff]
  %v9543 = vld [vmem:[%s6 + $0x2b8] sm:$0xff]
  %v9544 = vld [vmem:[%s6 + $0x2c0] sm:$0xff]
  %v9545 = vld [vmem:[%s6 + $0x2c8] sm:$0xff]
  %v9546 = vld [vmem:[%s6 + $0x2d0] sm:$0xff]
  %v9547 = vld [vmem:[%s6 + $0x2d8] sm:$0xff]
  %v9548 = vld [vmem:[%s6 + $0x2e0] sm:$0xff]
  %v9549 = vld [vmem:[%s6 + $0x2e8] sm:$0xff]
  %v9550 = vld [vmem:[%s6 + $0x2f0] sm:$0xff]
  %v9551 = vld [vmem:[%s6 + $0x2f8] sm:$0xff]
  %v9552 = vld [vmem:[%s6 + $0x300] sm:$0xff]
  %v9553 = vld [vmem:[%s6 + $0x308] sm:$0xff]
  %v9554 = vld [vmem:[%s6 + $0x310] sm:$0xff]
  %v9555 = vld [vmem:[%s6 + $0x318] sm:$0xff]
  %v9556 = vld [vmem:[%s6 + $0x320] sm:$0xff]
  %v9557 = vld [vmem:[%s6 + $0x328] sm:$0xff]
  %v9558 = vld [vmem:[%s6 + $0x330] sm:$0xff]
  %v9559 = vld [vmem:[%s6 + $0x338] sm:$0xff]
  %v9560 = vld [vmem:[%s6 + $0x340] sm:$0xff]
  %v9561 = vld [vmem:[%s6 + $0x348] sm:$0xff]
  %v9562 = vld [vmem:[%s6 + $0x350] sm:$0xff]
  %v9563 = vld [vmem:[%s6 + $0x358] sm:$0xff]
  %v9564 = vld [vmem:[%s6 + $0x360] sm:$0xff]
  %v9565 = vld [vmem:[%s6 + $0x368] sm:$0xff]
  %v9566 = vld [vmem:[%s6 + $0x370] sm:$0xff]
  %v9567 = vld [vmem:[%s6 + $0x378] sm:$0xff]
  %v9568 = vld [vmem:[%s6 + $0x380] sm:$0xff]
  %v9569 = vld [vmem:[%s6 + $0x388] sm:$0xff]
  %v9570 = vld [vmem:[%s6 + $0x390] sm:$0xff]
  %v9571 = vld [vmem:[%s6 + $0x398] sm:$0xff]
  %v9572 = vld [vmem:[%s6 + $0x3a0] sm:$0xff]
  %v9573 = vld [vmem:[%s6 + $0x3a8] sm:$0xff]
  %v9574 = vld [vmem:[%s6 + $0x3b0] sm:$0xff]
  %v9575 = vld [vmem:[%s6 + $0x3b8] sm:$0xff]
  %v9576 = vld [vmem:[%s6 + $0x3c0] sm:$0xff]
  %v9577 = vld [vmem:[%s6 + $0x3c8] sm:$0xff]
  %v9578 = vld [vmem:[%s6 + $0x3d0] sm:$0xff]
  %v9579 = vld [vmem:[%s6 + $0x3d8] sm:$0xff]
  %v9580 = vld [vmem:[%s6 + $0x3e0] sm:$0xff]
  %v9581 = vld [vmem:[%s6 + $0x3e8] sm:$0xff]
  %v9582 = vld [vmem:[%s6 + $0x3f0] sm:$0xff]
  %v9583 = vld [vmem:[%s6 + $0x3f8] sm:$0xff]
  %v9584 = vld [vmem:[%s6 + $0x400] sm:$0xff]
  %v9585 = vld [vmem:[%s6 + $0x408] sm:$0xff]
  %v9586 = vld [vmem:[%s6 + $0x410] sm:$0xff]
  %v9587 = vld [vmem:[%s6 + $0x418] sm:$0xff]
  %v9588 = vld [vmem:[%s6 + $0x420] sm:$0xff]
  %v9589 = vld [vmem:[%s6 + $0x428] sm:$0xff]
  %v9590 = vld [vmem:[%s6 + $0x430] sm:$0xff]
  %v9591 = vld [vmem:[%s6 + $0x438] sm:$0xff]
  %v9592 = vld [vmem:[%s6 + $0x440] sm:$0xff]
  %v9593 = vld [vmem:[%s6 + $0x448] sm:$0xff]
  %v9594 = vld [vmem:[%s6 + $0x450] sm:$0xff]
  %v9595 = vld [vmem:[%s6 + $0x458] sm:$0xff]
  %v9596 = vld [vmem:[%s6 + $0x460] sm:$0xff]
  %v9597 = vld [vmem:[%s6 + $0x468] sm:$0xff]
  %v9598 = vld [vmem:[%s6 + $0x470] sm:$0xff]
  %v9599 = vld [vmem:[%s6 + $0x478] sm:$0xff]
  %v9600 = vld [vmem:[%s6 + $0x480] sm:$0xff]
  %v9601 = vld [vmem:[%s6 + $0x488] sm:$0xff]
  %v9602 = vld [vmem:[%s6 + $0x490] sm:$0xff]
  %v9603 = vld [vmem:[%s6 + $0x498] sm:$0xff]
  %v9604 = vld [vmem:[%s6 + $0x4a0] sm:$0xff]
  %v9605 = vld [vmem:[%s6 + $0x4a8] sm:$0xff]
  %v9606 = vld [vmem:[%s6 + $0x4b0] sm:$0xff]
  %v9607 = vld [vmem:[%s6 + $0x4b8] sm:$0xff]
  %v9608 = vld [vmem:[%s6 + $0x4c0] sm:$0xff]
  %v9609 = vld [vmem:[%s6 + $0x4c8] sm:$0xff]
  %v9610 = vld [vmem:[%s6 + $0x4d0] sm:$0xff]
  %v9611 = vld [vmem:[%s6 + $0x4d8] sm:$0xff]
  %v9612 = vld [vmem:[%s6 + $0x4e0] sm:$0xff]
  %v9613 = vld [vmem:[%s6 + $0x4e8] sm:$0xff]
  %v9614 = vld [vmem:[%s6 + $0x4f0] sm:$0xff]
  %v9615 = vld [vmem:[%s6 + $0x4f8] sm:$0xff]
  %v9616 = vld [vmem:[%s6 + $0x500] sm:$0xff]
  %v9617 = vld [vmem:[%s6 + $0x508] sm:$0xff]
  %v9618 = vld [vmem:[%s6 + $0x510] sm:$0xff]
  %v9619 = vld [vmem:[%s6 + $0x518] sm:$0xff]
  %v9620 = vld [vmem:[%s6 + $0x520] sm:$0xff]
  %v9621 = vld [vmem:[%s6 + $0x528] sm:$0xff]
  %v9622 = vld [vmem:[%s6 + $0x530] sm:$0xff]
  %v9623 = vld [vmem:[%s6 + $0x538] sm:$0xff]
  %v9624 = vld [vmem:[%s6 + $0x540] sm:$0xff]
  %v9625 = vld [vmem:[%s6 + $0x548] sm:$0xff]
  %v9626 = vld [vmem:[%s6 + $0x550] sm:$0xff]
  %v9627 = vld [vmem:[%s6 + $0x558] sm:$0xff]
  %v9628 = vld [vmem:[%s6 + $0x560] sm:$0xff]
  %v9629 = vld [vmem:[%s6 + $0x568] sm:$0xff]
  %v9630 = vld [vmem:[%s6 + $0x570] sm:$0xff]
  %v9631 = vld [vmem:[%s6 + $0x578] sm:$0xff]
  %v9632 = vld [vmem:[%s6 + $0x580] sm:$0xff]
  %v9633 = vld [vmem:[%s6 + $0x588] sm:$0xff]
  %v9634 = vld [vmem:[%s6 + $0x590] sm:$0xff]
  %v9635 = vld [vmem:[%s6 + $0x598] sm:$0xff]
  %v9636 = vld [vmem:[%s6 + $0x5a0] sm:$0xff]
  %v9637 = vld [vmem:[%s6 + $0x5a8] sm:$0xff]
  %v9638 = vld [vmem:[%s6 + $0x5b0] sm:$0xff]
  %v9639 = vld [vmem:[%s6 + $0x5b8] sm:$0xff]
  %v9640 = vld [vmem:[%s6 + $0x5c0] sm:$0xff]
  %v9641 = vld [vmem:[%s6 + $0x5c8] sm:$0xff]
  %v9642 = vld [vmem:[%s6 + $0x5d0] sm:$0xff]
  %v9643 = vld [vmem:[%s6 + $0x5d8] sm:$0xff]
  %v9644 = vld [vmem:[%s6 + $0x5e0] sm:$0xff]
  %v9645 = vld [vmem:[%s6 + $0x5e8] sm:$0xff]
  %v9646 = vld [vmem:[%s6 + $0x5f0] sm:$0xff]
  %v9647 = vld [vmem:[%s6 + $0x5f8] sm:$0xff]
  %v9648 = vld [vmem:[%s6 + $0x600] sm:$0xff]
  %v9649 = vld [vmem:[%s6 + $0x608] sm:$0xff]
  %v9650 = vld [vmem:[%s6 + $0x610] sm:$0xff]
  %v9651 = vld [vmem:[%s6 + $0x618] sm:$0xff]
  %v9652 = vld [vmem:[%s6 + $0x620] sm:$0xff]
  %v9653 = vld [vmem:[%s6 + $0x628] sm:$0xff]
  %v9654 = vld [vmem:[%s6 + $0x630] sm:$0xff]
  %v9655 = vld [vmem:[%s6 + $0x638] sm:$0xff]
  %v9656 = vld [vmem:[%s6 + $0x640] sm:$0xff]
  %v9657 = vld [vmem:[%s6 + $0x648] sm:$0xff]
  %v9658 = vld [vmem:[%s6 + $0x650] sm:$0xff]
  %v9659 = vld [vmem:[%s6 + $0x658] sm:$0xff]
  %v9660 = vld [vmem:[%s6 + $0x660] sm:$0xff]
  %v9661 = vld [vmem:[%s6 + $0x668] sm:$0xff]
  %v9662 = vld [vmem:[%s6 + $0x670] sm:$0xff]
  %v9663 = vld [vmem:[%s6 + $0x678] sm:$0xff]
  %v9664 = vld [vmem:[%s6 + $0x680] sm:$0xff]
  %v9665 = vld [vmem:[%s6 + $0x688] sm:$0xff]
  %v9666 = vld [vmem:[%s6 + $0x690] sm:$0xff]
  %v9667 = vld [vmem:[%s6 + $0x698] sm:$0xff]
  %v9668 = vld [vmem:[%s6 + $0x6a0] sm:$0xff]
  %v9669 = vld [vmem:[%s6 + $0x6a8] sm:$0xff]
  %v9670 = vld [vmem:[%s6 + $0x6b0] sm:$0xff]
  %v9671 = vld [vmem:[%s6 + $0x6b8] sm:$0xff]
  %v9672 = vld [vmem:[%s6 + $0x6c0] sm:$0xff]
  %v9673 = vld [vmem:[%s6 + $0x6c8] sm:$0xff]
  %v9674 = vld [vmem:[%s6 + $0x6d0] sm:$0xff]
  %v9675 = vld [vmem:[%s6 + $0x6d8] sm:$0xff]
  %v9676 = vld [vmem:[%s6 + $0x6e0] sm:$0xff]
  %v9677 = vld [vmem:[%s6 + $0x6e8] sm:$0xff]
  %v9678 = vld [vmem:[%s6 + $0x6f0] sm:$0xff]
  %v9679 = vld [vmem:[%s6 + $0x6f8] sm:$0xff]
  %v9680 = vld [vmem:[%s6 + $0x700] sm:$0xff]
  %v9681 = vld [vmem:[%s6 + $0x708] sm:$0xff]
  %v9682 = vld [vmem:[%s6 + $0x710] sm:$0xff]
  %v9683 = vld [vmem:[%s6 + $0x718] sm:$0xff]
  %v9684 = vld [vmem:[%s6 + $0x720] sm:$0xff]
  %v9685 = vld [vmem:[%s6 + $0x728] sm:$0xff]
  %v9686 = vld [vmem:[%s6 + $0x730] sm:$0xff]
  %v9687 = vld [vmem:[%s6 + $0x738] sm:$0xff]
  %v9688 = vld [vmem:[%s6 + $0x740] sm:$0xff]
  %v9689 = vld [vmem:[%s6 + $0x748] sm:$0xff]
  %v9690 = vld [vmem:[%s6 + $0x750] sm:$0xff]
  %v9691 = vld [vmem:[%s6 + $0x758] sm:$0xff]
  %v9692 = vld [vmem:[%s6 + $0x760] sm:$0xff]
  %v9693 = vld [vmem:[%s6 + $0x768] sm:$0xff]
  %v9694 = vld [vmem:[%s6 + $0x770] sm:$0xff]
  %v9695 = vld [vmem:[%s6 + $0x778] sm:$0xff]
  %v9696 = vld [vmem:[%s6 + $0x780] sm:$0xff]
  %v9697 = vld [vmem:[%s6 + $0x788] sm:$0xff]
  %v9698 = vld [vmem:[%s6 + $0x790] sm:$0xff]
  %v9699 = vld [vmem:[%s6 + $0x798] sm:$0xff]
  %v9700 = vld [vmem:[%s6 + $0x7a0] sm:$0xff]
  %v9701 = vld [vmem:[%s6 + $0x7a8] sm:$0xff]
  %v9702 = vld [vmem:[%s6 + $0x7b0] sm:$0xff]
  %v9703 = vld [vmem:[%s6 + $0x7b8] sm:$0xff]
  %v9704 = vld [vmem:[%s6 + $0x7c0] sm:$0xff]
  %v9705 = vld [vmem:[%s6 + $0x7c8] sm:$0xff]
  %v9706 = vld [vmem:[%s6 + $0x7d0] sm:$0xff]
  %v9707 = vld [vmem:[%s6 + $0x7d8] sm:$0xff]
  %v9708 = vld [vmem:[%s6 + $0x7e0] sm:$0xff]
  %v9709 = vld [vmem:[%s6 + $0x7e8] sm:$0xff]
  %v9710 = vld [vmem:[%s6 + $0x7f0] sm:$0xff]
  %v9711 = vld [vmem:[%s6 + $0x7f8] sm:$0xff]
  %v9712 = vld [vmem:[%s6 + $0x800] sm:$0xff]
  %v9713 = vld [vmem:[%s6 + $0x808] sm:$0xff]
  %v9714 = vld [vmem:[%s6 + $0x810] sm:$0xff]
  %v9715 = vld [vmem:[%s6 + $0x818] sm:$0xff]
  %v9716 = vld [vmem:[%s6 + $0x820] sm:$0xff]
  %v9717 = vld [vmem:[%s6 + $0x828] sm:$0xff]
  %v9718 = vld [vmem:[%s6 + $0x830] sm:$0xff]
  %v9719 = vld [vmem:[%s6 + $0x838] sm:$0xff]
  %v9720 = vld [vmem:[%s6 + $0x840] sm:$0xff]
  %v9721 = vld [vmem:[%s6 + $0x848] sm:$0xff]
  %v9722 = vld [vmem:[%s6 + $0x850] sm:$0xff]
  %v9723 = vld [vmem:[%s6 + $0x858] sm:$0xff]
  %v9724 = vld [vmem:[%s6 + $0x860] sm:$0xff]
  %v9725 = vld [vmem:[%s6 + $0x868] sm:$0xff]
  %v9726 = vld [vmem:[%s6 + $0x870] sm:$0xff]
  %v9727 = vld [vmem:[%s6 + $0x878] sm:$0xff]
  %v9728 = vld [vmem:[%s6 + $0x880] sm:$0xff]
  %v9729 = vld [vmem:[%s6 + $0x888] sm:$0xff]
  %v9730 = vld [vmem:[%s6 + $0x890] sm:$0xff]
  %v9731 = vld [vmem:[%s6 + $0x898] sm:$0xff]
  %v9732 = vld [vmem:[%s6 + $0x8a0] sm:$0xff]
  %v9733 = vld [vmem:[%s6 + $0x8a8] sm:$0xff]
  %v9734 = vld [vmem:[%s6 + $0x8b0] sm:$0xff]
  %v9735 = vld [vmem:[%s6 + $0x8b8] sm:$0xff]
  %v9736 = vld [vmem:[%s6 + $0x8c0] sm:$0xff]
  %v9737 = vld [vmem:[%s6 + $0x8c8] sm:$0xff]
  %v9738 = vld [vmem:[%s6 + $0x8d0] sm:$0xff]
  %v9739 = vld [vmem:[%s6 + $0x8d8] sm:$0xff]
  %v9740 = vld [vmem:[%s6 + $0x8e0] sm:$0xff]
  %v9741 = vld [vmem:[%s6 + $0x8e8] sm:$0xff]
  %v9742 = vld [vmem:[%s6 + $0x8f0] sm:$0xff]
  %v9743 = vld [vmem:[%s6 + $0x8f8] sm:$0xff]
  %v9744 = vpack.c.bf16 %v9450, %v9444
  %v9745 = vpack.c.bf16 %v9451, %v9445
  %v9746 = vpack.c.bf16 %v9452, %v9446
  %v9747 = vpack.c.bf16 %v9453, %v9447
  %v9748 = vpack.c.bf16 %v9454, %v9448
  %v9749 = vpack.c.bf16 %v9455, %v9449
  %v9750 = vld [vmem:[%s7] sm:$0xff]
  %v9751 = vld [vmem:[%s7 + $0x8] sm:$0xff]
  %v9752 = vld [vmem:[%s7 + $0x10] sm:$0xff]
  %v9753 = vld [vmem:[%s7 + $0x18] sm:$0xff]
  %v9754 = vld [vmem:[%s7 + $0x20] sm:$0xff]
  %v9755 = vld [vmem:[%s7 + $0x28] sm:$0xff]
  %v9756 = vld [vmem:[%s7 + $0x30] sm:$0xff]
  %v9757 = vld [vmem:[%s7 + $0x38] sm:$0xff]
  %v9758 = vld [vmem:[%s7 + $0x40] sm:$0xff]
  %v9759 = vld [vmem:[%s7 + $0x48] sm:$0xff]
  %v9760 = vld [vmem:[%s7 + $0x50] sm:$0xff]
  %v9761 = vld [vmem:[%s7 + $0x58] sm:$0xff]
  %v9762 = vld [vmem:[%s7 + $0x60] sm:$0xff]
  %v9763 = vld [vmem:[%s7 + $0x68] sm:$0xff]
  %v9764 = vld [vmem:[%s7 + $0x70] sm:$0xff]
  %v9765 = vld [vmem:[%s7 + $0x78] sm:$0xff]
  %v9766 = vld [vmem:[%s7 + $0x80] sm:$0xff]
  %v9767 = vld [vmem:[%s7 + $0x88] sm:$0xff]
  %v9768 = vld [vmem:[%s7 + $0x90] sm:$0xff]
  %v9769 = vld [vmem:[%s7 + $0x98] sm:$0xff]
  %v9770 = vld [vmem:[%s7 + $0xa0] sm:$0xff]
  %v9771 = vld [vmem:[%s7 + $0xa8] sm:$0xff]
  %v9772 = vld [vmem:[%s7 + $0xb0] sm:$0xff]
  %v9773 = vld [vmem:[%s7 + $0xb8] sm:$0xff]
  %v9774 = vld [vmem:[%s7 + $0xc0] sm:$0xff]
  %v9775 = vld [vmem:[%s7 + $0xc8] sm:$0xff]
  %v9776 = vld [vmem:[%s7 + $0xd0] sm:$0xff]
  %v9777 = vld [vmem:[%s7 + $0xd8] sm:$0xff]
  %v9778 = vld [vmem:[%s7 + $0xe0] sm:$0xff]
  %v9779 = vld [vmem:[%s7 + $0xe8] sm:$0xff]
  %v9780 = vld [vmem:[%s7 + $0xf0] sm:$0xff]
  %v9781 = vld [vmem:[%s7 + $0xf8] sm:$0xff]
  %v9782 = vld [vmem:[%s7 + $0x100] sm:$0xff]
  %v9783 = vld [vmem:[%s7 + $0x108] sm:$0xff]
  %v9784 = vld [vmem:[%s7 + $0x110] sm:$0xff]
  %v9785 = vld [vmem:[%s7 + $0x118] sm:$0xff]
  %v9786 = vld [vmem:[%s7 + $0x120] sm:$0xff]
  %v9787 = vld [vmem:[%s7 + $0x128] sm:$0xff]
  %v9788 = vld [vmem:[%s7 + $0x130] sm:$0xff]
  %v9789 = vld [vmem:[%s7 + $0x138] sm:$0xff]
  %v9790 = vld [vmem:[%s7 + $0x140] sm:$0xff]
  %v9791 = vld [vmem:[%s7 + $0x148] sm:$0xff]
  %v9792 = vld [vmem:[%s7 + $0x150] sm:$0xff]
  %v9793 = vld [vmem:[%s7 + $0x158] sm:$0xff]
  %v9794 = vld [vmem:[%s7 + $0x160] sm:$0xff]
  %v9795 = vld [vmem:[%s7 + $0x168] sm:$0xff]
  %v9796 = vld [vmem:[%s7 + $0x170] sm:$0xff]
  %v9797 = vld [vmem:[%s7 + $0x178] sm:$0xff]
  %v9798 = vld [vmem:[%s7 + $0x180] sm:$0xff]
  %v9799 = vld [vmem:[%s7 + $0x188] sm:$0xff]
  %v9800 = vld [vmem:[%s7 + $0x190] sm:$0xff]
  %v9801 = vld [vmem:[%s7 + $0x198] sm:$0xff]
  %v9802 = vld [vmem:[%s7 + $0x1a0] sm:$0xff]
  %v9803 = vld [vmem:[%s7 + $0x1a8] sm:$0xff]
  %v9804 = vld [vmem:[%s7 + $0x1b0] sm:$0xff]
  %v9805 = vld [vmem:[%s7 + $0x1b8] sm:$0xff]
  %v9806 = vld [vmem:[%s7 + $0x1c0] sm:$0xff]
  %v9807 = vld [vmem:[%s7 + $0x1c8] sm:$0xff]
  %v9808 = vld [vmem:[%s7 + $0x1d0] sm:$0xff]
  %v9809 = vld [vmem:[%s7 + $0x1d8] sm:$0xff]
  %v9810 = vld [vmem:[%s7 + $0x1e0] sm:$0xff]
  %v9811 = vld [vmem:[%s7 + $0x1e8] sm:$0xff]
  %v9812 = vld [vmem:[%s7 + $0x1f0] sm:$0xff]
  %v9813 = vld [vmem:[%s7 + $0x1f8] sm:$0xff]
  %v9814 = vld [vmem:[%s7 + $0x200] sm:$0xff]
  %v9815 = vld [vmem:[%s7 + $0x208] sm:$0xff]
  %v9816 = vld [vmem:[%s7 + $0x210] sm:$0xff]
  %v9817 = vld [vmem:[%s7 + $0x218] sm:$0xff]
  %v9818 = vld [vmem:[%s7 + $0x220] sm:$0xff]
  %v9819 = vld [vmem:[%s7 + $0x228] sm:$0xff]
  %v9820 = vld [vmem:[%s7 + $0x230] sm:$0xff]
  %v9821 = vld [vmem:[%s7 + $0x238] sm:$0xff]
  %v9822 = vld [vmem:[%s7 + $0x240] sm:$0xff]
  %v9823 = vld [vmem:[%s7 + $0x248] sm:$0xff]
  %v9824 = vld [vmem:[%s7 + $0x250] sm:$0xff]
  %v9825 = vld [vmem:[%s7 + $0x258] sm:$0xff]
  %v9826 = vld [vmem:[%s7 + $0x260] sm:$0xff]
  %v9827 = vld [vmem:[%s7 + $0x268] sm:$0xff]
  %v9828 = vld [vmem:[%s7 + $0x270] sm:$0xff]
  %v9829 = vld [vmem:[%s7 + $0x278] sm:$0xff]
  %v9830 = vld [vmem:[%s7 + $0x280] sm:$0xff]
  %v9831 = vld [vmem:[%s7 + $0x288] sm:$0xff]
  %v9832 = vld [vmem:[%s7 + $0x290] sm:$0xff]
  %v9833 = vld [vmem:[%s7 + $0x298] sm:$0xff]
  %v9834 = vld [vmem:[%s7 + $0x2a0] sm:$0xff]
  %v9835 = vld [vmem:[%s7 + $0x2a8] sm:$0xff]
  %v9836 = vld [vmem:[%s7 + $0x2b0] sm:$0xff]
  %v9837 = vld [vmem:[%s7 + $0x2b8] sm:$0xff]
  %v9838 = vld [vmem:[%s7 + $0x2c0] sm:$0xff]
  %v9839 = vld [vmem:[%s7 + $0x2c8] sm:$0xff]
  %v9840 = vld [vmem:[%s7 + $0x2d0] sm:$0xff]
  %v9841 = vld [vmem:[%s7 + $0x2d8] sm:$0xff]
  %v9842 = vld [vmem:[%s7 + $0x2e0] sm:$0xff]
  %v9843 = vld [vmem:[%s7 + $0x2e8] sm:$0xff]
  %v9844 = vld [vmem:[%s7 + $0x2f0] sm:$0xff]
  %v9845 = vld [vmem:[%s7 + $0x2f8] sm:$0xff]
  %v9846 = vld [vmem:[%s7 + $0x300] sm:$0xff]
  %v9847 = vld [vmem:[%s7 + $0x308] sm:$0xff]
  %v9848 = vld [vmem:[%s7 + $0x310] sm:$0xff]
  %v9849 = vld [vmem:[%s7 + $0x318] sm:$0xff]
  %v9850 = vld [vmem:[%s7 + $0x320] sm:$0xff]
  %v9851 = vld [vmem:[%s7 + $0x328] sm:$0xff]
  %v9852 = vld [vmem:[%s7 + $0x330] sm:$0xff]
  %v9853 = vld [vmem:[%s7 + $0x338] sm:$0xff]
  %v9854 = vld [vmem:[%s7 + $0x340] sm:$0xff]
  %v9855 = vld [vmem:[%s7 + $0x348] sm:$0xff]
  %v9856 = vld [vmem:[%s7 + $0x350] sm:$0xff]
  %v9857 = vld [vmem:[%s7 + $0x358] sm:$0xff]
  %v9858 = vld [vmem:[%s7 + $0x360] sm:$0xff]
  %v9859 = vld [vmem:[%s7 + $0x368] sm:$0xff]
  %v9860 = vld [vmem:[%s7 + $0x370] sm:$0xff]
  %v9861 = vld [vmem:[%s7 + $0x378] sm:$0xff]
  %v9862 = vld [vmem:[%s7 + $0x380] sm:$0xff]
  %v9863 = vld [vmem:[%s7 + $0x388] sm:$0xff]
  %v9864 = vld [vmem:[%s7 + $0x390] sm:$0xff]
  %v9865 = vld [vmem:[%s7 + $0x398] sm:$0xff]
  %v9866 = vld [vmem:[%s7 + $0x3a0] sm:$0xff]
  %v9867 = vld [vmem:[%s7 + $0x3a8] sm:$0xff]
  %v9868 = vld [vmem:[%s7 + $0x3b0] sm:$0xff]
  %v9869 = vld [vmem:[%s7 + $0x3b8] sm:$0xff]
  %v9870 = vld [vmem:[%s7 + $0x3c0] sm:$0xff]
  %v9871 = vld [vmem:[%s7 + $0x3c8] sm:$0xff]
  %v9872 = vld [vmem:[%s7 + $0x3d0] sm:$0xff]
  %v9873 = vld [vmem:[%s7 + $0x3d8] sm:$0xff]
  %v9874 = vld [vmem:[%s7 + $0x3e0] sm:$0xff]
  %v9875 = vld [vmem:[%s7 + $0x3e8] sm:$0xff]
  %v9876 = vld [vmem:[%s7 + $0x3f0] sm:$0xff]
  %v9877 = vld [vmem:[%s7 + $0x3f8] sm:$0xff]
  %v9878 = vld [vmem:[%s7 + $0x400] sm:$0xff]
  %v9879 = vld [vmem:[%s7 + $0x408] sm:$0xff]
  %v9880 = vld [vmem:[%s7 + $0x410] sm:$0xff]
  %v9881 = vld [vmem:[%s7 + $0x418] sm:$0xff]
  %v9882 = vld [vmem:[%s7 + $0x420] sm:$0xff]
  %v9883 = vld [vmem:[%s7 + $0x428] sm:$0xff]
  %v9884 = vld [vmem:[%s7 + $0x430] sm:$0xff]
  %v9885 = vld [vmem:[%s7 + $0x438] sm:$0xff]
  %v9886 = vld [vmem:[%s7 + $0x440] sm:$0xff]
  %v9887 = vld [vmem:[%s7 + $0x448] sm:$0xff]
  %v9888 = vld [vmem:[%s7 + $0x450] sm:$0xff]
  %v9889 = vld [vmem:[%s7 + $0x458] sm:$0xff]
  %v9890 = vld [vmem:[%s7 + $0x460] sm:$0xff]
  %v9891 = vld [vmem:[%s7 + $0x468] sm:$0xff]
  %v9892 = vld [vmem:[%s7 + $0x470] sm:$0xff]
  %v9893 = vld [vmem:[%s7 + $0x478] sm:$0xff]
  %v9894 = vld [vmem:[%s7 + $0x480] sm:$0xff]
  %v9895 = vld [vmem:[%s7 + $0x488] sm:$0xff]
  %v9896 = vld [vmem:[%s7 + $0x490] sm:$0xff]
  %v9897 = vld [vmem:[%s7 + $0x498] sm:$0xff]
  %v9898 = vld [vmem:[%s7 + $0x4a0] sm:$0xff]
  %v9899 = vld [vmem:[%s7 + $0x4a8] sm:$0xff]
  %v9900 = vld [vmem:[%s7 + $0x4b0] sm:$0xff]
  %v9901 = vld [vmem:[%s7 + $0x4b8] sm:$0xff]
  %v9902 = vld [vmem:[%s7 + $0x4c0] sm:$0xff]
  %v9903 = vld [vmem:[%s7 + $0x4c8] sm:$0xff]
  %v9904 = vld [vmem:[%s7 + $0x4d0] sm:$0xff]
  %v9905 = vld [vmem:[%s7 + $0x4d8] sm:$0xff]
  %v9906 = vld [vmem:[%s7 + $0x4e0] sm:$0xff]
  %v9907 = vld [vmem:[%s7 + $0x4e8] sm:$0xff]
  %v9908 = vld [vmem:[%s7 + $0x4f0] sm:$0xff]
  %v9909 = vld [vmem:[%s7 + $0x4f8] sm:$0xff]
  %v9910 = vld [vmem:[%s7 + $0x500] sm:$0xff]
  %v9911 = vld [vmem:[%s7 + $0x508] sm:$0xff]
  %v9912 = vld [vmem:[%s7 + $0x510] sm:$0xff]
  %v9913 = vld [vmem:[%s7 + $0x518] sm:$0xff]
  %v9914 = vld [vmem:[%s7 + $0x520] sm:$0xff]
  %v9915 = vld [vmem:[%s7 + $0x528] sm:$0xff]
  %v9916 = vld [vmem:[%s7 + $0x530] sm:$0xff]
  %v9917 = vld [vmem:[%s7 + $0x538] sm:$0xff]
  %v9918 = vld [vmem:[%s7 + $0x540] sm:$0xff]
  %v9919 = vld [vmem:[%s7 + $0x548] sm:$0xff]
  %v9920 = vld [vmem:[%s7 + $0x550] sm:$0xff]
  %v9921 = vld [vmem:[%s7 + $0x558] sm:$0xff]
  %v9922 = vld [vmem:[%s7 + $0x560] sm:$0xff]
  %v9923 = vld [vmem:[%s7 + $0x568] sm:$0xff]
  %v9924 = vld [vmem:[%s7 + $0x570] sm:$0xff]
  %v9925 = vld [vmem:[%s7 + $0x578] sm:$0xff]
  %v9926 = vld [vmem:[%s7 + $0x580] sm:$0xff]
  %v9927 = vld [vmem:[%s7 + $0x588] sm:$0xff]
  %v9928 = vld [vmem:[%s7 + $0x590] sm:$0xff]
  %v9929 = vld [vmem:[%s7 + $0x598] sm:$0xff]
  %v9930 = vld [vmem:[%s7 + $0x5a0] sm:$0xff]
  %v9931 = vld [vmem:[%s7 + $0x5a8] sm:$0xff]
  %v9932 = vld [vmem:[%s7 + $0x5b0] sm:$0xff]
  %v9933 = vld [vmem:[%s7 + $0x5b8] sm:$0xff]
  %v9934 = vld [vmem:[%s7 + $0x5c0] sm:$0xff]
  %v9935 = vld [vmem:[%s7 + $0x5c8] sm:$0xff]
  %v9936 = vld [vmem:[%s7 + $0x5d0] sm:$0xff]
  %v9937 = vld [vmem:[%s7 + $0x5d8] sm:$0xff]
  %v9938 = vld [vmem:[%s7 + $0x5e0] sm:$0xff]
  %v9939 = vld [vmem:[%s7 + $0x5e8] sm:$0xff]
  %v9940 = vld [vmem:[%s7 + $0x5f0] sm:$0xff]
  %v9941 = vld [vmem:[%s7 + $0x5f8] sm:$0xff]
  %v9942 = vld [vmem:[%s7 + $0x600] sm:$0xff]
  %v9943 = vld [vmem:[%s7 + $0x608] sm:$0xff]
  %v9944 = vld [vmem:[%s7 + $0x610] sm:$0xff]
  %v9945 = vld [vmem:[%s7 + $0x618] sm:$0xff]
  %v9946 = vld [vmem:[%s7 + $0x620] sm:$0xff]
  %v9947 = vld [vmem:[%s7 + $0x628] sm:$0xff]
  %v9948 = vld [vmem:[%s7 + $0x630] sm:$0xff]
  %v9949 = vld [vmem:[%s7 + $0x638] sm:$0xff]
  %v9950 = vld [vmem:[%s7 + $0x640] sm:$0xff]
  %v9951 = vld [vmem:[%s7 + $0x648] sm:$0xff]
  %v9952 = vld [vmem:[%s7 + $0x650] sm:$0xff]
  %v9953 = vld [vmem:[%s7 + $0x658] sm:$0xff]
  %v9954 = vld [vmem:[%s7 + $0x660] sm:$0xff]
  %v9955 = vld [vmem:[%s7 + $0x668] sm:$0xff]
  %v9956 = vld [vmem:[%s7 + $0x670] sm:$0xff]
  %v9957 = vld [vmem:[%s7 + $0x678] sm:$0xff]
  %v9958 = vld [vmem:[%s7 + $0x680] sm:$0xff]
  %v9959 = vld [vmem:[%s7 + $0x688] sm:$0xff]
  %v9960 = vld [vmem:[%s7 + $0x690] sm:$0xff]
  %v9961 = vld [vmem:[%s7 + $0x698] sm:$0xff]
  %v9962 = vld [vmem:[%s7 + $0x6a0] sm:$0xff]
  %v9963 = vld [vmem:[%s7 + $0x6a8] sm:$0xff]
  %v9964 = vld [vmem:[%s7 + $0x6b0] sm:$0xff]
  %v9965 = vld [vmem:[%s7 + $0x6b8] sm:$0xff]
  %v9966 = vld [vmem:[%s7 + $0x6c0] sm:$0xff]
  %v9967 = vld [vmem:[%s7 + $0x6c8] sm:$0xff]
  %v9968 = vld [vmem:[%s7 + $0x6d0] sm:$0xff]
  %v9969 = vld [vmem:[%s7 + $0x6d8] sm:$0xff]
  %v9970 = vld [vmem:[%s7 + $0x6e0] sm:$0xff]
  %v9971 = vld [vmem:[%s7 + $0x6e8] sm:$0xff]
  %v9972 = vld [vmem:[%s7 + $0x6f0] sm:$0xff]
  %v9973 = vld [vmem:[%s7 + $0x6f8] sm:$0xff]
  %v9974 = vld [vmem:[%s7 + $0x700] sm:$0xff]
  %v9975 = vld [vmem:[%s7 + $0x708] sm:$0xff]
  %v9976 = vld [vmem:[%s7 + $0x710] sm:$0xff]
  %v9977 = vld [vmem:[%s7 + $0x718] sm:$0xff]
  %v9978 = vld [vmem:[%s7 + $0x720] sm:$0xff]
  %v9979 = vld [vmem:[%s7 + $0x728] sm:$0xff]
  %v9980 = vld [vmem:[%s7 + $0x730] sm:$0xff]
  %v9981 = vld [vmem:[%s7 + $0x738] sm:$0xff]
  %v9982 = vld [vmem:[%s7 + $0x740] sm:$0xff]
  %v9983 = vld [vmem:[%s7 + $0x748] sm:$0xff]
  %v9984 = vld [vmem:[%s7 + $0x750] sm:$0xff]
  %v9985 = vld [vmem:[%s7 + $0x758] sm:$0xff]
  %v9986 = vld [vmem:[%s7 + $0x760] sm:$0xff]
  %v9987 = vld [vmem:[%s7 + $0x768] sm:$0xff]
  %v9988 = vld [vmem:[%s7 + $0x770] sm:$0xff]
  %v9989 = vld [vmem:[%s7 + $0x778] sm:$0xff]
  %v9990 = vld [vmem:[%s7 + $0x780] sm:$0xff]
  %v9991 = vld [vmem:[%s7 + $0x788] sm:$0xff]
  %v9992 = vld [vmem:[%s7 + $0x790] sm:$0xff]
  %v9993 = vld [vmem:[%s7 + $0x798] sm:$0xff]
  %v9994 = vld [vmem:[%s7 + $0x7a0] sm:$0xff]
  %v9995 = vld [vmem:[%s7 + $0x7a8] sm:$0xff]
  %v9996 = vld [vmem:[%s7 + $0x7b0] sm:$0xff]
  %v9997 = vld [vmem:[%s7 + $0x7b8] sm:$0xff]
  %v9998 = vld [vmem:[%s7 + $0x7c0] sm:$0xff]
  %v9999 = vld [vmem:[%s7 + $0x7c8] sm:$0xff]
  %v10000 = vld [vmem:[%s7 + $0x7d0] sm:$0xff]
  %v10001 = vld [vmem:[%s7 + $0x7d8] sm:$0xff]
  %v10002 = vld [vmem:[%s7 + $0x7e0] sm:$0xff]
  %v10003 = vld [vmem:[%s7 + $0x7e8] sm:$0xff]
  %v10004 = vld [vmem:[%s7 + $0x7f0] sm:$0xff]
  %v10005 = vld [vmem:[%s7 + $0x7f8] sm:$0xff]
  %v10006 = vld [vmem:[%s7 + $0x800] sm:$0xff]
  %v10007 = vld [vmem:[%s7 + $0x808] sm:$0xff]
  %v10008 = vld [vmem:[%s7 + $0x810] sm:$0xff]
  %v10009 = vld [vmem:[%s7 + $0x818] sm:$0xff]
  %v10010 = vld [vmem:[%s7 + $0x820] sm:$0xff]
  %v10011 = vld [vmem:[%s7 + $0x828] sm:$0xff]
  %v10012 = vld [vmem:[%s7 + $0x830] sm:$0xff]
  %v10013 = vld [vmem:[%s7 + $0x838] sm:$0xff]
  %v10014 = vld [vmem:[%s7 + $0x840] sm:$0xff]
  %v10015 = vld [vmem:[%s7 + $0x848] sm:$0xff]
  %v10016 = vld [vmem:[%s7 + $0x850] sm:$0xff]
  %v10017 = vld [vmem:[%s7 + $0x858] sm:$0xff]
  %v10018 = vld [vmem:[%s7 + $0x860] sm:$0xff]
  %v10019 = vld [vmem:[%s7 + $0x868] sm:$0xff]
  %v10020 = vld [vmem:[%s7 + $0x870] sm:$0xff]
  %v10021 = vld [vmem:[%s7 + $0x878] sm:$0xff]
  %v10022 = vld [vmem:[%s7 + $0x880] sm:$0xff]
  %v10023 = vld [vmem:[%s7 + $0x888] sm:$0xff]
  %v10024 = vld [vmem:[%s7 + $0x890] sm:$0xff]
  %v10025 = vld [vmem:[%s7 + $0x898] sm:$0xff]
  %v10026 = vld [vmem:[%s7 + $0x8a0] sm:$0xff]
  %v10027 = vld [vmem:[%s7 + $0x8a8] sm:$0xff]
  %v10028 = vld [vmem:[%s7 + $0x8b0] sm:$0xff]
  %v10029 = vld [vmem:[%s7 + $0x8b8] sm:$0xff]
  %v10030 = vld [vmem:[%s7 + $0x8c0] sm:$0xff]
  %v10031 = vld [vmem:[%s7 + $0x8c8] sm:$0xff]
  %v10032 = vld [vmem:[%s7 + $0x8d0] sm:$0xff]
  %v10033 = vld [vmem:[%s7 + $0x8d8] sm:$0xff]
  %v10034 = vld [vmem:[%s7 + $0x8e0] sm:$0xff]
  %v10035 = vld [vmem:[%s7 + $0x8e8] sm:$0xff]
  %v10036 = vld [vmem:[%s7 + $0x8f0] sm:$0xff]
  %v10037 = vld [vmem:[%s7 + $0x8f8] sm:$0xff]
  %v10326 = vunpack.c.l.b16 %v9750
  %v10327 = vunpack.c.h.b16 %v9750
  %v10328 = vunpack.c.l.b16 %v9751
  %v10329 = vunpack.c.h.b16 %v9751
  %v10330 = vunpack.c.l.b16 %v9752
  %v10331 = vunpack.c.h.b16 %v9752
  %v10332 = vunpack.c.l.b16 %v9753
  %v10333 = vunpack.c.h.b16 %v9753
  %v10334 = vunpack.c.l.b16 %v9754
  %v10335 = vunpack.c.h.b16 %v9754
  %v10336 = vunpack.c.l.b16 %v9755
  %v10337 = vunpack.c.h.b16 %v9755
  %v10338 = vunpack.c.l.b16 %v9756
  %v10339 = vunpack.c.h.b16 %v9756
  %v10340 = vunpack.c.l.b16 %v9757
  %v10341 = vunpack.c.h.b16 %v9757
  %v10342 = vunpack.c.l.b16 %v9758
  %v10343 = vunpack.c.h.b16 %v9758
  %v10344 = vunpack.c.l.b16 %v9759
  %v10345 = vunpack.c.h.b16 %v9759
  %v10346 = vunpack.c.l.b16 %v9760
  %v10347 = vunpack.c.h.b16 %v9760
  %v10348 = vunpack.c.l.b16 %v9761
  %v10349 = vunpack.c.h.b16 %v9761
  %v10350 = vunpack.c.l.b16 %v9762
  %v10351 = vunpack.c.h.b16 %v9762
  %v10352 = vunpack.c.l.b16 %v9763
  %v10353 = vunpack.c.h.b16 %v9763
  %v10354 = vunpack.c.l.b16 %v9764
  %v10355 = vunpack.c.h.b16 %v9764
  %v10356 = vunpack.c.l.b16 %v9765
  %v10357 = vunpack.c.h.b16 %v9765
  %v10358 = vunpack.c.l.b16 %v9766
  %v10359 = vunpack.c.h.b16 %v9766
  %v10360 = vunpack.c.l.b16 %v9767
  %v10361 = vunpack.c.h.b16 %v9767
  %v10362 = vunpack.c.l.b16 %v9768
  %v10363 = vunpack.c.h.b16 %v9768
  %v10364 = vunpack.c.l.b16 %v9769
  %v10365 = vunpack.c.h.b16 %v9769
  %v10366 = vunpack.c.l.b16 %v9770
  %v10367 = vunpack.c.h.b16 %v9770
  %v10368 = vunpack.c.l.b16 %v9771
  %v10369 = vunpack.c.h.b16 %v9771
  %v10370 = vunpack.c.l.b16 %v9772
  %v10371 = vunpack.c.h.b16 %v9772
  %v10372 = vunpack.c.l.b16 %v9773
  %v10373 = vunpack.c.h.b16 %v9773
  %v10374 = vunpack.c.l.b16 %v9774
  %v10375 = vunpack.c.h.b16 %v9774
  %v10376 = vunpack.c.l.b16 %v9775
  %v10377 = vunpack.c.h.b16 %v9775
  %v10378 = vunpack.c.l.b16 %v9776
  %v10379 = vunpack.c.h.b16 %v9776
  %v10380 = vunpack.c.l.b16 %v9777
  %v10381 = vunpack.c.h.b16 %v9777
  %v10382 = vunpack.c.l.b16 %v9778
  %v10383 = vunpack.c.h.b16 %v9778
  %v10384 = vunpack.c.l.b16 %v9779
  %v10385 = vunpack.c.h.b16 %v9779
  %v10386 = vunpack.c.l.b16 %v9780
  %v10387 = vunpack.c.h.b16 %v9780
  %v10388 = vunpack.c.l.b16 %v9781
  %v10389 = vunpack.c.h.b16 %v9781
  %v10390 = vunpack.c.l.b16 %v9782
  %v10391 = vunpack.c.h.b16 %v9782
  %v10392 = vunpack.c.l.b16 %v9783
  %v10393 = vunpack.c.h.b16 %v9783
  %v10394 = vunpack.c.l.b16 %v9784
  %v10395 = vunpack.c.h.b16 %v9784
  %v10396 = vunpack.c.l.b16 %v9785
  %v10397 = vunpack.c.h.b16 %v9785
  %v10398 = vunpack.c.l.b16 %v9786
  %v10399 = vunpack.c.h.b16 %v9786
  %v10400 = vunpack.c.l.b16 %v9787
  %v10401 = vunpack.c.h.b16 %v9787
  %v10402 = vunpack.c.l.b16 %v9788
  %v10403 = vunpack.c.h.b16 %v9788
  %v10404 = vunpack.c.l.b16 %v9789
  %v10405 = vunpack.c.h.b16 %v9789
  %v10406 = vunpack.c.l.b16 %v9790
  %v10407 = vunpack.c.h.b16 %v9790
  %v10408 = vunpack.c.l.b16 %v9791
  %v10409 = vunpack.c.h.b16 %v9791
  %v10410 = vunpack.c.l.b16 %v9792
  %v10411 = vunpack.c.h.b16 %v9792
  %v10412 = vunpack.c.l.b16 %v9793
  %v10413 = vunpack.c.h.b16 %v9793
  %v10414 = vunpack.c.l.b16 %v9794
  %v10415 = vunpack.c.h.b16 %v9794
  %v10416 = vunpack.c.l.b16 %v9795
  %v10417 = vunpack.c.h.b16 %v9795
  %v10418 = vunpack.c.l.b16 %v9796
  %v10419 = vunpack.c.h.b16 %v9796
  %v10420 = vunpack.c.l.b16 %v9797
  %v10421 = vunpack.c.h.b16 %v9797
  %v10422 = vunpack.c.l.b16 %v9798
  %v10423 = vunpack.c.h.b16 %v9798
  %v10424 = vunpack.c.l.b16 %v9799
  %v10425 = vunpack.c.h.b16 %v9799
  %v10426 = vunpack.c.l.b16 %v9800
  %v10427 = vunpack.c.h.b16 %v9800
  %v10428 = vunpack.c.l.b16 %v9801
  %v10429 = vunpack.c.h.b16 %v9801
  %v10430 = vunpack.c.l.b16 %v9802
  %v10431 = vunpack.c.h.b16 %v9802
  %v10432 = vunpack.c.l.b16 %v9803
  %v10433 = vunpack.c.h.b16 %v9803
  %v10434 = vunpack.c.l.b16 %v9804
  %v10435 = vunpack.c.h.b16 %v9804
  %v10436 = vunpack.c.l.b16 %v9805
  %v10437 = vunpack.c.h.b16 %v9805
  %v10438 = vunpack.c.l.b16 %v9806
  %v10439 = vunpack.c.h.b16 %v9806
  %v10440 = vunpack.c.l.b16 %v9807
  %v10441 = vunpack.c.h.b16 %v9807
  %v10442 = vunpack.c.l.b16 %v9808
  %v10443 = vunpack.c.h.b16 %v9808
  %v10444 = vunpack.c.l.b16 %v9809
  %v10445 = vunpack.c.h.b16 %v9809
  %v10446 = vunpack.c.l.b16 %v9810
  %v10447 = vunpack.c.h.b16 %v9810
  %v10448 = vunpack.c.l.b16 %v9811
  %v10449 = vunpack.c.h.b16 %v9811
  %v10450 = vunpack.c.l.b16 %v9812
  %v10451 = vunpack.c.h.b16 %v9812
  %v10452 = vunpack.c.l.b16 %v9813
  %v10453 = vunpack.c.h.b16 %v9813
  %v10454 = vunpack.c.l.b16 %v9814
  %v10455 = vunpack.c.h.b16 %v9814
  %v10456 = vunpack.c.l.b16 %v9815
  %v10457 = vunpack.c.h.b16 %v9815
  %v10458 = vunpack.c.l.b16 %v9816
  %v10459 = vunpack.c.h.b16 %v9816
  %v10460 = vunpack.c.l.b16 %v9817
  %v10461 = vunpack.c.h.b16 %v9817
  %v10462 = vunpack.c.l.b16 %v9818
  %v10463 = vunpack.c.h.b16 %v9818
  %v10464 = vunpack.c.l.b16 %v9819
  %v10465 = vunpack.c.h.b16 %v9819
  %v10466 = vunpack.c.l.b16 %v9820
  %v10467 = vunpack.c.h.b16 %v9820
  %v10468 = vunpack.c.l.b16 %v9821
  %v10469 = vunpack.c.h.b16 %v9821
  %v10470 = vunpack.c.l.b16 %v9822
  %v10471 = vunpack.c.h.b16 %v9822
  %v10472 = vunpack.c.l.b16 %v9823
  %v10473 = vunpack.c.h.b16 %v9823
  %v10474 = vunpack.c.l.b16 %v9824
  %v10475 = vunpack.c.h.b16 %v9824
  %v10476 = vunpack.c.l.b16 %v9825
  %v10477 = vunpack.c.h.b16 %v9825
  %v10478 = vunpack.c.l.b16 %v9826
  %v10479 = vunpack.c.h.b16 %v9826
  %v10480 = vunpack.c.l.b16 %v9827
  %v10481 = vunpack.c.h.b16 %v9827
  %v10482 = vunpack.c.l.b16 %v9828
  %v10483 = vunpack.c.h.b16 %v9828
  %v10484 = vunpack.c.l.b16 %v9829
  %v10485 = vunpack.c.h.b16 %v9829
  %v10486 = vunpack.c.l.b16 %v9830
  %v10487 = vunpack.c.h.b16 %v9830
  %v10488 = vunpack.c.l.b16 %v9831
  %v10489 = vunpack.c.h.b16 %v9831
  %v10490 = vunpack.c.l.b16 %v9832
  %v10491 = vunpack.c.h.b16 %v9832
  %v10492 = vunpack.c.l.b16 %v9833
  %v10493 = vunpack.c.h.b16 %v9833
  %v10494 = vunpack.c.l.b16 %v9834
  %v10495 = vunpack.c.h.b16 %v9834
  %v10496 = vunpack.c.l.b16 %v9835
  %v10497 = vunpack.c.h.b16 %v9835
  %v10498 = vunpack.c.l.b16 %v9836
  %v10499 = vunpack.c.h.b16 %v9836
  %v10500 = vunpack.c.l.b16 %v9837
  %v10501 = vunpack.c.h.b16 %v9837
  %v10502 = vunpack.c.l.b16 %v9838
  %v10503 = vunpack.c.h.b16 %v9838
  %v10504 = vunpack.c.l.b16 %v9839
  %v10505 = vunpack.c.h.b16 %v9839
  %v10506 = vunpack.c.l.b16 %v9840
  %v10507 = vunpack.c.h.b16 %v9840
  %v10508 = vunpack.c.l.b16 %v9841
  %v10509 = vunpack.c.h.b16 %v9841
  %v10510 = vunpack.c.l.b16 %v9842
  %v10511 = vunpack.c.h.b16 %v9842
  %v10512 = vunpack.c.l.b16 %v9843
  %v10513 = vunpack.c.h.b16 %v9843
  %v10514 = vunpack.c.l.b16 %v9844
  %v10515 = vunpack.c.h.b16 %v9844
  %v10516 = vunpack.c.l.b16 %v9845
  %v10517 = vunpack.c.h.b16 %v9845
  %v10518 = vunpack.c.l.b16 %v9846
  %v10519 = vunpack.c.h.b16 %v9846
  %v10520 = vunpack.c.l.b16 %v9847
  %v10521 = vunpack.c.h.b16 %v9847
  %v10522 = vunpack.c.l.b16 %v9848
  %v10523 = vunpack.c.h.b16 %v9848
  %v10524 = vunpack.c.l.b16 %v9849
  %v10525 = vunpack.c.h.b16 %v9849
  %v10526 = vunpack.c.l.b16 %v9850
  %v10527 = vunpack.c.h.b16 %v9850
  %v10528 = vunpack.c.l.b16 %v9851
  %v10529 = vunpack.c.h.b16 %v9851
  %v10530 = vunpack.c.l.b16 %v9852
  %v10531 = vunpack.c.h.b16 %v9852
  %v10532 = vunpack.c.l.b16 %v9853
  %v10533 = vunpack.c.h.b16 %v9853
  %v10534 = vunpack.c.l.b16 %v9854
  %v10535 = vunpack.c.h.b16 %v9854
  %v10536 = vunpack.c.l.b16 %v9855
  %v10537 = vunpack.c.h.b16 %v9855
  %v10538 = vunpack.c.l.b16 %v9856
  %v10539 = vunpack.c.h.b16 %v9856
  %v10540 = vunpack.c.l.b16 %v9857
  %v10541 = vunpack.c.h.b16 %v9857
  %v10542 = vunpack.c.l.b16 %v9858
  %v10543 = vunpack.c.h.b16 %v9858
  %v10544 = vunpack.c.l.b16 %v9859
  %v10545 = vunpack.c.h.b16 %v9859
  %v10546 = vunpack.c.l.b16 %v9860
  %v10547 = vunpack.c.h.b16 %v9860
  %v10548 = vunpack.c.l.b16 %v9861
  %v10549 = vunpack.c.h.b16 %v9861
  %v10550 = vunpack.c.l.b16 %v9862
  %v10551 = vunpack.c.h.b16 %v9862
  %v10552 = vunpack.c.l.b16 %v9863
  %v10553 = vunpack.c.h.b16 %v9863
  %v10554 = vunpack.c.l.b16 %v9864
  %v10555 = vunpack.c.h.b16 %v9864
  %v10556 = vunpack.c.l.b16 %v9865
  %v10557 = vunpack.c.h.b16 %v9865
  %v10558 = vunpack.c.l.b16 %v9866
  %v10559 = vunpack.c.h.b16 %v9866
  %v10560 = vunpack.c.l.b16 %v9867
  %v10561 = vunpack.c.h.b16 %v9867
  %v10562 = vunpack.c.l.b16 %v9868
  %v10563 = vunpack.c.h.b16 %v9868
  %v10564 = vunpack.c.l.b16 %v9869
  %v10565 = vunpack.c.h.b16 %v9869
  %v10566 = vunpack.c.l.b16 %v9870
  %v10567 = vunpack.c.h.b16 %v9870
  %v10568 = vunpack.c.l.b16 %v9871
  %v10569 = vunpack.c.h.b16 %v9871
  %v10570 = vunpack.c.l.b16 %v9872
  %v10571 = vunpack.c.h.b16 %v9872
  %v10572 = vunpack.c.l.b16 %v9873
  %v10573 = vunpack.c.h.b16 %v9873
  %v10574 = vunpack.c.l.b16 %v9874
  %v10575 = vunpack.c.h.b16 %v9874
  %v10576 = vunpack.c.l.b16 %v9875
  %v10577 = vunpack.c.h.b16 %v9875
  %v10578 = vunpack.c.l.b16 %v9876
  %v10579 = vunpack.c.h.b16 %v9876
  %v10580 = vunpack.c.l.b16 %v9877
  %v10581 = vunpack.c.h.b16 %v9877
  %v10582 = vunpack.c.l.b16 %v9878
  %v10583 = vunpack.c.h.b16 %v9878
  %v10584 = vunpack.c.l.b16 %v9879
  %v10585 = vunpack.c.h.b16 %v9879
  %v10586 = vunpack.c.l.b16 %v9880
  %v10587 = vunpack.c.h.b16 %v9880
  %v10588 = vunpack.c.l.b16 %v9881
  %v10589 = vunpack.c.h.b16 %v9881
  %v10590 = vunpack.c.l.b16 %v9882
  %v10591 = vunpack.c.h.b16 %v9882
  %v10592 = vunpack.c.l.b16 %v9883
  %v10593 = vunpack.c.h.b16 %v9883
  %v10594 = vunpack.c.l.b16 %v9884
  %v10595 = vunpack.c.h.b16 %v9884
  %v10596 = vunpack.c.l.b16 %v9885
  %v10597 = vunpack.c.h.b16 %v9885
  %v10598 = vunpack.c.l.b16 %v9886
  %v10599 = vunpack.c.h.b16 %v9886
  %v10600 = vunpack.c.l.b16 %v9887
  %v10601 = vunpack.c.h.b16 %v9887
  %v10602 = vunpack.c.l.b16 %v9888
  %v10603 = vunpack.c.h.b16 %v9888
  %v10604 = vunpack.c.l.b16 %v9889
  %v10605 = vunpack.c.h.b16 %v9889
  %v10606 = vunpack.c.l.b16 %v9890
  %v10607 = vunpack.c.h.b16 %v9890
  %v10608 = vunpack.c.l.b16 %v9891
  %v10609 = vunpack.c.h.b16 %v9891
  %v10610 = vunpack.c.l.b16 %v9892
  %v10611 = vunpack.c.h.b16 %v9892
  %v10612 = vunpack.c.l.b16 %v9893
  %v10613 = vunpack.c.h.b16 %v9893
  %v10614 = vunpack.c.l.b16 %v9894
  %v10615 = vunpack.c.h.b16 %v9894
  %v10616 = vunpack.c.l.b16 %v9895
  %v10617 = vunpack.c.h.b16 %v9895
  %v10618 = vunpack.c.l.b16 %v9896
  %v10619 = vunpack.c.h.b16 %v9896
  %v10620 = vunpack.c.l.b16 %v9897
  %v10621 = vunpack.c.h.b16 %v9897
  %v10622 = vunpack.c.l.b16 %v9898
  %v10623 = vunpack.c.h.b16 %v9898
  %v10624 = vunpack.c.l.b16 %v9899
  %v10625 = vunpack.c.h.b16 %v9899
  %v10626 = vunpack.c.l.b16 %v9900
  %v10627 = vunpack.c.h.b16 %v9900
  %v10628 = vunpack.c.l.b16 %v9901
  %v10629 = vunpack.c.h.b16 %v9901
  %v10630 = vunpack.c.l.b16 %v9902
  %v10631 = vunpack.c.h.b16 %v9902
  %v10632 = vunpack.c.l.b16 %v9903
  %v10633 = vunpack.c.h.b16 %v9903
  %v10634 = vunpack.c.l.b16 %v9904
  %v10635 = vunpack.c.h.b16 %v9904
  %v10636 = vunpack.c.l.b16 %v9905
  %v10637 = vunpack.c.h.b16 %v9905
  %v10638 = vunpack.c.l.b16 %v9906
  %v10639 = vunpack.c.h.b16 %v9906
  %v10640 = vunpack.c.l.b16 %v9907
  %v10641 = vunpack.c.h.b16 %v9907
  %v10642 = vunpack.c.l.b16 %v9908
  %v10643 = vunpack.c.h.b16 %v9908
  %v10644 = vunpack.c.l.b16 %v9909
  %v10645 = vunpack.c.h.b16 %v9909
  %v10646 = vunpack.c.l.b16 %v9910
  %v10647 = vunpack.c.h.b16 %v9910
  %v10648 = vunpack.c.l.b16 %v9911
  %v10649 = vunpack.c.h.b16 %v9911
  %v10650 = vunpack.c.l.b16 %v9912
  %v10651 = vunpack.c.h.b16 %v9912
  %v10652 = vunpack.c.l.b16 %v9913
  %v10653 = vunpack.c.h.b16 %v9913
  %v10654 = vunpack.c.l.b16 %v9914
  %v10655 = vunpack.c.h.b16 %v9914
  %v10656 = vunpack.c.l.b16 %v9915
  %v10657 = vunpack.c.h.b16 %v9915
  %v10658 = vunpack.c.l.b16 %v9916
  %v10659 = vunpack.c.h.b16 %v9916
  %v10660 = vunpack.c.l.b16 %v9917
  %v10661 = vunpack.c.h.b16 %v9917
  %v10662 = vunpack.c.l.b16 %v9918
  %v10663 = vunpack.c.h.b16 %v9918
  %v10664 = vunpack.c.l.b16 %v9919
  %v10665 = vunpack.c.h.b16 %v9919
  %v10666 = vunpack.c.l.b16 %v9920
  %v10667 = vunpack.c.h.b16 %v9920
  %v10668 = vunpack.c.l.b16 %v9921
  %v10669 = vunpack.c.h.b16 %v9921
  %v10670 = vunpack.c.l.b16 %v9922
  %v10671 = vunpack.c.h.b16 %v9922
  %v10672 = vunpack.c.l.b16 %v9923
  %v10673 = vunpack.c.h.b16 %v9923
  %v10674 = vunpack.c.l.b16 %v9924
  %v10675 = vunpack.c.h.b16 %v9924
  %v10676 = vunpack.c.l.b16 %v9925
  %v10677 = vunpack.c.h.b16 %v9925
  %v10678 = vunpack.c.l.b16 %v9926
  %v10679 = vunpack.c.h.b16 %v9926
  %v10680 = vunpack.c.l.b16 %v9927
  %v10681 = vunpack.c.h.b16 %v9927
  %v10682 = vunpack.c.l.b16 %v9928
  %v10683 = vunpack.c.h.b16 %v9928
  %v10684 = vunpack.c.l.b16 %v9929
  %v10685 = vunpack.c.h.b16 %v9929
  %v10686 = vunpack.c.l.b16 %v9930
  %v10687 = vunpack.c.h.b16 %v9930
  %v10688 = vunpack.c.l.b16 %v9931
  %v10689 = vunpack.c.h.b16 %v9931
  %v10690 = vunpack.c.l.b16 %v9932
  %v10691 = vunpack.c.h.b16 %v9932
  %v10692 = vunpack.c.l.b16 %v9933
  %v10693 = vunpack.c.h.b16 %v9933
  %v10694 = vunpack.c.l.b16 %v9934
  %v10695 = vunpack.c.h.b16 %v9934
  %v10696 = vunpack.c.l.b16 %v9935
  %v10697 = vunpack.c.h.b16 %v9935
  %v10698 = vunpack.c.l.b16 %v9936
  %v10699 = vunpack.c.h.b16 %v9936
  %v10700 = vunpack.c.l.b16 %v9937
  %v10701 = vunpack.c.h.b16 %v9937
  %v10702 = vunpack.c.l.b16 %v9938
  %v10703 = vunpack.c.h.b16 %v9938
  %v10704 = vunpack.c.l.b16 %v9939
  %v10705 = vunpack.c.h.b16 %v9939
  %v10706 = vunpack.c.l.b16 %v9940
  %v10707 = vunpack.c.h.b16 %v9940
  %v10708 = vunpack.c.l.b16 %v9941
  %v10709 = vunpack.c.h.b16 %v9941
  %v10710 = vunpack.c.l.b16 %v9942
  %v10711 = vunpack.c.h.b16 %v9942
  %v10712 = vunpack.c.l.b16 %v9943
  %v10713 = vunpack.c.h.b16 %v9943
  %v10714 = vunpack.c.l.b16 %v9944
  %v10715 = vunpack.c.h.b16 %v9944
  %v10716 = vunpack.c.l.b16 %v9945
  %v10717 = vunpack.c.h.b16 %v9945
  %v10718 = vunpack.c.l.b16 %v9946
  %v10719 = vunpack.c.h.b16 %v9946
  %v10720 = vunpack.c.l.b16 %v9947
  %v10721 = vunpack.c.h.b16 %v9947
  %v10722 = vunpack.c.l.b16 %v9948
  %v10723 = vunpack.c.h.b16 %v9948
  %v10724 = vunpack.c.l.b16 %v9949
  %v10725 = vunpack.c.h.b16 %v9949
  %v10726 = vunpack.c.l.b16 %v9950
  %v10727 = vunpack.c.h.b16 %v9950
  %v10728 = vunpack.c.l.b16 %v9951
  %v10729 = vunpack.c.h.b16 %v9951
  %v10730 = vunpack.c.l.b16 %v9952
  %v10731 = vunpack.c.h.b16 %v9952
  %v10732 = vunpack.c.l.b16 %v9953
  %v10733 = vunpack.c.h.b16 %v9953
  %v10734 = vunpack.c.l.b16 %v9954
  %v10735 = vunpack.c.h.b16 %v9954
  %v10736 = vunpack.c.l.b16 %v9955
  %v10737 = vunpack.c.h.b16 %v9955
  %v10738 = vunpack.c.l.b16 %v9956
  %v10739 = vunpack.c.h.b16 %v9956
  %v10740 = vunpack.c.l.b16 %v9957
  %v10741 = vunpack.c.h.b16 %v9957
  %v10742 = vunpack.c.l.b16 %v9958
  %v10743 = vunpack.c.h.b16 %v9958
  %v10744 = vunpack.c.l.b16 %v9959
  %v10745 = vunpack.c.h.b16 %v9959
  %v10746 = vunpack.c.l.b16 %v9960
  %v10747 = vunpack.c.h.b16 %v9960
  %v10748 = vunpack.c.l.b16 %v9961
  %v10749 = vunpack.c.h.b16 %v9961
  %v10750 = vunpack.c.l.b16 %v9962
  %v10751 = vunpack.c.h.b16 %v9962
  %v10752 = vunpack.c.l.b16 %v9963
  %v10753 = vunpack.c.h.b16 %v9963
  %v10754 = vunpack.c.l.b16 %v9964
  %v10755 = vunpack.c.h.b16 %v9964
  %v10756 = vunpack.c.l.b16 %v9965
  %v10757 = vunpack.c.h.b16 %v9965
  %v10758 = vunpack.c.l.b16 %v9966
  %v10759 = vunpack.c.h.b16 %v9966
  %v10760 = vunpack.c.l.b16 %v9967
  %v10761 = vunpack.c.h.b16 %v9967
  %v10762 = vunpack.c.l.b16 %v9968
  %v10763 = vunpack.c.h.b16 %v9968
  %v10764 = vunpack.c.l.b16 %v9969
  %v10765 = vunpack.c.h.b16 %v9969
  %v10766 = vunpack.c.l.b16 %v9970
  %v10767 = vunpack.c.h.b16 %v9970
  %v10768 = vunpack.c.l.b16 %v9971
  %v10769 = vunpack.c.h.b16 %v9971
  %v10770 = vunpack.c.l.b16 %v9972
  %v10771 = vunpack.c.h.b16 %v9972
  %v10772 = vunpack.c.l.b16 %v9973
  %v10773 = vunpack.c.h.b16 %v9973
  %v10774 = vunpack.c.l.b16 %v9974
  %v10775 = vunpack.c.h.b16 %v9974
  %v10776 = vunpack.c.l.b16 %v9975
  %v10777 = vunpack.c.h.b16 %v9975
  %v10778 = vunpack.c.l.b16 %v9976
  %v10779 = vunpack.c.h.b16 %v9976
  %v10780 = vunpack.c.l.b16 %v9977
  %v10781 = vunpack.c.h.b16 %v9977
  %v10782 = vunpack.c.l.b16 %v9978
  %v10783 = vunpack.c.h.b16 %v9978
  %v10784 = vunpack.c.l.b16 %v9979
  %v10785 = vunpack.c.h.b16 %v9979
  %v10786 = vunpack.c.l.b16 %v9980
  %v10787 = vunpack.c.h.b16 %v9980
  %v10788 = vunpack.c.l.b16 %v9981
  %v10789 = vunpack.c.h.b16 %v9981
  %v10790 = vunpack.c.l.b16 %v9982
  %v10791 = vunpack.c.h.b16 %v9982
  %v10792 = vunpack.c.l.b16 %v9983
  %v10793 = vunpack.c.h.b16 %v9983
  %v10794 = vunpack.c.l.b16 %v9984
  %v10795 = vunpack.c.h.b16 %v9984
  %v10796 = vunpack.c.l.b16 %v9985
  %v10797 = vunpack.c.h.b16 %v9985
  %v10798 = vunpack.c.l.b16 %v9986
  %v10799 = vunpack.c.h.b16 %v9986
  %v10800 = vunpack.c.l.b16 %v9987
  %v10801 = vunpack.c.h.b16 %v9987
  %v10802 = vunpack.c.l.b16 %v9988
  %v10803 = vunpack.c.h.b16 %v9988
  %v10804 = vunpack.c.l.b16 %v9989
  %v10805 = vunpack.c.h.b16 %v9989
  %v10806 = vunpack.c.l.b16 %v9990
  %v10807 = vunpack.c.h.b16 %v9990
  %v10808 = vunpack.c.l.b16 %v9991
  %v10809 = vunpack.c.h.b16 %v9991
  %v10810 = vunpack.c.l.b16 %v9992
  %v10811 = vunpack.c.h.b16 %v9992
  %v10812 = vunpack.c.l.b16 %v9993
  %v10813 = vunpack.c.h.b16 %v9993
  %v10814 = vunpack.c.l.b16 %v9994
  %v10815 = vunpack.c.h.b16 %v9994
  %v10816 = vunpack.c.l.b16 %v9995
  %v10817 = vunpack.c.h.b16 %v9995
  %v10818 = vunpack.c.l.b16 %v9996
  %v10819 = vunpack.c.h.b16 %v9996
  %v10820 = vunpack.c.l.b16 %v9997
  %v10821 = vunpack.c.h.b16 %v9997
  %v10822 = vunpack.c.l.b16 %v9998
  %v10823 = vunpack.c.h.b16 %v9998
  %v10824 = vunpack.c.l.b16 %v9999
  %v10825 = vunpack.c.h.b16 %v9999
  %v10826 = vunpack.c.l.b16 %v10000
  %v10827 = vunpack.c.h.b16 %v10000
  %v10828 = vunpack.c.l.b16 %v10001
  %v10829 = vunpack.c.h.b16 %v10001
  %v10830 = vunpack.c.l.b16 %v10002
  %v10831 = vunpack.c.h.b16 %v10002
  %v10832 = vunpack.c.l.b16 %v10003
  %v10833 = vunpack.c.h.b16 %v10003
  %v10834 = vunpack.c.l.b16 %v10004
  %v10835 = vunpack.c.h.b16 %v10004
  %v10836 = vunpack.c.l.b16 %v10005
  %v10837 = vunpack.c.h.b16 %v10005
  %v10838 = vunpack.c.l.b16 %v10006
  %v10839 = vunpack.c.h.b16 %v10006
  %v10840 = vunpack.c.l.b16 %v10007
  %v10841 = vunpack.c.h.b16 %v10007
  %v10842 = vunpack.c.l.b16 %v10008
  %v10843 = vunpack.c.h.b16 %v10008
  %v10844 = vunpack.c.l.b16 %v10009
  %v10845 = vunpack.c.h.b16 %v10009
  %v10846 = vunpack.c.l.b16 %v10010
  %v10847 = vunpack.c.h.b16 %v10010
  %v10848 = vunpack.c.l.b16 %v10011
  %v10849 = vunpack.c.h.b16 %v10011
  %v10850 = vunpack.c.l.b16 %v10012
  %v10851 = vunpack.c.h.b16 %v10012
  %v10852 = vunpack.c.l.b16 %v10013
  %v10853 = vunpack.c.h.b16 %v10013
  %v10854 = vunpack.c.l.b16 %v10014
  %v10855 = vunpack.c.h.b16 %v10014
  %v10856 = vunpack.c.l.b16 %v10015
  %v10857 = vunpack.c.h.b16 %v10015
  %v10858 = vunpack.c.l.b16 %v10016
  %v10859 = vunpack.c.h.b16 %v10016
  %v10860 = vunpack.c.l.b16 %v10017
  %v10861 = vunpack.c.h.b16 %v10017
  %v10862 = vunpack.c.l.b16 %v10018
  %v10863 = vunpack.c.h.b16 %v10018
  %v10864 = vunpack.c.l.b16 %v10019
  %v10865 = vunpack.c.h.b16 %v10019
  %v10866 = vunpack.c.l.b16 %v10020
  %v10867 = vunpack.c.h.b16 %v10020
  %v10868 = vunpack.c.l.b16 %v10021
  %v10869 = vunpack.c.h.b16 %v10021
  %v10870 = vunpack.c.l.b16 %v10022
  %v10871 = vunpack.c.h.b16 %v10022
  %v10872 = vunpack.c.l.b16 %v10023
  %v10873 = vunpack.c.h.b16 %v10023
  %v10874 = vunpack.c.l.b16 %v10024
  %v10875 = vunpack.c.h.b16 %v10024
  %v10876 = vunpack.c.l.b16 %v10025
  %v10877 = vunpack.c.h.b16 %v10025
  %v10878 = vunpack.c.l.b16 %v10026
  %v10879 = vunpack.c.h.b16 %v10026
  %v10880 = vunpack.c.l.b16 %v10027
  %v10881 = vunpack.c.h.b16 %v10027
  %v10882 = vunpack.c.l.b16 %v10028
  %v10883 = vunpack.c.h.b16 %v10028
  %v10884 = vunpack.c.l.b16 %v10029
  %v10885 = vunpack.c.h.b16 %v10029
  %v10886 = vunpack.c.l.b16 %v10030
  %v10887 = vunpack.c.h.b16 %v10030
  %v10888 = vunpack.c.l.b16 %v10031
  %v10889 = vunpack.c.h.b16 %v10031
  %v10890 = vunpack.c.l.b16 %v10032
  %v10891 = vunpack.c.h.b16 %v10032
  %v10892 = vunpack.c.l.b16 %v10033
  %v10893 = vunpack.c.h.b16 %v10033
  %v10894 = vunpack.c.l.b16 %v10034
  %v10895 = vunpack.c.h.b16 %v10034
  %v10896 = vunpack.c.l.b16 %v10035
  %v10897 = vunpack.c.h.b16 %v10035
  %v10898 = vunpack.c.l.b16 %v10036
  %v10899 = vunpack.c.h.b16 %v10036
  %v10900 = vunpack.c.l.b16 %v10037
  %v10901 = vunpack.c.h.b16 %v10037
  %v10902 = vpack.c.b16 %v10332, %v10326
  %v10903 = vpack.c.b16 %v10333, %v10327
  %v10904 = vpack.c.b16 %v10334, %v10328
  %v10905 = vpack.c.b16 %v10335, %v10329
  %v10906 = vpack.c.b16 %v10336, %v10330
  %v10907 = vpack.c.b16 %v10337, %v10331
  %v10908 = vpack.c.b16 %v10344, %v10338
  %v10909 = vpack.c.b16 %v10345, %v10339
  %v10910 = vpack.c.b16 %v10346, %v10340
  %v10911 = vpack.c.b16 %v10347, %v10341
  %v10912 = vpack.c.b16 %v10348, %v10342
  %v10913 = vpack.c.b16 %v10349, %v10343
  %v10914 = vpack.c.b16 %v10356, %v10350
  %v10915 = vpack.c.b16 %v10357, %v10351
  %v10916 = vpack.c.b16 %v10358, %v10352
  %v10917 = vpack.c.b16 %v10359, %v10353
  %v10918 = vpack.c.b16 %v10360, %v10354
  %v10919 = vpack.c.b16 %v10361, %v10355
  %v10920 = vpack.c.b16 %v10368, %v10362
  %v10921 = vpack.c.b16 %v10369, %v10363
  %v10922 = vpack.c.b16 %v10370, %v10364
  %v10923 = vpack.c.b16 %v10371, %v10365
  %v10924 = vpack.c.b16 %v10372, %v10366
  %v10925 = vpack.c.b16 %v10373, %v10367
  %v10926 = vpack.c.b16 %v10380, %v10374
  %v10927 = vpack.c.b16 %v10381, %v10375
  %v10928 = vpack.c.b16 %v10382, %v10376
  %v10929 = vpack.c.b16 %v10383, %v10377
  %v10930 = vpack.c.b16 %v10384, %v10378
  %v10931 = vpack.c.b16 %v10385, %v10379
  %v10932 = vpack.c.b16 %v10392, %v10386
  %v10933 = vpack.c.b16 %v10393, %v10387
  %v10934 = vpack.c.b16 %v10394, %v10388
  %v10935 = vpack.c.b16 %v10395, %v10389
  %v10936 = vpack.c.b16 %v10396, %v10390
  %v10937 = vpack.c.b16 %v10397, %v10391
  %v10938 = vpack.c.b16 %v10404, %v10398
  %v10939 = vpack.c.b16 %v10405, %v10399
  %v10940 = vpack.c.b16 %v10406, %v10400
  %v10941 = vpack.c.b16 %v10407, %v10401
  %v10942 = vpack.c.b16 %v10408, %v10402
  %v10943 = vpack.c.b16 %v10409, %v10403
  %v10944 = vpack.c.b16 %v10416, %v10410
  %v10945 = vpack.c.b16 %v10417, %v10411
  %v10946 = vpack.c.b16 %v10418, %v10412
  %v10947 = vpack.c.b16 %v10419, %v10413
  %v10948 = vpack.c.b16 %v10420, %v10414
  %v10949 = vpack.c.b16 %v10421, %v10415
  %v10950 = vpack.c.b16 %v10428, %v10422
  %v10951 = vpack.c.b16 %v10429, %v10423
  %v10952 = vpack.c.b16 %v10430, %v10424
  %v10953 = vpack.c.b16 %v10431, %v10425
  %v10954 = vpack.c.b16 %v10432, %v10426
  %v10955 = vpack.c.b16 %v10433, %v10427
  %v10956 = vpack.c.b16 %v10440, %v10434
  %v10957 = vpack.c.b16 %v10441, %v10435
  %v10958 = vpack.c.b16 %v10442, %v10436
  %v10959 = vpack.c.b16 %v10443, %v10437
  %v10960 = vpack.c.b16 %v10444, %v10438
  %v10961 = vpack.c.b16 %v10445, %v10439
  %v10962 = vpack.c.b16 %v10452, %v10446
  %v10963 = vpack.c.b16 %v10453, %v10447
  %v10964 = vpack.c.b16 %v10454, %v10448
  %v10965 = vpack.c.b16 %v10455, %v10449
  %v10966 = vpack.c.b16 %v10456, %v10450
  %v10967 = vpack.c.b16 %v10457, %v10451
  %v10968 = vpack.c.b16 %v10464, %v10458
  %v10969 = vpack.c.b16 %v10465, %v10459
  %v10970 = vpack.c.b16 %v10466, %v10460
  %v10971 = vpack.c.b16 %v10467, %v10461
  %v10972 = vpack.c.b16 %v10468, %v10462
  %v10973 = vpack.c.b16 %v10469, %v10463
  %v10974 = vpack.c.b16 %v10476, %v10470
  %v10975 = vpack.c.b16 %v10477, %v10471
  %v10976 = vpack.c.b16 %v10478, %v10472
  %v10977 = vpack.c.b16 %v10479, %v10473
  %v10978 = vpack.c.b16 %v10480, %v10474
  %v10979 = vpack.c.b16 %v10481, %v10475
  %v10980 = vpack.c.b16 %v10488, %v10482
  %v10981 = vpack.c.b16 %v10489, %v10483
  %v10982 = vpack.c.b16 %v10490, %v10484
  %v10983 = vpack.c.b16 %v10491, %v10485
  %v10984 = vpack.c.b16 %v10492, %v10486
  %v10985 = vpack.c.b16 %v10493, %v10487
  %v10986 = vpack.c.b16 %v10500, %v10494
  %v10987 = vpack.c.b16 %v10501, %v10495
  %v10988 = vpack.c.b16 %v10502, %v10496
  %v10989 = vpack.c.b16 %v10503, %v10497
  %v10990 = vpack.c.b16 %v10504, %v10498
  %v10991 = vpack.c.b16 %v10505, %v10499
  %v10992 = vpack.c.b16 %v10512, %v10506
  %v10993 = vpack.c.b16 %v10513, %v10507
  %v10994 = vpack.c.b16 %v10514, %v10508
  %v10995 = vpack.c.b16 %v10515, %v10509
  %v10996 = vpack.c.b16 %v10516, %v10510
  %v10997 = vpack.c.b16 %v10517, %v10511
  %v10998 = vpack.c.b16 %v10524, %v10518
  %v10999 = vpack.c.b16 %v10525, %v10519
  %v11000 = vpack.c.b16 %v10526, %v10520
  %v11001 = vpack.c.b16 %v10527, %v10521
  %v11002 = vpack.c.b16 %v10528, %v10522
  %v11003 = vpack.c.b16 %v10529, %v10523
  %v11004 = vpack.c.b16 %v10536, %v10530
  %v11005 = vpack.c.b16 %v10537, %v10531
  %v11006 = vpack.c.b16 %v10538, %v10532
  %v11007 = vpack.c.b16 %v10539, %v10533
  %v11008 = vpack.c.b16 %v10540, %v10534
  %v11009 = vpack.c.b16 %v10541, %v10535
  %v11010 = vpack.c.b16 %v10548, %v10542
  %v11011 = vpack.c.b16 %v10549, %v10543
  %v11012 = vpack.c.b16 %v10550, %v10544
  %v11013 = vpack.c.b16 %v10551, %v10545
  %v11014 = vpack.c.b16 %v10552, %v10546
  %v11015 = vpack.c.b16 %v10553, %v10547
  %v11016 = vpack.c.b16 %v10560, %v10554
  %v11017 = vpack.c.b16 %v10561, %v10555
  %v11018 = vpack.c.b16 %v10562, %v10556
  %v11019 = vpack.c.b16 %v10563, %v10557
  %v11020 = vpack.c.b16 %v10564, %v10558
  %v11021 = vpack.c.b16 %v10565, %v10559
  %v11022 = vpack.c.b16 %v10572, %v10566
  %v11023 = vpack.c.b16 %v10573, %v10567
  %v11024 = vpack.c.b16 %v10574, %v10568
  %v11025 = vpack.c.b16 %v10575, %v10569
  %v11026 = vpack.c.b16 %v10576, %v10570
  %v11027 = vpack.c.b16 %v10577, %v10571
  %v11028 = vpack.c.b16 %v10584, %v10578
  %v11029 = vpack.c.b16 %v10585, %v10579
  %v11030 = vpack.c.b16 %v10586, %v10580
  %v11031 = vpack.c.b16 %v10587, %v10581
  %v11032 = vpack.c.b16 %v10588, %v10582
  %v11033 = vpack.c.b16 %v10589, %v10583
  %v11034 = vpack.c.b16 %v10596, %v10590
  %v11035 = vpack.c.b16 %v10597, %v10591
  %v11036 = vpack.c.b16 %v10598, %v10592
  %v11037 = vpack.c.b16 %v10599, %v10593
  %v11038 = vpack.c.b16 %v10600, %v10594
  %v11039 = vpack.c.b16 %v10601, %v10595
  %v11040 = vpack.c.b16 %v10608, %v10602
  %v11041 = vpack.c.b16 %v10609, %v10603
  %v11042 = vpack.c.b16 %v10610, %v10604
  %v11043 = vpack.c.b16 %v10611, %v10605
  %v11044 = vpack.c.b16 %v10612, %v10606
  %v11045 = vpack.c.b16 %v10613, %v10607
  %v11046 = vpack.c.b16 %v10620, %v10614
  %v11047 = vpack.c.b16 %v10621, %v10615
  %v11048 = vpack.c.b16 %v10622, %v10616
  %v11049 = vpack.c.b16 %v10623, %v10617
  %v11050 = vpack.c.b16 %v10624, %v10618
  %v11051 = vpack.c.b16 %v10625, %v10619
  %v11052 = vpack.c.b16 %v10632, %v10626
  %v11053 = vpack.c.b16 %v10633, %v10627
  %v11054 = vpack.c.b16 %v10634, %v10628
  %v11055 = vpack.c.b16 %v10635, %v10629
  %v11056 = vpack.c.b16 %v10636, %v10630
  %v11057 = vpack.c.b16 %v10637, %v10631
  %v11058 = vpack.c.b16 %v10644, %v10638
  %v11059 = vpack.c.b16 %v10645, %v10639
  %v11060 = vpack.c.b16 %v10646, %v10640
  %v11061 = vpack.c.b16 %v10647, %v10641
  %v11062 = vpack.c.b16 %v10648, %v10642
  %v11063 = vpack.c.b16 %v10649, %v10643
  %v11064 = vpack.c.b16 %v10656, %v10650
  %v11065 = vpack.c.b16 %v10657, %v10651
  %v11066 = vpack.c.b16 %v10658, %v10652
  %v11067 = vpack.c.b16 %v10659, %v10653
  %v11068 = vpack.c.b16 %v10660, %v10654
  %v11069 = vpack.c.b16 %v10661, %v10655
  %v11070 = vpack.c.b16 %v10668, %v10662
  %v11071 = vpack.c.b16 %v10669, %v10663
  %v11072 = vpack.c.b16 %v10670, %v10664
  %v11073 = vpack.c.b16 %v10671, %v10665
  %v11074 = vpack.c.b16 %v10672, %v10666
  %v11075 = vpack.c.b16 %v10673, %v10667
  %v11076 = vpack.c.b16 %v10680, %v10674
  %v11077 = vpack.c.b16 %v10681, %v10675
  %v11078 = vpack.c.b16 %v10682, %v10676
  %v11079 = vpack.c.b16 %v10683, %v10677
  %v11080 = vpack.c.b16 %v10684, %v10678
  %v11081 = vpack.c.b16 %v10685, %v10679
  %v11082 = vpack.c.b16 %v10692, %v10686
  %v11083 = vpack.c.b16 %v10693, %v10687
  %v11084 = vpack.c.b16 %v10694, %v10688
  %v11085 = vpack.c.b16 %v10695, %v10689
  %v11086 = vpack.c.b16 %v10696, %v10690
  %v11087 = vpack.c.b16 %v10697, %v10691
  %v11088 = vpack.c.b16 %v10704, %v10698
  %v11089 = vpack.c.b16 %v10705, %v10699
  %v11090 = vpack.c.b16 %v10706, %v10700
  %v11091 = vpack.c.b16 %v10707, %v10701
  %v11092 = vpack.c.b16 %v10708, %v10702
  %v11093 = vpack.c.b16 %v10709, %v10703
  %v11094 = vpack.c.b16 %v10716, %v10710
  %v11095 = vpack.c.b16 %v10717, %v10711
  %v11096 = vpack.c.b16 %v10718, %v10712
  %v11097 = vpack.c.b16 %v10719, %v10713
  %v11098 = vpack.c.b16 %v10720, %v10714
  %v11099 = vpack.c.b16 %v10721, %v10715
  %v11100 = vpack.c.b16 %v10728, %v10722
  %v11101 = vpack.c.b16 %v10729, %v10723
  %v11102 = vpack.c.b16 %v10730, %v10724
  %v11103 = vpack.c.b16 %v10731, %v10725
  %v11104 = vpack.c.b16 %v10732, %v10726
  %v11105 = vpack.c.b16 %v10733, %v10727
  %v11106 = vpack.c.b16 %v10740, %v10734
  %v11107 = vpack.c.b16 %v10741, %v10735
  %v11108 = vpack.c.b16 %v10742, %v10736
  %v11109 = vpack.c.b16 %v10743, %v10737
  %v11110 = vpack.c.b16 %v10744, %v10738
  %v11111 = vpack.c.b16 %v10745, %v10739
  %v11112 = vpack.c.b16 %v10752, %v10746
  %v11113 = vpack.c.b16 %v10753, %v10747
  %v11114 = vpack.c.b16 %v10754, %v10748
  %v11115 = vpack.c.b16 %v10755, %v10749
  %v11116 = vpack.c.b16 %v10756, %v10750
  %v11117 = vpack.c.b16 %v10757, %v10751
  %v11118 = vpack.c.b16 %v10764, %v10758
  %v11119 = vpack.c.b16 %v10765, %v10759
  %v11120 = vpack.c.b16 %v10766, %v10760
  %v11121 = vpack.c.b16 %v10767, %v10761
  %v11122 = vpack.c.b16 %v10768, %v10762
  %v11123 = vpack.c.b16 %v10769, %v10763
  %v11124 = vpack.c.b16 %v10776, %v10770
  %v11125 = vpack.c.b16 %v10777, %v10771
  %v11126 = vpack.c.b16 %v10778, %v10772
  %v11127 = vpack.c.b16 %v10779, %v10773
  %v11128 = vpack.c.b16 %v10780, %v10774
  %v11129 = vpack.c.b16 %v10781, %v10775
  %v11130 = vpack.c.b16 %v10788, %v10782
  %v11131 = vpack.c.b16 %v10789, %v10783
  %v11132 = vpack.c.b16 %v10790, %v10784
  %v11133 = vpack.c.b16 %v10791, %v10785
  %v11134 = vpack.c.b16 %v10792, %v10786
  %v11135 = vpack.c.b16 %v10793, %v10787
  %v11136 = vpack.c.b16 %v10800, %v10794
  %v11137 = vpack.c.b16 %v10801, %v10795
  %v11138 = vpack.c.b16 %v10802, %v10796
  %v11139 = vpack.c.b16 %v10803, %v10797
  %v11140 = vpack.c.b16 %v10804, %v10798
  %v11141 = vpack.c.b16 %v10805, %v10799
  %v11142 = vpack.c.b16 %v10812, %v10806
  %v11143 = vpack.c.b16 %v10813, %v10807
  %v11144 = vpack.c.b16 %v10814, %v10808
  %v11145 = vpack.c.b16 %v10815, %v10809
  %v11146 = vpack.c.b16 %v10816, %v10810
  %v11147 = vpack.c.b16 %v10817, %v10811
  %v11148 = vpack.c.b16 %v10824, %v10818
  %v11149 = vpack.c.b16 %v10825, %v10819
  %v11150 = vpack.c.b16 %v10826, %v10820
  %v11151 = vpack.c.b16 %v10827, %v10821
  %v11152 = vpack.c.b16 %v10828, %v10822
  %v11153 = vpack.c.b16 %v10829, %v10823
  %v11154 = vpack.c.b16 %v10836, %v10830
  %v11155 = vpack.c.b16 %v10837, %v10831
  %v11156 = vpack.c.b16 %v10838, %v10832
  %v11157 = vpack.c.b16 %v10839, %v10833
  %v11158 = vpack.c.b16 %v10840, %v10834
  %v11159 = vpack.c.b16 %v10841, %v10835
  %v11160 = vpack.c.b16 %v10848, %v10842
  %v11161 = vpack.c.b16 %v10849, %v10843
  %v11162 = vpack.c.b16 %v10850, %v10844
  %v11163 = vpack.c.b16 %v10851, %v10845
  %v11164 = vpack.c.b16 %v10852, %v10846
  %v11165 = vpack.c.b16 %v10853, %v10847
  %v11166 = vpack.c.b16 %v10860, %v10854
  %v11167 = vpack.c.b16 %v10861, %v10855
  %v11168 = vpack.c.b16 %v10862, %v10856
  %v11169 = vpack.c.b16 %v10863, %v10857
  %v11170 = vpack.c.b16 %v10864, %v10858
  %v11171 = vpack.c.b16 %v10865, %v10859
  %v11172 = vpack.c.b16 %v10872, %v10866
  %v11173 = vpack.c.b16 %v10873, %v10867
  %v11174 = vpack.c.b16 %v10874, %v10868
  %v11175 = vpack.c.b16 %v10875, %v10869
  %v11176 = vpack.c.b16 %v10876, %v10870
  %v11177 = vpack.c.b16 %v10877, %v10871
  %v11178 = vpack.c.b16 %v10884, %v10878
  %v11179 = vpack.c.b16 %v10885, %v10879
  %v11180 = vpack.c.b16 %v10886, %v10880
  %v11181 = vpack.c.b16 %v10887, %v10881
  %v11182 = vpack.c.b16 %v10888, %v10882
  %v11183 = vpack.c.b16 %v10889, %v10883
  %v11184 = vpack.c.b16 %v10896, %v10890
  %v11185 = vpack.c.b16 %v10897, %v10891
  %v11186 = vpack.c.b16 %v10898, %v10892
  %v11187 = vpack.c.b16 %v10899, %v10893
  %v11188 = vpack.c.b16 %v10900, %v10894
  %v11189 = vpack.c.b16 %v10901, %v10895
  %11478 = vmatprep.subr.bf16.mxu0 %v10945
  %11479 = vmatpush1.bf16.msra.mxu0 %v10944
  %11480 = vmatprep.subr.bf16.mxu0 %v10939
  %11481 = vmatpush1.bf16.msra.mxu0 %v10938
  %11482 = vmatprep.subr.bf16.mxu0 %v10933
  %11483 = vmatpush1.bf16.msra.mxu0 %v10932
  %11484 = vmatprep.subr.bf16.mxu0 %v10927
  %11485 = vmatpush1.bf16.msra.mxu0 %v10926
  %11486 = vmatprep.subr.bf16.mxu0 %v10921
  %11487 = vmatpush1.bf16.msra.mxu0 %v10920
  %11488 = vmatprep.subr.bf16.mxu0 %v10915
  %11489 = vmatpush1.bf16.msra.mxu0 %v10914
  %11490 = vmatprep.subr.bf16.mxu0 %v10909
  %11491 = vmatpush1.bf16.msra.mxu0 %v10908
  %11492 = vmatprep.subr.bf16.mxu0 %v10903
  %11493 = vmatpush1.bf16.msra.mxu0 %v10902
  %11494 = vmatprep.subr.bf16.mxu0 %v10993
  %11495 = vmatpush2.bf16.msra.mxu0 %v10992
  %11496 = vmatprep.subr.bf16.mxu0 %v10987
  %11497 = vmatpush2.bf16.msra.mxu0 %v10986
  %11498 = vmatprep.subr.bf16.mxu0 %v10981
  %11499 = vmatpush2.bf16.msra.mxu0 %v10980
  %11500 = vmatprep.subr.bf16.mxu0 %v10975
  %11501 = vmatpush2.bf16.msra.mxu0 %v10974
  %11502 = vmatprep.subr.bf16.mxu0 %v10969
  %11503 = vmatpush2.bf16.msra.mxu0 %v10968
  %11504 = vmatprep.subr.bf16.mxu0 %v10963
  %11505 = vmatpush2.bf16.msra.mxu0 %v10962
  %11506 = vmatprep.subr.bf16.mxu0 %v10957
  %11507 = vmatpush2.bf16.msra.mxu0 %v10956
  %11508 = vmatprep.subr.bf16.mxu0 %v10951
  %11509 = vmatpush2.bf16.msra.mxu0 %v10950
  %11510 = vmatprep.mubr.bf16.mxu0 %v9745
  %11511 = vmatmul.mubr.bf16.gmra.mxu0 %v9744
  %v11512 = vpop.f32.mrf.mxu0
  %v11513 = vadd.f32 0.0, %v11512
  %v11514 = vpop.f32.mrf.mxu0
  %v11515 = vadd.f32 0.0, %v11514
  %v11516 = vpop.f32.mrf.mxu0
  %v11517 = vadd.f32 0.0, %v11516
  %v11518 = vpop.f32.mrf.mxu0
  %v11519 = vadd.f32 0.0, %v11518
  %11520 = vdwg.mxu0
  %11521 = vmatprep.subr.bf16.mxu0 %v11041
  %11522 = vmatpush1.bf16.msra.mxu0 %v11040
  %11523 = vmatprep.subr.bf16.mxu0 %v11035
  %11524 = vmatpush1.bf16.msra.mxu0 %v11034
  %11525 = vmatprep.subr.bf16.mxu0 %v11029
  %11526 = vmatpush1.bf16.msra.mxu0 %v11028
  %11527 = vmatprep.subr.bf16.mxu0 %v11023
  %11528 = vmatpush1.bf16.msra.mxu0 %v11022
  %11529 = vmatprep.subr.bf16.mxu0 %v11017
  %11530 = vmatpush1.bf16.msra.mxu0 %v11016
  %11531 = vmatprep.subr.bf16.mxu0 %v11011
  %11532 = vmatpush1.bf16.msra.mxu0 %v11010
  %11533 = vmatprep.subr.bf16.mxu0 %v11005
  %11534 = vmatpush1.bf16.msra.mxu0 %v11004
  %11535 = vmatprep.subr.bf16.mxu0 %v10999
  %11536 = vmatpush1.bf16.msra.mxu0 %v10998
  %11537 = vmatprep.subr.bf16.mxu0 %v11089
  %11538 = vmatpush2.bf16.msra.mxu0 %v11088
  %11539 = vmatprep.subr.bf16.mxu0 %v11083
  %11540 = vmatpush2.bf16.msra.mxu0 %v11082
  %11541 = vmatprep.subr.bf16.mxu0 %v11077
  %11542 = vmatpush2.bf16.msra.mxu0 %v11076
  %11543 = vmatprep.subr.bf16.mxu0 %v11071
  %11544 = vmatpush2.bf16.msra.mxu0 %v11070
  %11545 = vmatprep.subr.bf16.mxu0 %v11065
  %11546 = vmatpush2.bf16.msra.mxu0 %v11064
  %11547 = vmatprep.subr.bf16.mxu0 %v11059
  %11548 = vmatpush2.bf16.msra.mxu0 %v11058
  %11549 = vmatprep.subr.bf16.mxu0 %v11053
  %11550 = vmatpush2.bf16.msra.mxu0 %v11052
  %11551 = vmatprep.subr.bf16.mxu0 %v11047
  %11552 = vmatpush2.bf16.msra.mxu0 %v11046
  %11553 = vmatprep.mubr.bf16.mxu0 %v9747
  %11554 = vmatmul.mubr.bf16.gmra.mxu0 %v9746
  %v11555 = vpop.f32.mrf.mxu0
  %v11556 = vadd.f32 %v11513, %v11555
  %v11557 = vpop.f32.mrf.mxu0
  %v11558 = vadd.f32 %v11515, %v11557
  %v11559 = vpop.f32.mrf.mxu0
  %v11560 = vadd.f32 %v11517, %v11559
  %v11561 = vpop.f32.mrf.mxu0
  %v11562 = vadd.f32 %v11519, %v11561
  %11563 = vdwg.mxu0
  %11564 = vmatprep.subr.bf16.mxu0 %v11137
  %11565 = vmatpush1.bf16.msra.mxu0 %v11136
  %11566 = vmatprep.subr.bf16.mxu0 %v11131
  %11567 = vmatpush1.bf16.msra.mxu0 %v11130
  %11568 = vmatprep.subr.bf16.mxu0 %v11125
  %11569 = vmatpush1.bf16.msra.mxu0 %v11124
  %11570 = vmatprep.subr.bf16.mxu0 %v11119
  %11571 = vmatpush1.bf16.msra.mxu0 %v11118
  %11572 = vmatprep.subr.bf16.mxu0 %v11113
  %11573 = vmatpush1.bf16.msra.mxu0 %v11112
  %11574 = vmatprep.subr.bf16.mxu0 %v11107
  %11575 = vmatpush1.bf16.msra.mxu0 %v11106
  %11576 = vmatprep.subr.bf16.mxu0 %v11101
  %11577 = vmatpush1.bf16.msra.mxu0 %v11100
  %11578 = vmatprep.subr.bf16.mxu0 %v11095
  %11579 = vmatpush1.bf16.msra.mxu0 %v11094
  %11580 = vmatprep.subr.bf16.mxu0 %v11185
  %11581 = vmatpush2.bf16.msra.mxu0 %v11184
  %11582 = vmatprep.subr.bf16.mxu0 %v11179
  %11583 = vmatpush2.bf16.msra.mxu0 %v11178
  %11584 = vmatprep.subr.bf16.mxu0 %v11173
  %11585 = vmatpush2.bf16.msra.mxu0 %v11172
  %11586 = vmatprep.subr.bf16.mxu0 %v11167
  %11587 = vmatpush2.bf16.msra.mxu0 %v11166
  %11588 = vmatprep.subr.bf16.mxu0 %v11161
  %11589 = vmatpush2.bf16.msra.mxu0 %v11160
  %11590 = vmatprep.subr.bf16.mxu0 %v11155
  %11591 = vmatpush2.bf16.msra.mxu0 %v11154
  %11592 = vmatprep.subr.bf16.mxu0 %v11149
  %11593 = vmatpush2.bf16.msra.mxu0 %v11148
  %11594 = vmatprep.subr.bf16.mxu0 %v11143
  %11595 = vmatpush2.bf16.msra.mxu0 %v11142
  %11596 = vmatprep.mubr.bf16.mxu0 %v9749
  %11597 = vmatmul.mubr.bf16.gmra.mxu0 %v9748
  %v11598 = vpop.f32.mrf.mxu0
  %v11599 = vadd.f32 %v11556, %v11598
  %v11600 = vpop.f32.mrf.mxu0
  %v11601 = vadd.f32 %v11558, %v11600
  %v11602 = vpop.f32.mrf.mxu0
  %v11603 = vadd.f32 %v11560, %v11602
  %v11604 = vpop.f32.mrf.mxu0
  %v11605 = vadd.f32 %v11562, %v11604
  %11606 = vdwg.mxu0
  %11607 = vmatprep.subr.bf16.mxu0 %v10947
  %11608 = vmatpush1.bf16.msra.mxu0 %v10946
  %11609 = vmatprep.subr.bf16.mxu0 %v10941
  %11610 = vmatpush1.bf16.msra.mxu0 %v10940
  %11611 = vmatprep.subr.bf16.mxu0 %v10935
  %11612 = vmatpush1.bf16.msra.mxu0 %v10934
  %11613 = vmatprep.subr.bf16.mxu0 %v10929
  %11614 = vmatpush1.bf16.msra.mxu0 %v10928
  %11615 = vmatprep.subr.bf16.mxu0 %v10923
  %11616 = vmatpush1.bf16.msra.mxu0 %v10922
  %11617 = vmatprep.subr.bf16.mxu0 %v10917
  %11618 = vmatpush1.bf16.msra.mxu0 %v10916
  %11619 = vmatprep.subr.bf16.mxu0 %v10911
  %11620 = vmatpush1.bf16.msra.mxu0 %v10910
  %11621 = vmatprep.subr.bf16.mxu0 %v10905
  %11622 = vmatpush1.bf16.msra.mxu0 %v10904
  %11623 = vmatprep.subr.bf16.mxu0 %v10995
  %11624 = vmatpush2.bf16.msra.mxu0 %v10994
  %11625 = vmatprep.subr.bf16.mxu0 %v10989
  %11626 = vmatpush2.bf16.msra.mxu0 %v10988
  %11627 = vmatprep.subr.bf16.mxu0 %v10983
  %11628 = vmatpush2.bf16.msra.mxu0 %v10982
  %11629 = vmatprep.subr.bf16.mxu0 %v10977
  %11630 = vmatpush2.bf16.msra.mxu0 %v10976
  %11631 = vmatprep.subr.bf16.mxu0 %v10971
  %11632 = vmatpush2.bf16.msra.mxu0 %v10970
  %11633 = vmatprep.subr.bf16.mxu0 %v10965
  %11634 = vmatpush2.bf16.msra.mxu0 %v10964
  %11635 = vmatprep.subr.bf16.mxu0 %v10959
  %11636 = vmatpush2.bf16.msra.mxu0 %v10958
  %11637 = vmatprep.subr.bf16.mxu0 %v10953
  %11638 = vmatpush2.bf16.msra.mxu0 %v10952
  %11639 = vmatprep.mubr.bf16.mxu0 %v9745
  %11640 = vmatmul.mubr.bf16.gmra.mxu0 %v9744
  %v11641 = vpop.f32.mrf.mxu0
  %v11642 = vadd.f32 0.0, %v11641
  %v11643 = vpop.f32.mrf.mxu0
  %v11644 = vadd.f32 0.0, %v11643
  %v11645 = vpop.f32.mrf.mxu0
  %v11646 = vadd.f32 0.0, %v11645
  %v11647 = vpop.f32.mrf.mxu0
  %v11648 = vadd.f32 0.0, %v11647
  %11649 = vdwg.mxu0
  %11650 = vmatprep.subr.bf16.mxu0 %v11043
  %11651 = vmatpush1.bf16.msra.mxu0 %v11042
  %11652 = vmatprep.subr.bf16.mxu0 %v11037
  %11653 = vmatpush1.bf16.msra.mxu0 %v11036
  %11654 = vmatprep.subr.bf16.mxu0 %v11031
  %11655 = vmatpush1.bf16.msra.mxu0 %v11030
  %11656 = vmatprep.subr.bf16.mxu0 %v11025
  %11657 = vmatpush1.bf16.msra.mxu0 %v11024
  %11658 = vmatprep.subr.bf16.mxu0 %v11019
  %11659 = vmatpush1.bf16.msra.mxu0 %v11018
  %11660 = vmatprep.subr.bf16.mxu0 %v11013
  %11661 = vmatpush1.bf16.msra.mxu0 %v11012
  %11662 = vmatprep.subr.bf16.mxu0 %v11007
  %11663 = vmatpush1.bf16.msra.mxu0 %v11006
  %11664 = vmatprep.subr.bf16.mxu0 %v11001
  %11665 = vmatpush1.bf16.msra.mxu0 %v11000
  %11666 = vmatprep.subr.bf16.mxu0 %v11091
  %11667 = vmatpush2.bf16.msra.mxu0 %v11090
  %11668 = vmatprep.subr.bf16.mxu0 %v11085
  %11669 = vmatpush2.bf16.msra.mxu0 %v11084
  %11670 = vmatprep.subr.bf16.mxu0 %v11079
  %11671 = vmatpush2.bf16.msra.mxu0 %v11078
  %11672 = vmatprep.subr.bf16.mxu0 %v11073
  %11673 = vmatpush2.bf16.msra.mxu0 %v11072
  %11674 = vmatprep.subr.bf16.mxu0 %v11067
  %11675 = vmatpush2.bf16.msra.mxu0 %v11066
  %11676 = vmatprep.subr.bf16.mxu0 %v11061
  %11677 = vmatpush2.bf16.msra.mxu0 %v11060
  %11678 = vmatprep.subr.bf16.mxu0 %v11055
  %11679 = vmatpush2.bf16.msra.mxu0 %v11054
  %11680 = vmatprep.subr.bf16.mxu0 %v11049
  %11681 = vmatpush2.bf16.msra.mxu0 %v11048
  %11682 = vmatprep.mubr.bf16.mxu0 %v9747
  %11683 = vmatmul.mubr.bf16.gmra.mxu0 %v9746
  %v11684 = vpop.f32.mrf.mxu0
  %v11685 = vadd.f32 %v11642, %v11684
  %v11686 = vpop.f32.mrf.mxu0
  %v11687 = vadd.f32 %v11644, %v11686
  %v11688 = vpop.f32.mrf.mxu0
  %v11689 = vadd.f32 %v11646, %v11688
  %v11690 = vpop.f32.mrf.mxu0
  %v11691 = vadd.f32 %v11648, %v11690
  %11692 = vdwg.mxu0
  %11693 = vmatprep.subr.bf16.mxu0 %v11139
  %11694 = vmatpush1.bf16.msra.mxu0 %v11138
  %11695 = vmatprep.subr.bf16.mxu0 %v11133
  %11696 = vmatpush1.bf16.msra.mxu0 %v11132
  %11697 = vmatprep.subr.bf16.mxu0 %v11127
  %11698 = vmatpush1.bf16.msra.mxu0 %v11126
  %11699 = vmatprep.subr.bf16.mxu0 %v11121
  %11700 = vmatpush1.bf16.msra.mxu0 %v11120
  %11701 = vmatprep.subr.bf16.mxu0 %v11115
  %11702 = vmatpush1.bf16.msra.mxu0 %v11114
  %11703 = vmatprep.subr.bf16.mxu0 %v11109
  %11704 = vmatpush1.bf16.msra.mxu0 %v11108
  %11705 = vmatprep.subr.bf16.mxu0 %v11103
  %11706 = vmatpush1.bf16.msra.mxu0 %v11102
  %11707 = vmatprep.subr.bf16.mxu0 %v11097
  %11708 = vmatpush1.bf16.msra.mxu0 %v11096
  %11709 = vmatprep.subr.bf16.mxu0 %v11187
  %11710 = vmatpush2.bf16.msra.mxu0 %v11186
  %11711 = vmatprep.subr.bf16.mxu0 %v11181
  %11712 = vmatpush2.bf16.msra.mxu0 %v11180
  %11713 = vmatprep.subr.bf16.mxu0 %v11175
  %11714 = vmatpush2.bf16.msra.mxu0 %v11174
  %11715 = vmatprep.subr.bf16.mxu0 %v11169
  %11716 = vmatpush2.bf16.msra.mxu0 %v11168
  %11717 = vmatprep.subr.bf16.mxu0 %v11163
  %11718 = vmatpush2.bf16.msra.mxu0 %v11162
  %11719 = vmatprep.subr.bf16.mxu0 %v11157
  %11720 = vmatpush2.bf16.msra.mxu0 %v11156
  %11721 = vmatprep.subr.bf16.mxu0 %v11151
  %11722 = vmatpush2.bf16.msra.mxu0 %v11150
  %11723 = vmatprep.subr.bf16.mxu0 %v11145
  %11724 = vmatpush2.bf16.msra.mxu0 %v11144
  %11725 = vmatprep.mubr.bf16.mxu0 %v9749
  %11726 = vmatmul.mubr.bf16.gmra.mxu0 %v9748
  %v11727 = vpop.f32.mrf.mxu0
  %v11728 = vadd.f32 %v11685, %v11727
  %v11729 = vpop.f32.mrf.mxu0
  %v11730 = vadd.f32 %v11687, %v11729
  %v11731 = vpop.f32.mrf.mxu0
  %v11732 = vadd.f32 %v11689, %v11731
  %v11733 = vpop.f32.mrf.mxu0
  %v11734 = vadd.f32 %v11691, %v11733
  %11735 = vdwg.mxu0
  %11736 = vmatprep.subr.bf16.mxu0 %v10949
  %11737 = vmatpush1.bf16.msra.mxu0 %v10948
  %11738 = vmatprep.subr.bf16.mxu0 %v10943
  %11739 = vmatpush1.bf16.msra.mxu0 %v10942
  %11740 = vmatprep.subr.bf16.mxu0 %v10937
  %11741 = vmatpush1.bf16.msra.mxu0 %v10936
  %11742 = vmatprep.subr.bf16.mxu0 %v10931
  %11743 = vmatpush1.bf16.msra.mxu0 %v10930
  %11744 = vmatprep.subr.bf16.mxu0 %v10925
  %11745 = vmatpush1.bf16.msra.mxu0 %v10924
  %11746 = vmatprep.subr.bf16.mxu0 %v10919
  %11747 = vmatpush1.bf16.msra.mxu0 %v10918
  %11748 = vmatprep.subr.bf16.mxu0 %v10913
  %11749 = vmatpush1.bf16.msra.mxu0 %v10912
  %11750 = vmatprep.subr.bf16.mxu0 %v10907
  %11751 = vmatpush1.bf16.msra.mxu0 %v10906
  %11752 = vmatprep.subr.bf16.mxu0 %v10997
  %11753 = vmatpush2.bf16.msra.mxu0 %v10996
  %11754 = vmatprep.subr.bf16.mxu0 %v10991
  %11755 = vmatpush2.bf16.msra.mxu0 %v10990
  %11756 = vmatprep.subr.bf16.mxu0 %v10985
  %11757 = vmatpush2.bf16.msra.mxu0 %v10984
  %11758 = vmatprep.subr.bf16.mxu0 %v10979
  %11759 = vmatpush2.bf16.msra.mxu0 %v10978
  %11760 = vmatprep.subr.bf16.mxu0 %v10973
  %11761 = vmatpush2.bf16.msra.mxu0 %v10972
  %11762 = vmatprep.subr.bf16.mxu0 %v10967
  %11763 = vmatpush2.bf16.msra.mxu0 %v10966
  %11764 = vmatprep.subr.bf16.mxu0 %v10961
  %11765 = vmatpush2.bf16.msra.mxu0 %v10960
  %11766 = vmatprep.subr.bf16.mxu0 %v10955
  %11767 = vmatpush2.bf16.msra.mxu0 %v10954
  %11768 = vmatprep.mubr.bf16.mxu0 %v9745
  %11769 = vmatmul.mubr.bf16.gmra.mxu0 %v9744
  %v11770 = vpop.f32.mrf.mxu0
  %v11771 = vadd.f32 0.0, %v11770
  %v11772 = vpop.f32.mrf.mxu0
  %v11773 = vadd.f32 0.0, %v11772
  %v11774 = vpop.f32.mrf.mxu0
  %v11775 = vadd.f32 0.0, %v11774
  %v11776 = vpop.f32.mrf.mxu0
  %v11777 = vadd.f32 0.0, %v11776
  %11778 = vdwg.mxu0
  %11779 = vmatprep.subr.bf16.mxu0 %v11045
  %11780 = vmatpush1.bf16.msra.mxu0 %v11044
  %11781 = vmatprep.subr.bf16.mxu0 %v11039
  %11782 = vmatpush1.bf16.msra.mxu0 %v11038
  %11783 = vmatprep.subr.bf16.mxu0 %v11033
  %11784 = vmatpush1.bf16.msra.mxu0 %v11032
  %11785 = vmatprep.subr.bf16.mxu0 %v11027
  %11786 = vmatpush1.bf16.msra.mxu0 %v11026
  %11787 = vmatprep.subr.bf16.mxu0 %v11021
  %11788 = vmatpush1.bf16.msra.mxu0 %v11020
  %11789 = vmatprep.subr.bf16.mxu0 %v11015
  %11790 = vmatpush1.bf16.msra.mxu0 %v11014
  %11791 = vmatprep.subr.bf16.mxu0 %v11009
  %11792 = vmatpush1.bf16.msra.mxu0 %v11008
  %11793 = vmatprep.subr.bf16.mxu0 %v11003
  %11794 = vmatpush1.bf16.msra.mxu0 %v11002
  %11795 = vmatprep.subr.bf16.mxu0 %v11093
  %11796 = vmatpush2.bf16.msra.mxu0 %v11092
  %11797 = vmatprep.subr.bf16.mxu0 %v11087
  %11798 = vmatpush2.bf16.msra.mxu0 %v11086
  %11799 = vmatprep.subr.bf16.mxu0 %v11081
  %11800 = vmatpush2.bf16.msra.mxu0 %v11080
  %11801 = vmatprep.subr.bf16.mxu0 %v11075
  %11802 = vmatpush2.bf16.msra.mxu0 %v11074
  %11803 = vmatprep.subr.bf16.mxu0 %v11069
  %11804 = vmatpush2.bf16.msra.mxu0 %v11068
  %11805 = vmatprep.subr.bf16.mxu0 %v11063
  %11806 = vmatpush2.bf16.msra.mxu0 %v11062
  %11807 = vmatprep.subr.bf16.mxu0 %v11057
  %11808 = vmatpush2.bf16.msra.mxu0 %v11056
  %11809 = vmatprep.subr.bf16.mxu0 %v11051
  %11810 = vmatpush2.bf16.msra.mxu0 %v11050
  %11811 = vmatprep.mubr.bf16.mxu0 %v9747
  %11812 = vmatmul.mubr.bf16.gmra.mxu0 %v9746
  %v11813 = vpop.f32.mrf.mxu0
  %v11814 = vadd.f32 %v11771, %v11813
  %v11815 = vpop.f32.mrf.mxu0
  %v11816 = vadd.f32 %v11773, %v11815
  %v11817 = vpop.f32.mrf.mxu0
  %v11818 = vadd.f32 %v11775, %v11817
  %v11819 = vpop.f32.mrf.mxu0
  %v11820 = vadd.f32 %v11777, %v11819
  %11821 = vdwg.mxu0
  %11822 = vmatprep.subr.bf16.mxu0 %v11141
  %11823 = vmatpush1.bf16.msra.mxu0 %v11140
  %11824 = vmatprep.subr.bf16.mxu0 %v11135
  %11825 = vmatpush1.bf16.msra.mxu0 %v11134
  %11826 = vmatprep.subr.bf16.mxu0 %v11129
  %11827 = vmatpush1.bf16.msra.mxu0 %v11128
  %11828 = vmatprep.subr.bf16.mxu0 %v11123
  %11829 = vmatpush1.bf16.msra.mxu0 %v11122
  %11830 = vmatprep.subr.bf16.mxu0 %v11117
  %11831 = vmatpush1.bf16.msra.mxu0 %v11116
  %11832 = vmatprep.subr.bf16.mxu0 %v11111
  %11833 = vmatpush1.bf16.msra.mxu0 %v11110
  %11834 = vmatprep.subr.bf16.mxu0 %v11105
  %11835 = vmatpush1.bf16.msra.mxu0 %v11104
  %11836 = vmatprep.subr.bf16.mxu0 %v11099
  %11837 = vmatpush1.bf16.msra.mxu0 %v11098
  %11838 = vmatprep.subr.bf16.mxu0 %v11189
  %11839 = vmatpush2.bf16.msra.mxu0 %v11188
  %11840 = vmatprep.subr.bf16.mxu0 %v11183
  %11841 = vmatpush2.bf16.msra.mxu0 %v11182
  %11842 = vmatprep.subr.bf16.mxu0 %v11177
  %11843 = vmatpush2.bf16.msra.mxu0 %v11176
  %11844 = vmatprep.subr.bf16.mxu0 %v11171
  %11845 = vmatpush2.bf16.msra.mxu0 %v11170
  %11846 = vmatprep.subr.bf16.mxu0 %v11165
  %11847 = vmatpush2.bf16.msra.mxu0 %v11164
  %11848 = vmatprep.subr.bf16.mxu0 %v11159
  %11849 = vmatpush2.bf16.msra.mxu0 %v11158
  %11850 = vmatprep.subr.bf16.mxu0 %v11153
  %11851 = vmatpush2.bf16.msra.mxu0 %v11152
  %11852 = vmatprep.subr.bf16.mxu0 %v11147
  %11853 = vmatpush2.bf16.msra.mxu0 %v11146
  %11854 = vmatprep.mubr.bf16.mxu0 %v9749
  %11855 = vmatmul.mubr.bf16.gmra.mxu0 %v9748
  %v11856 = vpop.f32.mrf.mxu0
  %v11857 = vadd.f32 %v11814, %v11856
  %v11858 = vpop.f32.mrf.mxu0
  %v11859 = vadd.f32 %v11816, %v11858
  %v11860 = vpop.f32.mrf.mxu0
  %v11861 = vadd.f32 %v11818, %v11860
  %v11862 = vpop.f32.mrf.mxu0
  %v11863 = vadd.f32 %v11820, %v11862
  %11864 = vdwg.mxu0
  %v12153 = vunpack.c.l.b16 %v9456
  %v12154 = vunpack.c.h.b16 %v9456
  %v12155 = vunpack.c.l.b16 %v9457
  %v12156 = vunpack.c.h.b16 %v9457
  %v12157 = vunpack.c.l.b16 %v9458
  %v12158 = vunpack.c.h.b16 %v9458
  %v12159 = vunpack.c.l.b16 %v9459
  %v12160 = vunpack.c.h.b16 %v9459
  %v12161 = vunpack.c.l.b16 %v9460
  %v12162 = vunpack.c.h.b16 %v9460
  %v12163 = vunpack.c.l.b16 %v9461
  %v12164 = vunpack.c.h.b16 %v9461
  %v12165 = vunpack.c.l.b16 %v9462
  %v12166 = vunpack.c.h.b16 %v9462
  %v12167 = vunpack.c.l.b16 %v9463
  %v12168 = vunpack.c.h.b16 %v9463
  %v12169 = vunpack.c.l.b16 %v9464
  %v12170 = vunpack.c.h.b16 %v9464
  %v12171 = vunpack.c.l.b16 %v9465
  %v12172 = vunpack.c.h.b16 %v9465
  %v12173 = vunpack.c.l.b16 %v9466
  %v12174 = vunpack.c.h.b16 %v9466
  %v12175 = vunpack.c.l.b16 %v9467
  %v12176 = vunpack.c.h.b16 %v9467
  %v12177 = vunpack.c.l.b16 %v9468
  %v12178 = vunpack.c.h.b16 %v9468
  %v12179 = vunpack.c.l.b16 %v9469
  %v12180 = vunpack.c.h.b16 %v9469
  %v12181 = vunpack.c.l.b16 %v9470
  %v12182 = vunpack.c.h.b16 %v9470
  %v12183 = vunpack.c.l.b16 %v9471
  %v12184 = vunpack.c.h.b16 %v9471
  %v12185 = vunpack.c.l.b16 %v9472
  %v12186 = vunpack.c.h.b16 %v9472
  %v12187 = vunpack.c.l.b16 %v9473
  %v12188 = vunpack.c.h.b16 %v9473
  %v12189 = vunpack.c.l.b16 %v9474
  %v12190 = vunpack.c.h.b16 %v9474
  %v12191 = vunpack.c.l.b16 %v9475
  %v12192 = vunpack.c.h.b16 %v9475
  %v12193 = vunpack.c.l.b16 %v9476
  %v12194 = vunpack.c.h.b16 %v9476
  %v12195 = vunpack.c.l.b16 %v9477
  %v12196 = vunpack.c.h.b16 %v9477
  %v12197 = vunpack.c.l.b16 %v9478
  %v12198 = vunpack.c.h.b16 %v9478
  %v12199 = vunpack.c.l.b16 %v9479
  %v12200 = vunpack.c.h.b16 %v9479
  %v12201 = vunpack.c.l.b16 %v9480
  %v12202 = vunpack.c.h.b16 %v9480
  %v12203 = vunpack.c.l.b16 %v9481
  %v12204 = vunpack.c.h.b16 %v9481
  %v12205 = vunpack.c.l.b16 %v9482
  %v12206 = vunpack.c.h.b16 %v9482
  %v12207 = vunpack.c.l.b16 %v9483
  %v12208 = vunpack.c.h.b16 %v9483
  %v12209 = vunpack.c.l.b16 %v9484
  %v12210 = vunpack.c.h.b16 %v9484
  %v12211 = vunpack.c.l.b16 %v9485
  %v12212 = vunpack.c.h.b16 %v9485
  %v12213 = vunpack.c.l.b16 %v9486
  %v12214 = vunpack.c.h.b16 %v9486
  %v12215 = vunpack.c.l.b16 %v9487
  %v12216 = vunpack.c.h.b16 %v9487
  %v12217 = vunpack.c.l.b16 %v9488
  %v12218 = vunpack.c.h.b16 %v9488
  %v12219 = vunpack.c.l.b16 %v9489
  %v12220 = vunpack.c.h.b16 %v9489
  %v12221 = vunpack.c.l.b16 %v9490
  %v12222 = vunpack.c.h.b16 %v9490
  %v12223 = vunpack.c.l.b16 %v9491
  %v12224 = vunpack.c.h.b16 %v9491
  %v12225 = vunpack.c.l.b16 %v9492
  %v12226 = vunpack.c.h.b16 %v9492
  %v12227 = vunpack.c.l.b16 %v9493
  %v12228 = vunpack.c.h.b16 %v9493
  %v12229 = vunpack.c.l.b16 %v9494
  %v12230 = vunpack.c.h.b16 %v9494
  %v12231 = vunpack.c.l.b16 %v9495
  %v12232 = vunpack.c.h.b16 %v9495
  %v12233 = vunpack.c.l.b16 %v9496
  %v12234 = vunpack.c.h.b16 %v9496
  %v12235 = vunpack.c.l.b16 %v9497
  %v12236 = vunpack.c.h.b16 %v9497
  %v12237 = vunpack.c.l.b16 %v9498
  %v12238 = vunpack.c.h.b16 %v9498
  %v12239 = vunpack.c.l.b16 %v9499
  %v12240 = vunpack.c.h.b16 %v9499
  %v12241 = vunpack.c.l.b16 %v9500
  %v12242 = vunpack.c.h.b16 %v9500
  %v12243 = vunpack.c.l.b16 %v9501
  %v12244 = vunpack.c.h.b16 %v9501
  %v12245 = vunpack.c.l.b16 %v9502
  %v12246 = vunpack.c.h.b16 %v9502
  %v12247 = vunpack.c.l.b16 %v9503
  %v12248 = vunpack.c.h.b16 %v9503
  %v12249 = vunpack.c.l.b16 %v9504
  %v12250 = vunpack.c.h.b16 %v9504
  %v12251 = vunpack.c.l.b16 %v9505
  %v12252 = vunpack.c.h.b16 %v9505
  %v12253 = vunpack.c.l.b16 %v9506
  %v12254 = vunpack.c.h.b16 %v9506
  %v12255 = vunpack.c.l.b16 %v9507
  %v12256 = vunpack.c.h.b16 %v9507
  %v12257 = vunpack.c.l.b16 %v9508
  %v12258 = vunpack.c.h.b16 %v9508
  %v12259 = vunpack.c.l.b16 %v9509
  %v12260 = vunpack.c.h.b16 %v9509
  %v12261 = vunpack.c.l.b16 %v9510
  %v12262 = vunpack.c.h.b16 %v9510
  %v12263 = vunpack.c.l.b16 %v9511
  %v12264 = vunpack.c.h.b16 %v9511
  %v12265 = vunpack.c.l.b16 %v9512
  %v12266 = vunpack.c.h.b16 %v9512
  %v12267 = vunpack.c.l.b16 %v9513
  %v12268 = vunpack.c.h.b16 %v9513
  %v12269 = vunpack.c.l.b16 %v9514
  %v12270 = vunpack.c.h.b16 %v9514
  %v12271 = vunpack.c.l.b16 %v9515
  %v12272 = vunpack.c.h.b16 %v9515
  %v12273 = vunpack.c.l.b16 %v9516
  %v12274 = vunpack.c.h.b16 %v9516
  %v12275 = vunpack.c.l.b16 %v9517
  %v12276 = vunpack.c.h.b16 %v9517
  %v12277 = vunpack.c.l.b16 %v9518
  %v12278 = vunpack.c.h.b16 %v9518
  %v12279 = vunpack.c.l.b16 %v9519
  %v12280 = vunpack.c.h.b16 %v9519
  %v12281 = vunpack.c.l.b16 %v9520
  %v12282 = vunpack.c.h.b16 %v9520
  %v12283 = vunpack.c.l.b16 %v9521
  %v12284 = vunpack.c.h.b16 %v9521
  %v12285 = vunpack.c.l.b16 %v9522
  %v12286 = vunpack.c.h.b16 %v9522
  %v12287 = vunpack.c.l.b16 %v9523
  %v12288 = vunpack.c.h.b16 %v9523
  %v12289 = vunpack.c.l.b16 %v9524
  %v12290 = vunpack.c.h.b16 %v9524
  %v12291 = vunpack.c.l.b16 %v9525
  %v12292 = vunpack.c.h.b16 %v9525
  %v12293 = vunpack.c.l.b16 %v9526
  %v12294 = vunpack.c.h.b16 %v9526
  %v12295 = vunpack.c.l.b16 %v9527
  %v12296 = vunpack.c.h.b16 %v9527
  %v12297 = vunpack.c.l.b16 %v9528
  %v12298 = vunpack.c.h.b16 %v9528
  %v12299 = vunpack.c.l.b16 %v9529
  %v12300 = vunpack.c.h.b16 %v9529
  %v12301 = vunpack.c.l.b16 %v9530
  %v12302 = vunpack.c.h.b16 %v9530
  %v12303 = vunpack.c.l.b16 %v9531
  %v12304 = vunpack.c.h.b16 %v9531
  %v12305 = vunpack.c.l.b16 %v9532
  %v12306 = vunpack.c.h.b16 %v9532
  %v12307 = vunpack.c.l.b16 %v9533
  %v12308 = vunpack.c.h.b16 %v9533
  %v12309 = vunpack.c.l.b16 %v9534
  %v12310 = vunpack.c.h.b16 %v9534
  %v12311 = vunpack.c.l.b16 %v9535
  %v12312 = vunpack.c.h.b16 %v9535
  %v12313 = vunpack.c.l.b16 %v9536
  %v12314 = vunpack.c.h.b16 %v9536
  %v12315 = vunpack.c.l.b16 %v9537
  %v12316 = vunpack.c.h.b16 %v9537
  %v12317 = vunpack.c.l.b16 %v9538
  %v12318 = vunpack.c.h.b16 %v9538
  %v12319 = vunpack.c.l.b16 %v9539
  %v12320 = vunpack.c.h.b16 %v9539
  %v12321 = vunpack.c.l.b16 %v9540
  %v12322 = vunpack.c.h.b16 %v9540
  %v12323 = vunpack.c.l.b16 %v9541
  %v12324 = vunpack.c.h.b16 %v9541
  %v12325 = vunpack.c.l.b16 %v9542
  %v12326 = vunpack.c.h.b16 %v9542
  %v12327 = vunpack.c.l.b16 %v9543
  %v12328 = vunpack.c.h.b16 %v9543
  %v12329 = vunpack.c.l.b16 %v9544
  %v12330 = vunpack.c.h.b16 %v9544
  %v12331 = vunpack.c.l.b16 %v9545
  %v12332 = vunpack.c.h.b16 %v9545
  %v12333 = vunpack.c.l.b16 %v9546
  %v12334 = vunpack.c.h.b16 %v9546
  %v12335 = vunpack.c.l.b16 %v9547
  %v12336 = vunpack.c.h.b16 %v9547
  %v12337 = vunpack.c.l.b16 %v9548
  %v12338 = vunpack.c.h.b16 %v9548
  %v12339 = vunpack.c.l.b16 %v9549
  %v12340 = vunpack.c.h.b16 %v9549
  %v12341 = vunpack.c.l.b16 %v9550
  %v12342 = vunpack.c.h.b16 %v9550
  %v12343 = vunpack.c.l.b16 %v9551
  %v12344 = vunpack.c.h.b16 %v9551
  %v12345 = vunpack.c.l.b16 %v9552
  %v12346 = vunpack.c.h.b16 %v9552
  %v12347 = vunpack.c.l.b16 %v9553
  %v12348 = vunpack.c.h.b16 %v9553
  %v12349 = vunpack.c.l.b16 %v9554
  %v12350 = vunpack.c.h.b16 %v9554
  %v12351 = vunpack.c.l.b16 %v9555
  %v12352 = vunpack.c.h.b16 %v9555
  %v12353 = vunpack.c.l.b16 %v9556
  %v12354 = vunpack.c.h.b16 %v9556
  %v12355 = vunpack.c.l.b16 %v9557
  %v12356 = vunpack.c.h.b16 %v9557
  %v12357 = vunpack.c.l.b16 %v9558
  %v12358 = vunpack.c.h.b16 %v9558
  %v12359 = vunpack.c.l.b16 %v9559
  %v12360 = vunpack.c.h.b16 %v9559
  %v12361 = vunpack.c.l.b16 %v9560
  %v12362 = vunpack.c.h.b16 %v9560
  %v12363 = vunpack.c.l.b16 %v9561
  %v12364 = vunpack.c.h.b16 %v9561
  %v12365 = vunpack.c.l.b16 %v9562
  %v12366 = vunpack.c.h.b16 %v9562
  %v12367 = vunpack.c.l.b16 %v9563
  %v12368 = vunpack.c.h.b16 %v9563
  %v12369 = vunpack.c.l.b16 %v9564
  %v12370 = vunpack.c.h.b16 %v9564
  %v12371 = vunpack.c.l.b16 %v9565
  %v12372 = vunpack.c.h.b16 %v9565
  %v12373 = vunpack.c.l.b16 %v9566
  %v12374 = vunpack.c.h.b16 %v9566
  %v12375 = vunpack.c.l.b16 %v9567
  %v12376 = vunpack.c.h.b16 %v9567
  %v12377 = vunpack.c.l.b16 %v9568
  %v12378 = vunpack.c.h.b16 %v9568
  %v12379 = vunpack.c.l.b16 %v9569
  %v12380 = vunpack.c.h.b16 %v9569
  %v12381 = vunpack.c.l.b16 %v9570
  %v12382 = vunpack.c.h.b16 %v9570
  %v12383 = vunpack.c.l.b16 %v9571
  %v12384 = vunpack.c.h.b16 %v9571
  %v12385 = vunpack.c.l.b16 %v9572
  %v12386 = vunpack.c.h.b16 %v9572
  %v12387 = vunpack.c.l.b16 %v9573
  %v12388 = vunpack.c.h.b16 %v9573
  %v12389 = vunpack.c.l.b16 %v9574
  %v12390 = vunpack.c.h.b16 %v9574
  %v12391 = vunpack.c.l.b16 %v9575
  %v12392 = vunpack.c.h.b16 %v9575
  %v12393 = vunpack.c.l.b16 %v9576
  %v12394 = vunpack.c.h.b16 %v9576
  %v12395 = vunpack.c.l.b16 %v9577
  %v12396 = vunpack.c.h.b16 %v9577
  %v12397 = vunpack.c.l.b16 %v9578
  %v12398 = vunpack.c.h.b16 %v9578
  %v12399 = vunpack.c.l.b16 %v9579
  %v12400 = vunpack.c.h.b16 %v9579
  %v12401 = vunpack.c.l.b16 %v9580
  %v12402 = vunpack.c.h.b16 %v9580
  %v12403 = vunpack.c.l.b16 %v9581
  %v12404 = vunpack.c.h.b16 %v9581
  %v12405 = vunpack.c.l.b16 %v9582
  %v12406 = vunpack.c.h.b16 %v9582
  %v12407 = vunpack.c.l.b16 %v9583
  %v12408 = vunpack.c.h.b16 %v9583
  %v12409 = vunpack.c.l.b16 %v9584
  %v12410 = vunpack.c.h.b16 %v9584
  %v12411 = vunpack.c.l.b16 %v9585
  %v12412 = vunpack.c.h.b16 %v9585
  %v12413 = vunpack.c.l.b16 %v9586
  %v12414 = vunpack.c.h.b16 %v9586
  %v12415 = vunpack.c.l.b16 %v9587
  %v12416 = vunpack.c.h.b16 %v9587
  %v12417 = vunpack.c.l.b16 %v9588
  %v12418 = vunpack.c.h.b16 %v9588
  %v12419 = vunpack.c.l.b16 %v9589
  %v12420 = vunpack.c.h.b16 %v9589
  %v12421 = vunpack.c.l.b16 %v9590
  %v12422 = vunpack.c.h.b16 %v9590
  %v12423 = vunpack.c.l.b16 %v9591
  %v12424 = vunpack.c.h.b16 %v9591
  %v12425 = vunpack.c.l.b16 %v9592
  %v12426 = vunpack.c.h.b16 %v9592
  %v12427 = vunpack.c.l.b16 %v9593
  %v12428 = vunpack.c.h.b16 %v9593
  %v12429 = vunpack.c.l.b16 %v9594
  %v12430 = vunpack.c.h.b16 %v9594
  %v12431 = vunpack.c.l.b16 %v9595
  %v12432 = vunpack.c.h.b16 %v9595
  %v12433 = vunpack.c.l.b16 %v9596
  %v12434 = vunpack.c.h.b16 %v9596
  %v12435 = vunpack.c.l.b16 %v9597
  %v12436 = vunpack.c.h.b16 %v9597
  %v12437 = vunpack.c.l.b16 %v9598
  %v12438 = vunpack.c.h.b16 %v9598
  %v12439 = vunpack.c.l.b16 %v9599
  %v12440 = vunpack.c.h.b16 %v9599
  %v12441 = vunpack.c.l.b16 %v9600
  %v12442 = vunpack.c.h.b16 %v9600
  %v12443 = vunpack.c.l.b16 %v9601
  %v12444 = vunpack.c.h.b16 %v9601
  %v12445 = vunpack.c.l.b16 %v9602
  %v12446 = vunpack.c.h.b16 %v9602
  %v12447 = vunpack.c.l.b16 %v9603
  %v12448 = vunpack.c.h.b16 %v9603
  %v12449 = vunpack.c.l.b16 %v9604
  %v12450 = vunpack.c.h.b16 %v9604
  %v12451 = vunpack.c.l.b16 %v9605
  %v12452 = vunpack.c.h.b16 %v9605
  %v12453 = vunpack.c.l.b16 %v9606
  %v12454 = vunpack.c.h.b16 %v9606
  %v12455 = vunpack.c.l.b16 %v9607
  %v12456 = vunpack.c.h.b16 %v9607
  %v12457 = vunpack.c.l.b16 %v9608
  %v12458 = vunpack.c.h.b16 %v9608
  %v12459 = vunpack.c.l.b16 %v9609
  %v12460 = vunpack.c.h.b16 %v9609
  %v12461 = vunpack.c.l.b16 %v9610
  %v12462 = vunpack.c.h.b16 %v9610
  %v12463 = vunpack.c.l.b16 %v9611
  %v12464 = vunpack.c.h.b16 %v9611
  %v12465 = vunpack.c.l.b16 %v9612
  %v12466 = vunpack.c.h.b16 %v9612
  %v12467 = vunpack.c.l.b16 %v9613
  %v12468 = vunpack.c.h.b16 %v9613
  %v12469 = vunpack.c.l.b16 %v9614
  %v12470 = vunpack.c.h.b16 %v9614
  %v12471 = vunpack.c.l.b16 %v9615
  %v12472 = vunpack.c.h.b16 %v9615
  %v12473 = vunpack.c.l.b16 %v9616
  %v12474 = vunpack.c.h.b16 %v9616
  %v12475 = vunpack.c.l.b16 %v9617
  %v12476 = vunpack.c.h.b16 %v9617
  %v12477 = vunpack.c.l.b16 %v9618
  %v12478 = vunpack.c.h.b16 %v9618
  %v12479 = vunpack.c.l.b16 %v9619
  %v12480 = vunpack.c.h.b16 %v9619
  %v12481 = vunpack.c.l.b16 %v9620
  %v12482 = vunpack.c.h.b16 %v9620
  %v12483 = vunpack.c.l.b16 %v9621
  %v12484 = vunpack.c.h.b16 %v9621
  %v12485 = vunpack.c.l.b16 %v9622
  %v12486 = vunpack.c.h.b16 %v9622
  %v12487 = vunpack.c.l.b16 %v9623
  %v12488 = vunpack.c.h.b16 %v9623
  %v12489 = vunpack.c.l.b16 %v9624
  %v12490 = vunpack.c.h.b16 %v9624
  %v12491 = vunpack.c.l.b16 %v9625
  %v12492 = vunpack.c.h.b16 %v9625
  %v12493 = vunpack.c.l.b16 %v9626
  %v12494 = vunpack.c.h.b16 %v9626
  %v12495 = vunpack.c.l.b16 %v9627
  %v12496 = vunpack.c.h.b16 %v9627
  %v12497 = vunpack.c.l.b16 %v9628
  %v12498 = vunpack.c.h.b16 %v9628
  %v12499 = vunpack.c.l.b16 %v9629
  %v12500 = vunpack.c.h.b16 %v9629
  %v12501 = vunpack.c.l.b16 %v9630
  %v12502 = vunpack.c.h.b16 %v9630
  %v12503 = vunpack.c.l.b16 %v9631
  %v12504 = vunpack.c.h.b16 %v9631
  %v12505 = vunpack.c.l.b16 %v9632
  %v12506 = vunpack.c.h.b16 %v9632
  %v12507 = vunpack.c.l.b16 %v9633
  %v12508 = vunpack.c.h.b16 %v9633
  %v12509 = vunpack.c.l.b16 %v9634
  %v12510 = vunpack.c.h.b16 %v9634
  %v12511 = vunpack.c.l.b16 %v9635
  %v12512 = vunpack.c.h.b16 %v9635
  %v12513 = vunpack.c.l.b16 %v9636
  %v12514 = vunpack.c.h.b16 %v9636
  %v12515 = vunpack.c.l.b16 %v9637
  %v12516 = vunpack.c.h.b16 %v9637
  %v12517 = vunpack.c.l.b16 %v9638
  %v12518 = vunpack.c.h.b16 %v9638
  %v12519 = vunpack.c.l.b16 %v9639
  %v12520 = vunpack.c.h.b16 %v9639
  %v12521 = vunpack.c.l.b16 %v9640
  %v12522 = vunpack.c.h.b16 %v9640
  %v12523 = vunpack.c.l.b16 %v9641
  %v12524 = vunpack.c.h.b16 %v9641
  %v12525 = vunpack.c.l.b16 %v9642
  %v12526 = vunpack.c.h.b16 %v9642
  %v12527 = vunpack.c.l.b16 %v9643
  %v12528 = vunpack.c.h.b16 %v9643
  %v12529 = vunpack.c.l.b16 %v9644
  %v12530 = vunpack.c.h.b16 %v9644
  %v12531 = vunpack.c.l.b16 %v9645
  %v12532 = vunpack.c.h.b16 %v9645
  %v12533 = vunpack.c.l.b16 %v9646
  %v12534 = vunpack.c.h.b16 %v9646
  %v12535 = vunpack.c.l.b16 %v9647
  %v12536 = vunpack.c.h.b16 %v9647
  %v12537 = vunpack.c.l.b16 %v9648
  %v12538 = vunpack.c.h.b16 %v9648
  %v12539 = vunpack.c.l.b16 %v9649
  %v12540 = vunpack.c.h.b16 %v9649
  %v12541 = vunpack.c.l.b16 %v9650
  %v12542 = vunpack.c.h.b16 %v9650
  %v12543 = vunpack.c.l.b16 %v9651
  %v12544 = vunpack.c.h.b16 %v9651
  %v12545 = vunpack.c.l.b16 %v9652
  %v12546 = vunpack.c.h.b16 %v9652
  %v12547 = vunpack.c.l.b16 %v9653
  %v12548 = vunpack.c.h.b16 %v9653
  %v12549 = vunpack.c.l.b16 %v9654
  %v12550 = vunpack.c.h.b16 %v9654
  %v12551 = vunpack.c.l.b16 %v9655
  %v12552 = vunpack.c.h.b16 %v9655
  %v12553 = vunpack.c.l.b16 %v9656
  %v12554 = vunpack.c.h.b16 %v9656
  %v12555 = vunpack.c.l.b16 %v9657
  %v12556 = vunpack.c.h.b16 %v9657
  %v12557 = vunpack.c.l.b16 %v9658
  %v12558 = vunpack.c.h.b16 %v9658
  %v12559 = vunpack.c.l.b16 %v9659
  %v12560 = vunpack.c.h.b16 %v9659
  %v12561 = vunpack.c.l.b16 %v9660
  %v12562 = vunpack.c.h.b16 %v9660
  %v12563 = vunpack.c.l.b16 %v9661
  %v12564 = vunpack.c.h.b16 %v9661
  %v12565 = vunpack.c.l.b16 %v9662
  %v12566 = vunpack.c.h.b16 %v9662
  %v12567 = vunpack.c.l.b16 %v9663
  %v12568 = vunpack.c.h.b16 %v9663
  %v12569 = vunpack.c.l.b16 %v9664
  %v12570 = vunpack.c.h.b16 %v9664
  %v12571 = vunpack.c.l.b16 %v9665
  %v12572 = vunpack.c.h.b16 %v9665
  %v12573 = vunpack.c.l.b16 %v9666
  %v12574 = vunpack.c.h.b16 %v9666
  %v12575 = vunpack.c.l.b16 %v9667
  %v12576 = vunpack.c.h.b16 %v9667
  %v12577 = vunpack.c.l.b16 %v9668
  %v12578 = vunpack.c.h.b16 %v9668
  %v12579 = vunpack.c.l.b16 %v9669
  %v12580 = vunpack.c.h.b16 %v9669
  %v12581 = vunpack.c.l.b16 %v9670
  %v12582 = vunpack.c.h.b16 %v9670
  %v12583 = vunpack.c.l.b16 %v9671
  %v12584 = vunpack.c.h.b16 %v9671
  %v12585 = vunpack.c.l.b16 %v9672
  %v12586 = vunpack.c.h.b16 %v9672
  %v12587 = vunpack.c.l.b16 %v9673
  %v12588 = vunpack.c.h.b16 %v9673
  %v12589 = vunpack.c.l.b16 %v9674
  %v12590 = vunpack.c.h.b16 %v9674
  %v12591 = vunpack.c.l.b16 %v9675
  %v12592 = vunpack.c.h.b16 %v9675
  %v12593 = vunpack.c.l.b16 %v9676
  %v12594 = vunpack.c.h.b16 %v9676
  %v12595 = vunpack.c.l.b16 %v9677
  %v12596 = vunpack.c.h.b16 %v9677
  %v12597 = vunpack.c.l.b16 %v9678
  %v12598 = vunpack.c.h.b16 %v9678
  %v12599 = vunpack.c.l.b16 %v9679
  %v12600 = vunpack.c.h.b16 %v9679
  %v12601 = vunpack.c.l.b16 %v9680
  %v12602 = vunpack.c.h.b16 %v9680
  %v12603 = vunpack.c.l.b16 %v9681
  %v12604 = vunpack.c.h.b16 %v9681
  %v12605 = vunpack.c.l.b16 %v9682
  %v12606 = vunpack.c.h.b16 %v9682
  %v12607 = vunpack.c.l.b16 %v9683
  %v12608 = vunpack.c.h.b16 %v9683
  %v12609 = vunpack.c.l.b16 %v9684
  %v12610 = vunpack.c.h.b16 %v9684
  %v12611 = vunpack.c.l.b16 %v9685
  %v12612 = vunpack.c.h.b16 %v9685
  %v12613 = vunpack.c.l.b16 %v9686
  %v12614 = vunpack.c.h.b16 %v9686
  %v12615 = vunpack.c.l.b16 %v9687
  %v12616 = vunpack.c.h.b16 %v9687
  %v12617 = vunpack.c.l.b16 %v9688
  %v12618 = vunpack.c.h.b16 %v9688
  %v12619 = vunpack.c.l.b16 %v9689
  %v12620 = vunpack.c.h.b16 %v9689
  %v12621 = vunpack.c.l.b16 %v9690
  %v12622 = vunpack.c.h.b16 %v9690
  %v12623 = vunpack.c.l.b16 %v9691
  %v12624 = vunpack.c.h.b16 %v9691
  %v12625 = vunpack.c.l.b16 %v9692
  %v12626 = vunpack.c.h.b16 %v9692
  %v12627 = vunpack.c.l.b16 %v9693
  %v12628 = vunpack.c.h.b16 %v9693
  %v12629 = vunpack.c.l.b16 %v9694
  %v12630 = vunpack.c.h.b16 %v9694
  %v12631 = vunpack.c.l.b16 %v9695
  %v12632 = vunpack.c.h.b16 %v9695
  %v12633 = vunpack.c.l.b16 %v9696
  %v12634 = vunpack.c.h.b16 %v9696
  %v12635 = vunpack.c.l.b16 %v9697
  %v12636 = vunpack.c.h.b16 %v9697
  %v12637 = vunpack.c.l.b16 %v9698
  %v12638 = vunpack.c.h.b16 %v9698
  %v12639 = vunpack.c.l.b16 %v9699
  %v12640 = vunpack.c.h.b16 %v9699
  %v12641 = vunpack.c.l.b16 %v9700
  %v12642 = vunpack.c.h.b16 %v9700
  %v12643 = vunpack.c.l.b16 %v9701
  %v12644 = vunpack.c.h.b16 %v9701
  %v12645 = vunpack.c.l.b16 %v9702
  %v12646 = vunpack.c.h.b16 %v9702
  %v12647 = vunpack.c.l.b16 %v9703
  %v12648 = vunpack.c.h.b16 %v9703
  %v12649 = vunpack.c.l.b16 %v9704
  %v12650 = vunpack.c.h.b16 %v9704
  %v12651 = vunpack.c.l.b16 %v9705
  %v12652 = vunpack.c.h.b16 %v9705
  %v12653 = vunpack.c.l.b16 %v9706
  %v12654 = vunpack.c.h.b16 %v9706
  %v12655 = vunpack.c.l.b16 %v9707
  %v12656 = vunpack.c.h.b16 %v9707
  %v12657 = vunpack.c.l.b16 %v9708
  %v12658 = vunpack.c.h.b16 %v9708
  %v12659 = vunpack.c.l.b16 %v9709
  %v12660 = vunpack.c.h.b16 %v9709
  %v12661 = vunpack.c.l.b16 %v9710
  %v12662 = vunpack.c.h.b16 %v9710
  %v12663 = vunpack.c.l.b16 %v9711
  %v12664 = vunpack.c.h.b16 %v9711
  %v12665 = vunpack.c.l.b16 %v9712
  %v12666 = vunpack.c.h.b16 %v9712
  %v12667 = vunpack.c.l.b16 %v9713
  %v12668 = vunpack.c.h.b16 %v9713
  %v12669 = vunpack.c.l.b16 %v9714
  %v12670 = vunpack.c.h.b16 %v9714
  %v12671 = vunpack.c.l.b16 %v9715
  %v12672 = vunpack.c.h.b16 %v9715
  %v12673 = vunpack.c.l.b16 %v9716
  %v12674 = vunpack.c.h.b16 %v9716
  %v12675 = vunpack.c.l.b16 %v9717
  %v12676 = vunpack.c.h.b16 %v9717
  %v12677 = vunpack.c.l.b16 %v9718
  %v12678 = vunpack.c.h.b16 %v9718
  %v12679 = vunpack.c.l.b16 %v9719
  %v12680 = vunpack.c.h.b16 %v9719
  %v12681 = vunpack.c.l.b16 %v9720
  %v12682 = vunpack.c.h.b16 %v9720
  %v12683 = vunpack.c.l.b16 %v9721
  %v12684 = vunpack.c.h.b16 %v9721
  %v12685 = vunpack.c.l.b16 %v9722
  %v12686 = vunpack.c.h.b16 %v9722
  %v12687 = vunpack.c.l.b16 %v9723
  %v12688 = vunpack.c.h.b16 %v9723
  %v12689 = vunpack.c.l.b16 %v9724
  %v12690 = vunpack.c.h.b16 %v9724
  %v12691 = vunpack.c.l.b16 %v9725
  %v12692 = vunpack.c.h.b16 %v9725
  %v12693 = vunpack.c.l.b16 %v9726
  %v12694 = vunpack.c.h.b16 %v9726
  %v12695 = vunpack.c.l.b16 %v9727
  %v12696 = vunpack.c.h.b16 %v9727
  %v12697 = vunpack.c.l.b16 %v9728
  %v12698 = vunpack.c.h.b16 %v9728
  %v12699 = vunpack.c.l.b16 %v9729
  %v12700 = vunpack.c.h.b16 %v9729
  %v12701 = vunpack.c.l.b16 %v9730
  %v12702 = vunpack.c.h.b16 %v9730
  %v12703 = vunpack.c.l.b16 %v9731
  %v12704 = vunpack.c.h.b16 %v9731
  %v12705 = vunpack.c.l.b16 %v9732
  %v12706 = vunpack.c.h.b16 %v9732
  %v12707 = vunpack.c.l.b16 %v9733
  %v12708 = vunpack.c.h.b16 %v9733
  %v12709 = vunpack.c.l.b16 %v9734
  %v12710 = vunpack.c.h.b16 %v9734
  %v12711 = vunpack.c.l.b16 %v9735
  %v12712 = vunpack.c.h.b16 %v9735
  %v12713 = vunpack.c.l.b16 %v9736
  %v12714 = vunpack.c.h.b16 %v9736
  %v12715 = vunpack.c.l.b16 %v9737
  %v12716 = vunpack.c.h.b16 %v9737
  %v12717 = vunpack.c.l.b16 %v9738
  %v12718 = vunpack.c.h.b16 %v9738
  %v12719 = vunpack.c.l.b16 %v9739
  %v12720 = vunpack.c.h.b16 %v9739
  %v12721 = vunpack.c.l.b16 %v9740
  %v12722 = vunpack.c.h.b16 %v9740
  %v12723 = vunpack.c.l.b16 %v9741
  %v12724 = vunpack.c.h.b16 %v9741
  %v12725 = vunpack.c.l.b16 %v9742
  %v12726 = vunpack.c.h.b16 %v9742
  %v12727 = vunpack.c.l.b16 %v9743
  %v12728 = vunpack.c.h.b16 %v9743
  %v12729 = vpack.c.b16 %v12159, %v12153
  %v12730 = vpack.c.b16 %v12160, %v12154
  %v12731 = vpack.c.b16 %v12161, %v12155
  %v12732 = vpack.c.b16 %v12162, %v12156
  %v12733 = vpack.c.b16 %v12163, %v12157
  %v12734 = vpack.c.b16 %v12164, %v12158
  %v12735 = vpack.c.b16 %v12171, %v12165
  %v12736 = vpack.c.b16 %v12172, %v12166
  %v12737 = vpack.c.b16 %v12173, %v12167
  %v12738 = vpack.c.b16 %v12174, %v12168
  %v12739 = vpack.c.b16 %v12175, %v12169
  %v12740 = vpack.c.b16 %v12176, %v12170
  %v12741 = vpack.c.b16 %v12183, %v12177
  %v12742 = vpack.c.b16 %v12184, %v12178
  %v12743 = vpack.c.b16 %v12185, %v12179
  %v12744 = vpack.c.b16 %v12186, %v12180
  %v12745 = vpack.c.b16 %v12187, %v12181
  %v12746 = vpack.c.b16 %v12188, %v12182
  %v12747 = vpack.c.b16 %v12195, %v12189
  %v12748 = vpack.c.b16 %v12196, %v12190
  %v12749 = vpack.c.b16 %v12197, %v12191
  %v12750 = vpack.c.b16 %v12198, %v12192
  %v12751 = vpack.c.b16 %v12199, %v12193
  %v12752 = vpack.c.b16 %v12200, %v12194
  %v12753 = vpack.c.b16 %v12207, %v12201
  %v12754 = vpack.c.b16 %v12208, %v12202
  %v12755 = vpack.c.b16 %v12209, %v12203
  %v12756 = vpack.c.b16 %v12210, %v12204
  %v12757 = vpack.c.b16 %v12211, %v12205
  %v12758 = vpack.c.b16 %v12212, %v12206
  %v12759 = vpack.c.b16 %v12219, %v12213
  %v12760 = vpack.c.b16 %v12220, %v12214
  %v12761 = vpack.c.b16 %v12221, %v12215
  %v12762 = vpack.c.b16 %v12222, %v12216
  %v12763 = vpack.c.b16 %v12223, %v12217
  %v12764 = vpack.c.b16 %v12224, %v12218
  %v12765 = vpack.c.b16 %v12231, %v12225
  %v12766 = vpack.c.b16 %v12232, %v12226
  %v12767 = vpack.c.b16 %v12233, %v12227
  %v12768 = vpack.c.b16 %v12234, %v12228
  %v12769 = vpack.c.b16 %v12235, %v12229
  %v12770 = vpack.c.b16 %v12236, %v12230
  %v12771 = vpack.c.b16 %v12243, %v12237
  %v12772 = vpack.c.b16 %v12244, %v12238
  %v12773 = vpack.c.b16 %v12245, %v12239
  %v12774 = vpack.c.b16 %v12246, %v12240
  %v12775 = vpack.c.b16 %v12247, %v12241
  %v12776 = vpack.c.b16 %v12248, %v12242
  %v12777 = vpack.c.b16 %v12255, %v12249
  %v12778 = vpack.c.b16 %v12256, %v12250
  %v12779 = vpack.c.b16 %v12257, %v12251
  %v12780 = vpack.c.b16 %v12258, %v12252
  %v12781 = vpack.c.b16 %v12259, %v12253
  %v12782 = vpack.c.b16 %v12260, %v12254
  %v12783 = vpack.c.b16 %v12267, %v12261
  %v12784 = vpack.c.b16 %v12268, %v12262
  %v12785 = vpack.c.b16 %v12269, %v12263
  %v12786 = vpack.c.b16 %v12270, %v12264
  %v12787 = vpack.c.b16 %v12271, %v12265
  %v12788 = vpack.c.b16 %v12272, %v12266
  %v12789 = vpack.c.b16 %v12279, %v12273
  %v12790 = vpack.c.b16 %v12280, %v12274
  %v12791 = vpack.c.b16 %v12281, %v12275
  %v12792 = vpack.c.b16 %v12282, %v12276
  %v12793 = vpack.c.b16 %v12283, %v12277
  %v12794 = vpack.c.b16 %v12284, %v12278
  %v12795 = vpack.c.b16 %v12291, %v12285
  %v12796 = vpack.c.b16 %v12292, %v12286
  %v12797 = vpack.c.b16 %v12293, %v12287
  %v12798 = vpack.c.b16 %v12294, %v12288
  %v12799 = vpack.c.b16 %v12295, %v12289
  %v12800 = vpack.c.b16 %v12296, %v12290
  %v12801 = vpack.c.b16 %v12303, %v12297
  %v12802 = vpack.c.b16 %v12304, %v12298
  %v12803 = vpack.c.b16 %v12305, %v12299
  %v12804 = vpack.c.b16 %v12306, %v12300
  %v12805 = vpack.c.b16 %v12307, %v12301
  %v12806 = vpack.c.b16 %v12308, %v12302
  %v12807 = vpack.c.b16 %v12315, %v12309
  %v12808 = vpack.c.b16 %v12316, %v12310
  %v12809 = vpack.c.b16 %v12317, %v12311
  %v12810 = vpack.c.b16 %v12318, %v12312
  %v12811 = vpack.c.b16 %v12319, %v12313
  %v12812 = vpack.c.b16 %v12320, %v12314
  %v12813 = vpack.c.b16 %v12327, %v12321
  %v12814 = vpack.c.b16 %v12328, %v12322
  %v12815 = vpack.c.b16 %v12329, %v12323
  %v12816 = vpack.c.b16 %v12330, %v12324
  %v12817 = vpack.c.b16 %v12331, %v12325
  %v12818 = vpack.c.b16 %v12332, %v12326
  %v12819 = vpack.c.b16 %v12339, %v12333
  %v12820 = vpack.c.b16 %v12340, %v12334
  %v12821 = vpack.c.b16 %v12341, %v12335
  %v12822 = vpack.c.b16 %v12342, %v12336
  %v12823 = vpack.c.b16 %v12343, %v12337
  %v12824 = vpack.c.b16 %v12344, %v12338
  %v12825 = vpack.c.b16 %v12351, %v12345
  %v12826 = vpack.c.b16 %v12352, %v12346
  %v12827 = vpack.c.b16 %v12353, %v12347
  %v12828 = vpack.c.b16 %v12354, %v12348
  %v12829 = vpack.c.b16 %v12355, %v12349
  %v12830 = vpack.c.b16 %v12356, %v12350
  %v12831 = vpack.c.b16 %v12363, %v12357
  %v12832 = vpack.c.b16 %v12364, %v12358
  %v12833 = vpack.c.b16 %v12365, %v12359
  %v12834 = vpack.c.b16 %v12366, %v12360
  %v12835 = vpack.c.b16 %v12367, %v12361
  %v12836 = vpack.c.b16 %v12368, %v12362
  %v12837 = vpack.c.b16 %v12375, %v12369
  %v12838 = vpack.c.b16 %v12376, %v12370
  %v12839 = vpack.c.b16 %v12377, %v12371
  %v12840 = vpack.c.b16 %v12378, %v12372
  %v12841 = vpack.c.b16 %v12379, %v12373
  %v12842 = vpack.c.b16 %v12380, %v12374
  %v12843 = vpack.c.b16 %v12387, %v12381
  %v12844 = vpack.c.b16 %v12388, %v12382
  %v12845 = vpack.c.b16 %v12389, %v12383
  %v12846 = vpack.c.b16 %v12390, %v12384
  %v12847 = vpack.c.b16 %v12391, %v12385
  %v12848 = vpack.c.b16 %v12392, %v12386
  %v12849 = vpack.c.b16 %v12399, %v12393
  %v12850 = vpack.c.b16 %v12400, %v12394
  %v12851 = vpack.c.b16 %v12401, %v12395
  %v12852 = vpack.c.b16 %v12402, %v12396
  %v12853 = vpack.c.b16 %v12403, %v12397
  %v12854 = vpack.c.b16 %v12404, %v12398
  %v12855 = vpack.c.b16 %v12411, %v12405
  %v12856 = vpack.c.b16 %v12412, %v12406
  %v12857 = vpack.c.b16 %v12413, %v12407
  %v12858 = vpack.c.b16 %v12414, %v12408
  %v12859 = vpack.c.b16 %v12415, %v12409
  %v12860 = vpack.c.b16 %v12416, %v12410
  %v12861 = vpack.c.b16 %v12423, %v12417
  %v12862 = vpack.c.b16 %v12424, %v12418
  %v12863 = vpack.c.b16 %v12425, %v12419
  %v12864 = vpack.c.b16 %v12426, %v12420
  %v12865 = vpack.c.b16 %v12427, %v12421
  %v12866 = vpack.c.b16 %v12428, %v12422
  %v12867 = vpack.c.b16 %v12435, %v12429
  %v12868 = vpack.c.b16 %v12436, %v12430
  %v12869 = vpack.c.b16 %v12437, %v12431
  %v12870 = vpack.c.b16 %v12438, %v12432
  %v12871 = vpack.c.b16 %v12439, %v12433
  %v12872 = vpack.c.b16 %v12440, %v12434
  %v12873 = vpack.c.b16 %v12447, %v12441
  %v12874 = vpack.c.b16 %v12448, %v12442
  %v12875 = vpack.c.b16 %v12449, %v12443
  %v12876 = vpack.c.b16 %v12450, %v12444
  %v12877 = vpack.c.b16 %v12451, %v12445
  %v12878 = vpack.c.b16 %v12452, %v12446
  %v12879 = vpack.c.b16 %v12459, %v12453
  %v12880 = vpack.c.b16 %v12460, %v12454
  %v12881 = vpack.c.b16 %v12461, %v12455
  %v12882 = vpack.c.b16 %v12462, %v12456
  %v12883 = vpack.c.b16 %v12463, %v12457
  %v12884 = vpack.c.b16 %v12464, %v12458
  %v12885 = vpack.c.b16 %v12471, %v12465
  %v12886 = vpack.c.b16 %v12472, %v12466
  %v12887 = vpack.c.b16 %v12473, %v12467
  %v12888 = vpack.c.b16 %v12474, %v12468
  %v12889 = vpack.c.b16 %v12475, %v12469
  %v12890 = vpack.c.b16 %v12476, %v12470
  %v12891 = vpack.c.b16 %v12483, %v12477
  %v12892 = vpack.c.b16 %v12484, %v12478
  %v12893 = vpack.c.b16 %v12485, %v12479
  %v12894 = vpack.c.b16 %v12486, %v12480
  %v12895 = vpack.c.b16 %v12487, %v12481
  %v12896 = vpack.c.b16 %v12488, %v12482
  %v12897 = vpack.c.b16 %v12495, %v12489
  %v12898 = vpack.c.b16 %v12496, %v12490
  %v12899 = vpack.c.b16 %v12497, %v12491
  %v12900 = vpack.c.b16 %v12498, %v12492
  %v12901 = vpack.c.b16 %v12499, %v12493
  %v12902 = vpack.c.b16 %v12500, %v12494
  %v12903 = vpack.c.b16 %v12507, %v12501
  %v12904 = vpack.c.b16 %v12508, %v12502
  %v12905 = vpack.c.b16 %v12509, %v12503
  %v12906 = vpack.c.b16 %v12510, %v12504
  %v12907 = vpack.c.b16 %v12511, %v12505
  %v12908 = vpack.c.b16 %v12512, %v12506
  %v12909 = vpack.c.b16 %v12519, %v12513
  %v12910 = vpack.c.b16 %v12520, %v12514
  %v12911 = vpack.c.b16 %v12521, %v12515
  %v12912 = vpack.c.b16 %v12522, %v12516
  %v12913 = vpack.c.b16 %v12523, %v12517
  %v12914 = vpack.c.b16 %v12524, %v12518
  %v12915 = vpack.c.b16 %v12531, %v12525
  %v12916 = vpack.c.b16 %v12532, %v12526
  %v12917 = vpack.c.b16 %v12533, %v12527
  %v12918 = vpack.c.b16 %v12534, %v12528
  %v12919 = vpack.c.b16 %v12535, %v12529
  %v12920 = vpack.c.b16 %v12536, %v12530
  %v12921 = vpack.c.b16 %v12543, %v12537
  %v12922 = vpack.c.b16 %v12544, %v12538
  %v12923 = vpack.c.b16 %v12545, %v12539
  %v12924 = vpack.c.b16 %v12546, %v12540
  %v12925 = vpack.c.b16 %v12547, %v12541
  %v12926 = vpack.c.b16 %v12548, %v12542
  %v12927 = vpack.c.b16 %v12555, %v12549
  %v12928 = vpack.c.b16 %v12556, %v12550
  %v12929 = vpack.c.b16 %v12557, %v12551
  %v12930 = vpack.c.b16 %v12558, %v12552
  %v12931 = vpack.c.b16 %v12559, %v12553
  %v12932 = vpack.c.b16 %v12560, %v12554
  %v12933 = vpack.c.b16 %v12567, %v12561
  %v12934 = vpack.c.b16 %v12568, %v12562
  %v12935 = vpack.c.b16 %v12569, %v12563
  %v12936 = vpack.c.b16 %v12570, %v12564
  %v12937 = vpack.c.b16 %v12571, %v12565
  %v12938 = vpack.c.b16 %v12572, %v12566
  %v12939 = vpack.c.b16 %v12579, %v12573
  %v12940 = vpack.c.b16 %v12580, %v12574
  %v12941 = vpack.c.b16 %v12581, %v12575
  %v12942 = vpack.c.b16 %v12582, %v12576
  %v12943 = vpack.c.b16 %v12583, %v12577
  %v12944 = vpack.c.b16 %v12584, %v12578
  %v12945 = vpack.c.b16 %v12591, %v12585
  %v12946 = vpack.c.b16 %v12592, %v12586
  %v12947 = vpack.c.b16 %v12593, %v12587
  %v12948 = vpack.c.b16 %v12594, %v12588
  %v12949 = vpack.c.b16 %v12595, %v12589
  %v12950 = vpack.c.b16 %v12596, %v12590
  %v12951 = vpack.c.b16 %v12603, %v12597
  %v12952 = vpack.c.b16 %v12604, %v12598
  %v12953 = vpack.c.b16 %v12605, %v12599
  %v12954 = vpack.c.b16 %v12606, %v12600
  %v12955 = vpack.c.b16 %v12607, %v12601
  %v12956 = vpack.c.b16 %v12608, %v12602
  %v12957 = vpack.c.b16 %v12615, %v12609
  %v12958 = vpack.c.b16 %v12616, %v12610
  %v12959 = vpack.c.b16 %v12617, %v12611
  %v12960 = vpack.c.b16 %v12618, %v12612
  %v12961 = vpack.c.b16 %v12619, %v12613
  %v12962 = vpack.c.b16 %v12620, %v12614
  %v12963 = vpack.c.b16 %v12627, %v12621
  %v12964 = vpack.c.b16 %v12628, %v12622
  %v12965 = vpack.c.b16 %v12629, %v12623
  %v12966 = vpack.c.b16 %v12630, %v12624
  %v12967 = vpack.c.b16 %v12631, %v12625
  %v12968 = vpack.c.b16 %v12632, %v12626
  %v12969 = vpack.c.b16 %v12639, %v12633
  %v12970 = vpack.c.b16 %v12640, %v12634
  %v12971 = vpack.c.b16 %v12641, %v12635
  %v12972 = vpack.c.b16 %v12642, %v12636
  %v12973 = vpack.c.b16 %v12643, %v12637
  %v12974 = vpack.c.b16 %v12644, %v12638
  %v12975 = vpack.c.b16 %v12651, %v12645
  %v12976 = vpack.c.b16 %v12652, %v12646
  %v12977 = vpack.c.b16 %v12653, %v12647
  %v12978 = vpack.c.b16 %v12654, %v12648
  %v12979 = vpack.c.b16 %v12655, %v12649
  %v12980 = vpack.c.b16 %v12656, %v12650
  %v12981 = vpack.c.b16 %v12663, %v12657
  %v12982 = vpack.c.b16 %v12664, %v12658
  %v12983 = vpack.c.b16 %v12665, %v12659
  %v12984 = vpack.c.b16 %v12666, %v12660
  %v12985 = vpack.c.b16 %v12667, %v12661
  %v12986 = vpack.c.b16 %v12668, %v12662
  %v12987 = vpack.c.b16 %v12675, %v12669
  %v12988 = vpack.c.b16 %v12676, %v12670
  %v12989 = vpack.c.b16 %v12677, %v12671
  %v12990 = vpack.c.b16 %v12678, %v12672
  %v12991 = vpack.c.b16 %v12679, %v12673
  %v12992 = vpack.c.b16 %v12680, %v12674
  %v12993 = vpack.c.b16 %v12687, %v12681
  %v12994 = vpack.c.b16 %v12688, %v12682
  %v12995 = vpack.c.b16 %v12689, %v12683
  %v12996 = vpack.c.b16 %v12690, %v12684
  %v12997 = vpack.c.b16 %v12691, %v12685
  %v12998 = vpack.c.b16 %v12692, %v12686
  %v12999 = vpack.c.b16 %v12699, %v12693
  %v13000 = vpack.c.b16 %v12700, %v12694
  %v13001 = vpack.c.b16 %v12701, %v12695
  %v13002 = vpack.c.b16 %v12702, %v12696
  %v13003 = vpack.c.b16 %v12703, %v12697
  %v13004 = vpack.c.b16 %v12704, %v12698
  %v13005 = vpack.c.b16 %v12711, %v12705
  %v13006 = vpack.c.b16 %v12712, %v12706
  %v13007 = vpack.c.b16 %v12713, %v12707
  %v13008 = vpack.c.b16 %v12714, %v12708
  %v13009 = vpack.c.b16 %v12715, %v12709
  %v13010 = vpack.c.b16 %v12716, %v12710
  %v13011 = vpack.c.b16 %v12723, %v12717
  %v13012 = vpack.c.b16 %v12724, %v12718
  %v13013 = vpack.c.b16 %v12725, %v12719
  %v13014 = vpack.c.b16 %v12726, %v12720
  %v13015 = vpack.c.b16 %v12727, %v12721
  %v13016 = vpack.c.b16 %v12728, %v12722
  %13305 = vmatprep.subr.bf16.mxu0 %v12772
  %13306 = vmatpush1.bf16.msra.mxu0 %v12771
  %13307 = vmatprep.subr.bf16.mxu0 %v12766
  %13308 = vmatpush1.bf16.msra.mxu0 %v12765
  %13309 = vmatprep.subr.bf16.mxu0 %v12760
  %13310 = vmatpush1.bf16.msra.mxu0 %v12759
  %13311 = vmatprep.subr.bf16.mxu0 %v12754
  %13312 = vmatpush1.bf16.msra.mxu0 %v12753
  %13313 = vmatprep.subr.bf16.mxu0 %v12748
  %13314 = vmatpush1.bf16.msra.mxu0 %v12747
  %13315 = vmatprep.subr.bf16.mxu0 %v12742
  %13316 = vmatpush1.bf16.msra.mxu0 %v12741
  %13317 = vmatprep.subr.bf16.mxu0 %v12736
  %13318 = vmatpush1.bf16.msra.mxu0 %v12735
  %13319 = vmatprep.subr.bf16.mxu0 %v12730
  %13320 = vmatpush1.bf16.msra.mxu0 %v12729
  %13321 = vmatprep.subr.bf16.mxu0 %v12820
  %13322 = vmatpush2.bf16.msra.mxu0 %v12819
  %13323 = vmatprep.subr.bf16.mxu0 %v12814
  %13324 = vmatpush2.bf16.msra.mxu0 %v12813
  %13325 = vmatprep.subr.bf16.mxu0 %v12808
  %13326 = vmatpush2.bf16.msra.mxu0 %v12807
  %13327 = vmatprep.subr.bf16.mxu0 %v12802
  %13328 = vmatpush2.bf16.msra.mxu0 %v12801
  %13329 = vmatprep.subr.bf16.mxu0 %v12796
  %13330 = vmatpush2.bf16.msra.mxu0 %v12795
  %13331 = vmatprep.subr.bf16.mxu0 %v12790
  %13332 = vmatpush2.bf16.msra.mxu0 %v12789
  %13333 = vmatprep.subr.bf16.mxu0 %v12784
  %13334 = vmatpush2.bf16.msra.mxu0 %v12783
  %13335 = vmatprep.subr.bf16.mxu0 %v12778
  %13336 = vmatpush2.bf16.msra.mxu0 %v12777
  %13337 = vmatprep.mubr.bf16.mxu0 %v2442
  %13338 = vmatmul.mubr.bf16.gmra.mxu0 %v2441
  %v13339 = vpop.f32.mrf.mxu0
  %v13340 = vadd.f32 %v11599, %v13339
  %v13341 = vpop.f32.mrf.mxu0
  %v13342 = vadd.f32 %v11601, %v13341
  %v13343 = vpop.f32.mrf.mxu0
  %v13344 = vadd.f32 %v11603, %v13343
  %v13345 = vpop.f32.mrf.mxu0
  %v13346 = vadd.f32 %v11605, %v13345
  %13347 = vdwg.mxu0
  %13348 = vmatprep.subr.bf16.mxu0 %v12868
  %13349 = vmatpush1.bf16.msra.mxu0 %v12867
  %13350 = vmatprep.subr.bf16.mxu0 %v12862
  %13351 = vmatpush1.bf16.msra.mxu0 %v12861
  %13352 = vmatprep.subr.bf16.mxu0 %v12856
  %13353 = vmatpush1.bf16.msra.mxu0 %v12855
  %13354 = vmatprep.subr.bf16.mxu0 %v12850
  %13355 = vmatpush1.bf16.msra.mxu0 %v12849
  %13356 = vmatprep.subr.bf16.mxu0 %v12844
  %13357 = vmatpush1.bf16.msra.mxu0 %v12843
  %13358 = vmatprep.subr.bf16.mxu0 %v12838
  %13359 = vmatpush1.bf16.msra.mxu0 %v12837
  %13360 = vmatprep.subr.bf16.mxu0 %v12832
  %13361 = vmatpush1.bf16.msra.mxu0 %v12831
  %13362 = vmatprep.subr.bf16.mxu0 %v12826
  %13363 = vmatpush1.bf16.msra.mxu0 %v12825
  %13364 = vmatprep.subr.bf16.mxu0 %v12916
  %13365 = vmatpush2.bf16.msra.mxu0 %v12915
  %13366 = vmatprep.subr.bf16.mxu0 %v12910
  %13367 = vmatpush2.bf16.msra.mxu0 %v12909
  %13368 = vmatprep.subr.bf16.mxu0 %v12904
  %13369 = vmatpush2.bf16.msra.mxu0 %v12903
  %13370 = vmatprep.subr.bf16.mxu0 %v12898
  %13371 = vmatpush2.bf16.msra.mxu0 %v12897
  %13372 = vmatprep.subr.bf16.mxu0 %v12892
  %13373 = vmatpush2.bf16.msra.mxu0 %v12891
  %13374 = vmatprep.subr.bf16.mxu0 %v12886
  %13375 = vmatpush2.bf16.msra.mxu0 %v12885
  %13376 = vmatprep.subr.bf16.mxu0 %v12880
  %13377 = vmatpush2.bf16.msra.mxu0 %v12879
  %13378 = vmatprep.subr.bf16.mxu0 %v12874
  %13379 = vmatpush2.bf16.msra.mxu0 %v12873
  %13380 = vmatprep.mubr.bf16.mxu0 %v2444
  %13381 = vmatmul.mubr.bf16.gmra.mxu0 %v2443
  %v13382 = vpop.f32.mrf.mxu0
  %v13383 = vadd.f32 %v13340, %v13382
  %v13384 = vpop.f32.mrf.mxu0
  %v13385 = vadd.f32 %v13342, %v13384
  %v13386 = vpop.f32.mrf.mxu0
  %v13387 = vadd.f32 %v13344, %v13386
  %v13388 = vpop.f32.mrf.mxu0
  %v13389 = vadd.f32 %v13346, %v13388
  %13390 = vdwg.mxu0
  %13391 = vmatprep.subr.bf16.mxu0 %v12964
  %13392 = vmatpush1.bf16.msra.mxu0 %v12963
  %13393 = vmatprep.subr.bf16.mxu0 %v12958
  %13394 = vmatpush1.bf16.msra.mxu0 %v12957
  %13395 = vmatprep.subr.bf16.mxu0 %v12952
  %13396 = vmatpush1.bf16.msra.mxu0 %v12951
  %13397 = vmatprep.subr.bf16.mxu0 %v12946
  %13398 = vmatpush1.bf16.msra.mxu0 %v12945
  %13399 = vmatprep.subr.bf16.mxu0 %v12940
  %13400 = vmatpush1.bf16.msra.mxu0 %v12939
  %13401 = vmatprep.subr.bf16.mxu0 %v12934
  %13402 = vmatpush1.bf16.msra.mxu0 %v12933
  %13403 = vmatprep.subr.bf16.mxu0 %v12928
  %13404 = vmatpush1.bf16.msra.mxu0 %v12927
  %13405 = vmatprep.subr.bf16.mxu0 %v12922
  %13406 = vmatpush1.bf16.msra.mxu0 %v12921
  %13407 = vmatprep.subr.bf16.mxu0 %v13012
  %13408 = vmatpush2.bf16.msra.mxu0 %v13011
  %13409 = vmatprep.subr.bf16.mxu0 %v13006
  %13410 = vmatpush2.bf16.msra.mxu0 %v13005
  %13411 = vmatprep.subr.bf16.mxu0 %v13000
  %13412 = vmatpush2.bf16.msra.mxu0 %v12999
  %13413 = vmatprep.subr.bf16.mxu0 %v12994
  %13414 = vmatpush2.bf16.msra.mxu0 %v12993
  %13415 = vmatprep.subr.bf16.mxu0 %v12988
  %13416 = vmatpush2.bf16.msra.mxu0 %v12987
  %13417 = vmatprep.subr.bf16.mxu0 %v12982
  %13418 = vmatpush2.bf16.msra.mxu0 %v12981
  %13419 = vmatprep.subr.bf16.mxu0 %v12976
  %13420 = vmatpush2.bf16.msra.mxu0 %v12975
  %13421 = vmatprep.subr.bf16.mxu0 %v12970
  %13422 = vmatpush2.bf16.msra.mxu0 %v12969
  %13423 = vmatprep.mubr.bf16.mxu0 %v2446
  %13424 = vmatmul.mubr.bf16.gmra.mxu0 %v2445
  %v13425 = vpop.f32.mrf.mxu0
  %v13426 = vadd.f32 %v13383, %v13425
  %v13427 = vpop.f32.mrf.mxu0
  %v13428 = vadd.f32 %v13385, %v13427
  %v13429 = vpop.f32.mrf.mxu0
  %v13430 = vadd.f32 %v13387, %v13429
  %v13431 = vpop.f32.mrf.mxu0
  %v13432 = vadd.f32 %v13389, %v13431
  %13433 = vdwg.mxu0
  %13434 = vmatprep.subr.bf16.mxu0 %v12774
  %13435 = vmatpush1.bf16.msra.mxu0 %v12773
  %13436 = vmatprep.subr.bf16.mxu0 %v12768
  %13437 = vmatpush1.bf16.msra.mxu0 %v12767
  %13438 = vmatprep.subr.bf16.mxu0 %v12762
  %13439 = vmatpush1.bf16.msra.mxu0 %v12761
  %13440 = vmatprep.subr.bf16.mxu0 %v12756
  %13441 = vmatpush1.bf16.msra.mxu0 %v12755
  %13442 = vmatprep.subr.bf16.mxu0 %v12750
  %13443 = vmatpush1.bf16.msra.mxu0 %v12749
  %13444 = vmatprep.subr.bf16.mxu0 %v12744
  %13445 = vmatpush1.bf16.msra.mxu0 %v12743
  %13446 = vmatprep.subr.bf16.mxu0 %v12738
  %13447 = vmatpush1.bf16.msra.mxu0 %v12737
  %13448 = vmatprep.subr.bf16.mxu0 %v12732
  %13449 = vmatpush1.bf16.msra.mxu0 %v12731
  %13450 = vmatprep.subr.bf16.mxu0 %v12822
  %13451 = vmatpush2.bf16.msra.mxu0 %v12821
  %13452 = vmatprep.subr.bf16.mxu0 %v12816
  %13453 = vmatpush2.bf16.msra.mxu0 %v12815
  %13454 = vmatprep.subr.bf16.mxu0 %v12810
  %13455 = vmatpush2.bf16.msra.mxu0 %v12809
  %13456 = vmatprep.subr.bf16.mxu0 %v12804
  %13457 = vmatpush2.bf16.msra.mxu0 %v12803
  %13458 = vmatprep.subr.bf16.mxu0 %v12798
  %13459 = vmatpush2.bf16.msra.mxu0 %v12797
  %13460 = vmatprep.subr.bf16.mxu0 %v12792
  %13461 = vmatpush2.bf16.msra.mxu0 %v12791
  %13462 = vmatprep.subr.bf16.mxu0 %v12786
  %13463 = vmatpush2.bf16.msra.mxu0 %v12785
  %13464 = vmatprep.subr.bf16.mxu0 %v12780
  %13465 = vmatpush2.bf16.msra.mxu0 %v12779
  %13466 = vmatprep.mubr.bf16.mxu0 %v2442
  %13467 = vmatmul.mubr.bf16.gmra.mxu0 %v2441
  %v13468 = vpop.f32.mrf.mxu0
  %v13469 = vadd.f32 %v11728, %v13468
  %v13470 = vpop.f32.mrf.mxu0
  %v13471 = vadd.f32 %v11730, %v13470
  %v13472 = vpop.f32.mrf.mxu0
  %v13473 = vadd.f32 %v11732, %v13472
  %v13474 = vpop.f32.mrf.mxu0
  %v13475 = vadd.f32 %v11734, %v13474
  %13476 = vdwg.mxu0
  %13477 = vmatprep.subr.bf16.mxu0 %v12870
  %13478 = vmatpush1.bf16.msra.mxu0 %v12869
  %13479 = vmatprep.subr.bf16.mxu0 %v12864
  %13480 = vmatpush1.bf16.msra.mxu0 %v12863
  %13481 = vmatprep.subr.bf16.mxu0 %v12858
  %13482 = vmatpush1.bf16.msra.mxu0 %v12857
  %13483 = vmatprep.subr.bf16.mxu0 %v12852
  %13484 = vmatpush1.bf16.msra.mxu0 %v12851
  %13485 = vmatprep.subr.bf16.mxu0 %v12846
  %13486 = vmatpush1.bf16.msra.mxu0 %v12845
  %13487 = vmatprep.subr.bf16.mxu0 %v12840
  %13488 = vmatpush1.bf16.msra.mxu0 %v12839
  %13489 = vmatprep.subr.bf16.mxu0 %v12834
  %13490 = vmatpush1.bf16.msra.mxu0 %v12833
  %13491 = vmatprep.subr.bf16.mxu0 %v12828
  %13492 = vmatpush1.bf16.msra.mxu0 %v12827
  %13493 = vmatprep.subr.bf16.mxu0 %v12918
  %13494 = vmatpush2.bf16.msra.mxu0 %v12917
  %13495 = vmatprep.subr.bf16.mxu0 %v12912
  %13496 = vmatpush2.bf16.msra.mxu0 %v12911
  %13497 = vmatprep.subr.bf16.mxu0 %v12906
  %13498 = vmatpush2.bf16.msra.mxu0 %v12905
  %13499 = vmatprep.subr.bf16.mxu0 %v12900
  %13500 = vmatpush2.bf16.msra.mxu0 %v12899
  %13501 = vmatprep.subr.bf16.mxu0 %v12894
  %13502 = vmatpush2.bf16.msra.mxu0 %v12893
  %13503 = vmatprep.subr.bf16.mxu0 %v12888
  %13504 = vmatpush2.bf16.msra.mxu0 %v12887
  %13505 = vmatprep.subr.bf16.mxu0 %v12882
  %13506 = vmatpush2.bf16.msra.mxu0 %v12881
  %13507 = vmatprep.subr.bf16.mxu0 %v12876
  %13508 = vmatpush2.bf16.msra.mxu0 %v12875
  %13509 = vmatprep.mubr.bf16.mxu0 %v2444
  %13510 = vmatmul.mubr.bf16.gmra.mxu0 %v2443
  %v13511 = vpop.f32.mrf.mxu0
  %v13512 = vadd.f32 %v13469, %v13511
  %v13513 = vpop.f32.mrf.mxu0
  %v13514 = vadd.f32 %v13471, %v13513
  %v13515 = vpop.f32.mrf.mxu0
  %v13516 = vadd.f32 %v13473, %v13515
  %v13517 = vpop.f32.mrf.mxu0
  %v13518 = vadd.f32 %v13475, %v13517
  %13519 = vdwg.mxu0
  %13520 = vmatprep.subr.bf16.mxu0 %v12966
  %13521 = vmatpush1.bf16.msra.mxu0 %v12965
  %13522 = vmatprep.subr.bf16.mxu0 %v12960
  %13523 = vmatpush1.bf16.msra.mxu0 %v12959
  %13524 = vmatprep.subr.bf16.mxu0 %v12954
  %13525 = vmatpush1.bf16.msra.mxu0 %v12953
  %13526 = vmatprep.subr.bf16.mxu0 %v12948
  %13527 = vmatpush1.bf16.msra.mxu0 %v12947
  %13528 = vmatprep.subr.bf16.mxu0 %v12942
  %13529 = vmatpush1.bf16.msra.mxu0 %v12941
  %13530 = vmatprep.subr.bf16.mxu0 %v12936
  %13531 = vmatpush1.bf16.msra.mxu0 %v12935
  %13532 = vmatprep.subr.bf16.mxu0 %v12930
  %13533 = vmatpush1.bf16.msra.mxu0 %v12929
  %13534 = vmatprep.subr.bf16.mxu0 %v12924
  %13535 = vmatpush1.bf16.msra.mxu0 %v12923
  %13536 = vmatprep.subr.bf16.mxu0 %v13014
  %13537 = vmatpush2.bf16.msra.mxu0 %v13013
  %13538 = vmatprep.subr.bf16.mxu0 %v13008
  %13539 = vmatpush2.bf16.msra.mxu0 %v13007
  %13540 = vmatprep.subr.bf16.mxu0 %v13002
  %13541 = vmatpush2.bf16.msra.mxu0 %v13001
  %13542 = vmatprep.subr.bf16.mxu0 %v12996
  %13543 = vmatpush2.bf16.msra.mxu0 %v12995
  %13544 = vmatprep.subr.bf16.mxu0 %v12990
  %13545 = vmatpush2.bf16.msra.mxu0 %v12989
  %13546 = vmatprep.subr.bf16.mxu0 %v12984
  %13547 = vmatpush2.bf16.msra.mxu0 %v12983
  %13548 = vmatprep.subr.bf16.mxu0 %v12978
  %13549 = vmatpush2.bf16.msra.mxu0 %v12977
  %13550 = vmatprep.subr.bf16.mxu0 %v12972
  %13551 = vmatpush2.bf16.msra.mxu0 %v12971
  %13552 = vmatprep.mubr.bf16.mxu0 %v2446
  %13553 = vmatmul.mubr.bf16.gmra.mxu0 %v2445
  %v13554 = vpop.f32.mrf.mxu0
  %v13555 = vadd.f32 %v13512, %v13554
  %v13556 = vpop.f32.mrf.mxu0
  %v13557 = vadd.f32 %v13514, %v13556
  %v13558 = vpop.f32.mrf.mxu0
  %v13559 = vadd.f32 %v13516, %v13558
  %v13560 = vpop.f32.mrf.mxu0
  %v13561 = vadd.f32 %v13518, %v13560
  %13562 = vdwg.mxu0
  %13563 = vmatprep.subr.bf16.mxu0 %v12776
  %13564 = vmatpush1.bf16.msra.mxu0 %v12775
  %13565 = vmatprep.subr.bf16.mxu0 %v12770
  %13566 = vmatpush1.bf16.msra.mxu0 %v12769
  %13567 = vmatprep.subr.bf16.mxu0 %v12764
  %13568 = vmatpush1.bf16.msra.mxu0 %v12763
  %13569 = vmatprep.subr.bf16.mxu0 %v12758
  %13570 = vmatpush1.bf16.msra.mxu0 %v12757
  %13571 = vmatprep.subr.bf16.mxu0 %v12752
  %13572 = vmatpush1.bf16.msra.mxu0 %v12751
  %13573 = vmatprep.subr.bf16.mxu0 %v12746
  %13574 = vmatpush1.bf16.msra.mxu0 %v12745
  %13575 = vmatprep.subr.bf16.mxu0 %v12740
  %13576 = vmatpush1.bf16.msra.mxu0 %v12739
  %13577 = vmatprep.subr.bf16.mxu0 %v12734
  %13578 = vmatpush1.bf16.msra.mxu0 %v12733
  %13579 = vmatprep.subr.bf16.mxu0 %v12824
  %13580 = vmatpush2.bf16.msra.mxu0 %v12823
  %13581 = vmatprep.subr.bf16.mxu0 %v12818
  %13582 = vmatpush2.bf16.msra.mxu0 %v12817
  %13583 = vmatprep.subr.bf16.mxu0 %v12812
  %13584 = vmatpush2.bf16.msra.mxu0 %v12811
  %13585 = vmatprep.subr.bf16.mxu0 %v12806
  %13586 = vmatpush2.bf16.msra.mxu0 %v12805
  %13587 = vmatprep.subr.bf16.mxu0 %v12800
  %13588 = vmatpush2.bf16.msra.mxu0 %v12799
  %13589 = vmatprep.subr.bf16.mxu0 %v12794
  %13590 = vmatpush2.bf16.msra.mxu0 %v12793
  %13591 = vmatprep.subr.bf16.mxu0 %v12788
  %13592 = vmatpush2.bf16.msra.mxu0 %v12787
  %13593 = vmatprep.subr.bf16.mxu0 %v12782
  %13594 = vmatpush2.bf16.msra.mxu0 %v12781
  %13595 = vmatprep.mubr.bf16.mxu0 %v2442
  %13596 = vmatmul.mubr.bf16.gmra.mxu0 %v2441
  %v13597 = vpop.f32.mrf.mxu0
  %v13598 = vadd.f32 %v11857, %v13597
  %v13599 = vpop.f32.mrf.mxu0
  %v13600 = vadd.f32 %v11859, %v13599
  %v13601 = vpop.f32.mrf.mxu0
  %v13602 = vadd.f32 %v11861, %v13601
  %v13603 = vpop.f32.mrf.mxu0
  %v13604 = vadd.f32 %v11863, %v13603
  %13605 = vdwg.mxu0
  %13606 = vmatprep.subr.bf16.mxu0 %v12872
  %13607 = vmatpush1.bf16.msra.mxu0 %v12871
  %13608 = vmatprep.subr.bf16.mxu0 %v12866
  %13609 = vmatpush1.bf16.msra.mxu0 %v12865
  %13610 = vmatprep.subr.bf16.mxu0 %v12860
  %13611 = vmatpush1.bf16.msra.mxu0 %v12859
  %13612 = vmatprep.subr.bf16.mxu0 %v12854
  %13613 = vmatpush1.bf16.msra.mxu0 %v12853
  %13614 = vmatprep.subr.bf16.mxu0 %v12848
  %13615 = vmatpush1.bf16.msra.mxu0 %v12847
  %13616 = vmatprep.subr.bf16.mxu0 %v12842
  %13617 = vmatpush1.bf16.msra.mxu0 %v12841
  %13618 = vmatprep.subr.bf16.mxu0 %v12836
  %13619 = vmatpush1.bf16.msra.mxu0 %v12835
  %13620 = vmatprep.subr.bf16.mxu0 %v12830
  %13621 = vmatpush1.bf16.msra.mxu0 %v12829
  %13622 = vmatprep.subr.bf16.mxu0 %v12920
  %13623 = vmatpush2.bf16.msra.mxu0 %v12919
  %13624 = vmatprep.subr.bf16.mxu0 %v12914
  %13625 = vmatpush2.bf16.msra.mxu0 %v12913
  %13626 = vmatprep.subr.bf16.mxu0 %v12908
  %13627 = vmatpush2.bf16.msra.mxu0 %v12907
  %13628 = vmatprep.subr.bf16.mxu0 %v12902
  %13629 = vmatpush2.bf16.msra.mxu0 %v12901
  %13630 = vmatprep.subr.bf16.mxu0 %v12896
  %13631 = vmatpush2.bf16.msra.mxu0 %v12895
  %13632 = vmatprep.subr.bf16.mxu0 %v12890
  %13633 = vmatpush2.bf16.msra.mxu0 %v12889
  %13634 = vmatprep.subr.bf16.mxu0 %v12884
  %13635 = vmatpush2.bf16.msra.mxu0 %v12883
  %13636 = vmatprep.subr.bf16.mxu0 %v12878
  %13637 = vmatpush2.bf16.msra.mxu0 %v12877
  %13638 = vmatprep.mubr.bf16.mxu0 %v2444
  %13639 = vmatmul.mubr.bf16.gmra.mxu0 %v2443
  %v13640 = vpop.f32.mrf.mxu0
  %v13641 = vadd.f32 %v13598, %v13640
  %v13642 = vpop.f32.mrf.mxu0
  %v13643 = vadd.f32 %v13600, %v13642
  %v13644 = vpop.f32.mrf.mxu0
  %v13645 = vadd.f32 %v13602, %v13644
  %v13646 = vpop.f32.mrf.mxu0
  %v13647 = vadd.f32 %v13604, %v13646
  %13648 = vdwg.mxu0
  %13649 = vmatprep.subr.bf16.mxu0 %v12968
  %13650 = vmatpush1.bf16.msra.mxu0 %v12967
  %13651 = vmatprep.subr.bf16.mxu0 %v12962
  %13652 = vmatpush1.bf16.msra.mxu0 %v12961
  %13653 = vmatprep.subr.bf16.mxu0 %v12956
  %13654 = vmatpush1.bf16.msra.mxu0 %v12955
  %13655 = vmatprep.subr.bf16.mxu0 %v12950
  %13656 = vmatpush1.bf16.msra.mxu0 %v12949
  %13657 = vmatprep.subr.bf16.mxu0 %v12944
  %13658 = vmatpush1.bf16.msra.mxu0 %v12943
  %13659 = vmatprep.subr.bf16.mxu0 %v12938
  %13660 = vmatpush1.bf16.msra.mxu0 %v12937
  %13661 = vmatprep.subr.bf16.mxu0 %v12932
  %13662 = vmatpush1.bf16.msra.mxu0 %v12931
  %13663 = vmatprep.subr.bf16.mxu0 %v12926
  %13664 = vmatpush1.bf16.msra.mxu0 %v12925
  %13665 = vmatprep.subr.bf16.mxu0 %v13016
  %13666 = vmatpush2.bf16.msra.mxu0 %v13015
  %13667 = vmatprep.subr.bf16.mxu0 %v13010
  %13668 = vmatpush2.bf16.msra.mxu0 %v13009
  %13669 = vmatprep.subr.bf16.mxu0 %v13004
  %13670 = vmatpush2.bf16.msra.mxu0 %v13003
  %13671 = vmatprep.subr.bf16.mxu0 %v12998
  %13672 = vmatpush2.bf16.msra.mxu0 %v12997
  %13673 = vmatprep.subr.bf16.mxu0 %v12992
  %13674 = vmatpush2.bf16.msra.mxu0 %v12991
  %13675 = vmatprep.subr.bf16.mxu0 %v12986
  %13676 = vmatpush2.bf16.msra.mxu0 %v12985
  %13677 = vmatprep.subr.bf16.mxu0 %v12980
  %13678 = vmatpush2.bf16.msra.mxu0 %v12979
  %13679 = vmatprep.subr.bf16.mxu0 %v12974
  %13680 = vmatpush2.bf16.msra.mxu0 %v12973
  %13681 = vmatprep.mubr.bf16.mxu0 %v2446
  %13682 = vmatmul.mubr.bf16.gmra.mxu0 %v2445
  %v13683 = vpop.f32.mrf.mxu0
  %v13684 = vadd.f32 %v13641, %v13683
  %v13685 = vpop.f32.mrf.mxu0
  %v13686 = vadd.f32 %v13643, %v13685
  %v13687 = vpop.f32.mrf.mxu0
  %v13688 = vadd.f32 %v13645, %v13687
  %v13689 = vpop.f32.mrf.mxu0
  %v13690 = vadd.f32 %v13647, %v13689
  %13691 = vdwg.mxu0
  %v13692 = vld [vmem:[%s8] sm:$0x3f]
  %v13694 = vlaneseq
  %v13695 = vshrl.u32 %v13694, 7
  %v13696 = vsub.s32 0, %v13695
  %v13697 = vrot.slane %v13692, %v13696
  %v13698 = vlaneseq
  %v13699 = vshrl.u32 %v13698, 7
  %v13700 = vsub.s32 1, %v13699
  %v13701 = vrot.slane %v13692, %v13700
  %v13702 = vlaneseq
  %v13703 = vshrl.u32 %v13702, 7
  %v13704 = vsub.s32 2, %v13703
  %v13705 = vrot.slane %v13692, %v13704
  %v13706 = vlaneseq
  %v13707 = vshrl.u32 %v13706, 7
  %v13708 = vsub.s32 3, %v13707
  %v13709 = vrot.slane %v13692, %v13708
  %v13710 = vlaneseq
  %v13711 = vshrl.u32 %v13710, 7
  %v13712 = vsub.s32 4, %v13711
  %v13713 = vrot.slane %v13692, %v13712
  %v13714 = vlaneseq
  %v13715 = vshrl.u32 %v13714, 7
  %v13716 = vsub.s32 5, %v13715
  %v13717 = vrot.slane %v13692, %v13716
  %v13724 = vadd.f32 %v13426, %v13697
  %v13725 = vadd.f32 %v13428, %v13701
  %v13726 = vadd.f32 %v13555, %v13705
  %v13727 = vadd.f32 %v13557, %v13709
  %v13728 = vadd.f32 %v13684, %v13713
  %v13729 = vadd.f32 %v13686, %v13717
  %v13730 = vadd.f32 %v13430, %v13697
  %v13731 = vadd.f32 %v13432, %v13701
  %v13732 = vadd.f32 %v13559, %v13705
  %v13733 = vadd.f32 %v13561, %v13709
  %v13734 = vadd.f32 %v13688, %v13713
  %v13735 = vadd.f32 %v13690, %v13717
  %v13736 = vand.u32 2147483647, %v13724
  %v13737 = vand.u32 2147483647, %v13725
  %v13738 = vand.u32 2147483647, %v13726
  %v13739 = vand.u32 2147483647, %v13727
  %v13740 = vand.u32 2147483647, %v13728
  %v13741 = vand.u32 2147483647, %v13729
  %v13742 = vand.u32 2147483647, %v13730
  %v13743 = vand.u32 2147483647, %v13731
  %v13744 = vand.u32 2147483647, %v13732
  %v13745 = vand.u32 2147483647, %v13733
  %v13746 = vand.u32 2147483647, %v13734
  %v13747 = vand.u32 2147483647, %v13735
  %v13748 = vadd.f32 %v13736, %v13742
  %v13749 = vrot.slane %v13748, 4
  %v13750 = vadd.f32 %v13748, %v13749
  %v13751 = vrot.slane %v13750, 2
  %v13752 = vadd.f32 %v13750, %v13751
  %v13753 = vrot.slane %v13752, 1
  %v13754 = vadd.f32 %v13752, %v13753
  %v13755 = vadd.f32 %v13737, %v13743
  %v13756 = vrot.slane %v13755, 4
  %v13757 = vadd.f32 %v13755, %v13756
  %v13758 = vrot.slane %v13757, 2
  %v13759 = vadd.f32 %v13757, %v13758
  %v13760 = vrot.slane %v13759, 1
  %v13761 = vadd.f32 %v13759, %v13760
  %v13762 = vadd.f32 %v13738, %v13744
  %v13763 = vrot.slane %v13762, 4
  %v13764 = vadd.f32 %v13762, %v13763
  %v13765 = vrot.slane %v13764, 2
  %v13766 = vadd.f32 %v13764, %v13765
  %v13767 = vrot.slane %v13766, 1
  %v13768 = vadd.f32 %v13766, %v13767
  %v13769 = vadd.f32 %v13739, %v13745
  %v13770 = vrot.slane %v13769, 4
  %v13771 = vadd.f32 %v13769, %v13770
  %v13772 = vrot.slane %v13771, 2
  %v13773 = vadd.f32 %v13771, %v13772
  %v13774 = vrot.slane %v13773, 1
  %v13775 = vadd.f32 %v13773, %v13774
  %v13776 = vadd.f32 %v13740, %v13746
  %v13777 = vrot.slane %v13776, 4
  %v13778 = vadd.f32 %v13776, %v13777
  %v13779 = vrot.slane %v13778, 2
  %v13780 = vadd.f32 %v13778, %v13779
  %v13781 = vrot.slane %v13780, 1
  %v13782 = vadd.f32 %v13780, %v13781
  %v13783 = vadd.f32 %v13741, %v13747
  %v13784 = vrot.slane %v13783, 4
  %v13785 = vadd.f32 %v13783, %v13784
  %v13786 = vrot.slane %v13785, 2
  %v13787 = vadd.f32 %v13785, %v13786
  %v13788 = vrot.slane %v13787, 1
  %v13789 = vadd.f32 %v13787, %v13788
  %v13790 = vmax.f32 %v13754, 1e-12
  %v13791 = vmax.f32 %v13761, 1e-12
  %v13792 = vmax.f32 %v13768, 1e-12
  %v13793 = vmax.f32 %v13775, 1e-12
  %v13794 = vmax.f32 %v13782, 1e-12
  %v13795 = vmax.f32 %v13789, 1e-12
  %v13796 = vrcp.pop %v13790
  %v13797 = vmul.f32 %v13724, %v13796
  %v13798 = vrcp.pop %v13791
  %v13799 = vmul.f32 %v13725, %v13798
  %v13800 = vrcp.pop %v13792
  %v13801 = vmul.f32 %v13726, %v13800
  %v13802 = vrcp.pop %v13793
  %v13803 = vmul.f32 %v13727, %v13802
  %v13804 = vrcp.pop %v13794
  %v13805 = vmul.f32 %v13728, %v13804
  %v13806 = vrcp.pop %v13795
  %v13807 = vmul.f32 %v13729, %v13806
  %v13808 = vmul.f32 %v13730, %v13796
  %v13809 = vmul.f32 %v13731, %v13798
  %v13810 = vmul.f32 %v13732, %v13800
  %v13811 = vmul.f32 %v13733, %v13802
  %v13812 = vmul.f32 %v13734, %v13804
  %v13813 = vmul.f32 %v13735, %v13806
  %v13814 = vpack.c.bf16 %v13808, %v13797
  %v13815 = vpack.c.bf16 %v13809, %v13799
  %v13816 = vpack.c.bf16 %v13810, %v13801
  %v13817 = vpack.c.bf16 %v13811, %v13803
  %v13818 = vpack.c.bf16 %v13812, %v13805
  %v13819 = vpack.c.bf16 %v13813, %v13807
  %v13826 = vunpack.c.l.b16 %v13814
  %v13827 = vunpack.c.l.b16 %v13815
  %v13828 = vunpack.c.l.b16 %v13816
  %v13829 = vunpack.c.l.b16 %v13817
  %v13830 = vunpack.c.l.b16 %v13818
  %v13831 = vunpack.c.l.b16 %v13819
  %v13832 = vunpack.c.h.b16 %v13814
  %v13833 = vunpack.c.h.b16 %v13815
  %v13834 = vunpack.c.h.b16 %v13816
  %v13835 = vunpack.c.h.b16 %v13817
  %v13836 = vunpack.c.h.b16 %v13818
  %v13837 = vunpack.c.h.b16 %v13819
  %v13838 = vpack.c.b16 %v13827, %v13826
  %v13839 = vpack.c.b16 %v13829, %v13828
  %v13840 = vpack.c.b16 %v13831, %v13830
  %v13841 = vpack.c.b16 %v13833, %v13832
  %v13842 = vpack.c.b16 %v13835, %v13834
  %v13843 = vpack.c.b16 %v13837, %v13836
  %13850 = vst [vmem:[%s9] sm:$0xff] %v13838
  %13851 = vst [vmem:[%s9 + $0x8] sm:$0xff] %v13839
  %13852 = vst [vmem:[%s9 + $0x10] sm:$0xff] %v13840
  %13853 = vst [vmem:[%s9 + $0x18] sm:$0xff] %v13841
  %13854 = vst [vmem:[%s9 + $0x20] sm:$0xff] %v13842
  %13855 = vst [vmem:[%s9 + $0x28] sm:$0xff] %v13843
  // Predicated region
  $region38: #{classify_forward.2} parent=0 // pred_check
    _
  $region39: #{classify_forward.2} parent=0 // pred_check_branch
    %13857 = sbr.rel (0) target = $region41
  $region40: #{classify_forward.2} parent=0 // pred_region
    _
  $region41: #{classify_forward.2} parent=0 // pred_fallthru
    _
  // Predicated region
  $region42: #{classify_forward.2} parent=0 // pred_check
    _
  $region43: #{classify_forward.2} parent=0 // pred_check_branch
    %13859 = sbr.rel (0) target = $region45
  $region44: #{classify_forward.2} parent=0 // pred_region
    _
  $region45: #{classify_forward.2} parent=0 // pred_fallthru
    _

</llo_original>
